<compile_context>
chip_gen: v7x
topology: tpu7x:2x2x1
jax: 0.10.0
libtpu: 0.0.40
codegen_flags: <defaults>
</compile_context>

<pallas_src>
import jax
import jax.numpy as jnp
from jax.experimental import pallas as pl
from jax.experimental.pallas import tpu as pltpu

EPS = 1e-5
LANES = 128
# bf16 operands double MXU throughput on v6e/v7x (f32 accumulation either way).
# Set to jnp.float32 for bit-closer parity with a PyTorch f32 reference.
MATMUL_DTYPE = jnp.bfloat16


def _round_up(x, m):
    return (x + m - 1) // m * m


def _vmem_limit_bytes():
    # ~3/4 of physical VMEM: ~96 MiB on v5e/v6e (128 MiB), ~48 MiB on v7x (64 MiB).
    try:
        cap = int(pltpu.get_tpu_info().vmem_capacity_bytes)
    except Exception:
        cap = 64 * 1024 * 1024
    return max(cap * 3 // 4, 32 * 1024 * 1024)


def _pick_tile_h(H, W, cin, cout, vmem_limit):
    """Largest row-tile height (divisor of H) whose working set fits the budget."""
    # Estimate with lane-padded channels -- that is what VMEM physically holds.
    cin_l = _round_up(cin, LANES)
    cout_l = _round_up(cout, LANES)
    budget = vmem_limit // 3          # headroom for weights / compiler temporaries
    best = 1
    for th in range(1, H + 1):
        if H % th:
            continue
        need = (2 * (th + 2) * W * cin_l * 4        # double-buffered input rows
                + 2 * th * W * cout_l * 4           # double-buffered output tile
                + (th + 2) * (W + 2) * cin_l * 4    # halo scratch (f32)
                + th * W * (cin_l * 2 + cout_l * 4))  # tap / accumulator temps
        if need <= budget:
            best = th
    return best


# ---------------------------------------------------------------------------
# Kernel: fused BN (pre-folded scale/shift) -> ReLU -> 3x3 conv on one row tile
# ---------------------------------------------------------------------------
def _make_bn_relu_conv_kernel(emit_stats):
    def kernel(top_ref, mid_ref, bot_ref, scale_ref, shift_ref, w_ref, b_ref,
               out_ref, *rest):
        if emit_stats:
            stats_ref, xpad = rest
        else:
            (xpad,) = rest

        _, TH, W, Cin = mid_ref.shape
        Cout = out_ref.shape[-1]
        h = pl.program_id(1)
        gh = pl.num_programs(1)

        scale = scale_ref[...]                         # (1, 1, Cin) f32
        shift = shift_ref[...]

        def bn_relu(t):                                # (*, W, Cin) -> f32
            return jnp.maximum(t.astype(jnp.float32) * scale + shift, 0.0)

        # Zero-padded (TH+2, W+2, Cin) halo tile in VMEM scratch (real Cin; the
        # channel padding to 128 lanes only ever exists inside VMEM layouts).
        # The two width-1 zero columns are rewritten every step: scratch is
        # per-core and the grid may be split across TensorCores, so a
        # "first grid step only" guard would not be megacore-safe.
        zcol = jnp.zeros((TH + 2, 1, Cin), jnp.float32)
        xpad[:, 0:1, :] = zcol                         # left  W-halo column
        xpad[:, W + 1:W + 2, :] = zcol                 # right W-halo column
        xpad[1:TH + 1, 1:W + 1, :] = bn_relu(mid_ref[0])

        top_mask = (h != 0).astype(jnp.float32)        # zero halo at image border
        bot_mask = (h != gh - 1).astype(jnp.float32)
        xpad[0:1, 1:W + 1, :] = bn_relu(top_ref[0]) * top_mask
        xpad[TH + 1:TH + 2, 1:W + 1, :] = bn_relu(bot_ref[0]) * bot_mask

        # 3x3 conv as 9 accumulating MXU dots with the *real* channel count as K
        # (no 9*128 im2col padding, no large concatenated patches buffer).
        acc = jnp.zeros((TH * W, Cout), jnp.float32)
        for idx in range(9):
            ky, kx = idx // 3, idx % 3
            tap = xpad[ky:ky + TH, kx:kx + W, :].reshape(TH * W, Cin)
            acc = acc + jnp.dot(tap.astype(w_ref.dtype), w_ref[idx],
                                preferred_element_type=jnp.float32)
        out = acc + b_ref[...]                          # bias (1, Cout) broadcast
        out_ref[0] = out.reshape(TH, W, Cout).astype(out_ref.dtype)

        if emit_stats:
            # Per-tile f32 partial sums (pre-cast) for the next BN's global stats.
            stats_ref[0, 0, 0:1, :] = jnp.sum(out, axis=0, keepdims=True)
            stats_ref[0, 0, 1:2, :] = jnp.sum(out * out, axis=0, keepdims=True)

    return kernel


def _bn_relu_conv_pass(x, scale, shift, w9, b_row, tile_h, emit_stats,
                       out_dtype, vmem_limit):
    N, H, W, Cin = x.shape
    Cout = w9.shape[-1]
    GH = H // tile_h

    def top_map(n, h):                  # row just above the tile (clamped)
        return (n, jnp.maximum(h * tile_h - 1, 0), 0, 0)

    def mid_map(n, h):
        return (n, h, 0, 0)

    def bot_map(n, h):                  # row just below the tile (clamped)
        return (n, jnp.minimum((h + 1) * tile_h, H - 1), 0, 0)

    in_specs = [
        pl.BlockSpec((1, 1, W, Cin), top_map),                 # top halo row
        pl.BlockSpec((1, tile_h, W, Cin), mid_map),            # tile body
        pl.BlockSpec((1, 1, W, Cin), bot_map),                 # bottom halo row
        pl.BlockSpec((1, 1, Cin), lambda n, h: (0, 0, 0)),     # folded BN scale
        pl.BlockSpec((1, 1, Cin), lambda n, h: (0, 0, 0)),     # folded BN shift
        pl.BlockSpec((9, Cin, Cout), lambda n, h: (0, 0, 0)),  # per-tap conv weights
        pl.BlockSpec((1, Cout), lambda n, h: (0, 0)),          # conv bias
    ]
    out_block = pl.BlockSpec((1, tile_h, W, Cout), mid_map)
    if emit_stats:
        out_specs = (out_block,
                     pl.BlockSpec((1, 1, 2, Cout), lambda n, h: (n, h, 0, 0)))
        out_shape = (jax.ShapeDtypeStruct((N, H, W, Cout), out_dtype),
                     jax.ShapeDtypeStruct((N, GH, 2, Cout), jnp.float32))
    else:
        out_specs = out_block
        out_shape = jax.ShapeDtypeStruct((N, H, W, Cout), out_dtype)

    return pl.pallas_call(
        _make_bn_relu_conv_kernel(emit_stats),
        out_shape=out_shape,
        grid_spec=pltpu.PrefetchScalarGridSpec(
            num_scalar_prefetch=0,
            grid=(N, GH),
            in_specs=in_specs,
            out_specs=out_specs,
            scratch_shapes=[pltpu.VMEM((tile_h + 2, W + 2, Cin), jnp.float32)],
        ),
        compiler_params=pltpu.CompilerParams(
            dimension_semantics=("parallel", "parallel"),
            vmem_limit_bytes=vmem_limit,
        ),
    )(x, x, x, scale, shift, w9, b_row)


# ---------------------------------------------------------------------------
# Wrapper: parameter packing, two-pass BatchNorm statistics, layout glue
# ---------------------------------------------------------------------------
def _pack_conv(w, b):
    # w: (3, 3, Cin, Cout) -> (9, Cin, Cout) per-tap stack, real channel counts.
    cin, cout = w.shape[2], w.shape[3]
    return (w.reshape(9, cin, cout).astype(MATMUL_DTYPE),
            b.reshape(1, cout).astype(jnp.float32))


def _fold_bn(gamma, beta, mean, var):
    scale = gamma * jax.lax.rsqrt(var + EPS)
    shift = beta - mean * scale
    c = scale.shape[-1]
    return (scale.reshape(1, 1, c).astype(jnp.float32),
            shift.reshape(1, 1, c).astype(jnp.float32))


def pre_activate_double_conv(x_nchw, params):
    w1, b1 = params['w1'], params['b1']
    w2, b2 = params['w2'], params['b2']
    g1, be1 = params['g1'], params['be1']
    g2, be2 = params['g2'], params['be2']

    N, Cin, H, W = x_nchw.shape
    Cout = w1.shape[-1]

    vmem_limit = _vmem_limit_bytes()
    tile_h = _pick_tile_h(H, W, max(Cin, Cout), Cout, vmem_limit)

    # NHWC with the *real* channel count in HBM (no 128-lane padding of HBM data).
    x = jnp.transpose(x_nchw, (0, 2, 3, 1)).astype(jnp.float32)

    # ---- BN1 global statistics (training mode, biased batch variance) ----
    mean1 = jnp.mean(x, axis=(0, 1, 2))
    var1 = jnp.var(x, axis=(0, 1, 2))             # stable E[(x - mean)^2] form
    scale1, shift1 = _fold_bn(g1, be1, mean1, var1)

    w1_9, b1_row = _pack_conv(w1, b1)
    w2_9, b2_row = _pack_conv(w2, b2)

    # ---- pass 1: BN1 + ReLU + conv1; h1 stored bf16; per-tile sum/sumsq emitted ----
    h1, stats1 = _bn_relu_conv_pass(x, scale1, shift1, w1_9, b1_row, tile_h,
                                    True, MATMUL_DTYPE, vmem_limit)

    # ---- BN2 global statistics from the per-tile f32 partials ----
    cnt = float(N * H * W)
    s = jnp.sum(stats1[:, :, 0, :], axis=(0, 1))
    ss = jnp.sum(stats1[:, :, 1, :], axis=(0, 1))
    mean2 = s / cnt
    var2 = jnp.maximum(ss / cnt - mean2 * mean2, 0.0)
    scale2, shift2 = _fold_bn(g2, be2, mean2, var2)

    # ---- pass 2: BN2 + ReLU + conv2 ----
    out = _bn_relu_conv_pass(h1, scale2, shift2, w2_9, b2_row, tile_h,
                             False, jnp.float32, vmem_limit)

    # Back to PyTorch NCHW.
    return jnp.transpose(out, (0, 3, 1, 2))


def init_params(key, in_channels, out_channels):
    k1, k2, k3, k4 = jax.random.split(key, 4)
    return {
        'w1': jax.random.normal(k1, (3, 3, in_channels, out_channels), jnp.float32) * 0.1,
        'b1': jax.random.normal(k2, (out_channels,), jnp.float32) * 0.1,
        'w2': jax.random.normal(k3, (3, 3, out_channels, out_channels), jnp.float32) * 0.1,
        'b2': jax.random.normal(k4, (out_channels,), jnp.float32) * 0.1,
        # PyTorch BatchNorm default init: weight = 1, bias = 0.
        'g1': jnp.ones((in_channels,), jnp.float32),
        'be1': jnp.zeros((in_channels,), jnp.float32),
        'g2': jnp.ones((out_channels,), jnp.float32),
        'be2': jnp.zeros((out_channels,), jnp.float32),
    }


if __name__ == "__main__":
    key = jax.random.PRNGKey(0)
    kx, kp = jax.random.split(key)

    # x: (N, C, H, W) = (2, 4, 16, 16); out_channels = 8.
    x = jax.random.normal(kx, (2, 4, 16, 16), jnp.float32)
    params = init_params(kp, in_channels=4, out_channels=8)

    out = jax.jit(pre_activate_double_conv)(x, params)
    out = jax.block_until_ready(out)

    assert out.shape == (2, 8, 16, 16), out.shape
    assert bool(jnp.all(jnp.isfinite(out)))
    print("KERNEL_OK")
</pallas_src>

<mosaic_0001>
module attributes {stable_mosaic.version = 11 : i64} {
  func.func @kernel(%arg0: i32, %arg1: i32, %arg2: memref<1x1x16x4xf32, #tpu.memory_space<vmem>>, %arg3: memref<1x16x16x4xf32, #tpu.memory_space<vmem>>, %arg4: memref<1x1x16x4xf32, #tpu.memory_space<vmem>>, %arg5: memref<1x1x4xf32, #tpu.memory_space<vmem>>, %arg6: memref<1x1x4xf32, #tpu.memory_space<vmem>>, %arg7: memref<9x4x8xbf16, #tpu.memory_space<vmem>>, %arg8: memref<1x8xf32, #tpu.memory_space<vmem>>, %arg9: memref<1x16x16x8xbf16, #tpu.memory_space<vmem>>, %arg10: memref<1x1x2x8xf32, #tpu.memory_space<vmem>>, %arg11: memref<18x18x4xf32, #tpu.memory_space<vmem>>) attributes {dimension_semantics = [#tpu.dimension_semantics<parallel>, #tpu.dimension_semantics<parallel>], iteration_bounds = array<i64: 2, 1>, scalar_prefetch = 0 : i64, scratch_operands = 1 : i64, tpu.core_type = #tpu.core_type<tc>, window_params = [{transform_indices = @transform_0, window_bounds = array<i64: 1, 1, 16, 4>}, {transform_indices = @transform_1, window_bounds = array<i64: 1, 16, 16, 4>}, {transform_indices = @transform_2, window_bounds = array<i64: 1, 1, 16, 4>}, {pipeline_mode = #tpu.pipeline_mode<synchronous>, transform_indices = @transform_3, window_bounds = array<i64: 1, 1, 4>}, {pipeline_mode = #tpu.pipeline_mode<synchronous>, transform_indices = @transform_4, window_bounds = array<i64: 1, 1, 4>}, {pipeline_mode = #tpu.pipeline_mode<synchronous>, transform_indices = @transform_5, window_bounds = array<i64: 9, 4, 8>}, {pipeline_mode = #tpu.pipeline_mode<synchronous>, transform_indices = @transform_6, window_bounds = array<i64: 1, 8>}, {transform_indices = @transform_7, window_bounds = array<i64: 1, 16, 16, 8>}, {transform_indices = @transform_8, window_bounds = array<i64: 1, 1, 2, 8>}]} {
    %c0 = arith.constant 0 : index
    %c0_0 = arith.constant 0 : index
    %c0_1 = arith.constant 0 : index
    %0 = vector.load %arg5[%c0, %c0_0, %c0_1] : memref<1x1x4xf32, #tpu.memory_space<vmem>>, vector<1x1x4xf32>
    %c0_2 = arith.constant 0 : index
    %c0_3 = arith.constant 0 : index
    %c0_4 = arith.constant 0 : index
    %1 = vector.load %arg6[%c0_2, %c0_3, %c0_4] : memref<1x1x4xf32, #tpu.memory_space<vmem>>, vector<1x1x4xf32>
    %cst = arith.constant 0.000000e+00 : f32
    %2 = vector.broadcast %cst : f32 to vector<18x1x4xf32>
    %c0_5 = arith.constant 0 : index
    %c0_6 = arith.constant 0 : index
    %c0_7 = arith.constant 0 : index
    %3 = vector.load %arg11[%c0_5, %c0_6, %c0_7] : memref<18x18x4xf32, #tpu.memory_space<vmem>>, vector<18x1x4xf32>
    tpu.vector_store %arg11[%c0_5, %c0_6, %c0_7], %2 {strides = array<i32>} : memref<18x18x4xf32, #tpu.memory_space<vmem>>, vector<18x1x4xf32>,
    %c0_8 = arith.constant 0 : index
    %c17 = arith.constant 17 : index
    %c0_9 = arith.constant 0 : index
    %4 = vector.load %arg11[%c0_8, %c17, %c0_9] : memref<18x18x4xf32, #tpu.memory_space<vmem>>, vector<18x1x4xf32>
    tpu.vector_store %arg11[%c0_8, %c17, %c0_9], %2 {strides = array<i32>} : memref<18x18x4xf32, #tpu.memory_space<vmem>>, vector<18x1x4xf32>,
    %c0_10 = arith.constant 0 : index
    %c0_11 = arith.constant 0 : index
    %c0_12 = arith.constant 0 : index
    %c0_13 = arith.constant 0 : index
    %5 = vector.load %arg3[%c0_10, %c0_11, %c0_12, %c0_13] : memref<1x16x16x4xf32, #tpu.memory_space<vmem>>, vector<1x16x16x4xf32>
    %6 = vector.shape_cast %5 : vector<1x16x16x4xf32> to vector<16x16x4xf32>
    %7 = vector.broadcast %0 : vector<1x1x4xf32> to vector<16x16x4xf32>
    %8 = arith.mulf %6, %7 : vector<16x16x4xf32>
    %9 = vector.broadcast %1 : vector<1x1x4xf32> to vector<16x16x4xf32>
    %10 = arith.addf %8, %9 : vector<16x16x4xf32>
    %cst_14 = arith.constant 0.000000e+00 : f32
    %11 = vector.broadcast %cst_14 : f32 to vector<16x16x4xf32>
    %12 = arith.maximumf %10, %11 : vector<16x16x4xf32>
    %c1 = arith.constant 1 : index
    %c1_15 = arith.constant 1 : index
    %c0_16 = arith.constant 0 : index
    %13 = vector.load %arg11[%c1, %c1_15, %c0_16] : memref<18x18x4xf32, #tpu.memory_space<vmem>>, vector<16x16x4xf32>
    tpu.vector_store %arg11[%c1, %c1_15, %c0_16], %12 {strides = array<i32>} : memref<18x18x4xf32, #tpu.memory_space<vmem>>, vector<16x16x4xf32>,
    %c0_i32 = arith.constant 0 : i32
    %14 = arith.cmpi ne, %arg1, %c0_i32 : i32
    %15 = arith.extui %14 : i1 to i32
    %16 = arith.sitofp %15 : i32 to f32
    %c0_i32_17 = arith.constant 0 : i32
    %17 = arith.cmpi ne, %arg1, %c0_i32_17 : i32
    %18 = arith.extui %17 : i1 to i32
    %19 = arith.sitofp %18 : i32 to f32
    %c0_18 = arith.constant 0 : index
    %c0_19 = arith.constant 0 : index
    %c0_20 = arith.constant 0 : index
    %c0_21 = arith.constant 0 : index
    %20 = vector.load %arg2[%c0_18, %c0_19, %c0_20, %c0_21] : memref<1x1x16x4xf32, #tpu.memory_space<vmem>>, vector<1x1x16x4xf32>
    %21 = vector.shape_cast %20 : vector<1x1x16x4xf32> to vector<1x16x4xf32>
    %22 = vector.broadcast %0 : vector<1x1x4xf32> to vector<1x16x4xf32>
    %23 = arith.mulf %21, %22 : vector<1x16x4xf32>
    %24 = vector.broadcast %1 : vector<1x1x4xf32> to vector<1x16x4xf32>
    %25 = arith.addf %23, %24 : vector<1x16x4xf32>
    %cst_22 = arith.constant 0.000000e+00 : f32
    %26 = vector.broadcast %cst_22 : f32 to vector<1x16x4xf32>
    %27 = arith.maximumf %25, %26 : vector<1x16x4xf32>
    %28 = vector.broadcast %16 : f32 to vector<1x16x4xf32>
    %29 = arith.mulf %27, %28 : vector<1x16x4xf32>
    %c0_23 = arith.constant 0 : index
    %c1_24 = arith.constant 1 : index
    %c0_25 = arith.constant 0 : index
    %30 = vector.load %arg11[%c0_23, %c1_24, %c0_25] : memref<18x18x4xf32, #tpu.memory_space<vmem>>, vector<1x16x4xf32>
    tpu.vector_store %arg11[%c0_23, %c1_24, %c0_25], %29 {strides = array<i32>} : memref<18x18x4xf32, #tpu.memory_space<vmem>>, vector<1x16x4xf32>,
    %c0_26 = arith.constant 0 : index
    %c0_27 = arith.constant 0 : index
    %c0_28 = arith.constant 0 : index
    %c0_29 = arith.constant 0 : index
    %31 = vector.load %arg4[%c0_26, %c0_27, %c0_28, %c0_29] : memref<1x1x16x4xf32, #tpu.memory_space<vmem>>, vector<1x1x16x4xf32>
    %32 = vector.shape_cast %31 : vector<1x1x16x4xf32> to vector<1x16x4xf32>
    %33 = vector.broadcast %0 : vector<1x1x4xf32> to vector<1x16x4xf32>
    %34 = arith.mulf %32, %33 : vector<1x16x4xf32>
    %35 = vector.broadcast %1 : vector<1x1x4xf32> to vector<1x16x4xf32>
    %36 = arith.addf %34, %35 : vector<1x16x4xf32>
    %cst_30 = arith.constant 0.000000e+00 : f32
    %37 = vector.broadcast %cst_30 : f32 to vector<1x16x4xf32>
    %38 = arith.maximumf %36, %37 : vector<1x16x4xf32>
    %39 = vector.broadcast %19 : f32 to vector<1x16x4xf32>
    %40 = arith.mulf %38, %39 : vector<1x16x4xf32>
    %c17_31 = arith.constant 17 : index
    %c1_32 = arith.constant 1 : index
    %c0_33 = arith.constant 0 : index
    %41 = vector.load %arg11[%c17_31, %c1_32, %c0_33] : memref<18x18x4xf32, #tpu.memory_space<vmem>>, vector<1x16x4xf32>
    tpu.vector_store %arg11[%c17_31, %c1_32, %c0_33], %40 {strides = array<i32>} : memref<18x18x4xf32, #tpu.memory_space<vmem>>, vector<1x16x4xf32>,
    %cst_34 = arith.constant 0.000000e+00 : f32
    %42 = vector.broadcast %cst_34 : f32 to vector<256x8xf32>
    %c0_35 = arith.constant 0 : index
    %c0_36 = arith.constant 0 : index
    %c0_37 = arith.constant 0 : index
    %43 = vector.load %arg11[%c0_35, %c0_36, %c0_37] : memref<18x18x4xf32, #tpu.memory_space<vmem>>, vector<16x16x4xf32>
    %44 = vector.shape_cast %43 : vector<16x16x4xf32> to vector<256x4xf32>
    %45 = arith.truncf %44 : vector<256x4xf32> to vector<256x4xbf16>
    %c0_38 = arith.constant 0 : index
    %c0_39 = arith.constant 0 : index
    %c0_40 = arith.constant 0 : index
    %46 = vector.load %arg7[%c0_38, %c0_39, %c0_40] : memref<9x4x8xbf16, #tpu.memory_space<vmem>>, vector<1x4x8xbf16>
    %47 = vector.shape_cast %46 : vector<1x4x8xbf16> to vector<4x8xbf16>
    %cst_41 = arith.constant dense<0.000000e+00> : vector<256x8xf32>
    %48 = tpu.matmul %45, %47, %cst_41 {dimension_numbers = #tpu.dot_dimension_numbers<[1], [0], [0], [1], [0, 0, 1, 1], [], []>} : vector<256x4xbf16>, vector<4x8xbf16>, vector<256x8xf32> -> vector<256x8xf32>
    %49 = arith.addf %42, %48 : vector<256x8xf32>
    %c0_42 = arith.constant 0 : index
    %c1_43 = arith.constant 1 : index
    %c0_44 = arith.constant 0 : index
    %50 = vector.load %arg11[%c0_42, %c1_43, %c0_44] : memref<18x18x4xf32, #tpu.memory_space<vmem>>, vector<16x16x4xf32>
    %51 = vector.shape_cast %50 : vector<16x16x4xf32> to vector<256x4xf32>
    %52 = arith.truncf %51 : vector<256x4xf32> to vector<256x4xbf16>
    %c1_45 = arith.constant 1 : index
    %c0_46 = arith.constant 0 : index
    %c0_47 = arith.constant 0 : index
    %53 = vector.load %arg7[%c1_45, %c0_46, %c0_47] : memref<9x4x8xbf16, #tpu.memory_space<vmem>>, vector<1x4x8xbf16>
    %54 = vector.shape_cast %53 : vector<1x4x8xbf16> to vector<4x8xbf16>
    %cst_48 = arith.constant dense<0.000000e+00> : vector<256x8xf32>
    %55 = tpu.matmul %52, %54, %cst_48 {dimension_numbers = #tpu.dot_dimension_numbers<[1], [0], [0], [1], [0, 0, 1, 1], [], []>} : vector<256x4xbf16>, vector<4x8xbf16>, vector<256x8xf32> -> vector<256x8xf32>
    %56 = arith.addf %49, %55 : vector<256x8xf32>
    %c0_49 = arith.constant 0 : index
    %c2 = arith.constant 2 : index
    %c0_50 = arith.constant 0 : index
    %57 = vector.load %arg11[%c0_49, %c2, %c0_50] : memref<18x18x4xf32, #tpu.memory_space<vmem>>, vector<16x16x4xf32>
    %58 = vector.shape_cast %57 : vector<16x16x4xf32> to vector<256x4xf32>
    %59 = arith.truncf %58 : vector<256x4xf32> to vector<256x4xbf16>
    %c2_51 = arith.constant 2 : index
    %c0_52 = arith.constant 0 : index
    %c0_53 = arith.constant 0 : index
    %60 = vector.load %arg7[%c2_51, %c0_52, %c0_53] : memref<9x4x8xbf16, #tpu.memory_space<vmem>>, vector<1x4x8xbf16>
    %61 = vector.shape_cast %60 : vector<1x4x8xbf16> to vector<4x8xbf16>
    %cst_54 = arith.constant dense<0.000000e+00> : vector<256x8xf32>
    %62 = tpu.matmul %59, %61, %cst_54 {dimension_numbers = #tpu.dot_dimension_numbers<[1], [0], [0], [1], [0, 0, 1, 1], [], []>} : vector<256x4xbf16>, vector<4x8xbf16>, vector<256x8xf32> -> vector<256x8xf32>
    %63 = arith.addf %56, %62 : vector<256x8xf32>
    %c1_55 = arith.constant 1 : index
    %c0_56 = arith.constant 0 : index
    %c0_57 = arith.constant 0 : index
    %64 = vector.load %arg11[%c1_55, %c0_56, %c0_57] : memref<18x18x4xf32, #tpu.memory_space<vmem>>, vector<16x16x4xf32>
    %65 = vector.shape_cast %64 : vector<16x16x4xf32> to vector<256x4xf32>
    %66 = arith.truncf %65 : vector<256x4xf32> to vector<256x4xbf16>
    %c3 = arith.constant 3 : index
    %c0_58 = arith.constant 0 : index
    %c0_59 = arith.constant 0 : index
    %67 = vector.load %arg7[%c3, %c0_58, %c0_59] : memref<9x4x8xbf16, #tpu.memory_space<vmem>>, vector<1x4x8xbf16>
    %68 = vector.shape_cast %67 : vector<1x4x8xbf16> to vector<4x8xbf16>
    %cst_60 = arith.constant dense<0.000000e+00> : vector<256x8xf32>
    %69 = tpu.matmul %66, %68, %cst_60 {dimension_numbers = #tpu.dot_dimension_numbers<[1], [0], [0], [1], [0, 0, 1, 1], [], []>} : vector<256x4xbf16>, vector<4x8xbf16>, vector<256x8xf32> -> vector<256x8xf32>
    %70 = arith.addf %63, %69 : vector<256x8xf32>
    %c1_61 = arith.constant 1 : index
    %c1_62 = arith.constant 1 : index
    %c0_63 = arith.constant 0 : index
    %71 = vector.load %arg11[%c1_61, %c1_62, %c0_63] : memref<18x18x4xf32, #tpu.memory_space<vmem>>, vector<16x16x4xf32>
    %72 = vector.shape_cast %71 : vector<16x16x4xf32> to vector<256x4xf32>
    %73 = arith.truncf %72 : vector<256x4xf32> to vector<256x4xbf16>
    %c4 = arith.constant 4 : index
    %c0_64 = arith.constant 0 : index
    %c0_65 = arith.constant 0 : index
    %74 = vector.load %arg7[%c4, %c0_64, %c0_65] : memref<9x4x8xbf16, #tpu.memory_space<vmem>>, vector<1x4x8xbf16>
    %75 = vector.shape_cast %74 : vector<1x4x8xbf16> to vector<4x8xbf16>
    %cst_66 = arith.constant dense<0.000000e+00> : vector<256x8xf32>
    %76 = tpu.matmul %73, %75, %cst_66 {dimension_numbers = #tpu.dot_dimension_numbers<[1], [0], [0], [1], [0, 0, 1, 1], [], []>} : vector<256x4xbf16>, vector<4x8xbf16>, vector<256x8xf32> -> vector<256x8xf32>
    %77 = arith.addf %70, %76 : vector<256x8xf32>
    %c1_67 = arith.constant 1 : index
    %c2_68 = arith.constant 2 : index
    %c0_69 = arith.constant 0 : index
    %78 = vector.load %arg11[%c1_67, %c2_68, %c0_69] : memref<18x18x4xf32, #tpu.memory_space<vmem>>, vector<16x16x4xf32>
    %79 = vector.shape_cast %78 : vector<16x16x4xf32> to vector<256x4xf32>
    %80 = arith.truncf %79 : vector<256x4xf32> to vector<256x4xbf16>
    %c5 = arith.constant 5 : index
    %c0_70 = arith.constant 0 : index
    %c0_71 = arith.constant 0 : index
    %81 = vector.load %arg7[%c5, %c0_70, %c0_71] : memref<9x4x8xbf16, #tpu.memory_space<vmem>>, vector<1x4x8xbf16>
    %82 = vector.shape_cast %81 : vector<1x4x8xbf16> to vector<4x8xbf16>
    %cst_72 = arith.constant dense<0.000000e+00> : vector<256x8xf32>
    %83 = tpu.matmul %80, %82, %cst_72 {dimension_numbers = #tpu.dot_dimension_numbers<[1], [0], [0], [1], [0, 0, 1, 1], [], []>} : vector<256x4xbf16>, vector<4x8xbf16>, vector<256x8xf32> -> vector<256x8xf32>
    %84 = arith.addf %77, %83 : vector<256x8xf32>
    %c2_73 = arith.constant 2 : index
    %c0_74 = arith.constant 0 : index
    %c0_75 = arith.constant 0 : index
    %85 = vector.load %arg11[%c2_73, %c0_74, %c0_75] : memref<18x18x4xf32, #tpu.memory_space<vmem>>, vector<16x16x4xf32>
    %86 = vector.shape_cast %85 : vector<16x16x4xf32> to vector<256x4xf32>
    %87 = arith.truncf %86 : vector<256x4xf32> to vector<256x4xbf16>
    %c6 = arith.constant 6 : index
    %c0_76 = arith.constant 0 : index
    %c0_77 = arith.constant 0 : index
    %88 = vector.load %arg7[%c6, %c0_76, %c0_77] : memref<9x4x8xbf16, #tpu.memory_space<vmem>>, vector<1x4x8xbf16>
    %89 = vector.shape_cast %88 : vector<1x4x8xbf16> to vector<4x8xbf16>
    %cst_78 = arith.constant dense<0.000000e+00> : vector<256x8xf32>
    %90 = tpu.matmul %87, %89, %cst_78 {dimension_numbers = #tpu.dot_dimension_numbers<[1], [0], [0], [1], [0, 0, 1, 1], [], []>} : vector<256x4xbf16>, vector<4x8xbf16>, vector<256x8xf32> -> vector<256x8xf32>
    %91 = arith.addf %84, %90 : vector<256x8xf32>
    %c2_79 = arith.constant 2 : index
    %c1_80 = arith.constant 1 : index
    %c0_81 = arith.constant 0 : index
    %92 = vector.load %arg11[%c2_79, %c1_80, %c0_81] : memref<18x18x4xf32, #tpu.memory_space<vmem>>, vector<16x16x4xf32>
    %93 = vector.shape_cast %92 : vector<16x16x4xf32> to vector<256x4xf32>
    %94 = arith.truncf %93 : vector<256x4xf32> to vector<256x4xbf16>
    %c7 = arith.constant 7 : index
    %c0_82 = arith.constant 0 : index
    %c0_83 = arith.constant 0 : index
    %95 = vector.load %arg7[%c7, %c0_82, %c0_83] : memref<9x4x8xbf16, #tpu.memory_space<vmem>>, vector<1x4x8xbf16>
    %96 = vector.shape_cast %95 : vector<1x4x8xbf16> to vector<4x8xbf16>
    %cst_84 = arith.constant dense<0.000000e+00> : vector<256x8xf32>
    %97 = tpu.matmul %94, %96, %cst_84 {dimension_numbers = #tpu.dot_dimension_numbers<[1], [0], [0], [1], [0, 0, 1, 1], [], []>} : vector<256x4xbf16>, vector<4x8xbf16>, vector<256x8xf32> -> vector<256x8xf32>
    %98 = arith.addf %91, %97 : vector<256x8xf32>
    %c2_85 = arith.constant 2 : index
    %c2_86 = arith.constant 2 : index
    %c0_87 = arith.constant 0 : index
    %99 = vector.load %arg11[%c2_85, %c2_86, %c0_87] : memref<18x18x4xf32, #tpu.memory_space<vmem>>, vector<16x16x4xf32>
    %100 = vector.shape_cast %99 : vector<16x16x4xf32> to vector<256x4xf32>
    %101 = arith.truncf %100 : vector<256x4xf32> to vector<256x4xbf16>
    %c8 = arith.constant 8 : index
    %c0_88 = arith.constant 0 : index
    %c0_89 = arith.constant 0 : index
    %102 = vector.load %arg7[%c8, %c0_88, %c0_89] : memref<9x4x8xbf16, #tpu.memory_space<vmem>>, vector<1x4x8xbf16>
    %103 = vector.shape_cast %102 : vector<1x4x8xbf16> to vector<4x8xbf16>
    %cst_90 = arith.constant dense<0.000000e+00> : vector<256x8xf32>
    %104 = tpu.matmul %101, %103, %cst_90 {dimension_numbers = #tpu.dot_dimension_numbers<[1], [0], [0], [1], [0, 0, 1, 1], [], []>} : vector<256x4xbf16>, vector<4x8xbf16>, vector<256x8xf32> -> vector<256x8xf32>
    %105 = arith.addf %98, %104 : vector<256x8xf32>
    %c0_91 = arith.constant 0 : index
    %c0_92 = arith.constant 0 : index
    %106 = vector.load %arg8[%c0_91, %c0_92] : memref<1x8xf32, #tpu.memory_space<vmem>>, vector<1x8xf32>
    %107 = vector.broadcast %106 : vector<1x8xf32> to vector<256x8xf32>
    %108 = arith.addf %105, %107 : vector<256x8xf32>
    %109 = vector.shape_cast %108 : vector<256x8xf32> to vector<16x16x8xf32>
    %110 = arith.truncf %109 : vector<16x16x8xf32> to vector<16x16x8xbf16>
    %c0_93 = arith.constant 0 : index
    %c0_94 = arith.constant 0 : index
    %c0_95 = arith.constant 0 : index
    %c0_96 = arith.constant 0 : index
    %111 = vector.load %arg9[%c0_93, %c0_94, %c0_95, %c0_96] : memref<1x16x16x8xbf16, #tpu.memory_space<vmem>>, vector<1x16x16x8xbf16>
    %112 = vector.shape_cast %111 : vector<1x16x16x8xbf16> to vector<16x16x8xbf16>
    %113 = vector.shape_cast %110 : vector<16x16x8xbf16> to vector<1x16x16x8xbf16>
    tpu.vector_store %arg9[%c0_93, %c0_94, %c0_95, %c0_96], %113 {strides = array<i32>} : memref<1x16x16x8xbf16, #tpu.memory_space<vmem>>, vector<1x16x16x8xbf16>,
    %cst_97 = arith.constant dense<0.000000e+00> : vector<8xf32>
    %114 = vector.multi_reduction <add>, %108, %cst_97 [0] : vector<256x8xf32> to vector<8xf32>
    %115 = vector.shape_cast %114 : vector<8xf32> to vector<1x8xf32>
    %c0_98 = arith.constant 0 : index
    %c0_99 = arith.constant 0 : index
    %c0_100 = arith.constant 0 : index
    %c0_101 = arith.constant 0 : index
    %116 = vector.load %arg10[%c0_98, %c0_99, %c0_100, %c0_101] : memref<1x1x2x8xf32, #tpu.memory_space<vmem>>, vector<1x1x1x8xf32>
    %117 = vector.shape_cast %116 : vector<1x1x1x8xf32> to vector<1x8xf32>
    %118 = vector.shape_cast %115 : vector<1x8xf32> to vector<1x1x1x8xf32>
    tpu.vector_store %arg10[%c0_98, %c0_99, %c0_100, %c0_101], %118 {strides = array<i32>} : memref<1x1x2x8xf32, #tpu.memory_space<vmem>>, vector<1x1x1x8xf32>,
    %119 = arith.mulf %108, %108 : vector<256x8xf32>
    %cst_102 = arith.constant dense<0.000000e+00> : vector<8xf32>
    %120 = vector.multi_reduction <add>, %119, %cst_102 [0] : vector<256x8xf32> to vector<8xf32>
    %121 = vector.shape_cast %120 : vector<8xf32> to vector<1x8xf32>
    %c0_103 = arith.constant 0 : index
    %c0_104 = arith.constant 0 : index
    %c1_105 = arith.constant 1 : index
    %c0_106 = arith.constant 0 : index
    %122 = vector.load %arg10[%c0_103, %c0_104, %c1_105, %c0_106] : memref<1x1x2x8xf32, #tpu.memory_space<vmem>>, vector<1x1x1x8xf32>
    %123 = vector.shape_cast %122 : vector<1x1x1x8xf32> to vector<1x8xf32>
    %124 = vector.shape_cast %121 : vector<1x8xf32> to vector<1x1x1x8xf32>
    tpu.vector_store %arg10[%c0_103, %c0_104, %c1_105, %c0_106], %124 {strides = array<i32>} : memref<1x1x2x8xf32, #tpu.memory_space<vmem>>, vector<1x1x1x8xf32>,
    return
  }
  func.func @transform_0(%arg0: i32, %arg1: i32) -> (i32, i32, i32, i32) {
    %c16_i32 = arith.constant 16 : i32
    %0 = arith.muli %arg1, %c16_i32 : i32
    %c1_i32 = arith.constant 1 : i32
    %1 = arith.subi %0, %c1_i32 : i32
    %c0_i32 = arith.constant 0 : i32
    %2 = arith.maxsi %1, %c0_i32 : i32
    %c0_i32_0 = arith.constant 0 : i32
    %c0_i32_1 = arith.constant 0 : i32
    %c0_i32_2 = arith.constant 0 : i32
    return %arg0, %2, %c0_i32_0, %c0_i32_1 : i32, i32, i32, i32
  }
  func.func @transform_1(%arg0: i32, %arg1: i32) -> (i32, i32, i32, i32) {
    %c0_i32 = arith.constant 0 : i32
    %c0_i32_0 = arith.constant 0 : i32
    %c0_i32_1 = arith.constant 0 : i32
    return %arg0, %arg1, %c0_i32, %c0_i32_0 : i32, i32, i32, i32
  }
  func.func @transform_2(%arg0: i32, %arg1: i32) -> (i32, i32, i32, i32) {
    %c1_i32 = arith.constant 1 : i32
    %0 = arith.addi %arg1, %c1_i32 : i32
    %c16_i32 = arith.constant 16 : i32
    %1 = arith.muli %0, %c16_i32 : i32
    %c15_i32 = arith.constant 15 : i32
    %2 = arith.minsi %1, %c15_i32 : i32
    %c0_i32 = arith.constant 0 : i32
    %c0_i32_0 = arith.constant 0 : i32
    %c0_i32_1 = arith.constant 0 : i32
    return %arg0, %2, %c0_i32, %c0_i32_0 : i32, i32, i32, i32
  }
  func.func @transform_3(%arg0: i32, %arg1: i32) -> (i32, i32, i32) {
    %c0_i32 = arith.constant 0 : i32
    %c0_i32_0 = arith.constant 0 : i32
    %c0_i32_1 = arith.constant 0 : i32
    %c0_i32_2 = arith.constant 0 : i32
    return %c0_i32, %c0_i32_0, %c0_i32_1 : i32, i32, i32
  }
  func.func @transform_4(%arg0: i32, %arg1: i32) -> (i32, i32, i32) {
    %c0_i32 = arith.constant 0 : i32
    %c0_i32_0 = arith.constant 0 : i32
    %c0_i32_1 = arith.constant 0 : i32
    %c0_i32_2 = arith.constant 0 : i32
    return %c0_i32, %c0_i32_0, %c0_i32_1 : i32, i32, i32
  }
  func.func @transform_5(%arg0: i32, %arg1: i32) -> (i32, i32, i32) {
    %c0_i32 = arith.constant 0 : i32
    %c0_i32_0 = arith.constant 0 : i32
    %c0_i32_1 = arith.constant 0 : i32
    %c0_i32_2 = arith.constant 0 : i32
    return %c0_i32, %c0_i32_0, %c0_i32_1 : i32, i32, i32
  }
  func.func @transform_6(%arg0: i32, %arg1: i32) -> (i32, i32) {
    %c0_i32 = arith.constant 0 : i32
    %c0_i32_0 = arith.constant 0 : i32
    %c0_i32_1 = arith.constant 0 : i32
    return %c0_i32, %c0_i32_0 : i32, i32
  }
  func.func @transform_7(%arg0: i32, %arg1: i32) -> (i32, i32, i32, i32) {
    %c0_i32 = arith.constant 0 : i32
    %c0_i32_0 = arith.constant 0 : i32
    %c0_i32_1 = arith.constant 0 : i32
    return %arg0, %arg1, %c0_i32, %c0_i32_0 : i32, i32, i32, i32
  }
  func.func @transform_8(%arg0: i32, %arg1: i32) -> (i32, i32, i32, i32) {
    %c0_i32 = arith.constant 0 : i32
    %c0_i32_0 = arith.constant 0 : i32
    %c0_i32_1 = arith.constant 0 : i32
    return %arg0, %arg1, %c0_i32, %c0_i32_0 : i32, i32, i32, i32
  }
}

module attributes {stable_mosaic.version = 11 : i64} {
  func.func @kernel(%arg0: i32, %arg1: i32, %arg2: memref<1x1x16x8xbf16, #tpu.memory_space<vmem>>, %arg3: memref<1x16x16x8xbf16, #tpu.memory_space<vmem>>, %arg4: memref<1x1x16x8xbf16, #tpu.memory_space<vmem>>, %arg5: memref<1x1x8xf32, #tpu.memory_space<vmem>>, %arg6: memref<1x1x8xf32, #tpu.memory_space<vmem>>, %arg7: memref<9x8x8xbf16, #tpu.memory_space<vmem>>, %arg8: memref<1x8xf32, #tpu.memory_space<vmem>>, %arg9: memref<1x16x16x8xf32, #tpu.memory_space<vmem>>, %arg10: memref<18x18x8xf32, #tpu.memory_space<vmem>>) attributes {dimension_semantics = [#tpu.dimension_semantics<parallel>, #tpu.dimension_semantics<parallel>], iteration_bounds = array<i64: 2, 1>, scalar_prefetch = 0 : i64, scratch_operands = 1 : i64, tpu.core_type = #tpu.core_type<tc>, window_params = [{transform_indices = @transform_0, window_bounds = array<i64: 1, 1, 16, 8>}, {transform_indices = @transform_1, window_bounds = array<i64: 1, 16, 16, 8>}, {transform_indices = @transform_2, window_bounds = array<i64: 1, 1, 16, 8>}, {pipeline_mode = #tpu.pipeline_mode<synchronous>, transform_indices = @transform_3, window_bounds = array<i64: 1, 1, 8>}, {pipeline_mode = #tpu.pipeline_mode<synchronous>, transform_indices = @transform_4, window_bounds = array<i64: 1, 1, 8>}, {pipeline_mode = #tpu.pipeline_mode<synchronous>, transform_indices = @transform_5, window_bounds = array<i64: 9, 8, 8>}, {pipeline_mode = #tpu.pipeline_mode<synchronous>, transform_indices = @transform_6, window_bounds = array<i64: 1, 8>}, {transform_indices = @transform_7, window_bounds = array<i64: 1, 16, 16, 8>}]} {
    %c0 = arith.constant 0 : index
    %c0_0 = arith.constant 0 : index
    %c0_1 = arith.constant 0 : index
    %0 = vector.load %arg5[%c0, %c0_0, %c0_1] : memref<1x1x8xf32, #tpu.memory_space<vmem>>, vector<1x1x8xf32>
    %c0_2 = arith.constant 0 : index
    %c0_3 = arith.constant 0 : index
    %c0_4 = arith.constant 0 : index
    %1 = vector.load %arg6[%c0_2, %c0_3, %c0_4] : memref<1x1x8xf32, #tpu.memory_space<vmem>>, vector<1x1x8xf32>
    %cst = arith.constant 0.000000e+00 : f32
    %2 = vector.broadcast %cst : f32 to vector<18x1x8xf32>
    %c0_5 = arith.constant 0 : index
    %c0_6 = arith.constant 0 : index
    %c0_7 = arith.constant 0 : index
    %3 = vector.load %arg10[%c0_5, %c0_6, %c0_7] : memref<18x18x8xf32, #tpu.memory_space<vmem>>, vector<18x1x8xf32>
    tpu.vector_store %arg10[%c0_5, %c0_6, %c0_7], %2 {strides = array<i32>} : memref<18x18x8xf32, #tpu.memory_space<vmem>>, vector<18x1x8xf32>,
    %c0_8 = arith.constant 0 : index
    %c17 = arith.constant 17 : index
    %c0_9 = arith.constant 0 : index
    %4 = vector.load %arg10[%c0_8, %c17, %c0_9] : memref<18x18x8xf32, #tpu.memory_space<vmem>>, vector<18x1x8xf32>
    tpu.vector_store %arg10[%c0_8, %c17, %c0_9], %2 {strides = array<i32>} : memref<18x18x8xf32, #tpu.memory_space<vmem>>, vector<18x1x8xf32>,
    %c0_10 = arith.constant 0 : index
    %c0_11 = arith.constant 0 : index
    %c0_12 = arith.constant 0 : index
    %c0_13 = arith.constant 0 : index
    %5 = vector.load %arg3[%c0_10, %c0_11, %c0_12, %c0_13] : memref<1x16x16x8xbf16, #tpu.memory_space<vmem>>, vector<1x16x16x8xbf16>
    %6 = vector.shape_cast %5 : vector<1x16x16x8xbf16> to vector<16x16x8xbf16>
    %7 = arith.extf %6 : vector<16x16x8xbf16> to vector<16x16x8xf32>
    %8 = vector.broadcast %0 : vector<1x1x8xf32> to vector<16x16x8xf32>
    %9 = arith.mulf %7, %8 : vector<16x16x8xf32>
    %10 = vector.broadcast %1 : vector<1x1x8xf32> to vector<16x16x8xf32>
    %11 = arith.addf %9, %10 : vector<16x16x8xf32>
    %cst_14 = arith.constant 0.000000e+00 : f32
    %12 = vector.broadcast %cst_14 : f32 to vector<16x16x8xf32>
    %13 = arith.maximumf %11, %12 : vector<16x16x8xf32>
    %c1 = arith.constant 1 : index
    %c1_15 = arith.constant 1 : index
    %c0_16 = arith.constant 0 : index
    %14 = vector.load %arg10[%c1, %c1_15, %c0_16] : memref<18x18x8xf32, #tpu.memory_space<vmem>>, vector<16x16x8xf32>
    tpu.vector_store %arg10[%c1, %c1_15, %c0_16], %13 {strides = array<i32>} : memref<18x18x8xf32, #tpu.memory_space<vmem>>, vector<16x16x8xf32>,
    %c0_i32 = arith.constant 0 : i32
    %15 = arith.cmpi ne, %arg1, %c0_i32 : i32
    %16 = arith.extui %15 : i1 to i32
    %17 = arith.sitofp %16 : i32 to f32
    %c0_i32_17 = arith.constant 0 : i32
    %18 = arith.cmpi ne, %arg1, %c0_i32_17 : i32
    %19 = arith.extui %18 : i1 to i32
    %20 = arith.sitofp %19 : i32 to f32
    %c0_18 = arith.constant 0 : index
    %c0_19 = arith.constant 0 : index
    %c0_20 = arith.constant 0 : index
    %c0_21 = arith.constant 0 : index
    %21 = vector.load %arg2[%c0_18, %c0_19, %c0_20, %c0_21] : memref<1x1x16x8xbf16, #tpu.memory_space<vmem>>, vector<1x1x16x8xbf16>
    %22 = vector.shape_cast %21 : vector<1x1x16x8xbf16> to vector<1x16x8xbf16>
    %23 = arith.extf %22 : vector<1x16x8xbf16> to vector<1x16x8xf32>
    %24 = vector.broadcast %0 : vector<1x1x8xf32> to vector<1x16x8xf32>
    %25 = arith.mulf %23, %24 : vector<1x16x8xf32>
    %26 = vector.broadcast %1 : vector<1x1x8xf32> to vector<1x16x8xf32>
    %27 = arith.addf %25, %26 : vector<1x16x8xf32>
    %cst_22 = arith.constant 0.000000e+00 : f32
    %28 = vector.broadcast %cst_22 : f32 to vector<1x16x8xf32>
    %29 = arith.maximumf %27, %28 : vector<1x16x8xf32>
    %30 = vector.broadcast %17 : f32 to vector<1x16x8xf32>
    %31 = arith.mulf %29, %30 : vector<1x16x8xf32>
    %c0_23 = arith.constant 0 : index
    %c1_24 = arith.constant 1 : index
    %c0_25 = arith.constant 0 : index
    %32 = vector.load %arg10[%c0_23, %c1_24, %c0_25] : memref<18x18x8xf32, #tpu.memory_space<vmem>>, vector<1x16x8xf32>
    tpu.vector_store %arg10[%c0_23, %c1_24, %c0_25], %31 {strides = array<i32>} : memref<18x18x8xf32, #tpu.memory_space<vmem>>, vector<1x16x8xf32>,
    %c0_26 = arith.constant 0 : index
    %c0_27 = arith.constant 0 : index
    %c0_28 = arith.constant 0 : index
    %c0_29 = arith.constant 0 : index
    %33 = vector.load %arg4[%c0_26, %c0_27, %c0_28, %c0_29] : memref<1x1x16x8xbf16, #tpu.memory_space<vmem>>, vector<1x1x16x8xbf16>
    %34 = vector.shape_cast %33 : vector<1x1x16x8xbf16> to vector<1x16x8xbf16>
    %35 = arith.extf %34 : vector<1x16x8xbf16> to vector<1x16x8xf32>
    %36 = vector.broadcast %0 : vector<1x1x8xf32> to vector<1x16x8xf32>
    %37 = arith.mulf %35, %36 : vector<1x16x8xf32>
    %38 = vector.broadcast %1 : vector<1x1x8xf32> to vector<1x16x8xf32>
    %39 = arith.addf %37, %38 : vector<1x16x8xf32>
    %cst_30 = arith.constant 0.000000e+00 : f32
    %40 = vector.broadcast %cst_30 : f32 to vector<1x16x8xf32>
    %41 = arith.maximumf %39, %40 : vector<1x16x8xf32>
    %42 = vector.broadcast %20 : f32 to vector<1x16x8xf32>
    %43 = arith.mulf %41, %42 : vector<1x16x8xf32>
    %c17_31 = arith.constant 17 : index
    %c1_32 = arith.constant 1 : index
    %c0_33 = arith.constant 0 : index
    %44 = vector.load %arg10[%c17_31, %c1_32, %c0_33] : memref<18x18x8xf32, #tpu.memory_space<vmem>>, vector<1x16x8xf32>
    tpu.vector_store %arg10[%c17_31, %c1_32, %c0_33], %43 {strides = array<i32>} : memref<18x18x8xf32, #tpu.memory_space<vmem>>, vector<1x16x8xf32>,
    %cst_34 = arith.constant 0.000000e+00 : f32
    %45 = vector.broadcast %cst_34 : f32 to vector<256x8xf32>
    %c0_35 = arith.constant 0 : index
    %c0_36 = arith.constant 0 : index
    %c0_37 = arith.constant 0 : index
    %46 = vector.load %arg10[%c0_35, %c0_36, %c0_37] : memref<18x18x8xf32, #tpu.memory_space<vmem>>, vector<16x16x8xf32>
    %47 = vector.shape_cast %46 : vector<16x16x8xf32> to vector<256x8xf32>
    %48 = arith.truncf %47 : vector<256x8xf32> to vector<256x8xbf16>
    %c0_38 = arith.constant 0 : index
    %c0_39 = arith.constant 0 : index
    %c0_40 = arith.constant 0 : index
    %49 = vector.load %arg7[%c0_38, %c0_39, %c0_40] : memref<9x8x8xbf16, #tpu.memory_space<vmem>>, vector<1x8x8xbf16>
    %50 = vector.shape_cast %49 : vector<1x8x8xbf16> to vector<8x8xbf16>
    %cst_41 = arith.constant dense<0.000000e+00> : vector<256x8xf32>
    %51 = tpu.matmul %48, %50, %cst_41 {dimension_numbers = #tpu.dot_dimension_numbers<[1], [0], [0], [1], [0, 0, 1, 1], [], []>} : vector<256x8xbf16>, vector<8x8xbf16>, vector<256x8xf32> -> vector<256x8xf32>
    %52 = arith.addf %45, %51 : vector<256x8xf32>
    %c0_42 = arith.constant 0 : index
    %c1_43 = arith.constant 1 : index
    %c0_44 = arith.constant 0 : index
    %53 = vector.load %arg10[%c0_42, %c1_43, %c0_44] : memref<18x18x8xf32, #tpu.memory_space<vmem>>, vector<16x16x8xf32>
    %54 = vector.shape_cast %53 : vector<16x16x8xf32> to vector<256x8xf32>
    %55 = arith.truncf %54 : vector<256x8xf32> to vector<256x8xbf16>
    %c1_45 = arith.constant 1 : index
    %c0_46 = arith.constant 0 : index
    %c0_47 = arith.constant 0 : index
    %56 = vector.load %arg7[%c1_45, %c0_46, %c0_47] : memref<9x8x8xbf16, #tpu.memory_space<vmem>>, vector<1x8x8xbf16>
    %57 = vector.shape_cast %56 : vector<1x8x8xbf16> to vector<8x8xbf16>
    %cst_48 = arith.constant dense<0.000000e+00> : vector<256x8xf32>
    %58 = tpu.matmul %55, %57, %cst_48 {dimension_numbers = #tpu.dot_dimension_numbers<[1], [0], [0], [1], [0, 0, 1, 1], [], []>} : vector<256x8xbf16>, vector<8x8xbf16>, vector<256x8xf32> -> vector<256x8xf32>
    %59 = arith.addf %52, %58 : vector<256x8xf32>
    %c0_49 = arith.constant 0 : index
    %c2 = arith.constant 2 : index
    %c0_50 = arith.constant 0 : index
    %60 = vector.load %arg10[%c0_49, %c2, %c0_50] : memref<18x18x8xf32, #tpu.memory_space<vmem>>, vector<16x16x8xf32>
    %61 = vector.shape_cast %60 : vector<16x16x8xf32> to vector<256x8xf32>
    %62 = arith.truncf %61 : vector<256x8xf32> to vector<256x8xbf16>
    %c2_51 = arith.constant 2 : index
    %c0_52 = arith.constant 0 : index
    %c0_53 = arith.constant 0 : index
    %63 = vector.load %arg7[%c2_51, %c0_52, %c0_53] : memref<9x8x8xbf16, #tpu.memory_space<vmem>>, vector<1x8x8xbf16>
    %64 = vector.shape_cast %63 : vector<1x8x8xbf16> to vector<8x8xbf16>
    %cst_54 = arith.constant dense<0.000000e+00> : vector<256x8xf32>
    %65 = tpu.matmul %62, %64, %cst_54 {dimension_numbers = #tpu.dot_dimension_numbers<[1], [0], [0], [1], [0, 0, 1, 1], [], []>} : vector<256x8xbf16>, vector<8x8xbf16>, vector<256x8xf32> -> vector<256x8xf32>
    %66 = arith.addf %59, %65 : vector<256x8xf32>
    %c1_55 = arith.constant 1 : index
    %c0_56 = arith.constant 0 : index
    %c0_57 = arith.constant 0 : index
    %67 = vector.load %arg10[%c1_55, %c0_56, %c0_57] : memref<18x18x8xf32, #tpu.memory_space<vmem>>, vector<16x16x8xf32>
    %68 = vector.shape_cast %67 : vector<16x16x8xf32> to vector<256x8xf32>
    %69 = arith.truncf %68 : vector<256x8xf32> to vector<256x8xbf16>
    %c3 = arith.constant 3 : index
    %c0_58 = arith.constant 0 : index
    %c0_59 = arith.constant 0 : index
    %70 = vector.load %arg7[%c3, %c0_58, %c0_59] : memref<9x8x8xbf16, #tpu.memory_space<vmem>>, vector<1x8x8xbf16>
    %71 = vector.shape_cast %70 : vector<1x8x8xbf16> to vector<8x8xbf16>
    %cst_60 = arith.constant dense<0.000000e+00> : vector<256x8xf32>
    %72 = tpu.matmul %69, %71, %cst_60 {dimension_numbers = #tpu.dot_dimension_numbers<[1], [0], [0], [1], [0, 0, 1, 1], [], []>} : vector<256x8xbf16>, vector<8x8xbf16>, vector<256x8xf32> -> vector<256x8xf32>
    %73 = arith.addf %66, %72 : vector<256x8xf32>
    %c1_61 = arith.constant 1 : index
    %c1_62 = arith.constant 1 : index
    %c0_63 = arith.constant 0 : index
    %74 = vector.load %arg10[%c1_61, %c1_62, %c0_63] : memref<18x18x8xf32, #tpu.memory_space<vmem>>, vector<16x16x8xf32>
    %75 = vector.shape_cast %74 : vector<16x16x8xf32> to vector<256x8xf32>
    %76 = arith.truncf %75 : vector<256x8xf32> to vector<256x8xbf16>
    %c4 = arith.constant 4 : index
    %c0_64 = arith.constant 0 : index
    %c0_65 = arith.constant 0 : index
    %77 = vector.load %arg7[%c4, %c0_64, %c0_65] : memref<9x8x8xbf16, #tpu.memory_space<vmem>>, vector<1x8x8xbf16>
    %78 = vector.shape_cast %77 : vector<1x8x8xbf16> to vector<8x8xbf16>
    %cst_66 = arith.constant dense<0.000000e+00> : vector<256x8xf32>
    %79 = tpu.matmul %76, %78, %cst_66 {dimension_numbers = #tpu.dot_dimension_numbers<[1], [0], [0], [1], [0, 0, 1, 1], [], []>} : vector<256x8xbf16>, vector<8x8xbf16>, vector<256x8xf32> -> vector<256x8xf32>
    %80 = arith.addf %73, %79 : vector<256x8xf32>
    %c1_67 = arith.constant 1 : index
    %c2_68 = arith.constant 2 : index
    %c0_69 = arith.constant 0 : index
    %81 = vector.load %arg10[%c1_67, %c2_68, %c0_69] : memref<18x18x8xf32, #tpu.memory_space<vmem>>, vector<16x16x8xf32>
    %82 = vector.shape_cast %81 : vector<16x16x8xf32> to vector<256x8xf32>
    %83 = arith.truncf %82 : vector<256x8xf32> to vector<256x8xbf16>
    %c5 = arith.constant 5 : index
    %c0_70 = arith.constant 0 : index
    %c0_71 = arith.constant 0 : index
    %84 = vector.load %arg7[%c5, %c0_70, %c0_71] : memref<9x8x8xbf16, #tpu.memory_space<vmem>>, vector<1x8x8xbf16>
    %85 = vector.shape_cast %84 : vector<1x8x8xbf16> to vector<8x8xbf16>
    %cst_72 = arith.constant dense<0.000000e+00> : vector<256x8xf32>
    %86 = tpu.matmul %83, %85, %cst_72 {dimension_numbers = #tpu.dot_dimension_numbers<[1], [0], [0], [1], [0, 0, 1, 1], [], []>} : vector<256x8xbf16>, vector<8x8xbf16>, vector<256x8xf32> -> vector<256x8xf32>
    %87 = arith.addf %80, %86 : vector<256x8xf32>
    %c2_73 = arith.constant 2 : index
    %c0_74 = arith.constant 0 : index
    %c0_75 = arith.constant 0 : index
    %88 = vector.load %arg10[%c2_73, %c0_74, %c0_75] : memref<18x18x8xf32, #tpu.memory_space<vmem>>, vector<16x16x8xf32>
    %89 = vector.shape_cast %88 : vector<16x16x8xf32> to vector<256x8xf32>
    %90 = arith.truncf %89 : vector<256x8xf32> to vector<256x8xbf16>
    %c6 = arith.constant 6 : index
    %c0_76 = arith.constant 0 : index
    %c0_77 = arith.constant 0 : index
    %91 = vector.load %arg7[%c6, %c0_76, %c0_77] : memref<9x8x8xbf16, #tpu.memory_space<vmem>>, vector<1x8x8xbf16>
    %92 = vector.shape_cast %91 : vector<1x8x8xbf16> to vector<8x8xbf16>
    %cst_78 = arith.constant dense<0.000000e+00> : vector<256x8xf32>
    %93 = tpu.matmul %90, %92, %cst_78 {dimension_numbers = #tpu.dot_dimension_numbers<[1], [0], [0], [1], [0, 0, 1, 1], [], []>} : vector<256x8xbf16>, vector<8x8xbf16>, vector<256x8xf32> -> vector<256x8xf32>
    %94 = arith.addf %87, %93 : vector<256x8xf32>
    %c2_79 = arith.constant 2 : index
    %c1_80 = arith.constant 1 : index
    %c0_81 = arith.constant 0 : index
    %95 = vector.load %arg10[%c2_79, %c1_80, %c0_81] : memref<18x18x8xf32, #tpu.memory_space<vmem>>, vector<16x16x8xf32>
    %96 = vector.shape_cast %95 : vector<16x16x8xf32> to vector<256x8xf32>
    %97 = arith.truncf %96 : vector<256x8xf32> to vector<256x8xbf16>
    %c7 = arith.constant 7 : index
    %c0_82 = arith.constant 0 : index
    %c0_83 = arith.constant 0 : index
    %98 = vector.load %arg7[%c7, %c0_82, %c0_83] : memref<9x8x8xbf16, #tpu.memory_space<vmem>>, vector<1x8x8xbf16>
    %99 = vector.shape_cast %98 : vector<1x8x8xbf16> to vector<8x8xbf16>
    %cst_84 = arith.constant dense<0.000000e+00> : vector<256x8xf32>
    %100 = tpu.matmul %97, %99, %cst_84 {dimension_numbers = #tpu.dot_dimension_numbers<[1], [0], [0], [1], [0, 0, 1, 1], [], []>} : vector<256x8xbf16>, vector<8x8xbf16>, vector<256x8xf32> -> vector<256x8xf32>
    %101 = arith.addf %94, %100 : vector<256x8xf32>
    %c2_85 = arith.constant 2 : index
    %c2_86 = arith.constant 2 : index
    %c0_87 = arith.constant 0 : index
    %102 = vector.load %arg10[%c2_85, %c2_86, %c0_87] : memref<18x18x8xf32, #tpu.memory_space<vmem>>, vector<16x16x8xf32>
    %103 = vector.shape_cast %102 : vector<16x16x8xf32> to vector<256x8xf32>
    %104 = arith.truncf %103 : vector<256x8xf32> to vector<256x8xbf16>
    %c8 = arith.constant 8 : index
    %c0_88 = arith.constant 0 : index
    %c0_89 = arith.constant 0 : index
    %105 = vector.load %arg7[%c8, %c0_88, %c0_89] : memref<9x8x8xbf16, #tpu.memory_space<vmem>>, vector<1x8x8xbf16>
    %106 = vector.shape_cast %105 : vector<1x8x8xbf16> to vector<8x8xbf16>
    %cst_90 = arith.constant dense<0.000000e+00> : vector<256x8xf32>
    %107 = tpu.matmul %104, %106, %cst_90 {dimension_numbers = #tpu.dot_dimension_numbers<[1], [0], [0], [1], [0, 0, 1, 1], [], []>} : vector<256x8xbf16>, vector<8x8xbf16>, vector<256x8xf32> -> vector<256x8xf32>
    %108 = arith.addf %101, %107 : vector<256x8xf32>
    %c0_91 = arith.constant 0 : index
    %c0_92 = arith.constant 0 : index
    %109 = vector.load %arg8[%c0_91, %c0_92] : memref<1x8xf32, #tpu.memory_space<vmem>>, vector<1x8xf32>
    %110 = vector.broadcast %109 : vector<1x8xf32> to vector<256x8xf32>
    %111 = arith.addf %108, %110 : vector<256x8xf32>
    %112 = vector.shape_cast %111 : vector<256x8xf32> to vector<16x16x8xf32>
    %c0_93 = arith.constant 0 : index
    %c0_94 = arith.constant 0 : index
    %c0_95 = arith.constant 0 : index
    %c0_96 = arith.constant 0 : index
    %113 = vector.load %arg9[%c0_93, %c0_94, %c0_95, %c0_96] : memref<1x16x16x8xf32, #tpu.memory_space<vmem>>, vector<1x16x16x8xf32>
    %114 = vector.shape_cast %113 : vector<1x16x16x8xf32> to vector<16x16x8xf32>
    %115 = vector.shape_cast %112 : vector<16x16x8xf32> to vector<1x16x16x8xf32>
    tpu.vector_store %arg9[%c0_93, %c0_94, %c0_95, %c0_96], %115 {strides = array<i32>} : memref<1x16x16x8xf32, #tpu.memory_space<vmem>>, vector<1x16x16x8xf32>,
    return
  }
  func.func @transform_0(%arg0: i32, %arg1: i32) -> (i32, i32, i32, i32) {
    %c16_i32 = arith.constant 16 : i32
    %0 = arith.muli %arg1, %c16_i32 : i32
    %c1_i32 = arith.constant 1 : i32
    %1 = arith.subi %0, %c1_i32 : i32
    %c0_i32 = arith.constant 0 : i32
    %2 = arith.maxsi %1, %c0_i32 : i32
    %c0_i32_0 = arith.constant 0 : i32
    %c0_i32_1 = arith.constant 0 : i32
    %c0_i32_2 = arith.constant 0 : i32
    return %arg0, %2, %c0_i32_0, %c0_i32_1 : i32, i32, i32, i32
  }
  func.func @transform_1(%arg0: i32, %arg1: i32) -> (i32, i32, i32, i32) {
    %c0_i32 = arith.constant 0 : i32
    %c0_i32_0 = arith.constant 0 : i32
    %c0_i32_1 = arith.constant 0 : i32
    return %arg0, %arg1, %c0_i32, %c0_i32_0 : i32, i32, i32, i32
  }
  func.func @transform_2(%arg0: i32, %arg1: i32) -> (i32, i32, i32, i32) {
    %c1_i32 = arith.constant 1 : i32
    %0 = arith.addi %arg1, %c1_i32 : i32
    %c16_i32 = arith.constant 16 : i32
    %1 = arith.muli %0, %c16_i32 : i32
    %c15_i32 = arith.constant 15 : i32
    %2 = arith.minsi %1, %c15_i32 : i32
    %c0_i32 = arith.constant 0 : i32
    %c0_i32_0 = arith.constant 0 : i32
    %c0_i32_1 = arith.constant 0 : i32
    return %arg0, %2, %c0_i32, %c0_i32_0 : i32, i32, i32, i32
  }
  func.func @transform_3(%arg0: i32, %arg1: i32) -> (i32, i32, i32) {
    %c0_i32 = arith.constant 0 : i32
    %c0_i32_0 = arith.constant 0 : i32
    %c0_i32_1 = arith.constant 0 : i32
    %c0_i32_2 = arith.constant 0 : i32
    return %c0_i32, %c0_i32_0, %c0_i32_1 : i32, i32, i32
  }
  func.func @transform_4(%arg0: i32, %arg1: i32) -> (i32, i32, i32) {
    %c0_i32 = arith.constant 0 : i32
    %c0_i32_0 = arith.constant 0 : i32
    %c0_i32_1 = arith.constant 0 : i32
    %c0_i32_2 = arith.constant 0 : i32
    return %c0_i32, %c0_i32_0, %c0_i32_1 : i32, i32, i32
  }
  func.func @transform_5(%arg0: i32, %arg1: i32) -> (i32, i32, i32) {
    %c0_i32 = arith.constant 0 : i32
    %c0_i32_0 = arith.constant 0 : i32
    %c0_i32_1 = arith.constant 0 : i32
    %c0_i32_2 = arith.constant 0 : i32
    return %c0_i32, %c0_i32_0, %c0_i32_1 : i32, i32, i32
  }
  func.func @transform_6(%arg0: i32, %arg1: i32) -> (i32, i32) {
    %c0_i32 = arith.constant 0 : i32
    %c0_i32_0 = arith.constant 0 : i32
    %c0_i32_1 = arith.constant 0 : i32
    return %c0_i32, %c0_i32_0 : i32, i32
  }
  func.func @transform_7(%arg0: i32, %arg1: i32) -> (i32, i32, i32, i32) {
    %c0_i32 = arith.constant 0 : i32
    %c0_i32_0 = arith.constant 0 : i32
    %c0_i32_1 = arith.constant 0 : i32
    return %arg0, %arg1, %c0_i32, %c0_i32_0 : i32, i32, i32, i32
  }
}

</mosaic_0001>

<llo_original>
// kernel: pre_activate_double_conv.3
$region0: #{pre_activate_double_conv.3}
  #allocation0 [shape = 'u32[]', space=smem, size = 0x4, offset = 0x4, fixed_abs, tag = 'smem constant byte address 0x4 - core index']
  #allocation1 [shape = 'u32[144,128]{1,0:T(1,128)}', space=vmem, size = 0x12000, scoped, tag = 'internal scratch']
  #allocation2 [shape = 'f32[18,18,8]{2,1,0:T(8,128)}', space=vmem, size = 0x36000, scoped, tag = 'scratch operand']
  %s0 = inlined_call_operand.vmem [shape: bf16[2,16,16,8], index: 0, kind: input, shape index: {}, may-alias: {0,1,2}]
  %s1 = inlined_call_operand.vmem [shape: bf16[2,16,16,8], index: 1, kind: input, shape index: {}, may-alias: {0,1,2}]
  %s2 = inlined_call_operand.vmem [shape: bf16[2,16,16,8], index: 2, kind: input, shape index: {}, may-alias: {0,1,2}]
  %s3 = inlined_call_operand.vmem [shape: f32[1,1,8], index: 3, kind: input, shape index: {}]
  %s4 = inlined_call_operand.vmem [shape: f32[1,1,8], index: 4, kind: input, shape index: {}]
  %s5 = inlined_call_operand.vmem [shape: bf16[9,8,8], index: 5, kind: input, shape index: {}]
  %s6 = inlined_call_operand.vmem [shape: f32[1,8], index: 6, kind: input, shape index: {}]
  %s7 = inlined_call_operand.vmem [shape: f32[2,16,16,8], index: 7, kind: output, shape index: {}]
  %s8 = sld [smem:[#allocation0]]
  $region61: #{pre_activate_double_conv.3} parent=0
    _
  %s10 = ssub.s32 1, %s8
  %s11 = scalar_select 0, %s10, %s8
  loop: start=0, step=1, limit=4
  $region2: #{pre_activate_double_conv.3} parent=0 // loop_pre_header
    _
  $region3: #{pre_activate_double_conv.3} parent=0 // loop_header
    %s13 = sphi 0, %s17
    %p14 = scmp.ge.s32.totalorder %s13, 4
    %s20 = sphi 0, %s32
    %s21 = sphi 0, %s28
    %s22 = sphi 0, %s20
    %s23 = sphi 0, %s21
    %s24 = sphi 0, %s22
    %s25 = sphi 0, %s23
    %s45 = sphi 0, %s47
    %s48 = sphi 0, %s45
    %s49 = sphi 0, %s48
    %s65 = sphi 0, %s49
    %s73 = sphi 0, %s75
    %s76 = sphi 0, %s73
    %s77 = sphi 0, %s76
    %s93 = sphi 0, %s77
    %s109 = sphi 0, %s111
    %s112 = sphi 0, %s109
    %s113 = sphi 0, %s112
    %s129 = sphi 0, %s113
    %s133 = sphi 0, %s133
    %s135 = sphi 0, %s133
    %s136 = sphi 0, %s135
    %s150 = sphi 0, %s136
    %s154 = sphi 0, %s154
    %s156 = sphi 0, %s154
    %s157 = sphi 0, %s156
    %s171 = sphi 0, %s157
    %s175 = sphi 0, %s175
    %s177 = sphi 0, %s175
    %s178 = sphi 0, %s177
    %s192 = sphi 0, %s178
    %s196 = sphi 0, %s196
    %s198 = sphi 0, %s196
    %s199 = sphi 0, %s198
    %s213 = sphi 0, %s199
    %s221 = sphi 0, %s223
    %s224 = sphi 0, %s221
    %s225 = sphi 0, %s224
    %s241 = sphi 0, %s225
  $region4: #{pre_activate_double_conv.3} parent=0 // loop_header_branch
    %16 = sbr.rel (%p14) target = $region8
  $region5: #{pre_activate_double_conv.3} parent=0 // loop_body
    %s18 = ssub.s32 %s13, 1
    %s19 = ssub.s32 %s13, 2
    %s26 = sadd.s32 1, %s21
    %p27 = scmp.ge.s32.totalorder %s26, 1
    %s28 = scalar_select %p27, 0, %s26
    %s29 = sadd.s32 1, %s20
    %s30 = scalar_select %p27, %s29, %s20
    %p31 = scmp.ge.s32.totalorder %s30, 2
    %s32 = scalar_select %p31, 0, %s30
    %s33 = smul.u32 %s21, 16
    %s34 = ssub.s32 %s33, 1
    %p35 = scmp.gt.s32.totalorder %s34, 0
    %s36 = scalar_select %p35, %s34, 0
    %s37 = smul.u32 %s28, 16
    %s38 = ssub.s32 %s37, 1
    %p39 = scmp.gt.s32.totalorder %s38, 0
    %s40 = scalar_select %p39, %s38, 0
    %s41 = ssub.s32 %s20, %s32
    %s42 = ssub.s32 %s36, %s40
    %s43 = sor.u32 %s41, %s42
    %p44 = scmp.eq.s32.totalorder %s43, 0
    %s46 = sadd.s32 %s45, 1
    %s47 = scalar_select %p44, %s45, %s46
    %p50 = pneg %p44
    %p51 = scmp.eq.s32.totalorder %s13, 1
    %p52 = por %p50, %p51
    %p53 = scmp.ne.s32.totalorder %s45, %s48
    %p54 = scmp.eq.s32.totalorder %s13, 0
    %p55 = por %p53, %p54
    %p56 = scmp.ne.s32.totalorder %s45, %s48
    %p57 = scmp.eq.s32.totalorder %s18, 1
    %p58 = por %p56, %p57
    %p59 = scmp.ne.s32.totalorder %s48, %s49
    %p60 = scmp.eq.s32.totalorder %s18, 0
    %p61 = por %p59, %p60
    %p62 = scmp.ne.s32.totalorder %s48, %s49
    %p63 = scmp.eq.s32.totalorder %s19, 1
    %p64 = por %p62, %p63
    %p66 = scmp.ne.s32.totalorder %s49, %s65
    %p67 = scmp.eq.s32.totalorder %s19, 0
    %p68 = por %p66, %p67
    %s69 = ssub.s32 %s20, %s32
    %s70 = ssub.s32 %s21, %s28
    %s71 = sor.u32 %s69, %s70
    %p72 = scmp.eq.s32.totalorder %s71, 0
    %s74 = sadd.s32 %s73, 1
    %s75 = scalar_select %p72, %s73, %s74
    %p78 = pneg %p72
    %p79 = scmp.eq.s32.totalorder %s13, 1
    %p80 = por %p78, %p79
    %p81 = scmp.ne.s32.totalorder %s73, %s76
    %p82 = scmp.eq.s32.totalorder %s13, 0
    %p83 = por %p81, %p82
    %p84 = scmp.ne.s32.totalorder %s73, %s76
    %p85 = scmp.eq.s32.totalorder %s18, 1
    %p86 = por %p84, %p85
    %p87 = scmp.ne.s32.totalorder %s76, %s77
    %p88 = scmp.eq.s32.totalorder %s18, 0
    %p89 = por %p87, %p88
    %p90 = scmp.ne.s32.totalorder %s76, %s77
    %p91 = scmp.eq.s32.totalorder %s19, 1
    %p92 = por %p90, %p91
    %p94 = scmp.ne.s32.totalorder %s77, %s93
    %p95 = scmp.eq.s32.totalorder %s19, 0
    %p96 = por %p94, %p95
    %s97 = sadd.s32 %s21, 1
    %s98 = smul.u32 %s97, 16
    %p99 = scmp.lt.s32.totalorder %s98, 15
    %s100 = scalar_select %p99, %s98, 15
    %s101 = sadd.s32 %s28, 1
    %s102 = smul.u32 %s101, 16
    %p103 = scmp.lt.s32.totalorder %s102, 15
    %s104 = scalar_select %p103, %s102, 15
    %s105 = ssub.s32 %s20, %s32
    %s106 = ssub.s32 %s100, %s104
    %s107 = sor.u32 %s105, %s106
    %p108 = scmp.eq.s32.totalorder %s107, 0
    %s110 = sadd.s32 %s109, 1
    %s111 = scalar_select %p108, %s109, %s110
    %p114 = pneg %p108
    %p115 = scmp.eq.s32.totalorder %s13, 1
    %p116 = por %p114, %p115
    %p117 = scmp.ne.s32.totalorder %s109, %s112
    %p118 = scmp.eq.s32.totalorder %s13, 0
    %p119 = por %p117, %p118
    %p120 = scmp.ne.s32.totalorder %s109, %s112
    %p121 = scmp.eq.s32.totalorder %s18, 1
    %p122 = por %p120, %p121
    %p123 = scmp.ne.s32.totalorder %s112, %s113
    %p124 = scmp.eq.s32.totalorder %s18, 0
    %p125 = por %p123, %p124
    %p126 = scmp.ne.s32.totalorder %s112, %s113
    %p127 = scmp.eq.s32.totalorder %s19, 1
    %p128 = por %p126, %p127
    %p130 = scmp.ne.s32.totalorder %s113, %s129
    %p131 = scmp.eq.s32.totalorder %s19, 0
    %p132 = por %p130, %p131
    %s134 = sadd.s32 %s133, 1
    %p137 = scmp.eq.s32.totalorder %s13, 1
    %p138 = scmp.ne.s32.totalorder %s133, %s135
    %p139 = scmp.eq.s32.totalorder %s13, 0
    %p140 = por %p138, %p139
    %p141 = scmp.ne.s32.totalorder %s133, %s135
    %p142 = scmp.eq.s32.totalorder %s18, 1
    %p143 = por %p141, %p142
    %p144 = scmp.ne.s32.totalorder %s135, %s136
    %p145 = scmp.eq.s32.totalorder %s18, 0
    %p146 = por %p144, %p145
    %p147 = scmp.ne.s32.totalorder %s135, %s136
    %p148 = scmp.eq.s32.totalorder %s19, 1
    %p149 = por %p147, %p148
    %p151 = scmp.ne.s32.totalorder %s136, %s150
    %p152 = scmp.eq.s32.totalorder %s19, 0
    %p153 = por %p151, %p152
    %s155 = sadd.s32 %s154, 1
    %p158 = scmp.eq.s32.totalorder %s13, 1
    %p159 = scmp.ne.s32.totalorder %s154, %s156
    %p160 = scmp.eq.s32.totalorder %s13, 0
    %p161 = por %p159, %p160
    %p162 = scmp.ne.s32.totalorder %s154, %s156
    %p163 = scmp.eq.s32.totalorder %s18, 1
    %p164 = por %p162, %p163
    %p165 = scmp.ne.s32.totalorder %s156, %s157
    %p166 = scmp.eq.s32.totalorder %s18, 0
    %p167 = por %p165, %p166
    %p168 = scmp.ne.s32.totalorder %s156, %s157
    %p169 = scmp.eq.s32.totalorder %s19, 1
    %p170 = por %p168, %p169
    %p172 = scmp.ne.s32.totalorder %s157, %s171
    %p173 = scmp.eq.s32.totalorder %s19, 0
    %p174 = por %p172, %p173
    %s176 = sadd.s32 %s175, 1
    %p179 = scmp.eq.s32.totalorder %s13, 1
    %p180 = scmp.ne.s32.totalorder %s175, %s177
    %p181 = scmp.eq.s32.totalorder %s13, 0
    %p182 = por %p180, %p181
    %p183 = scmp.ne.s32.totalorder %s175, %s177
    %p184 = scmp.eq.s32.totalorder %s18, 1
    %p185 = por %p183, %p184
    %p186 = scmp.ne.s32.totalorder %s177, %s178
    %p187 = scmp.eq.s32.totalorder %s18, 0
    %p188 = por %p186, %p187
    %p189 = scmp.ne.s32.totalorder %s177, %s178
    %p190 = scmp.eq.s32.totalorder %s19, 1
    %p191 = por %p189, %p190
    %p193 = scmp.ne.s32.totalorder %s178, %s192
    %p194 = scmp.eq.s32.totalorder %s19, 0
    %p195 = por %p193, %p194
    %s197 = sadd.s32 %s196, 1
    %p200 = scmp.eq.s32.totalorder %s13, 1
    %p201 = scmp.ne.s32.totalorder %s196, %s198
    %p202 = scmp.eq.s32.totalorder %s13, 0
    %p203 = por %p201, %p202
    %p204 = scmp.ne.s32.totalorder %s196, %s198
    %p205 = scmp.eq.s32.totalorder %s18, 1
    %p206 = por %p204, %p205
    %p207 = scmp.ne.s32.totalorder %s198, %s199
    %p208 = scmp.eq.s32.totalorder %s18, 0
    %p209 = por %p207, %p208
    %p210 = scmp.ne.s32.totalorder %s198, %s199
    %p211 = scmp.eq.s32.totalorder %s19, 1
    %p212 = por %p210, %p211
    %p214 = scmp.ne.s32.totalorder %s199, %s213
    %p215 = scmp.eq.s32.totalorder %s19, 0
    %p216 = por %p214, %p215
    %s217 = ssub.s32 %s20, %s32
    %s218 = ssub.s32 %s21, %s28
    %s219 = sor.u32 %s217, %s218
    %p220 = scmp.eq.s32.totalorder %s219, 0
    %s222 = sadd.s32 %s221, 1
    %s223 = scalar_select %p220, %s221, %s222
    %p226 = pneg %p220
    %p227 = scmp.eq.s32.totalorder %s13, 1
    %p228 = por %p226, %p227
    %p229 = scmp.ne.s32.totalorder %s221, %s224
    %p230 = scmp.eq.s32.totalorder %s13, 0
    %p231 = por %p229, %p230
    %p232 = scmp.ne.s32.totalorder %s221, %s224
    %p233 = scmp.eq.s32.totalorder %s18, 1
    %p234 = por %p232, %p233
    %p235 = scmp.ne.s32.totalorder %s224, %s225
    %p236 = scmp.eq.s32.totalorder %s18, 0
    %p237 = por %p235, %p236
    %p238 = scmp.ne.s32.totalorder %s224, %s225
    %p239 = scmp.eq.s32.totalorder %s19, 1
    %p240 = por %p238, %p239
    %p242 = scmp.ne.s32.totalorder %s225, %s241
    %p243 = scmp.eq.s32.totalorder %s19, 0
    %p244 = por %p242, %p243
    %p245 = scmp.le.s32.totalorder 1, %s13
    %p246 = scmp.lt.s32.totalorder %s13, 3
    %p247 = pnand %p245, %p246
    %p248 = pneg %p247
    // Predicated region
    $region9: #{pre_activate_double_conv.3} parent=5 // pred_check
      _
    $region10: #{pre_activate_double_conv.3} parent=5 // pred_check_branch
      %250 = sbr.rel (%p247) target = $region12
    $region11: #{pre_activate_double_conv.3} parent=5 // pred_region
      %s251 = ssub.s32 %s13, 1
      // Predicated region
      $region13: #{pre_activate_double_conv.3} parent=11 // pred_check
        %p252 = pneg %p146
      $region14: #{pre_activate_double_conv.3} parent=11 // pred_check_branch
        %254 = sbr.rel (%p252) target = $region16
      $region15: #{pre_activate_double_conv.3} parent=11 // pred_region
        _
      $region16: #{pre_activate_double_conv.3} parent=11 // pred_fallthru
        _
      // Predicated region
      $region17: #{pre_activate_double_conv.3} parent=11 // pred_check
        %p255 = pneg %p167
      $region18: #{pre_activate_double_conv.3} parent=11 // pred_check_branch
        %257 = sbr.rel (%p255) target = $region20
      $region19: #{pre_activate_double_conv.3} parent=11 // pred_region
        _
      $region20: #{pre_activate_double_conv.3} parent=11 // pred_fallthru
        _
      // Predicated region
      $region21: #{pre_activate_double_conv.3} parent=11 // pred_check
        %p258 = pneg %p188
      $region22: #{pre_activate_double_conv.3} parent=11 // pred_check_branch
        %260 = sbr.rel (%p258) target = $region24
      $region23: #{pre_activate_double_conv.3} parent=11 // pred_region
        _
      $region24: #{pre_activate_double_conv.3} parent=11 // pred_fallthru
        _
      // Predicated region
      $region25: #{pre_activate_double_conv.3} parent=11 // pred_check
        %p261 = pneg %p209
      $region26: #{pre_activate_double_conv.3} parent=11 // pred_check_branch
        %263 = sbr.rel (%p261) target = $region28
      $region27: #{pre_activate_double_conv.3} parent=11 // pred_region
        _
      $region28: #{pre_activate_double_conv.3} parent=11 // pred_fallthru
        _
    $region12: #{pre_activate_double_conv.3} parent=5 // pred_fallthru
      _
    %p264 = scmp.lt.s32.totalorder %s13, 2
    // Predicated region
    $region29: #{pre_activate_double_conv.3} parent=5 // pred_check
      %p265 = pneg %p264
    $region30: #{pre_activate_double_conv.3} parent=5 // pred_check_branch
      %267 = sbr.rel (%p265) target = $region32
    $region31: #{pre_activate_double_conv.3} parent=5 // pred_region
      // Predicated region
      $region33: #{pre_activate_double_conv.3} parent=31 // pred_check
        %p268 = pneg %p55
      $region34: #{pre_activate_double_conv.3} parent=31 // pred_check_branch
        %270 = sbr.rel (%p268) target = $region36
      $region35: #{pre_activate_double_conv.3} parent=31 // pred_region
        %s271 = smul.u32 %s21, 16
        %s272 = ssub.s32 %s271, 1
        %p273 = scmp.gt.s32.totalorder %s272, 0
        %s274 = scalar_select %p273, %s272, 0
        %p275 = scmp.lt.s32.totalorder %s20, 1
        %s276 = scalar_select %p275, %s20, 1
        %p277 = scmp.lt.s32.totalorder %s274, 15
        %s278 = scalar_select %p277, %s274, 15
        %s279 = smul.addr %s278, 2
        %s280 = smul.addr %s276, 32
        %s281 = sadd.s32 %s279, %s280
        %s282 = smul.addr %s281, 4
        %s283 = scalar_lea.vmem %s0, %s282
        %s284 = smul.u32 %s21, 16
        %s285 = ssub.s32 %s284, 1
        %p286 = scmp.gt.s32.totalorder %s285, 0
        %s287 = scalar_select %p286, %s285, 0
      $region36: #{pre_activate_double_conv.3} parent=31 // pred_fallthru
        _
      // Predicated region
      $region37: #{pre_activate_double_conv.3} parent=31 // pred_check
        %p288 = pneg %p83
      $region38: #{pre_activate_double_conv.3} parent=31 // pred_check_branch
        %290 = sbr.rel (%p288) target = $region40
      $region39: #{pre_activate_double_conv.3} parent=31 // pred_region
        %s291 = smul.u32 16, %s21
        %p292 = scmp.lt.s32.totalorder %s20, 1
        %s293 = scalar_select %p292, %s20, 1
        %p294 = scmp.lt.s32.totalorder %s291, 15
        %s295 = scalar_select %p294, %s291, 15
        %s296 = smul.addr %s295, 2
        %s297 = smul.addr %s293, 32
        %s298 = sadd.s32 %s296, %s297
        %s299 = smul.addr %s298, 4
        %s300 = scalar_lea.vmem %s1, %s299
        %s301 = smul.u32 16, %s21
      $region40: #{pre_activate_double_conv.3} parent=31 // pred_fallthru
        _
      // Predicated region
      $region41: #{pre_activate_double_conv.3} parent=31 // pred_check
        %p302 = pneg %p119
      $region42: #{pre_activate_double_conv.3} parent=31 // pred_check_branch
        %304 = sbr.rel (%p302) target = $region44
      $region43: #{pre_activate_double_conv.3} parent=31 // pred_region
        %s305 = sadd.s32 %s21, 1
        %s306 = smul.u32 %s305, 16
        %p307 = scmp.lt.s32.totalorder %s306, 15
        %s308 = scalar_select %p307, %s306, 15
        %p309 = scmp.lt.s32.totalorder %s20, 1
        %s310 = scalar_select %p309, %s20, 1
        %p311 = scmp.lt.s32.totalorder %s308, 15
        %s312 = scalar_select %p311, %s308, 15
        %s313 = smul.addr %s312, 2
        %s314 = smul.addr %s310, 32
        %s315 = sadd.s32 %s313, %s314
        %s316 = smul.addr %s315, 4
        %s317 = scalar_lea.vmem %s2, %s316
        %s318 = sadd.s32 %s21, 1
        %s319 = smul.u32 %s318, 16
        %p320 = scmp.lt.s32.totalorder %s319, 15
        %s321 = scalar_select %p320, %s319, 15
      $region44: #{pre_activate_double_conv.3} parent=31 // pred_fallthru
        _
    $region32: #{pre_activate_double_conv.3} parent=5 // pred_fallthru
      _
    %p322 = scmp.le.s32.totalorder 1, %s13
    %p323 = scmp.lt.s32.totalorder %s13, 3
    %p324 = pnand %p322, %p323
    %p325 = pneg %p324
    // Predicated region
    $region45: #{pre_activate_double_conv.3} parent=5 // pred_check
      _
    $region46: #{pre_activate_double_conv.3} parent=5 // pred_check_branch
      %327 = sbr.rel (%p324) target = $region48
    $region47: #{pre_activate_double_conv.3} parent=5 // pred_region
      %s328 = ssub.s32 %s13, 1
      %s329 = smul.u32 %s23, 16
      %s330 = ssub.s32 %s329, 1
      %p331 = scmp.gt.s32.totalorder %s330, 0
      %s332 = scalar_select %p331, %s330, 0
      %p333 = scmp.lt.s32.totalorder %s22, 1
      %s334 = scalar_select %p333, %s22, 1
      %p335 = scmp.lt.s32.totalorder %s332, 15
      %s336 = scalar_select %p335, %s332, 15
      %s337 = smul.addr %s336, 2
      %s338 = smul.addr %s334, 32
      %s339 = sadd.s32 %s337, %s338
      %s340 = smul.addr %s339, 4
      %s341 = scalar_lea.vmem %s0, %s340
      %p342 = pneg %p61
      %p343 = pneg %p58
      %s344 = smul.u32 16, %s23
      %p345 = scmp.lt.s32.totalorder %s22, 1
      %s346 = scalar_select %p345, %s22, 1
      %p347 = scmp.lt.s32.totalorder %s344, 15
      %s348 = scalar_select %p347, %s344, 15
      %s349 = smul.addr %s348, 2
      %s350 = smul.addr %s346, 32
      %s351 = sadd.s32 %s349, %s350
      %s352 = smul.addr %s351, 4
      %s353 = scalar_lea.vmem %s1, %s352
      %p354 = pneg %p89
      %p355 = pneg %p86
      %s356 = sadd.s32 %s23, 1
      %s357 = smul.u32 %s356, 16
      %p358 = scmp.lt.s32.totalorder %s357, 15
      %s359 = scalar_select %p358, %s357, 15
      %p360 = scmp.lt.s32.totalorder %s22, 1
      %s361 = scalar_select %p360, %s22, 1
      %p362 = scmp.lt.s32.totalorder %s359, 15
      %s363 = scalar_select %p362, %s359, 15
      %s364 = smul.addr %s363, 2
      %s365 = smul.addr %s361, 32
      %s366 = sadd.s32 %s364, %s365
      %s367 = smul.addr %s366, 4
      %s368 = scalar_lea.vmem %s2, %s367
      %p369 = pneg %p125
      %p370 = pneg %p122
      %p371 = pneg %p146
      %p372 = pneg %p143
      %p373 = pneg %p167
      %p374 = pneg %p164
      %p375 = pneg %p188
      %p376 = pneg %p185
      %p377 = pneg %p209
      %p378 = pneg %p206
      %p379 = pneg %p237
      %p380 = pneg %p234
      %s381 = smul.u32 16, %s23
      %p382 = scmp.lt.s32.totalorder %s22, 1
      %s383 = scalar_select %p382, %s22, 1
      %p384 = scmp.lt.s32.totalorder %s381, 15
      %s385 = scalar_select %p384, %s381, 15
      %s386 = smul.addr %s385, 2
      %s387 = smul.addr %s383, 32
      %s388 = sadd.s32 %s386, %s387
      %s389 = smul.addr %s388, 8
      %s390 = scalar_lea.vmem %s7, %s389
      %s391 = smul.u32 %s23, 16
      %s392 = ssub.s32 %s391, 1
      %p393 = scmp.gt.s32.totalorder %s392, 0
      %s394 = scalar_select %p393, %s392, 0
      %p395 = scmp.lt.s32.totalorder %s22, 1
      %s396 = scalar_select %p395, %s22, 1
      %p397 = scmp.lt.s32.totalorder %s394, 15
      %s398 = scalar_select %p397, %s394, 15
      %s399 = smul.addr %s398, 2
      %s400 = smul.addr %s396, 32
      %s401 = sadd.s32 %s399, %s400
      %s402 = smul.addr %s401, 4
      %s403 = scalar_lea.vmem %s0, %s402
      %s404 = smul.u32 %s23, 16
      %s405 = ssub.s32 %s404, 1
      %p406 = scmp.gt.s32.totalorder %s405, 0
      %s407 = scalar_select %p406, %s405, 0
      %s408 = smul.u32 16, %s23
      %p409 = scmp.lt.s32.totalorder %s22, 1
      %s410 = scalar_select %p409, %s22, 1
      %p411 = scmp.lt.s32.totalorder %s408, 15
      %s412 = scalar_select %p411, %s408, 15
      %s413 = smul.addr %s412, 2
      %s414 = smul.addr %s410, 32
      %s415 = sadd.s32 %s413, %s414
      %s416 = smul.addr %s415, 4
      %s417 = scalar_lea.vmem %s1, %s416
      %s418 = smul.u32 16, %s23
      %s419 = sadd.s32 %s23, 1
      %s420 = smul.u32 %s419, 16
      %p421 = scmp.lt.s32.totalorder %s420, 15
      %s422 = scalar_select %p421, %s420, 15
      %p423 = scmp.lt.s32.totalorder %s22, 1
      %s424 = scalar_select %p423, %s22, 1
      %p425 = scmp.lt.s32.totalorder %s422, 15
      %s426 = scalar_select %p425, %s422, 15
      %s427 = smul.addr %s426, 2
      %s428 = smul.addr %s424, 32
      %s429 = sadd.s32 %s427, %s428
      %s430 = smul.addr %s429, 4
      %s431 = scalar_lea.vmem %s2, %s430
      %s432 = sadd.s32 %s23, 1
      %s433 = smul.u32 %s432, 16
      %p434 = scmp.lt.s32.totalorder %s433, 15
      %s435 = scalar_select %p434, %s433, 15
      %s436 = smul.u32 16, %s23
      %p437 = scmp.lt.s32.totalorder %s22, 1
      %s438 = scalar_select %p437, %s22, 1
      %p439 = scmp.lt.s32.totalorder %s436, 15
      %s440 = scalar_select %p439, %s436, 15
      %s441 = smul.addr %s440, 2
      %s442 = smul.addr %s438, 32
      %s443 = sadd.s32 %s441, %s442
      %s444 = smul.addr %s443, 8
      %s445 = scalar_lea.vmem %s7, %s444
      %s446 = smul.u32 16, %s23
      %v448 = vld [vmem:[%s3] sm:$0x1]
      %v449 = vld [vmem:[%s4] sm:$0x1]
      %vm450 = vcmask 57344
      %451 = vst.msk [vmem:[#allocation2] sm:$0x1] %vm450, 0.0
      %452 = vst.msk [vmem:[#allocation2 + $0x18] sm:$0x1] %vm450, 0.0
      %453 = vst.msk [vmem:[#allocation2 + $0x30] sm:$0x1] %vm450, 0.0
      %454 = vst.msk [vmem:[#allocation2 + $0x48] sm:$0x1] %vm450, 0.0
      %455 = vst.msk [vmem:[#allocation2 + $0x60] sm:$0x1] %vm450, 0.0
      %456 = vst.msk [vmem:[#allocation2 + $0x78] sm:$0x1] %vm450, 0.0
      %457 = vst.msk [vmem:[#allocation2 + $0x90] sm:$0x1] %vm450, 0.0
      %458 = vst.msk [vmem:[#allocation2 + $0xa8] sm:$0x1] %vm450, 0.0
      %459 = vst.msk [vmem:[#allocation2 + $0xc0] sm:$0x1] %vm450, 0.0
      %460 = vst.msk [vmem:[#allocation2 + $0xd8] sm:$0x1] %vm450, 0.0
      %461 = vst.msk [vmem:[#allocation2 + $0xf0] sm:$0x1] %vm450, 0.0
      %462 = vst.msk [vmem:[#allocation2 + $0x108] sm:$0x1] %vm450, 0.0
      %463 = vst.msk [vmem:[#allocation2 + $0x120] sm:$0x1] %vm450, 0.0
      %464 = vst.msk [vmem:[#allocation2 + $0x138] sm:$0x1] %vm450, 0.0
      %465 = vst.msk [vmem:[#allocation2 + $0x150] sm:$0x1] %vm450, 0.0
      %466 = vst.msk [vmem:[#allocation2 + $0x168] sm:$0x1] %vm450, 0.0
      %467 = vst.msk [vmem:[#allocation2 + $0x180] sm:$0x1] %vm450, 0.0
      %468 = vst.msk [vmem:[#allocation2 + $0x198] sm:$0x1] %vm450, 0.0
      %469 = vst.msk [vmem:[#allocation2 + $0x11] sm:$0x1] %vm450, 0.0
      %470 = vst.msk [vmem:[#allocation2 + $0x29] sm:$0x1] %vm450, 0.0
      %471 = vst.msk [vmem:[#allocation2 + $0x41] sm:$0x1] %vm450, 0.0
      %472 = vst.msk [vmem:[#allocation2 + $0x59] sm:$0x1] %vm450, 0.0
      %473 = vst.msk [vmem:[#allocation2 + $0x71] sm:$0x1] %vm450, 0.0
      %474 = vst.msk [vmem:[#allocation2 + $0x89] sm:$0x1] %vm450, 0.0
      %475 = vst.msk [vmem:[#allocation2 + $0xa1] sm:$0x1] %vm450, 0.0
      %476 = vst.msk [vmem:[#allocation2 + $0xb9] sm:$0x1] %vm450, 0.0
      %477 = vst.msk [vmem:[#allocation2 + $0xd1] sm:$0x1] %vm450, 0.0
      %478 = vst.msk [vmem:[#allocation2 + $0xe9] sm:$0x1] %vm450, 0.0
      %479 = vst.msk [vmem:[#allocation2 + $0x101] sm:$0x1] %vm450, 0.0
      %480 = vst.msk [vmem:[#allocation2 + $0x119] sm:$0x1] %vm450, 0.0
      %481 = vst.msk [vmem:[#allocation2 + $0x131] sm:$0x1] %vm450, 0.0
      %482 = vst.msk [vmem:[#allocation2 + $0x149] sm:$0x1] %vm450, 0.0
      %483 = vst.msk [vmem:[#allocation2 + $0x161] sm:$0x1] %vm450, 0.0
      %484 = vst.msk [vmem:[#allocation2 + $0x179] sm:$0x1] %vm450, 0.0
      %485 = vst.msk [vmem:[#allocation2 + $0x191] sm:$0x1] %vm450, 0.0
      %486 = vst.msk [vmem:[#allocation2 + $0x1a9] sm:$0x1] %vm450, 0.0
      %v487 = vld [vmem:[%s417] sm:$0xf]
      %v488 = vld [vmem:[%s417 + $0x4] sm:$0xf]
      %v489 = vld [vmem:[%s417 + $0x8] sm:$0xf]
      %v490 = vld [vmem:[%s417 + $0xc] sm:$0xf]
      %v491 = vld [vmem:[%s417 + $0x10] sm:$0xf]
      %v492 = vld [vmem:[%s417 + $0x14] sm:$0xf]
      %v493 = vld [vmem:[%s417 + $0x18] sm:$0xf]
      %v494 = vld [vmem:[%s417 + $0x1c] sm:$0xf]
      %v495 = vld [vmem:[%s417 + $0x20] sm:$0xf]
      %v496 = vld [vmem:[%s417 + $0x24] sm:$0xf]
      %v497 = vld [vmem:[%s417 + $0x28] sm:$0xf]
      %v498 = vld [vmem:[%s417 + $0x2c] sm:$0xf]
      %v499 = vld [vmem:[%s417 + $0x30] sm:$0xf]
      %v500 = vld [vmem:[%s417 + $0x34] sm:$0xf]
      %v501 = vld [vmem:[%s417 + $0x38] sm:$0xf]
      %v502 = vld [vmem:[%s417 + $0x3c] sm:$0xf]
      %v503 = vld [vmem:[%s417 + $0x40] sm:$0xf]
      %v504 = vld [vmem:[%s417 + $0x44] sm:$0xf]
      %v505 = vld [vmem:[%s417 + $0x48] sm:$0xf]
      %v506 = vld [vmem:[%s417 + $0x4c] sm:$0xf]
      %v507 = vld [vmem:[%s417 + $0x50] sm:$0xf]
      %v508 = vld [vmem:[%s417 + $0x54] sm:$0xf]
      %v509 = vld [vmem:[%s417 + $0x58] sm:$0xf]
      %v510 = vld [vmem:[%s417 + $0x5c] sm:$0xf]
      %v511 = vld [vmem:[%s417 + $0x60] sm:$0xf]
      %v512 = vld [vmem:[%s417 + $0x64] sm:$0xf]
      %v513 = vld [vmem:[%s417 + $0x68] sm:$0xf]
      %v514 = vld [vmem:[%s417 + $0x6c] sm:$0xf]
      %v515 = vld [vmem:[%s417 + $0x70] sm:$0xf]
      %v516 = vld [vmem:[%s417 + $0x74] sm:$0xf]
      %v517 = vld [vmem:[%s417 + $0x78] sm:$0xf]
      %v518 = vld [vmem:[%s417 + $0x7c] sm:$0xf]
      %v519 = vunpack.c.l.bf16 %v487
      %v520 = vunpack.c.l.bf16 %v488
      %v521 = vunpack.c.l.bf16 %v489
      %v522 = vunpack.c.l.bf16 %v490
      %v523 = vunpack.c.l.bf16 %v491
      %v524 = vunpack.c.l.bf16 %v492
      %v525 = vunpack.c.l.bf16 %v493
      %v526 = vunpack.c.l.bf16 %v494
      %v527 = vunpack.c.l.bf16 %v495
      %v528 = vunpack.c.l.bf16 %v496
      %v529 = vunpack.c.l.bf16 %v497
      %v530 = vunpack.c.l.bf16 %v498
      %v531 = vunpack.c.l.bf16 %v499
      %v532 = vunpack.c.l.bf16 %v500
      %v533 = vunpack.c.l.bf16 %v501
      %v534 = vunpack.c.l.bf16 %v502
      %v535 = vunpack.c.l.bf16 %v503
      %v536 = vunpack.c.l.bf16 %v504
      %v537 = vunpack.c.l.bf16 %v505
      %v538 = vunpack.c.l.bf16 %v506
      %v539 = vunpack.c.l.bf16 %v507
      %v540 = vunpack.c.l.bf16 %v508
      %v541 = vunpack.c.l.bf16 %v509
      %v542 = vunpack.c.l.bf16 %v510
      %v543 = vunpack.c.l.bf16 %v511
      %v544 = vunpack.c.l.bf16 %v512
      %v545 = vunpack.c.l.bf16 %v513
      %v546 = vunpack.c.l.bf16 %v514
      %v547 = vunpack.c.l.bf16 %v515
      %v548 = vunpack.c.l.bf16 %v516
      %v549 = vunpack.c.l.bf16 %v517
      %v550 = vunpack.c.l.bf16 %v518
      %v552 = vlaneseq
      %v553 = vshrl.u32 %v552, 7
      %v554 = vsub.s32 0, %v553
      %v555 = vrot.slane %v448, %v554
      %v557 = vmul.f32 %v519, %v555
      %v558 = vmul.f32 %v520, %v555
      %v559 = vmul.f32 %v521, %v555
      %v560 = vmul.f32 %v522, %v555
      %v561 = vmul.f32 %v523, %v555
      %v562 = vmul.f32 %v524, %v555
      %v563 = vmul.f32 %v525, %v555
      %v564 = vmul.f32 %v526, %v555
      %v565 = vmul.f32 %v527, %v555
      %v566 = vmul.f32 %v528, %v555
      %v567 = vmul.f32 %v529, %v555
      %v568 = vmul.f32 %v530, %v555
      %v569 = vmul.f32 %v531, %v555
      %v570 = vmul.f32 %v532, %v555
      %v571 = vmul.f32 %v533, %v555
      %v572 = vmul.f32 %v534, %v555
      %v573 = vmul.f32 %v535, %v555
      %v574 = vmul.f32 %v536, %v555
      %v575 = vmul.f32 %v537, %v555
      %v576 = vmul.f32 %v538, %v555
      %v577 = vmul.f32 %v539, %v555
      %v578 = vmul.f32 %v540, %v555
      %v579 = vmul.f32 %v541, %v555
      %v580 = vmul.f32 %v542, %v555
      %v581 = vmul.f32 %v543, %v555
      %v582 = vmul.f32 %v544, %v555
      %v583 = vmul.f32 %v545, %v555
      %v584 = vmul.f32 %v546, %v555
      %v585 = vmul.f32 %v547, %v555
      %v586 = vmul.f32 %v548, %v555
      %v587 = vmul.f32 %v549, %v555
      %v588 = vmul.f32 %v550, %v555
      %v590 = vlaneseq
      %v591 = vshrl.u32 %v590, 7
      %v592 = vsub.s32 0, %v591
      %v593 = vrot.slane %v449, %v592
      %v595 = vadd.f32 %v557, %v593
      %v596 = vadd.f32 %v558, %v593
      %v597 = vadd.f32 %v559, %v593
      %v598 = vadd.f32 %v560, %v593
      %v599 = vadd.f32 %v561, %v593
      %v600 = vadd.f32 %v562, %v593
      %v601 = vadd.f32 %v563, %v593
      %v602 = vadd.f32 %v564, %v593
      %v603 = vadd.f32 %v565, %v593
      %v604 = vadd.f32 %v566, %v593
      %v605 = vadd.f32 %v567, %v593
      %v606 = vadd.f32 %v568, %v593
      %v607 = vadd.f32 %v569, %v593
      %v608 = vadd.f32 %v570, %v593
      %v609 = vadd.f32 %v571, %v593
      %v610 = vadd.f32 %v572, %v593
      %v611 = vadd.f32 %v573, %v593
      %v612 = vadd.f32 %v574, %v593
      %v613 = vadd.f32 %v575, %v593
      %v614 = vadd.f32 %v576, %v593
      %v615 = vadd.f32 %v577, %v593
      %v616 = vadd.f32 %v578, %v593
      %v617 = vadd.f32 %v579, %v593
      %v618 = vadd.f32 %v580, %v593
      %v619 = vadd.f32 %v581, %v593
      %v620 = vadd.f32 %v582, %v593
      %v621 = vadd.f32 %v583, %v593
      %v622 = vadd.f32 %v584, %v593
      %v623 = vadd.f32 %v585, %v593
      %v624 = vadd.f32 %v586, %v593
      %v625 = vadd.f32 %v587, %v593
      %v626 = vadd.f32 %v588, %v593
      %v627 = vmax.f32 %v595, 0.0
      %v628 = vmax.f32 %v596, 0.0
      %v629 = vmax.f32 %v597, 0.0
      %v630 = vmax.f32 %v598, 0.0
      %v631 = vmax.f32 %v599, 0.0
      %v632 = vmax.f32 %v600, 0.0
      %v633 = vmax.f32 %v601, 0.0
      %v634 = vmax.f32 %v602, 0.0
      %v635 = vmax.f32 %v603, 0.0
      %v636 = vmax.f32 %v604, 0.0
      %v637 = vmax.f32 %v605, 0.0
      %v638 = vmax.f32 %v606, 0.0
      %v639 = vmax.f32 %v607, 0.0
      %v640 = vmax.f32 %v608, 0.0
      %v641 = vmax.f32 %v609, 0.0
      %v642 = vmax.f32 %v610, 0.0
      %v643 = vmax.f32 %v611, 0.0
      %v644 = vmax.f32 %v612, 0.0
      %v645 = vmax.f32 %v613, 0.0
      %v646 = vmax.f32 %v614, 0.0
      %v647 = vmax.f32 %v615, 0.0
      %v648 = vmax.f32 %v616, 0.0
      %v649 = vmax.f32 %v617, 0.0
      %v650 = vmax.f32 %v618, 0.0
      %v651 = vmax.f32 %v619, 0.0
      %v652 = vmax.f32 %v620, 0.0
      %v653 = vmax.f32 %v621, 0.0
      %v654 = vmax.f32 %v622, 0.0
      %v655 = vmax.f32 %v623, 0.0
      %v656 = vmax.f32 %v624, 0.0
      %v657 = vmax.f32 %v625, 0.0
      %v658 = vmax.f32 %v626, 0.0
      %s659 = scalar_lea.vmem [#allocation2], 24
      %vm660 = vcmask 64512
      %661 = vst.msk [vmem:[%s659 + $0x1] sm:$0xff] %vm660, %v627
      %662 = vst.msk [vmem:[%s659 + $0x9] sm:$0xff] %vm660, %v628
      %663 = vst.msk [vmem:[%s659 + $0x19] sm:$0xff] %vm660, %v629
      %664 = vst.msk [vmem:[%s659 + $0x21] sm:$0xff] %vm660, %v630
      %665 = vst.msk [vmem:[%s659 + $0x31] sm:$0xff] %vm660, %v631
      %666 = vst.msk [vmem:[%s659 + $0x39] sm:$0xff] %vm660, %v632
      %667 = vst.msk [vmem:[%s659 + $0x49] sm:$0xff] %vm660, %v633
      %668 = vst.msk [vmem:[%s659 + $0x51] sm:$0xff] %vm660, %v634
      %669 = vst.msk [vmem:[%s659 + $0x61] sm:$0xff] %vm660, %v635
      %670 = vst.msk [vmem:[%s659 + $0x69] sm:$0xff] %vm660, %v636
      %671 = vst.msk [vmem:[%s659 + $0x79] sm:$0xff] %vm660, %v637
      %672 = vst.msk [vmem:[%s659 + $0x81] sm:$0xff] %vm660, %v638
      %673 = vst.msk [vmem:[%s659 + $0x91] sm:$0xff] %vm660, %v639
      %674 = vst.msk [vmem:[%s659 + $0x99] sm:$0xff] %vm660, %v640
      %675 = vst.msk [vmem:[%s659 + $0xa9] sm:$0xff] %vm660, %v641
      %676 = vst.msk [vmem:[%s659 + $0xb1] sm:$0xff] %vm660, %v642
      %677 = vst.msk [vmem:[%s659 + $0xc1] sm:$0xff] %vm660, %v643
      %678 = vst.msk [vmem:[%s659 + $0xc9] sm:$0xff] %vm660, %v644
      %679 = vst.msk [vmem:[%s659 + $0xd9] sm:$0xff] %vm660, %v645
      %680 = vst.msk [vmem:[%s659 + $0xe1] sm:$0xff] %vm660, %v646
      %681 = vst.msk [vmem:[%s659 + $0xf1] sm:$0xff] %vm660, %v647
      %682 = vst.msk [vmem:[%s659 + $0xf9] sm:$0xff] %vm660, %v648
      %683 = vst.msk [vmem:[%s659 + $0x109] sm:$0xff] %vm660, %v649
      %684 = vst.msk [vmem:[%s659 + $0x111] sm:$0xff] %vm660, %v650
      %685 = vst.msk [vmem:[%s659 + $0x121] sm:$0xff] %vm660, %v651
      %686 = vst.msk [vmem:[%s659 + $0x129] sm:$0xff] %vm660, %v652
      %687 = vst.msk [vmem:[%s659 + $0x139] sm:$0xff] %vm660, %v653
      %688 = vst.msk [vmem:[%s659 + $0x141] sm:$0xff] %vm660, %v654
      %689 = vst.msk [vmem:[%s659 + $0x151] sm:$0xff] %vm660, %v655
      %690 = vst.msk [vmem:[%s659 + $0x159] sm:$0xff] %vm660, %v656
      %691 = vst.msk [vmem:[%s659 + $0x169] sm:$0xff] %vm660, %v657
      %692 = vst.msk [vmem:[%s659 + $0x171] sm:$0xff] %vm660, %v658
      %p693 = scmp.ne.s32.totalorder %s23, 0
      %s694 = scalar_select %p693, 1, 0
      %s695 = scvt.s32.f32 %s694
      %v696 = vld [vmem:[%s403] sm:$0xf]
      %v697 = vld [vmem:[%s403 + $0x4] sm:$0xf]
      %v698 = vunpack.c.l.bf16 %v696
      %v699 = vunpack.c.l.bf16 %v697
      %v700 = vmul.f32 %v698, %v555
      %v701 = vmul.f32 %v699, %v555
      %v702 = vadd.f32 %v700, %v593
      %v703 = vadd.f32 %v701, %v593
      %v704 = vmax.f32 %v702, 0.0
      %v705 = vmax.f32 %v703, 0.0
      %v706 = vstv %s695
      %v707 = vmul.f32 %v704, %v706
      %v708 = vmul.f32 %v705, %v706
      %709 = vst.msk [vmem:[#allocation2 + $0x1] sm:$0xff] %vm660, %v707
      %710 = vst.msk [vmem:[#allocation2 + $0x9] sm:$0xff] %vm660, %v708
      %v711 = vld [vmem:[%s431] sm:$0xf]
      %v712 = vld [vmem:[%s431 + $0x4] sm:$0xf]
      %v713 = vunpack.c.l.bf16 %v711
      %v714 = vunpack.c.l.bf16 %v712
      %v715 = vmul.f32 %v713, %v555
      %v716 = vmul.f32 %v714, %v555
      %v717 = vadd.f32 %v715, %v593
      %v718 = vadd.f32 %v716, %v593
      %v719 = vmax.f32 %v717, 0.0
      %v720 = vmax.f32 %v718, 0.0
      %v721 = vmul.f32 %v719, %v706
      %v722 = vmul.f32 %v720, %v706
      %s723 = scalar_lea.vmem [#allocation2], 408
      %724 = vst.msk [vmem:[%s723 + $0x1] sm:$0xff] %vm660, %v721
      %725 = vst.msk [vmem:[%s723 + $0x9] sm:$0xff] %vm660, %v722
      %v726 = vld [vmem:[#allocation2] sm:$0xff]
      %v727 = vld [vmem:[#allocation2 + $0x8] sm:$0xff]
      %v728 = vld [vmem:[#allocation2 + $0x18] sm:$0xff]
      %v729 = vld [vmem:[#allocation2 + $0x20] sm:$0xff]
      %v730 = vld [vmem:[#allocation2 + $0x30] sm:$0xff]
      %v731 = vld [vmem:[#allocation2 + $0x38] sm:$0xff]
      %v732 = vld [vmem:[#allocation2 + $0x48] sm:$0xff]
      %v733 = vld [vmem:[#allocation2 + $0x50] sm:$0xff]
      %v734 = vld [vmem:[#allocation2 + $0x60] sm:$0xff]
      %v735 = vld [vmem:[#allocation2 + $0x68] sm:$0xff]
      %v736 = vld [vmem:[#allocation2 + $0x78] sm:$0xff]
      %v737 = vld [vmem:[#allocation2 + $0x80] sm:$0xff]
      %v738 = vld [vmem:[#allocation2 + $0x90] sm:$0xff]
      %v739 = vld [vmem:[#allocation2 + $0x98] sm:$0xff]
      %v740 = vld [vmem:[#allocation2 + $0xa8] sm:$0xff]
      %v741 = vld [vmem:[#allocation2 + $0xb0] sm:$0xff]
      %v742 = vld [vmem:[#allocation2 + $0xc0] sm:$0xff]
      %v743 = vld [vmem:[#allocation2 + $0xc8] sm:$0xff]
      %v744 = vld [vmem:[#allocation2 + $0xd8] sm:$0xff]
      %v745 = vld [vmem:[#allocation2 + $0xe0] sm:$0xff]
      %v746 = vld [vmem:[#allocation2 + $0xf0] sm:$0xff]
      %v747 = vld [vmem:[#allocation2 + $0xf8] sm:$0xff]
      %v748 = vld [vmem:[#allocation2 + $0x108] sm:$0xff]
      %v749 = vld [vmem:[#allocation2 + $0x110] sm:$0xff]
      %v750 = vld [vmem:[#allocation2 + $0x120] sm:$0xff]
      %v751 = vld [vmem:[#allocation2 + $0x128] sm:$0xff]
      %v752 = vld [vmem:[#allocation2 + $0x138] sm:$0xff]
      %v753 = vld [vmem:[#allocation2 + $0x140] sm:$0xff]
      %v754 = vld [vmem:[#allocation2 + $0x150] sm:$0xff]
      %v755 = vld [vmem:[#allocation2 + $0x158] sm:$0xff]
      %v756 = vld [vmem:[#allocation2 + $0x168] sm:$0xff]
      %v757 = vld [vmem:[#allocation2 + $0x170] sm:$0xff]
      %v758 = vpack.c.bf16 %v727, %v726
      %v759 = vpack.c.bf16 %v729, %v728
      %v760 = vpack.c.bf16 %v731, %v730
      %v761 = vpack.c.bf16 %v733, %v732
      %v762 = vpack.c.bf16 %v735, %v734
      %v763 = vpack.c.bf16 %v737, %v736
      %v764 = vpack.c.bf16 %v739, %v738
      %v765 = vpack.c.bf16 %v741, %v740
      %v766 = vpack.c.bf16 %v743, %v742
      %v767 = vpack.c.bf16 %v745, %v744
      %v768 = vpack.c.bf16 %v747, %v746
      %v769 = vpack.c.bf16 %v749, %v748
      %v770 = vpack.c.bf16 %v751, %v750
      %v771 = vpack.c.bf16 %v753, %v752
      %v772 = vpack.c.bf16 %v755, %v754
      %v773 = vpack.c.bf16 %v757, %v756
      %v774 = vld [vmem:[%s5] sm:$0xf]
      %v775 = vld [vmem:[#allocation2 + $0x1] sm:$0xff]
      %v776 = vld [vmem:[#allocation2 + $0x9] sm:$0xff]
      %v777 = vld [vmem:[#allocation2 + $0x19] sm:$0xff]
      %v778 = vld [vmem:[#allocation2 + $0x21] sm:$0xff]
      %v779 = vld [vmem:[#allocation2 + $0x31] sm:$0xff]
      %v780 = vld [vmem:[#allocation2 + $0x39] sm:$0xff]
      %v781 = vld [vmem:[#allocation2 + $0x49] sm:$0xff]
      %v782 = vld [vmem:[#allocation2 + $0x51] sm:$0xff]
      %v783 = vld [vmem:[#allocation2 + $0x61] sm:$0xff]
      %v784 = vld [vmem:[#allocation2 + $0x69] sm:$0xff]
      %v785 = vld [vmem:[#allocation2 + $0x79] sm:$0xff]
      %v786 = vld [vmem:[#allocation2 + $0x81] sm:$0xff]
      %v787 = vld [vmem:[#allocation2 + $0x91] sm:$0xff]
      %v788 = vld [vmem:[#allocation2 + $0x99] sm:$0xff]
      %v789 = vld [vmem:[#allocation2 + $0xa9] sm:$0xff]
      %v790 = vld [vmem:[#allocation2 + $0xb1] sm:$0xff]
      %v791 = vld [vmem:[#allocation2 + $0xc1] sm:$0xff]
      %v792 = vld [vmem:[#allocation2 + $0xc9] sm:$0xff]
      %v793 = vld [vmem:[#allocation2 + $0xd9] sm:$0xff]
      %v794 = vld [vmem:[#allocation2 + $0xe1] sm:$0xff]
      %v795 = vld [vmem:[#allocation2 + $0xf1] sm:$0xff]
      %v796 = vld [vmem:[#allocation2 + $0xf9] sm:$0xff]
      %v797 = vld [vmem:[#allocation2 + $0x109] sm:$0xff]
      %v798 = vld [vmem:[#allocation2 + $0x111] sm:$0xff]
      %v799 = vld [vmem:[#allocation2 + $0x121] sm:$0xff]
      %v800 = vld [vmem:[#allocation2 + $0x129] sm:$0xff]
      %v801 = vld [vmem:[#allocation2 + $0x139] sm:$0xff]
      %v802 = vld [vmem:[#allocation2 + $0x141] sm:$0xff]
      %v803 = vld [vmem:[#allocation2 + $0x151] sm:$0xff]
      %v804 = vld [vmem:[#allocation2 + $0x159] sm:$0xff]
      %v805 = vld [vmem:[#allocation2 + $0x169] sm:$0xff]
      %v806 = vld [vmem:[#allocation2 + $0x171] sm:$0xff]
      %v807 = vpack.c.bf16 %v776, %v775
      %v808 = vpack.c.bf16 %v778, %v777
      %v809 = vpack.c.bf16 %v780, %v779
      %v810 = vpack.c.bf16 %v782, %v781
      %v811 = vpack.c.bf16 %v784, %v783
      %v812 = vpack.c.bf16 %v786, %v785
      %v813 = vpack.c.bf16 %v788, %v787
      %v814 = vpack.c.bf16 %v790, %v789
      %v815 = vpack.c.bf16 %v792, %v791
      %v816 = vpack.c.bf16 %v794, %v793
      %v817 = vpack.c.bf16 %v796, %v795
      %v818 = vpack.c.bf16 %v798, %v797
      %v819 = vpack.c.bf16 %v800, %v799
      %v820 = vpack.c.bf16 %v802, %v801
      %v821 = vpack.c.bf16 %v804, %v803
      %v822 = vpack.c.bf16 %v806, %v805
      %s823 = scalar_lea.vmem %s5, 4
      %v824 = vld [vmem:[%s823] sm:$0xf]
      %v826 = vsel %vm660, %v807, 0
      %v829 = vsel %vm660, %v808, 0
      %v832 = vsel %vm660, %v809, 0
      %v835 = vsel %vm660, %v810, 0
      %v838 = vsel %vm660, %v811, 0
      %v841 = vsel %vm660, %v812, 0
      %v844 = vsel %vm660, %v813, 0
      %v847 = vsel %vm660, %v814, 0
      %v850 = vsel %vm660, %v815, 0
      %v853 = vsel %vm660, %v816, 0
      %v856 = vsel %vm660, %v817, 0
      %v859 = vsel %vm660, %v818, 0
      %v862 = vsel %vm660, %v819, 0
      %v865 = vsel %vm660, %v820, 0
      %v868 = vsel %vm660, %v821, 0
      %v871 = vsel %vm660, %v822, 0
      %vm873 = vcmask 1043456
      %v875 = vsel %vm873, %v824, 0
      %877 = vmatprep.subr.bf16.mxu0 0
      %878 = vmatpush1.bf16.msra.mxu0 %v875
      %879 = vmatprep.subr.bf16.mxu0 0
      %880 = vmatpush1.bf16.msra.mxu0 0
      %881 = vmatprep.subr.bf16.mxu0 0
      %882 = vmatpush1.bf16.msra.mxu0 0
      %883 = vmatprep.subr.bf16.mxu0 0
      %884 = vmatpush1.bf16.msra.mxu0 0
      %885 = vmatprep.subr.bf16.mxu0 0
      %886 = vmatpush1.bf16.msra.mxu0 0
      %887 = vmatprep.subr.bf16.mxu0 0
      %888 = vmatpush1.bf16.msra.mxu0 0
      %889 = vmatprep.subr.bf16.mxu0 0
      %890 = vmatpush1.bf16.msra.mxu0 0
      %891 = vmatprep.subr.bf16.mxu0 0
      %892 = vmatpush1.bf16.msra.mxu0 0
      %893 = vmatprep.subr.bf16.mxu0 0
      %894 = vmatpush1.bf16.msra.mxu0 0
      %895 = vmatprep.subr.bf16.mxu0 0
      %896 = vmatpush1.bf16.msra.mxu0 0
      %897 = vmatprep.subr.bf16.mxu0 0
      %898 = vmatpush1.bf16.msra.mxu0 0
      %899 = vmatprep.subr.bf16.mxu0 0
      %900 = vmatpush1.bf16.msra.mxu0 0
      %901 = vmatprep.subr.bf16.mxu0 0
      %902 = vmatpush1.bf16.msra.mxu0 0
      %903 = vmatprep.subr.bf16.mxu0 0
      %904 = vmatpush1.bf16.msra.mxu0 0
      %905 = vmatprep.subr.bf16.mxu0 0
      %906 = vmatpush1.bf16.msra.mxu0 0
      %907 = vmatprep.subr.bf16.mxu0 0
      %908 = vmatpush1.bf16.msra.mxu0 0
      %909 = vmatprep.mubr.bf16.mxu0 0
      %910 = vmatmul.mubr.bf16.gmra.mrb[0].mxu0 %v826
      %v911 = vpop.f32.mrb[0].mxu0
      %v912 = vadd.f32 0.0, %v911
      %v913 = vpop.f32.mrb[0].mxu0
      %v914 = vpop.f32.mrb[0].mxu0
      %v915 = vadd.f32 0.0, %v914
      %v916 = vpop.f32.mrb[0].mxu0
      %917 = vmatprep.mubr.bf16.mxu0 0
      %918 = vmatmul.mubr.bf16.gmra.mrb[0].mxu0 %v829
      %v919 = vpop.f32.mrb[0].mxu0
      %v920 = vadd.f32 0.0, %v919
      %v921 = vpop.f32.mrb[0].mxu0
      %v922 = vpop.f32.mrb[0].mxu0
      %v923 = vadd.f32 0.0, %v922
      %v924 = vpop.f32.mrb[0].mxu0
      %925 = vmatprep.mubr.bf16.mxu0 0
      %926 = vmatmul.mubr.bf16.gmra.mrb[0].mxu0 %v832
      %v927 = vpop.f32.mrb[0].mxu0
      %v928 = vadd.f32 0.0, %v927
      %v929 = vpop.f32.mrb[0].mxu0
      %v930 = vpop.f32.mrb[0].mxu0
      %v931 = vadd.f32 0.0, %v930
      %v932 = vpop.f32.mrb[0].mxu0
      %933 = vmatprep.mubr.bf16.mxu0 0
      %934 = vmatmul.mubr.bf16.gmra.mrb[0].mxu0 %v835
      %v935 = vpop.f32.mrb[0].mxu0
      %v936 = vadd.f32 0.0, %v935
      %v937 = vpop.f32.mrb[0].mxu0
      %v938 = vpop.f32.mrb[0].mxu0
      %v939 = vadd.f32 0.0, %v938
      %v940 = vpop.f32.mrb[0].mxu0
      %941 = vmatprep.mubr.bf16.mxu0 0
      %942 = vmatmul.mubr.bf16.gmra.mrb[0].mxu0 %v838
      %v943 = vpop.f32.mrb[0].mxu0
      %v944 = vadd.f32 0.0, %v943
      %v945 = vpop.f32.mrb[0].mxu0
      %v946 = vpop.f32.mrb[0].mxu0
      %v947 = vadd.f32 0.0, %v946
      %v948 = vpop.f32.mrb[0].mxu0
      %949 = vmatprep.mubr.bf16.mxu0 0
      %950 = vmatmul.mubr.bf16.gmra.mrb[0].mxu0 %v841
      %v951 = vpop.f32.mrb[0].mxu0
      %v952 = vadd.f32 0.0, %v951
      %v953 = vpop.f32.mrb[0].mxu0
      %v954 = vpop.f32.mrb[0].mxu0
      %v955 = vadd.f32 0.0, %v954
      %v956 = vpop.f32.mrb[0].mxu0
      %957 = vmatprep.mubr.bf16.mxu0 0
      %958 = vmatmul.mubr.bf16.gmra.mrb[0].mxu0 %v844
      %v959 = vpop.f32.mrb[0].mxu0
      %v960 = vadd.f32 0.0, %v959
      %v961 = vpop.f32.mrb[0].mxu0
      %v962 = vpop.f32.mrb[0].mxu0
      %v963 = vadd.f32 0.0, %v962
      %v964 = vpop.f32.mrb[0].mxu0
      %965 = vmatprep.mubr.bf16.mxu0 0
      %966 = vmatmul.mubr.bf16.gmra.mrb[0].mxu0 %v847
      %v967 = vpop.f32.mrb[0].mxu0
      %v968 = vadd.f32 0.0, %v967
      %v969 = vpop.f32.mrb[0].mxu0
      %v970 = vpop.f32.mrb[0].mxu0
      %v971 = vadd.f32 0.0, %v970
      %v972 = vpop.f32.mrb[0].mxu0
      %973 = vmatprep.mubr.bf16.mxu0 0
      %974 = vmatmul.mubr.bf16.gmra.mrb[0].mxu0 %v850
      %v975 = vpop.f32.mrb[0].mxu0
      %v976 = vadd.f32 0.0, %v975
      %v977 = vpop.f32.mrb[0].mxu0
      %v978 = vpop.f32.mrb[0].mxu0
      %v979 = vadd.f32 0.0, %v978
      %v980 = vpop.f32.mrb[0].mxu0
      %981 = vmatprep.mubr.bf16.mxu0 0
      %982 = vmatmul.mubr.bf16.gmra.mrb[0].mxu0 %v853
      %v983 = vpop.f32.mrb[0].mxu0
      %v984 = vadd.f32 0.0, %v983
      %v985 = vpop.f32.mrb[0].mxu0
      %v986 = vpop.f32.mrb[0].mxu0
      %v987 = vadd.f32 0.0, %v986
      %v988 = vpop.f32.mrb[0].mxu0
      %989 = vmatprep.mubr.bf16.mxu0 0
      %990 = vmatmul.mubr.bf16.gmra.mrb[0].mxu0 %v856
      %v991 = vpop.f32.mrb[0].mxu0
      %v992 = vadd.f32 0.0, %v991
      %v993 = vpop.f32.mrb[0].mxu0
      %v994 = vpop.f32.mrb[0].mxu0
      %v995 = vadd.f32 0.0, %v994
      %v996 = vpop.f32.mrb[0].mxu0
      %997 = vmatprep.mubr.bf16.mxu0 0
      %998 = vmatmul.mubr.bf16.gmra.mrb[0].mxu0 %v859
      %v999 = vpop.f32.mrb[0].mxu0
      %v1000 = vadd.f32 0.0, %v999
      %v1001 = vpop.f32.mrb[0].mxu0
      %v1002 = vpop.f32.mrb[0].mxu0
      %v1003 = vadd.f32 0.0, %v1002
      %v1004 = vpop.f32.mrb[0].mxu0
      %1005 = vmatprep.mubr.bf16.mxu0 0
      %1006 = vmatmul.mubr.bf16.gmra.mrb[0].mxu0 %v862
      %v1007 = vpop.f32.mrb[0].mxu0
      %v1008 = vadd.f32 0.0, %v1007
      %v1009 = vpop.f32.mrb[0].mxu0
      %v1010 = vpop.f32.mrb[0].mxu0
      %v1011 = vadd.f32 0.0, %v1010
      %v1012 = vpop.f32.mrb[0].mxu0
      %1013 = vmatprep.mubr.bf16.mxu0 0
      %1014 = vmatmul.mubr.bf16.gmra.mrb[0].mxu0 %v865
      %v1015 = vpop.f32.mrb[0].mxu0
      %v1016 = vadd.f32 0.0, %v1015
      %v1017 = vpop.f32.mrb[0].mxu0
      %v1018 = vpop.f32.mrb[0].mxu0
      %v1019 = vadd.f32 0.0, %v1018
      %v1020 = vpop.f32.mrb[0].mxu0
      %1021 = vmatprep.mubr.bf16.mxu0 0
      %1022 = vmatmul.mubr.bf16.gmra.mrb[0].mxu0 %v868
      %v1023 = vpop.f32.mrb[0].mxu0
      %v1024 = vadd.f32 0.0, %v1023
      %v1025 = vpop.f32.mrb[0].mxu0
      %v1026 = vpop.f32.mrb[0].mxu0
      %v1027 = vadd.f32 0.0, %v1026
      %v1028 = vpop.f32.mrb[0].mxu0
      %1029 = vmatprep.mubr.bf16.mxu0 0
      %1030 = vmatmul.mubr.bf16.gmra.mrb[0].mxu0 %v871
      %v1031 = vpop.f32.mrb[0].mxu0
      %v1032 = vadd.f32 0.0, %v1031
      %v1033 = vpop.f32.mrb[0].mxu0
      %v1034 = vpop.f32.mrb[0].mxu0
      %v1035 = vadd.f32 0.0, %v1034
      %v1036 = vpop.f32.mrb[0].mxu0
      %1037 = vdwg.mxu0
      %v1039 = vsel %vm660, %v758, 0
      %v1042 = vsel %vm660, %v759, 0
      %v1045 = vsel %vm660, %v760, 0
      %v1048 = vsel %vm660, %v761, 0
      %v1051 = vsel %vm660, %v762, 0
      %v1054 = vsel %vm660, %v763, 0
      %v1057 = vsel %vm660, %v764, 0
      %v1060 = vsel %vm660, %v765, 0
      %v1063 = vsel %vm660, %v766, 0
      %v1066 = vsel %vm660, %v767, 0
      %v1069 = vsel %vm660, %v768, 0
      %v1072 = vsel %vm660, %v769, 0
      %v1075 = vsel %vm660, %v770, 0
      %v1078 = vsel %vm660, %v771, 0
      %v1081 = vsel %vm660, %v772, 0
      %v1084 = vsel %vm660, %v773, 0
      %v1087 = vsel %vm873, %v774, 0
      %1089 = vmatprep.subr.bf16.mxu0 0
      %1090 = vmatpush1.bf16.msra.mxu0 %v1087
      %1091 = vmatprep.subr.bf16.mxu0 0
      %1092 = vmatpush1.bf16.msra.mxu0 0
      %1093 = vmatprep.subr.bf16.mxu0 0
      %1094 = vmatpush1.bf16.msra.mxu0 0
      %1095 = vmatprep.subr.bf16.mxu0 0
      %1096 = vmatpush1.bf16.msra.mxu0 0
      %1097 = vmatprep.subr.bf16.mxu0 0
      %1098 = vmatpush1.bf16.msra.mxu0 0
      %1099 = vmatprep.subr.bf16.mxu0 0
      %1100 = vmatpush1.bf16.msra.mxu0 0
      %1101 = vmatprep.subr.bf16.mxu0 0
      %1102 = vmatpush1.bf16.msra.mxu0 0
      %1103 = vmatprep.subr.bf16.mxu0 0
      %1104 = vmatpush1.bf16.msra.mxu0 0
      %1105 = vmatprep.subr.bf16.mxu0 0
      %1106 = vmatpush1.bf16.msra.mxu0 0
      %1107 = vmatprep.subr.bf16.mxu0 0
      %1108 = vmatpush1.bf16.msra.mxu0 0
      %1109 = vmatprep.subr.bf16.mxu0 0
      %1110 = vmatpush1.bf16.msra.mxu0 0
      %1111 = vmatprep.subr.bf16.mxu0 0
      %1112 = vmatpush1.bf16.msra.mxu0 0
      %1113 = vmatprep.subr.bf16.mxu0 0
      %1114 = vmatpush1.bf16.msra.mxu0 0
      %1115 = vmatprep.subr.bf16.mxu0 0
      %1116 = vmatpush1.bf16.msra.mxu0 0
      %1117 = vmatprep.subr.bf16.mxu0 0
      %1118 = vmatpush1.bf16.msra.mxu0 0
      %1119 = vmatprep.subr.bf16.mxu0 0
      %1120 = vmatpush1.bf16.msra.mxu0 0
      %1121 = vmatprep.mubr.bf16.mxu0 0
      %1122 = vmatmul.mubr.bf16.gmra.mrb[0].mxu0 %v1039
      %v1123 = vpop.f32.mrb[0].mxu0
      %v1124 = vadd.f32 %v912, %v1123
      %v1125 = vpop.f32.mrb[0].mxu0
      %v1126 = vpop.f32.mrb[0].mxu0
      %v1127 = vadd.f32 %v915, %v1126
      %v1128 = vpop.f32.mrb[0].mxu0
      %1129 = vmatprep.mubr.bf16.mxu0 0
      %1130 = vmatmul.mubr.bf16.gmra.mrb[0].mxu0 %v1042
      %v1131 = vpop.f32.mrb[0].mxu0
      %v1132 = vadd.f32 %v920, %v1131
      %v1133 = vpop.f32.mrb[0].mxu0
      %v1134 = vpop.f32.mrb[0].mxu0
      %v1135 = vadd.f32 %v923, %v1134
      %v1136 = vpop.f32.mrb[0].mxu0
      %1137 = vmatprep.mubr.bf16.mxu0 0
      %1138 = vmatmul.mubr.bf16.gmra.mrb[0].mxu0 %v1045
      %v1139 = vpop.f32.mrb[0].mxu0
      %v1140 = vadd.f32 %v928, %v1139
      %v1141 = vpop.f32.mrb[0].mxu0
      %v1142 = vpop.f32.mrb[0].mxu0
      %v1143 = vadd.f32 %v931, %v1142
      %v1144 = vpop.f32.mrb[0].mxu0
      %1145 = vmatprep.mubr.bf16.mxu0 0
      %1146 = vmatmul.mubr.bf16.gmra.mrb[0].mxu0 %v1048
      %v1147 = vpop.f32.mrb[0].mxu0
      %v1148 = vadd.f32 %v936, %v1147
      %v1149 = vpop.f32.mrb[0].mxu0
      %v1150 = vpop.f32.mrb[0].mxu0
      %v1151 = vadd.f32 %v939, %v1150
      %v1152 = vpop.f32.mrb[0].mxu0
      %1153 = vmatprep.mubr.bf16.mxu0 0
      %1154 = vmatmul.mubr.bf16.gmra.mrb[0].mxu0 %v1051
      %v1155 = vpop.f32.mrb[0].mxu0
      %v1156 = vadd.f32 %v944, %v1155
      %v1157 = vpop.f32.mrb[0].mxu0
      %v1158 = vpop.f32.mrb[0].mxu0
      %v1159 = vadd.f32 %v947, %v1158
      %v1160 = vpop.f32.mrb[0].mxu0
      %1161 = vmatprep.mubr.bf16.mxu0 0
      %1162 = vmatmul.mubr.bf16.gmra.mrb[0].mxu0 %v1054
      %v1163 = vpop.f32.mrb[0].mxu0
      %v1164 = vadd.f32 %v952, %v1163
      %v1165 = vpop.f32.mrb[0].mxu0
      %v1166 = vpop.f32.mrb[0].mxu0
      %v1167 = vadd.f32 %v955, %v1166
      %v1168 = vpop.f32.mrb[0].mxu0
      %1169 = vmatprep.mubr.bf16.mxu0 0
      %1170 = vmatmul.mubr.bf16.gmra.mrb[0].mxu0 %v1057
      %v1171 = vpop.f32.mrb[0].mxu0
      %v1172 = vadd.f32 %v960, %v1171
      %v1173 = vpop.f32.mrb[0].mxu0
      %v1174 = vpop.f32.mrb[0].mxu0
      %v1175 = vadd.f32 %v963, %v1174
      %v1176 = vpop.f32.mrb[0].mxu0
      %1177 = vmatprep.mubr.bf16.mxu0 0
      %1178 = vmatmul.mubr.bf16.gmra.mrb[0].mxu0 %v1060
      %v1179 = vpop.f32.mrb[0].mxu0
      %v1180 = vadd.f32 %v968, %v1179
      %v1181 = vpop.f32.mrb[0].mxu0
      %v1182 = vpop.f32.mrb[0].mxu0
      %v1183 = vadd.f32 %v971, %v1182
      %v1184 = vpop.f32.mrb[0].mxu0
      %1185 = vmatprep.mubr.bf16.mxu0 0
      %1186 = vmatmul.mubr.bf16.gmra.mrb[0].mxu0 %v1063
      %v1187 = vpop.f32.mrb[0].mxu0
      %v1188 = vadd.f32 %v976, %v1187
      %v1189 = vpop.f32.mrb[0].mxu0
      %v1190 = vpop.f32.mrb[0].mxu0
      %v1191 = vadd.f32 %v979, %v1190
      %v1192 = vpop.f32.mrb[0].mxu0
      %1193 = vmatprep.mubr.bf16.mxu0 0
      %1194 = vmatmul.mubr.bf16.gmra.mrb[0].mxu0 %v1066
      %v1195 = vpop.f32.mrb[0].mxu0
      %v1196 = vadd.f32 %v984, %v1195
      %v1197 = vpop.f32.mrb[0].mxu0
      %v1198 = vpop.f32.mrb[0].mxu0
      %v1199 = vadd.f32 %v987, %v1198
      %v1200 = vpop.f32.mrb[0].mxu0
      %1201 = vmatprep.mubr.bf16.mxu0 0
      %1202 = vmatmul.mubr.bf16.gmra.mrb[0].mxu0 %v1069
      %v1203 = vpop.f32.mrb[0].mxu0
      %v1204 = vadd.f32 %v992, %v1203
      %v1205 = vpop.f32.mrb[0].mxu0
      %v1206 = vpop.f32.mrb[0].mxu0
      %v1207 = vadd.f32 %v995, %v1206
      %v1208 = vpop.f32.mrb[0].mxu0
      %1209 = vmatprep.mubr.bf16.mxu0 0
      %1210 = vmatmul.mubr.bf16.gmra.mrb[0].mxu0 %v1072
      %v1211 = vpop.f32.mrb[0].mxu0
      %v1212 = vadd.f32 %v1000, %v1211
      %v1213 = vpop.f32.mrb[0].mxu0
      %v1214 = vpop.f32.mrb[0].mxu0
      %v1215 = vadd.f32 %v1003, %v1214
      %v1216 = vpop.f32.mrb[0].mxu0
      %1217 = vmatprep.mubr.bf16.mxu0 0
      %1218 = vmatmul.mubr.bf16.gmra.mrb[0].mxu0 %v1075
      %v1219 = vpop.f32.mrb[0].mxu0
      %v1220 = vadd.f32 %v1008, %v1219
      %v1221 = vpop.f32.mrb[0].mxu0
      %v1222 = vpop.f32.mrb[0].mxu0
      %v1223 = vadd.f32 %v1011, %v1222
      %v1224 = vpop.f32.mrb[0].mxu0
      %1225 = vmatprep.mubr.bf16.mxu0 0
      %1226 = vmatmul.mubr.bf16.gmra.mrb[0].mxu0 %v1078
      %v1227 = vpop.f32.mrb[0].mxu0
      %v1228 = vadd.f32 %v1016, %v1227
      %v1229 = vpop.f32.mrb[0].mxu0
      %v1230 = vpop.f32.mrb[0].mxu0
      %v1231 = vadd.f32 %v1019, %v1230
      %v1232 = vpop.f32.mrb[0].mxu0
      %1233 = vmatprep.mubr.bf16.mxu0 0
      %1234 = vmatmul.mubr.bf16.gmra.mrb[0].mxu0 %v1081
      %v1235 = vpop.f32.mrb[0].mxu0
      %v1236 = vadd.f32 %v1024, %v1235
      %v1237 = vpop.f32.mrb[0].mxu0
      %v1238 = vpop.f32.mrb[0].mxu0
      %v1239 = vadd.f32 %v1027, %v1238
      %v1240 = vpop.f32.mrb[0].mxu0
      %1241 = vmatprep.mubr.bf16.mxu0 0
      %1242 = vmatmul.mubr.bf16.gmra.mrb[0].mxu0 %v1084
      %v1243 = vpop.f32.mrb[0].mxu0
      %v1244 = vadd.f32 %v1032, %v1243
      %v1245 = vpop.f32.mrb[0].mxu0
      %v1246 = vpop.f32.mrb[0].mxu0
      %v1247 = vadd.f32 %v1035, %v1246
      %v1248 = vpop.f32.mrb[0].mxu0
      %1249 = vdwg.mxu0
      %v1250 = vld [vmem:[#allocation2 + $0x2] sm:$0xff]
      %v1251 = vld [vmem:[#allocation2 + $0xa] sm:$0xff]
      %v1252 = vld [vmem:[#allocation2 + $0x1a] sm:$0xff]
      %v1253 = vld [vmem:[#allocation2 + $0x22] sm:$0xff]
      %v1254 = vld [vmem:[#allocation2 + $0x32] sm:$0xff]
      %v1255 = vld [vmem:[#allocation2 + $0x3a] sm:$0xff]
      %v1256 = vld [vmem:[#allocation2 + $0x4a] sm:$0xff]
      %v1257 = vld [vmem:[#allocation2 + $0x52] sm:$0xff]
      %v1258 = vld [vmem:[#allocation2 + $0x62] sm:$0xff]
      %v1259 = vld [vmem:[#allocation2 + $0x6a] sm:$0xff]
      %v1260 = vld [vmem:[#allocation2 + $0x7a] sm:$0xff]
      %v1261 = vld [vmem:[#allocation2 + $0x82] sm:$0xff]
      %v1262 = vld [vmem:[#allocation2 + $0x92] sm:$0xff]
      %v1263 = vld [vmem:[#allocation2 + $0x9a] sm:$0xff]
      %v1264 = vld [vmem:[#allocation2 + $0xaa] sm:$0xff]
      %v1265 = vld [vmem:[#allocation2 + $0xb2] sm:$0xff]
      %v1266 = vld [vmem:[#allocation2 + $0xc2] sm:$0xff]
      %v1267 = vld [vmem:[#allocation2 + $0xca] sm:$0xff]
      %v1268 = vld [vmem:[#allocation2 + $0xda] sm:$0xff]
      %v1269 = vld [vmem:[#allocation2 + $0xe2] sm:$0xff]
      %v1270 = vld [vmem:[#allocation2 + $0xf2] sm:$0xff]
      %v1271 = vld [vmem:[#allocation2 + $0xfa] sm:$0xff]
      %v1272 = vld [vmem:[#allocation2 + $0x10a] sm:$0xff]
      %v1273 = vld [vmem:[#allocation2 + $0x112] sm:$0xff]
      %v1274 = vld [vmem:[#allocation2 + $0x122] sm:$0xff]
      %v1275 = vld [vmem:[#allocation2 + $0x12a] sm:$0xff]
      %v1276 = vld [vmem:[#allocation2 + $0x13a] sm:$0xff]
      %v1277 = vld [vmem:[#allocation2 + $0x142] sm:$0xff]
      %v1278 = vld [vmem:[#allocation2 + $0x152] sm:$0xff]
      %v1279 = vld [vmem:[#allocation2 + $0x15a] sm:$0xff]
      %v1280 = vld [vmem:[#allocation2 + $0x16a] sm:$0xff]
      %v1281 = vld [vmem:[#allocation2 + $0x172] sm:$0xff]
      %v1282 = vpack.c.bf16 %v1251, %v1250
      %v1283 = vpack.c.bf16 %v1253, %v1252
      %v1284 = vpack.c.bf16 %v1255, %v1254
      %v1285 = vpack.c.bf16 %v1257, %v1256
      %v1286 = vpack.c.bf16 %v1259, %v1258
      %v1287 = vpack.c.bf16 %v1261, %v1260
      %v1288 = vpack.c.bf16 %v1263, %v1262
      %v1289 = vpack.c.bf16 %v1265, %v1264
      %v1290 = vpack.c.bf16 %v1267, %v1266
      %v1291 = vpack.c.bf16 %v1269, %v1268
      %v1292 = vpack.c.bf16 %v1271, %v1270
      %v1293 = vpack.c.bf16 %v1273, %v1272
      %v1294 = vpack.c.bf16 %v1275, %v1274
      %v1295 = vpack.c.bf16 %v1277, %v1276
      %v1296 = vpack.c.bf16 %v1279, %v1278
      %v1297 = vpack.c.bf16 %v1281, %v1280
      %s1298 = scalar_lea.vmem %s5, 8
      %v1299 = vld [vmem:[%s1298] sm:$0xf]
      %v1301 = vsel %vm660, %v1282, 0
      %v1304 = vsel %vm660, %v1283, 0
      %v1307 = vsel %vm660, %v1284, 0
      %v1310 = vsel %vm660, %v1285, 0
      %v1313 = vsel %vm660, %v1286, 0
      %v1316 = vsel %vm660, %v1287, 0
      %v1319 = vsel %vm660, %v1288, 0
      %v1322 = vsel %vm660, %v1289, 0
      %v1325 = vsel %vm660, %v1290, 0
      %v1328 = vsel %vm660, %v1291, 0
      %v1331 = vsel %vm660, %v1292, 0
      %v1334 = vsel %vm660, %v1293, 0
      %v1337 = vsel %vm660, %v1294, 0
      %v1340 = vsel %vm660, %v1295, 0
      %v1343 = vsel %vm660, %v1296, 0
      %v1346 = vsel %vm660, %v1297, 0
      %v1349 = vsel %vm873, %v1299, 0
      %1351 = vmatprep.subr.bf16.mxu0 0
      %1352 = vmatpush1.bf16.msra.mxu0 %v1349
      %1353 = vmatprep.subr.bf16.mxu0 0
      %1354 = vmatpush1.bf16.msra.mxu0 0
      %1355 = vmatprep.subr.bf16.mxu0 0
      %1356 = vmatpush1.bf16.msra.mxu0 0
      %1357 = vmatprep.subr.bf16.mxu0 0
      %1358 = vmatpush1.bf16.msra.mxu0 0
      %1359 = vmatprep.subr.bf16.mxu0 0
      %1360 = vmatpush1.bf16.msra.mxu0 0
      %1361 = vmatprep.subr.bf16.mxu0 0
      %1362 = vmatpush1.bf16.msra.mxu0 0
      %1363 = vmatprep.subr.bf16.mxu0 0
      %1364 = vmatpush1.bf16.msra.mxu0 0
      %1365 = vmatprep.subr.bf16.mxu0 0
      %1366 = vmatpush1.bf16.msra.mxu0 0
      %1367 = vmatprep.subr.bf16.mxu0 0
      %1368 = vmatpush1.bf16.msra.mxu0 0
      %1369 = vmatprep.subr.bf16.mxu0 0
      %1370 = vmatpush1.bf16.msra.mxu0 0
      %1371 = vmatprep.subr.bf16.mxu0 0
      %1372 = vmatpush1.bf16.msra.mxu0 0
      %1373 = vmatprep.subr.bf16.mxu0 0
      %1374 = vmatpush1.bf16.msra.mxu0 0
      %1375 = vmatprep.subr.bf16.mxu0 0
      %1376 = vmatpush1.bf16.msra.mxu0 0
      %1377 = vmatprep.subr.bf16.mxu0 0
      %1378 = vmatpush1.bf16.msra.mxu0 0
      %1379 = vmatprep.subr.bf16.mxu0 0
      %1380 = vmatpush1.bf16.msra.mxu0 0
      %1381 = vmatprep.subr.bf16.mxu0 0
      %1382 = vmatpush1.bf16.msra.mxu0 0
      %1383 = vmatprep.mubr.bf16.mxu0 0
      %1384 = vmatmul.mubr.bf16.gmra.mrb[0].mxu0 %v1301
      %v1385 = vpop.f32.mrb[0].mxu0
      %v1386 = vadd.f32 0.0, %v1385
      %v1387 = vpop.f32.mrb[0].mxu0
      %v1388 = vpop.f32.mrb[0].mxu0
      %v1389 = vadd.f32 0.0, %v1388
      %v1390 = vpop.f32.mrb[0].mxu0
      %1391 = vmatprep.mubr.bf16.mxu0 0
      %1392 = vmatmul.mubr.bf16.gmra.mrb[0].mxu0 %v1304
      %v1393 = vpop.f32.mrb[0].mxu0
      %v1394 = vadd.f32 0.0, %v1393
      %v1395 = vpop.f32.mrb[0].mxu0
      %v1396 = vpop.f32.mrb[0].mxu0
      %v1397 = vadd.f32 0.0, %v1396
      %v1398 = vpop.f32.mrb[0].mxu0
      %1399 = vmatprep.mubr.bf16.mxu0 0
      %1400 = vmatmul.mubr.bf16.gmra.mrb[0].mxu0 %v1307
      %v1401 = vpop.f32.mrb[0].mxu0
      %v1402 = vadd.f32 0.0, %v1401
      %v1403 = vpop.f32.mrb[0].mxu0
      %v1404 = vpop.f32.mrb[0].mxu0
      %v1405 = vadd.f32 0.0, %v1404
      %v1406 = vpop.f32.mrb[0].mxu0
      %1407 = vmatprep.mubr.bf16.mxu0 0
      %1408 = vmatmul.mubr.bf16.gmra.mrb[0].mxu0 %v1310
      %v1409 = vpop.f32.mrb[0].mxu0
      %v1410 = vadd.f32 0.0, %v1409
      %v1411 = vpop.f32.mrb[0].mxu0
      %v1412 = vpop.f32.mrb[0].mxu0
      %v1413 = vadd.f32 0.0, %v1412
      %v1414 = vpop.f32.mrb[0].mxu0
      %1415 = vmatprep.mubr.bf16.mxu0 0
      %1416 = vmatmul.mubr.bf16.gmra.mrb[0].mxu0 %v1313
      %v1417 = vpop.f32.mrb[0].mxu0
      %v1418 = vadd.f32 0.0, %v1417
      %v1419 = vpop.f32.mrb[0].mxu0
      %v1420 = vpop.f32.mrb[0].mxu0
      %v1421 = vadd.f32 0.0, %v1420
      %v1422 = vpop.f32.mrb[0].mxu0
      %1423 = vmatprep.mubr.bf16.mxu0 0
      %1424 = vmatmul.mubr.bf16.gmra.mrb[0].mxu0 %v1316
      %v1425 = vpop.f32.mrb[0].mxu0
      %v1426 = vadd.f32 0.0, %v1425
      %v1427 = vpop.f32.mrb[0].mxu0
      %v1428 = vpop.f32.mrb[0].mxu0
      %v1429 = vadd.f32 0.0, %v1428
      %v1430 = vpop.f32.mrb[0].mxu0
      %1431 = vmatprep.mubr.bf16.mxu0 0
      %1432 = vmatmul.mubr.bf16.gmra.mrb[0].mxu0 %v1319
      %v1433 = vpop.f32.mrb[0].mxu0
      %v1434 = vadd.f32 0.0, %v1433
      %v1435 = vpop.f32.mrb[0].mxu0
      %v1436 = vpop.f32.mrb[0].mxu0
      %v1437 = vadd.f32 0.0, %v1436
      %v1438 = vpop.f32.mrb[0].mxu0
      %1439 = vmatprep.mubr.bf16.mxu0 0
      %1440 = vmatmul.mubr.bf16.gmra.mrb[0].mxu0 %v1322
      %v1441 = vpop.f32.mrb[0].mxu0
      %v1442 = vadd.f32 0.0, %v1441
      %v1443 = vpop.f32.mrb[0].mxu0
      %v1444 = vpop.f32.mrb[0].mxu0
      %v1445 = vadd.f32 0.0, %v1444
      %v1446 = vpop.f32.mrb[0].mxu0
      %1447 = vmatprep.mubr.bf16.mxu0 0
      %1448 = vmatmul.mubr.bf16.gmra.mrb[0].mxu0 %v1325
      %v1449 = vpop.f32.mrb[0].mxu0
      %v1450 = vadd.f32 0.0, %v1449
      %v1451 = vpop.f32.mrb[0].mxu0
      %v1452 = vpop.f32.mrb[0].mxu0
      %v1453 = vadd.f32 0.0, %v1452
      %v1454 = vpop.f32.mrb[0].mxu0
      %1455 = vmatprep.mubr.bf16.mxu0 0
      %1456 = vmatmul.mubr.bf16.gmra.mrb[0].mxu0 %v1328
      %v1457 = vpop.f32.mrb[0].mxu0
      %v1458 = vadd.f32 0.0, %v1457
      %v1459 = vpop.f32.mrb[0].mxu0
      %v1460 = vpop.f32.mrb[0].mxu0
      %v1461 = vadd.f32 0.0, %v1460
      %v1462 = vpop.f32.mrb[0].mxu0
      %1463 = vmatprep.mubr.bf16.mxu0 0
      %1464 = vmatmul.mubr.bf16.gmra.mrb[0].mxu0 %v1331
      %v1465 = vpop.f32.mrb[0].mxu0
      %v1466 = vadd.f32 0.0, %v1465
      %v1467 = vpop.f32.mrb[0].mxu0
      %v1468 = vpop.f32.mrb[0].mxu0
      %v1469 = vadd.f32 0.0, %v1468
      %v1470 = vpop.f32.mrb[0].mxu0
      %1471 = vmatprep.mubr.bf16.mxu0 0
      %1472 = vmatmul.mubr.bf16.gmra.mrb[0].mxu0 %v1334
      %v1473 = vpop.f32.mrb[0].mxu0
      %v1474 = vadd.f32 0.0, %v1473
      %v1475 = vpop.f32.mrb[0].mxu0
      %v1476 = vpop.f32.mrb[0].mxu0
      %v1477 = vadd.f32 0.0, %v1476
      %v1478 = vpop.f32.mrb[0].mxu0
      %1479 = vmatprep.mubr.bf16.mxu0 0
      %1480 = vmatmul.mubr.bf16.gmra.mrb[0].mxu0 %v1337
      %v1481 = vpop.f32.mrb[0].mxu0
      %v1482 = vadd.f32 0.0, %v1481
      %v1483 = vpop.f32.mrb[0].mxu0
      %v1484 = vpop.f32.mrb[0].mxu0
      %v1485 = vadd.f32 0.0, %v1484
      %v1486 = vpop.f32.mrb[0].mxu0
      %1487 = vmatprep.mubr.bf16.mxu0 0
      %1488 = vmatmul.mubr.bf16.gmra.mrb[0].mxu0 %v1340
      %v1489 = vpop.f32.mrb[0].mxu0
      %v1490 = vadd.f32 0.0, %v1489
      %v1491 = vpop.f32.mrb[0].mxu0
      %v1492 = vpop.f32.mrb[0].mxu0
      %v1493 = vadd.f32 0.0, %v1492
      %v1494 = vpop.f32.mrb[0].mxu0
      %1495 = vmatprep.mubr.bf16.mxu0 0
      %1496 = vmatmul.mubr.bf16.gmra.mrb[0].mxu0 %v1343
      %v1497 = vpop.f32.mrb[0].mxu0
      %v1498 = vadd.f32 0.0, %v1497
      %v1499 = vpop.f32.mrb[0].mxu0
      %v1500 = vpop.f32.mrb[0].mxu0
      %v1501 = vadd.f32 0.0, %v1500
      %v1502 = vpop.f32.mrb[0].mxu0
      %1503 = vmatprep.mubr.bf16.mxu0 0
      %1504 = vmatmul.mubr.bf16.gmra.mrb[0].mxu0 %v1346
      %v1505 = vpop.f32.mrb[0].mxu0
      %v1506 = vadd.f32 0.0, %v1505
      %v1507 = vpop.f32.mrb[0].mxu0
      %v1508 = vpop.f32.mrb[0].mxu0
      %v1509 = vadd.f32 0.0, %v1508
      %v1510 = vpop.f32.mrb[0].mxu0
      %1511 = vdwg.mxu0
      %v1512 = vadd.f32 %v1124, %v1386
      %v1513 = vadd.f32 %v1127, %v1389
      %v1514 = vadd.f32 %v1132, %v1394
      %v1515 = vadd.f32 %v1135, %v1397
      %v1516 = vadd.f32 %v1140, %v1402
      %v1517 = vadd.f32 %v1143, %v1405
      %v1518 = vadd.f32 %v1148, %v1410
      %v1519 = vadd.f32 %v1151, %v1413
      %v1520 = vadd.f32 %v1156, %v1418
      %v1521 = vadd.f32 %v1159, %v1421
      %v1522 = vadd.f32 %v1164, %v1426
      %v1523 = vadd.f32 %v1167, %v1429
      %v1524 = vadd.f32 %v1172, %v1434
      %v1525 = vadd.f32 %v1175, %v1437
      %v1526 = vadd.f32 %v1180, %v1442
      %v1527 = vadd.f32 %v1183, %v1445
      %v1528 = vadd.f32 %v1188, %v1450
      %v1529 = vadd.f32 %v1191, %v1453
      %v1530 = vadd.f32 %v1196, %v1458
      %v1531 = vadd.f32 %v1199, %v1461
      %v1532 = vadd.f32 %v1204, %v1466
      %v1533 = vadd.f32 %v1207, %v1469
      %v1534 = vadd.f32 %v1212, %v1474
      %v1535 = vadd.f32 %v1215, %v1477
      %v1536 = vadd.f32 %v1220, %v1482
      %v1537 = vadd.f32 %v1223, %v1485
      %v1538 = vadd.f32 %v1228, %v1490
      %v1539 = vadd.f32 %v1231, %v1493
      %v1540 = vadd.f32 %v1236, %v1498
      %v1541 = vadd.f32 %v1239, %v1501
      %v1542 = vadd.f32 %v1244, %v1506
      %v1543 = vadd.f32 %v1247, %v1509
      %v1544 = vld [vmem:[%s659] sm:$0xff]
      %v1545 = vld [vmem:[%s659 + $0x8] sm:$0xff]
      %v1546 = vld [vmem:[%s659 + $0x18] sm:$0xff]
      %v1547 = vld [vmem:[%s659 + $0x20] sm:$0xff]
      %v1548 = vld [vmem:[%s659 + $0x30] sm:$0xff]
      %v1549 = vld [vmem:[%s659 + $0x38] sm:$0xff]
      %v1550 = vld [vmem:[%s659 + $0x48] sm:$0xff]
      %v1551 = vld [vmem:[%s659 + $0x50] sm:$0xff]
      %v1552 = vld [vmem:[%s659 + $0x60] sm:$0xff]
      %v1553 = vld [vmem:[%s659 + $0x68] sm:$0xff]
      %v1554 = vld [vmem:[%s659 + $0x78] sm:$0xff]
      %v1555 = vld [vmem:[%s659 + $0x80] sm:$0xff]
      %v1556 = vld [vmem:[%s659 + $0x90] sm:$0xff]
      %v1557 = vld [vmem:[%s659 + $0x98] sm:$0xff]
      %v1558 = vld [vmem:[%s659 + $0xa8] sm:$0xff]
      %v1559 = vld [vmem:[%s659 + $0xb0] sm:$0xff]
      %v1560 = vld [vmem:[%s659 + $0xc0] sm:$0xff]
      %v1561 = vld [vmem:[%s659 + $0xc8] sm:$0xff]
      %v1562 = vld [vmem:[%s659 + $0xd8] sm:$0xff]
      %v1563 = vld [vmem:[%s659 + $0xe0] sm:$0xff]
      %v1564 = vld [vmem:[%s659 + $0xf0] sm:$0xff]
      %v1565 = vld [vmem:[%s659 + $0xf8] sm:$0xff]
      %v1566 = vld [vmem:[%s659 + $0x108] sm:$0xff]
      %v1567 = vld [vmem:[%s659 + $0x110] sm:$0xff]
      %v1568 = vld [vmem:[%s659 + $0x120] sm:$0xff]
      %v1569 = vld [vmem:[%s659 + $0x128] sm:$0xff]
      %v1570 = vld [vmem:[%s659 + $0x138] sm:$0xff]
      %v1571 = vld [vmem:[%s659 + $0x140] sm:$0xff]
      %v1572 = vld [vmem:[%s659 + $0x150] sm:$0xff]
      %v1573 = vld [vmem:[%s659 + $0x158] sm:$0xff]
      %v1574 = vld [vmem:[%s659 + $0x168] sm:$0xff]
      %v1575 = vld [vmem:[%s659 + $0x170] sm:$0xff]
      %v1576 = vpack.c.bf16 %v1545, %v1544
      %v1577 = vpack.c.bf16 %v1547, %v1546
      %v1578 = vpack.c.bf16 %v1549, %v1548
      %v1579 = vpack.c.bf16 %v1551, %v1550
      %v1580 = vpack.c.bf16 %v1553, %v1552
      %v1581 = vpack.c.bf16 %v1555, %v1554
      %v1582 = vpack.c.bf16 %v1557, %v1556
      %v1583 = vpack.c.bf16 %v1559, %v1558
      %v1584 = vpack.c.bf16 %v1561, %v1560
      %v1585 = vpack.c.bf16 %v1563, %v1562
      %v1586 = vpack.c.bf16 %v1565, %v1564
      %v1587 = vpack.c.bf16 %v1567, %v1566
      %v1588 = vpack.c.bf16 %v1569, %v1568
      %v1589 = vpack.c.bf16 %v1571, %v1570
      %v1590 = vpack.c.bf16 %v1573, %v1572
      %v1591 = vpack.c.bf16 %v1575, %v1574
      %s1592 = scalar_lea.vmem %s5, 12
      %v1593 = vld [vmem:[%s1592] sm:$0xf]
      %v1595 = vsel %vm660, %v1576, 0
      %v1598 = vsel %vm660, %v1577, 0
      %v1601 = vsel %vm660, %v1578, 0
      %v1604 = vsel %vm660, %v1579, 0
      %v1607 = vsel %vm660, %v1580, 0
      %v1610 = vsel %vm660, %v1581, 0
      %v1613 = vsel %vm660, %v1582, 0
      %v1616 = vsel %vm660, %v1583, 0
      %v1619 = vsel %vm660, %v1584, 0
      %v1622 = vsel %vm660, %v1585, 0
      %v1625 = vsel %vm660, %v1586, 0
      %v1628 = vsel %vm660, %v1587, 0
      %v1631 = vsel %vm660, %v1588, 0
      %v1634 = vsel %vm660, %v1589, 0
      %v1637 = vsel %vm660, %v1590, 0
      %v1640 = vsel %vm660, %v1591, 0
      %v1643 = vsel %vm873, %v1593, 0
      %1645 = vmatprep.subr.bf16.mxu0 0
      %1646 = vmatpush1.bf16.msra.mxu0 %v1643
      %1647 = vmatprep.subr.bf16.mxu0 0
      %1648 = vmatpush1.bf16.msra.mxu0 0
      %1649 = vmatprep.subr.bf16.mxu0 0
      %1650 = vmatpush1.bf16.msra.mxu0 0
      %1651 = vmatprep.subr.bf16.mxu0 0
      %1652 = vmatpush1.bf16.msra.mxu0 0
      %1653 = vmatprep.subr.bf16.mxu0 0
      %1654 = vmatpush1.bf16.msra.mxu0 0
      %1655 = vmatprep.subr.bf16.mxu0 0
      %1656 = vmatpush1.bf16.msra.mxu0 0
      %1657 = vmatprep.subr.bf16.mxu0 0
      %1658 = vmatpush1.bf16.msra.mxu0 0
      %1659 = vmatprep.subr.bf16.mxu0 0
      %1660 = vmatpush1.bf16.msra.mxu0 0
      %1661 = vmatprep.subr.bf16.mxu0 0
      %1662 = vmatpush1.bf16.msra.mxu0 0
      %1663 = vmatprep.subr.bf16.mxu0 0
      %1664 = vmatpush1.bf16.msra.mxu0 0
      %1665 = vmatprep.subr.bf16.mxu0 0
      %1666 = vmatpush1.bf16.msra.mxu0 0
      %1667 = vmatprep.subr.bf16.mxu0 0
      %1668 = vmatpush1.bf16.msra.mxu0 0
      %1669 = vmatprep.subr.bf16.mxu0 0
      %1670 = vmatpush1.bf16.msra.mxu0 0
      %1671 = vmatprep.subr.bf16.mxu0 0
      %1672 = vmatpush1.bf16.msra.mxu0 0
      %1673 = vmatprep.subr.bf16.mxu0 0
      %1674 = vmatpush1.bf16.msra.mxu0 0
      %1675 = vmatprep.subr.bf16.mxu0 0
      %1676 = vmatpush1.bf16.msra.mxu0 0
      %1677 = vmatprep.mubr.bf16.mxu0 0
      %1678 = vmatmul.mubr.bf16.gmra.mrb[0].mxu0 %v1595
      %v1679 = vpop.f32.mrb[0].mxu0
      %v1680 = vadd.f32 0.0, %v1679
      %v1681 = vpop.f32.mrb[0].mxu0
      %v1682 = vpop.f32.mrb[0].mxu0
      %v1683 = vadd.f32 0.0, %v1682
      %v1684 = vpop.f32.mrb[0].mxu0
      %1685 = vmatprep.mubr.bf16.mxu0 0
      %1686 = vmatmul.mubr.bf16.gmra.mrb[0].mxu0 %v1598
      %v1687 = vpop.f32.mrb[0].mxu0
      %v1688 = vadd.f32 0.0, %v1687
      %v1689 = vpop.f32.mrb[0].mxu0
      %v1690 = vpop.f32.mrb[0].mxu0
      %v1691 = vadd.f32 0.0, %v1690
      %v1692 = vpop.f32.mrb[0].mxu0
      %1693 = vmatprep.mubr.bf16.mxu0 0
      %1694 = vmatmul.mubr.bf16.gmra.mrb[0].mxu0 %v1601
      %v1695 = vpop.f32.mrb[0].mxu0
      %v1696 = vadd.f32 0.0, %v1695
      %v1697 = vpop.f32.mrb[0].mxu0
      %v1698 = vpop.f32.mrb[0].mxu0
      %v1699 = vadd.f32 0.0, %v1698
      %v1700 = vpop.f32.mrb[0].mxu0
      %1701 = vmatprep.mubr.bf16.mxu0 0
      %1702 = vmatmul.mubr.bf16.gmra.mrb[0].mxu0 %v1604
      %v1703 = vpop.f32.mrb[0].mxu0
      %v1704 = vadd.f32 0.0, %v1703
      %v1705 = vpop.f32.mrb[0].mxu0
      %v1706 = vpop.f32.mrb[0].mxu0
      %v1707 = vadd.f32 0.0, %v1706
      %v1708 = vpop.f32.mrb[0].mxu0
      %1709 = vmatprep.mubr.bf16.mxu0 0
      %1710 = vmatmul.mubr.bf16.gmra.mrb[0].mxu0 %v1607
      %v1711 = vpop.f32.mrb[0].mxu0
      %v1712 = vadd.f32 0.0, %v1711
      %v1713 = vpop.f32.mrb[0].mxu0
      %v1714 = vpop.f32.mrb[0].mxu0
      %v1715 = vadd.f32 0.0, %v1714
      %v1716 = vpop.f32.mrb[0].mxu0
      %1717 = vmatprep.mubr.bf16.mxu0 0
      %1718 = vmatmul.mubr.bf16.gmra.mrb[0].mxu0 %v1610
      %v1719 = vpop.f32.mrb[0].mxu0
      %v1720 = vadd.f32 0.0, %v1719
      %v1721 = vpop.f32.mrb[0].mxu0
      %v1722 = vpop.f32.mrb[0].mxu0
      %v1723 = vadd.f32 0.0, %v1722
      %v1724 = vpop.f32.mrb[0].mxu0
      %1725 = vmatprep.mubr.bf16.mxu0 0
      %1726 = vmatmul.mubr.bf16.gmra.mrb[0].mxu0 %v1613
      %v1727 = vpop.f32.mrb[0].mxu0
      %v1728 = vadd.f32 0.0, %v1727
      %v1729 = vpop.f32.mrb[0].mxu0
      %v1730 = vpop.f32.mrb[0].mxu0
      %v1731 = vadd.f32 0.0, %v1730
      %v1732 = vpop.f32.mrb[0].mxu0
      %1733 = vmatprep.mubr.bf16.mxu0 0
      %1734 = vmatmul.mubr.bf16.gmra.mrb[0].mxu0 %v1616
      %v1735 = vpop.f32.mrb[0].mxu0
      %v1736 = vadd.f32 0.0, %v1735
      %v1737 = vpop.f32.mrb[0].mxu0
      %v1738 = vpop.f32.mrb[0].mxu0
      %v1739 = vadd.f32 0.0, %v1738
      %v1740 = vpop.f32.mrb[0].mxu0
      %1741 = vmatprep.mubr.bf16.mxu0 0
      %1742 = vmatmul.mubr.bf16.gmra.mrb[0].mxu0 %v1619
      %v1743 = vpop.f32.mrb[0].mxu0
      %v1744 = vadd.f32 0.0, %v1743
      %v1745 = vpop.f32.mrb[0].mxu0
      %v1746 = vpop.f32.mrb[0].mxu0
      %v1747 = vadd.f32 0.0, %v1746
      %v1748 = vpop.f32.mrb[0].mxu0
      %1749 = vmatprep.mubr.bf16.mxu0 0
      %1750 = vmatmul.mubr.bf16.gmra.mrb[0].mxu0 %v1622
      %v1751 = vpop.f32.mrb[0].mxu0
      %v1752 = vadd.f32 0.0, %v1751
      %v1753 = vpop.f32.mrb[0].mxu0
      %v1754 = vpop.f32.mrb[0].mxu0
      %v1755 = vadd.f32 0.0, %v1754
      %v1756 = vpop.f32.mrb[0].mxu0
      %1757 = vmatprep.mubr.bf16.mxu0 0
      %1758 = vmatmul.mubr.bf16.gmra.mrb[0].mxu0 %v1625
      %v1759 = vpop.f32.mrb[0].mxu0
      %v1760 = vadd.f32 0.0, %v1759
      %v1761 = vpop.f32.mrb[0].mxu0
      %v1762 = vpop.f32.mrb[0].mxu0
      %v1763 = vadd.f32 0.0, %v1762
      %v1764 = vpop.f32.mrb[0].mxu0
      %1765 = vmatprep.mubr.bf16.mxu0 0
      %1766 = vmatmul.mubr.bf16.gmra.mrb[0].mxu0 %v1628
      %v1767 = vpop.f32.mrb[0].mxu0
      %v1768 = vadd.f32 0.0, %v1767
      %v1769 = vpop.f32.mrb[0].mxu0
      %v1770 = vpop.f32.mrb[0].mxu0
      %v1771 = vadd.f32 0.0, %v1770
      %v1772 = vpop.f32.mrb[0].mxu0
      %1773 = vmatprep.mubr.bf16.mxu0 0
      %1774 = vmatmul.mubr.bf16.gmra.mrb[0].mxu0 %v1631
      %v1775 = vpop.f32.mrb[0].mxu0
      %v1776 = vadd.f32 0.0, %v1775
      %v1777 = vpop.f32.mrb[0].mxu0
      %v1778 = vpop.f32.mrb[0].mxu0
      %v1779 = vadd.f32 0.0, %v1778
      %v1780 = vpop.f32.mrb[0].mxu0
      %1781 = vmatprep.mubr.bf16.mxu0 0
      %1782 = vmatmul.mubr.bf16.gmra.mrb[0].mxu0 %v1634
      %v1783 = vpop.f32.mrb[0].mxu0
      %v1784 = vadd.f32 0.0, %v1783
      %v1785 = vpop.f32.mrb[0].mxu0
      %v1786 = vpop.f32.mrb[0].mxu0
      %v1787 = vadd.f32 0.0, %v1786
      %v1788 = vpop.f32.mrb[0].mxu0
      %1789 = vmatprep.mubr.bf16.mxu0 0
      %1790 = vmatmul.mubr.bf16.gmra.mrb[0].mxu0 %v1637
      %v1791 = vpop.f32.mrb[0].mxu0
      %v1792 = vadd.f32 0.0, %v1791
      %v1793 = vpop.f32.mrb[0].mxu0
      %v1794 = vpop.f32.mrb[0].mxu0
      %v1795 = vadd.f32 0.0, %v1794
      %v1796 = vpop.f32.mrb[0].mxu0
      %1797 = vmatprep.mubr.bf16.mxu0 0
      %1798 = vmatmul.mubr.bf16.gmra.mrb[0].mxu0 %v1640
      %v1799 = vpop.f32.mrb[0].mxu0
      %v1800 = vadd.f32 0.0, %v1799
      %v1801 = vpop.f32.mrb[0].mxu0
      %v1802 = vpop.f32.mrb[0].mxu0
      %v1803 = vadd.f32 0.0, %v1802
      %v1804 = vpop.f32.mrb[0].mxu0
      %1805 = vdwg.mxu0
      %v1806 = vadd.f32 %v1512, %v1680
      %v1807 = vadd.f32 %v1513, %v1683
      %v1808 = vadd.f32 %v1514, %v1688
      %v1809 = vadd.f32 %v1515, %v1691
      %v1810 = vadd.f32 %v1516, %v1696
      %v1811 = vadd.f32 %v1517, %v1699
      %v1812 = vadd.f32 %v1518, %v1704
      %v1813 = vadd.f32 %v1519, %v1707
      %v1814 = vadd.f32 %v1520, %v1712
      %v1815 = vadd.f32 %v1521, %v1715
      %v1816 = vadd.f32 %v1522, %v1720
      %v1817 = vadd.f32 %v1523, %v1723
      %v1818 = vadd.f32 %v1524, %v1728
      %v1819 = vadd.f32 %v1525, %v1731
      %v1820 = vadd.f32 %v1526, %v1736
      %v1821 = vadd.f32 %v1527, %v1739
      %v1822 = vadd.f32 %v1528, %v1744
      %v1823 = vadd.f32 %v1529, %v1747
      %v1824 = vadd.f32 %v1530, %v1752
      %v1825 = vadd.f32 %v1531, %v1755
      %v1826 = vadd.f32 %v1532, %v1760
      %v1827 = vadd.f32 %v1533, %v1763
      %v1828 = vadd.f32 %v1534, %v1768
      %v1829 = vadd.f32 %v1535, %v1771
      %v1830 = vadd.f32 %v1536, %v1776
      %v1831 = vadd.f32 %v1537, %v1779
      %v1832 = vadd.f32 %v1538, %v1784
      %v1833 = vadd.f32 %v1539, %v1787
      %v1834 = vadd.f32 %v1540, %v1792
      %v1835 = vadd.f32 %v1541, %v1795
      %v1836 = vadd.f32 %v1542, %v1800
      %v1837 = vadd.f32 %v1543, %v1803
      %v1838 = vld [vmem:[%s659 + $0x1] sm:$0xff]
      %v1839 = vld [vmem:[%s659 + $0x9] sm:$0xff]
      %v1840 = vld [vmem:[%s659 + $0x19] sm:$0xff]
      %v1841 = vld [vmem:[%s659 + $0x21] sm:$0xff]
      %v1842 = vld [vmem:[%s659 + $0x31] sm:$0xff]
      %v1843 = vld [vmem:[%s659 + $0x39] sm:$0xff]
      %v1844 = vld [vmem:[%s659 + $0x49] sm:$0xff]
      %v1845 = vld [vmem:[%s659 + $0x51] sm:$0xff]
      %v1846 = vld [vmem:[%s659 + $0x61] sm:$0xff]
      %v1847 = vld [vmem:[%s659 + $0x69] sm:$0xff]
      %v1848 = vld [vmem:[%s659 + $0x79] sm:$0xff]
      %v1849 = vld [vmem:[%s659 + $0x81] sm:$0xff]
      %v1850 = vld [vmem:[%s659 + $0x91] sm:$0xff]
      %v1851 = vld [vmem:[%s659 + $0x99] sm:$0xff]
      %v1852 = vld [vmem:[%s659 + $0xa9] sm:$0xff]
      %v1853 = vld [vmem:[%s659 + $0xb1] sm:$0xff]
      %v1854 = vld [vmem:[%s659 + $0xc1] sm:$0xff]
      %v1855 = vld [vmem:[%s659 + $0xc9] sm:$0xff]
      %v1856 = vld [vmem:[%s659 + $0xd9] sm:$0xff]
      %v1857 = vld [vmem:[%s659 + $0xe1] sm:$0xff]
      %v1858 = vld [vmem:[%s659 + $0xf1] sm:$0xff]
      %v1859 = vld [vmem:[%s659 + $0xf9] sm:$0xff]
      %v1860 = vld [vmem:[%s659 + $0x109] sm:$0xff]
      %v1861 = vld [vmem:[%s659 + $0x111] sm:$0xff]
      %v1862 = vld [vmem:[%s659 + $0x121] sm:$0xff]
      %v1863 = vld [vmem:[%s659 + $0x129] sm:$0xff]
      %v1864 = vld [vmem:[%s659 + $0x139] sm:$0xff]
      %v1865 = vld [vmem:[%s659 + $0x141] sm:$0xff]
      %v1866 = vld [vmem:[%s659 + $0x151] sm:$0xff]
      %v1867 = vld [vmem:[%s659 + $0x159] sm:$0xff]
      %v1868 = vld [vmem:[%s659 + $0x169] sm:$0xff]
      %v1869 = vld [vmem:[%s659 + $0x171] sm:$0xff]
      %v1870 = vpack.c.bf16 %v1839, %v1838
      %v1871 = vpack.c.bf16 %v1841, %v1840
      %v1872 = vpack.c.bf16 %v1843, %v1842
      %v1873 = vpack.c.bf16 %v1845, %v1844
      %v1874 = vpack.c.bf16 %v1847, %v1846
      %v1875 = vpack.c.bf16 %v1849, %v1848
      %v1876 = vpack.c.bf16 %v1851, %v1850
      %v1877 = vpack.c.bf16 %v1853, %v1852
      %v1878 = vpack.c.bf16 %v1855, %v1854
      %v1879 = vpack.c.bf16 %v1857, %v1856
      %v1880 = vpack.c.bf16 %v1859, %v1858
      %v1881 = vpack.c.bf16 %v1861, %v1860
      %v1882 = vpack.c.bf16 %v1863, %v1862
      %v1883 = vpack.c.bf16 %v1865, %v1864
      %v1884 = vpack.c.bf16 %v1867, %v1866
      %v1885 = vpack.c.bf16 %v1869, %v1868
      %s1886 = scalar_lea.vmem %s5, 16
      %v1887 = vld [vmem:[%s1886] sm:$0xf]
      %v1889 = vsel %vm660, %v1870, 0
      %v1892 = vsel %vm660, %v1871, 0
      %v1895 = vsel %vm660, %v1872, 0
      %v1898 = vsel %vm660, %v1873, 0
      %v1901 = vsel %vm660, %v1874, 0
      %v1904 = vsel %vm660, %v1875, 0
      %v1907 = vsel %vm660, %v1876, 0
      %v1910 = vsel %vm660, %v1877, 0
      %v1913 = vsel %vm660, %v1878, 0
      %v1916 = vsel %vm660, %v1879, 0
      %v1919 = vsel %vm660, %v1880, 0
      %v1922 = vsel %vm660, %v1881, 0
      %v1925 = vsel %vm660, %v1882, 0
      %v1928 = vsel %vm660, %v1883, 0
      %v1931 = vsel %vm660, %v1884, 0
      %v1934 = vsel %vm660, %v1885, 0
      %v1937 = vsel %vm873, %v1887, 0
      %1939 = vmatprep.subr.bf16.mxu0 0
      %1940 = vmatpush1.bf16.msra.mxu0 %v1937
      %1941 = vmatprep.subr.bf16.mxu0 0
      %1942 = vmatpush1.bf16.msra.mxu0 0
      %1943 = vmatprep.subr.bf16.mxu0 0
      %1944 = vmatpush1.bf16.msra.mxu0 0
      %1945 = vmatprep.subr.bf16.mxu0 0
      %1946 = vmatpush1.bf16.msra.mxu0 0
      %1947 = vmatprep.subr.bf16.mxu0 0
      %1948 = vmatpush1.bf16.msra.mxu0 0
      %1949 = vmatprep.subr.bf16.mxu0 0
      %1950 = vmatpush1.bf16.msra.mxu0 0
      %1951 = vmatprep.subr.bf16.mxu0 0
      %1952 = vmatpush1.bf16.msra.mxu0 0
      %1953 = vmatprep.subr.bf16.mxu0 0
      %1954 = vmatpush1.bf16.msra.mxu0 0
      %1955 = vmatprep.subr.bf16.mxu0 0
      %1956 = vmatpush1.bf16.msra.mxu0 0
      %1957 = vmatprep.subr.bf16.mxu0 0
      %1958 = vmatpush1.bf16.msra.mxu0 0
      %1959 = vmatprep.subr.bf16.mxu0 0
      %1960 = vmatpush1.bf16.msra.mxu0 0
      %1961 = vmatprep.subr.bf16.mxu0 0
      %1962 = vmatpush1.bf16.msra.mxu0 0
      %1963 = vmatprep.subr.bf16.mxu0 0
      %1964 = vmatpush1.bf16.msra.mxu0 0
      %1965 = vmatprep.subr.bf16.mxu0 0
      %1966 = vmatpush1.bf16.msra.mxu0 0
      %1967 = vmatprep.subr.bf16.mxu0 0
      %1968 = vmatpush1.bf16.msra.mxu0 0
      %1969 = vmatprep.subr.bf16.mxu0 0
      %1970 = vmatpush1.bf16.msra.mxu0 0
      %1971 = vmatprep.mubr.bf16.mxu0 0
      %1972 = vmatmul.mubr.bf16.gmra.mrb[0].mxu0 %v1889
      %v1973 = vpop.f32.mrb[0].mxu0
      %v1974 = vadd.f32 0.0, %v1973
      %v1975 = vpop.f32.mrb[0].mxu0
      %v1976 = vpop.f32.mrb[0].mxu0
      %v1977 = vadd.f32 0.0, %v1976
      %v1978 = vpop.f32.mrb[0].mxu0
      %1979 = vmatprep.mubr.bf16.mxu0 0
      %1980 = vmatmul.mubr.bf16.gmra.mrb[0].mxu0 %v1892
      %v1981 = vpop.f32.mrb[0].mxu0
      %v1982 = vadd.f32 0.0, %v1981
      %v1983 = vpop.f32.mrb[0].mxu0
      %v1984 = vpop.f32.mrb[0].mxu0
      %v1985 = vadd.f32 0.0, %v1984
      %v1986 = vpop.f32.mrb[0].mxu0
      %1987 = vmatprep.mubr.bf16.mxu0 0
      %1988 = vmatmul.mubr.bf16.gmra.mrb[0].mxu0 %v1895
      %v1989 = vpop.f32.mrb[0].mxu0
      %v1990 = vadd.f32 0.0, %v1989
      %v1991 = vpop.f32.mrb[0].mxu0
      %v1992 = vpop.f32.mrb[0].mxu0
      %v1993 = vadd.f32 0.0, %v1992
      %v1994 = vpop.f32.mrb[0].mxu0
      %1995 = vmatprep.mubr.bf16.mxu0 0
      %1996 = vmatmul.mubr.bf16.gmra.mrb[0].mxu0 %v1898
      %v1997 = vpop.f32.mrb[0].mxu0
      %v1998 = vadd.f32 0.0, %v1997
      %v1999 = vpop.f32.mrb[0].mxu0
      %v2000 = vpop.f32.mrb[0].mxu0
      %v2001 = vadd.f32 0.0, %v2000
      %v2002 = vpop.f32.mrb[0].mxu0
      %2003 = vmatprep.mubr.bf16.mxu0 0
      %2004 = vmatmul.mubr.bf16.gmra.mrb[0].mxu0 %v1901
      %v2005 = vpop.f32.mrb[0].mxu0
      %v2006 = vadd.f32 0.0, %v2005
      %v2007 = vpop.f32.mrb[0].mxu0
      %v2008 = vpop.f32.mrb[0].mxu0
      %v2009 = vadd.f32 0.0, %v2008
      %v2010 = vpop.f32.mrb[0].mxu0
      %2011 = vmatprep.mubr.bf16.mxu0 0
      %2012 = vmatmul.mubr.bf16.gmra.mrb[0].mxu0 %v1904
      %v2013 = vpop.f32.mrb[0].mxu0
      %v2014 = vadd.f32 0.0, %v2013
      %v2015 = vpop.f32.mrb[0].mxu0
      %v2016 = vpop.f32.mrb[0].mxu0
      %v2017 = vadd.f32 0.0, %v2016
      %v2018 = vpop.f32.mrb[0].mxu0
      %2019 = vmatprep.mubr.bf16.mxu0 0
      %2020 = vmatmul.mubr.bf16.gmra.mrb[0].mxu0 %v1907
      %v2021 = vpop.f32.mrb[0].mxu0
      %v2022 = vadd.f32 0.0, %v2021
      %v2023 = vpop.f32.mrb[0].mxu0
      %v2024 = vpop.f32.mrb[0].mxu0
      %v2025 = vadd.f32 0.0, %v2024
      %v2026 = vpop.f32.mrb[0].mxu0
      %2027 = vmatprep.mubr.bf16.mxu0 0
      %2028 = vmatmul.mubr.bf16.gmra.mrb[0].mxu0 %v1910
      %v2029 = vpop.f32.mrb[0].mxu0
      %v2030 = vadd.f32 0.0, %v2029
      %v2031 = vpop.f32.mrb[0].mxu0
      %v2032 = vpop.f32.mrb[0].mxu0
      %v2033 = vadd.f32 0.0, %v2032
      %v2034 = vpop.f32.mrb[0].mxu0
      %2035 = vmatprep.mubr.bf16.mxu0 0
      %2036 = vmatmul.mubr.bf16.gmra.mrb[0].mxu0 %v1913
      %v2037 = vpop.f32.mrb[0].mxu0
      %v2038 = vadd.f32 0.0, %v2037
      %v2039 = vpop.f32.mrb[0].mxu0
      %v2040 = vpop.f32.mrb[0].mxu0
      %v2041 = vadd.f32 0.0, %v2040
      %v2042 = vpop.f32.mrb[0].mxu0
      %2043 = vmatprep.mubr.bf16.mxu0 0
      %2044 = vmatmul.mubr.bf16.gmra.mrb[0].mxu0 %v1916
      %v2045 = vpop.f32.mrb[0].mxu0
      %v2046 = vadd.f32 0.0, %v2045
      %v2047 = vpop.f32.mrb[0].mxu0
      %v2048 = vpop.f32.mrb[0].mxu0
      %v2049 = vadd.f32 0.0, %v2048
      %v2050 = vpop.f32.mrb[0].mxu0
      %2051 = vmatprep.mubr.bf16.mxu0 0
      %2052 = vmatmul.mubr.bf16.gmra.mrb[0].mxu0 %v1919
      %v2053 = vpop.f32.mrb[0].mxu0
      %v2054 = vadd.f32 0.0, %v2053
      %v2055 = vpop.f32.mrb[0].mxu0
      %v2056 = vpop.f32.mrb[0].mxu0
      %v2057 = vadd.f32 0.0, %v2056
      %v2058 = vpop.f32.mrb[0].mxu0
      %2059 = vmatprep.mubr.bf16.mxu0 0
      %2060 = vmatmul.mubr.bf16.gmra.mrb[0].mxu0 %v1922
      %v2061 = vpop.f32.mrb[0].mxu0
      %v2062 = vadd.f32 0.0, %v2061
      %v2063 = vpop.f32.mrb[0].mxu0
      %v2064 = vpop.f32.mrb[0].mxu0
      %v2065 = vadd.f32 0.0, %v2064
      %v2066 = vpop.f32.mrb[0].mxu0
      %2067 = vmatprep.mubr.bf16.mxu0 0
      %2068 = vmatmul.mubr.bf16.gmra.mrb[0].mxu0 %v1925
      %v2069 = vpop.f32.mrb[0].mxu0
      %v2070 = vadd.f32 0.0, %v2069
      %v2071 = vpop.f32.mrb[0].mxu0
      %v2072 = vpop.f32.mrb[0].mxu0
      %v2073 = vadd.f32 0.0, %v2072
      %v2074 = vpop.f32.mrb[0].mxu0
      %2075 = vmatprep.mubr.bf16.mxu0 0
      %2076 = vmatmul.mubr.bf16.gmra.mrb[0].mxu0 %v1928
      %v2077 = vpop.f32.mrb[0].mxu0
      %v2078 = vadd.f32 0.0, %v2077
      %v2079 = vpop.f32.mrb[0].mxu0
      %v2080 = vpop.f32.mrb[0].mxu0
      %v2081 = vadd.f32 0.0, %v2080
      %v2082 = vpop.f32.mrb[0].mxu0
      %2083 = vmatprep.mubr.bf16.mxu0 0
      %2084 = vmatmul.mubr.bf16.gmra.mrb[0].mxu0 %v1931
      %v2085 = vpop.f32.mrb[0].mxu0
      %v2086 = vadd.f32 0.0, %v2085
      %v2087 = vpop.f32.mrb[0].mxu0
      %v2088 = vpop.f32.mrb[0].mxu0
      %v2089 = vadd.f32 0.0, %v2088
      %v2090 = vpop.f32.mrb[0].mxu0
      %2091 = vmatprep.mubr.bf16.mxu0 0
      %2092 = vmatmul.mubr.bf16.gmra.mrb[0].mxu0 %v1934
      %v2093 = vpop.f32.mrb[0].mxu0
      %v2094 = vadd.f32 0.0, %v2093
      %v2095 = vpop.f32.mrb[0].mxu0
      %v2096 = vpop.f32.mrb[0].mxu0
      %v2097 = vadd.f32 0.0, %v2096
      %v2098 = vpop.f32.mrb[0].mxu0
      %2099 = vdwg.mxu0
      %v2100 = vadd.f32 %v1806, %v1974
      %v2101 = vadd.f32 %v1807, %v1977
      %v2102 = vadd.f32 %v1808, %v1982
      %v2103 = vadd.f32 %v1809, %v1985
      %v2104 = vadd.f32 %v1810, %v1990
      %v2105 = vadd.f32 %v1811, %v1993
      %v2106 = vadd.f32 %v1812, %v1998
      %v2107 = vadd.f32 %v1813, %v2001
      %v2108 = vadd.f32 %v1814, %v2006
      %v2109 = vadd.f32 %v1815, %v2009
      %v2110 = vadd.f32 %v1816, %v2014
      %v2111 = vadd.f32 %v1817, %v2017
      %v2112 = vadd.f32 %v1818, %v2022
      %v2113 = vadd.f32 %v1819, %v2025
      %v2114 = vadd.f32 %v1820, %v2030
      %v2115 = vadd.f32 %v1821, %v2033
      %v2116 = vadd.f32 %v1822, %v2038
      %v2117 = vadd.f32 %v1823, %v2041
      %v2118 = vadd.f32 %v1824, %v2046
      %v2119 = vadd.f32 %v1825, %v2049
      %v2120 = vadd.f32 %v1826, %v2054
      %v2121 = vadd.f32 %v1827, %v2057
      %v2122 = vadd.f32 %v1828, %v2062
      %v2123 = vadd.f32 %v1829, %v2065
      %v2124 = vadd.f32 %v1830, %v2070
      %v2125 = vadd.f32 %v1831, %v2073
      %v2126 = vadd.f32 %v1832, %v2078
      %v2127 = vadd.f32 %v1833, %v2081
      %v2128 = vadd.f32 %v1834, %v2086
      %v2129 = vadd.f32 %v1835, %v2089
      %v2130 = vadd.f32 %v1836, %v2094
      %v2131 = vadd.f32 %v1837, %v2097
      %v2132 = vld [vmem:[%s659 + $0x2] sm:$0xff]
      %v2133 = vld [vmem:[%s659 + $0xa] sm:$0xff]
      %v2134 = vld [vmem:[%s659 + $0x1a] sm:$0xff]
      %v2135 = vld [vmem:[%s659 + $0x22] sm:$0xff]
      %v2136 = vld [vmem:[%s659 + $0x32] sm:$0xff]
      %v2137 = vld [vmem:[%s659 + $0x3a] sm:$0xff]
      %v2138 = vld [vmem:[%s659 + $0x4a] sm:$0xff]
      %v2139 = vld [vmem:[%s659 + $0x52] sm:$0xff]
      %v2140 = vld [vmem:[%s659 + $0x62] sm:$0xff]
      %v2141 = vld [vmem:[%s659 + $0x6a] sm:$0xff]
      %v2142 = vld [vmem:[%s659 + $0x7a] sm:$0xff]
      %v2143 = vld [vmem:[%s659 + $0x82] sm:$0xff]
      %v2144 = vld [vmem:[%s659 + $0x92] sm:$0xff]
      %v2145 = vld [vmem:[%s659 + $0x9a] sm:$0xff]
      %v2146 = vld [vmem:[%s659 + $0xaa] sm:$0xff]
      %v2147 = vld [vmem:[%s659 + $0xb2] sm:$0xff]
      %v2148 = vld [vmem:[%s659 + $0xc2] sm:$0xff]
      %v2149 = vld [vmem:[%s659 + $0xca] sm:$0xff]
      %v2150 = vld [vmem:[%s659 + $0xda] sm:$0xff]
      %v2151 = vld [vmem:[%s659 + $0xe2] sm:$0xff]
      %v2152 = vld [vmem:[%s659 + $0xf2] sm:$0xff]
      %v2153 = vld [vmem:[%s659 + $0xfa] sm:$0xff]
      %v2154 = vld [vmem:[%s659 + $0x10a] sm:$0xff]
      %v2155 = vld [vmem:[%s659 + $0x112] sm:$0xff]
      %v2156 = vld [vmem:[%s659 + $0x122] sm:$0xff]
      %v2157 = vld [vmem:[%s659 + $0x12a] sm:$0xff]
      %v2158 = vld [vmem:[%s659 + $0x13a] sm:$0xff]
      %v2159 = vld [vmem:[%s659 + $0x142] sm:$0xff]
      %v2160 = vld [vmem:[%s659 + $0x152] sm:$0xff]
      %v2161 = vld [vmem:[%s659 + $0x15a] sm:$0xff]
      %v2162 = vld [vmem:[%s659 + $0x16a] sm:$0xff]
      %v2163 = vld [vmem:[%s659 + $0x172] sm:$0xff]
      %v2164 = vpack.c.bf16 %v2133, %v2132
      %v2165 = vpack.c.bf16 %v2135, %v2134
      %v2166 = vpack.c.bf16 %v2137, %v2136
      %v2167 = vpack.c.bf16 %v2139, %v2138
      %v2168 = vpack.c.bf16 %v2141, %v2140
      %v2169 = vpack.c.bf16 %v2143, %v2142
      %v2170 = vpack.c.bf16 %v2145, %v2144
      %v2171 = vpack.c.bf16 %v2147, %v2146
      %v2172 = vpack.c.bf16 %v2149, %v2148
      %v2173 = vpack.c.bf16 %v2151, %v2150
      %v2174 = vpack.c.bf16 %v2153, %v2152
      %v2175 = vpack.c.bf16 %v2155, %v2154
      %v2176 = vpack.c.bf16 %v2157, %v2156
      %v2177 = vpack.c.bf16 %v2159, %v2158
      %v2178 = vpack.c.bf16 %v2161, %v2160
      %v2179 = vpack.c.bf16 %v2163, %v2162
      %s2180 = scalar_lea.vmem %s5, 20
      %v2181 = vld [vmem:[%s2180] sm:$0xf]
      %v2183 = vsel %vm660, %v2164, 0
      %v2186 = vsel %vm660, %v2165, 0
      %v2189 = vsel %vm660, %v2166, 0
      %v2192 = vsel %vm660, %v2167, 0
      %v2195 = vsel %vm660, %v2168, 0
      %v2198 = vsel %vm660, %v2169, 0
      %v2201 = vsel %vm660, %v2170, 0
      %v2204 = vsel %vm660, %v2171, 0
      %v2207 = vsel %vm660, %v2172, 0
      %v2210 = vsel %vm660, %v2173, 0
      %v2213 = vsel %vm660, %v2174, 0
      %v2216 = vsel %vm660, %v2175, 0
      %v2219 = vsel %vm660, %v2176, 0
      %v2222 = vsel %vm660, %v2177, 0
      %v2225 = vsel %vm660, %v2178, 0
      %v2228 = vsel %vm660, %v2179, 0
      %v2231 = vsel %vm873, %v2181, 0
      %2233 = vmatprep.subr.bf16.mxu0 0
      %2234 = vmatpush1.bf16.msra.mxu0 %v2231
      %2235 = vmatprep.subr.bf16.mxu0 0
      %2236 = vmatpush1.bf16.msra.mxu0 0
      %2237 = vmatprep.subr.bf16.mxu0 0
      %2238 = vmatpush1.bf16.msra.mxu0 0
      %2239 = vmatprep.subr.bf16.mxu0 0
      %2240 = vmatpush1.bf16.msra.mxu0 0
      %2241 = vmatprep.subr.bf16.mxu0 0
      %2242 = vmatpush1.bf16.msra.mxu0 0
      %2243 = vmatprep.subr.bf16.mxu0 0
      %2244 = vmatpush1.bf16.msra.mxu0 0
      %2245 = vmatprep.subr.bf16.mxu0 0
      %2246 = vmatpush1.bf16.msra.mxu0 0
      %2247 = vmatprep.subr.bf16.mxu0 0
      %2248 = vmatpush1.bf16.msra.mxu0 0
      %2249 = vmatprep.subr.bf16.mxu0 0
      %2250 = vmatpush1.bf16.msra.mxu0 0
      %2251 = vmatprep.subr.bf16.mxu0 0
      %2252 = vmatpush1.bf16.msra.mxu0 0
      %2253 = vmatprep.subr.bf16.mxu0 0
      %2254 = vmatpush1.bf16.msra.mxu0 0
      %2255 = vmatprep.subr.bf16.mxu0 0
      %2256 = vmatpush1.bf16.msra.mxu0 0
      %2257 = vmatprep.subr.bf16.mxu0 0
      %2258 = vmatpush1.bf16.msra.mxu0 0
      %2259 = vmatprep.subr.bf16.mxu0 0
      %2260 = vmatpush1.bf16.msra.mxu0 0
      %2261 = vmatprep.subr.bf16.mxu0 0
      %2262 = vmatpush1.bf16.msra.mxu0 0
      %2263 = vmatprep.subr.bf16.mxu0 0
      %2264 = vmatpush1.bf16.msra.mxu0 0
      %2265 = vmatprep.mubr.bf16.mxu0 0
      %2266 = vmatmul.mubr.bf16.gmra.mrb[0].mxu0 %v2183
      %v2267 = vpop.f32.mrb[0].mxu0
      %v2268 = vadd.f32 0.0, %v2267
      %v2269 = vpop.f32.mrb[0].mxu0
      %v2270 = vpop.f32.mrb[0].mxu0
      %v2271 = vadd.f32 0.0, %v2270
      %v2272 = vpop.f32.mrb[0].mxu0
      %2273 = vmatprep.mubr.bf16.mxu0 0
      %2274 = vmatmul.mubr.bf16.gmra.mrb[0].mxu0 %v2186
      %v2275 = vpop.f32.mrb[0].mxu0
      %v2276 = vadd.f32 0.0, %v2275
      %v2277 = vpop.f32.mrb[0].mxu0
      %v2278 = vpop.f32.mrb[0].mxu0
      %v2279 = vadd.f32 0.0, %v2278
      %v2280 = vpop.f32.mrb[0].mxu0
      %2281 = vmatprep.mubr.bf16.mxu0 0
      %2282 = vmatmul.mubr.bf16.gmra.mrb[0].mxu0 %v2189
      %v2283 = vpop.f32.mrb[0].mxu0
      %v2284 = vadd.f32 0.0, %v2283
      %v2285 = vpop.f32.mrb[0].mxu0
      %v2286 = vpop.f32.mrb[0].mxu0
      %v2287 = vadd.f32 0.0, %v2286
      %v2288 = vpop.f32.mrb[0].mxu0
      %2289 = vmatprep.mubr.bf16.mxu0 0
      %2290 = vmatmul.mubr.bf16.gmra.mrb[0].mxu0 %v2192
      %v2291 = vpop.f32.mrb[0].mxu0
      %v2292 = vadd.f32 0.0, %v2291
      %v2293 = vpop.f32.mrb[0].mxu0
      %v2294 = vpop.f32.mrb[0].mxu0
      %v2295 = vadd.f32 0.0, %v2294
      %v2296 = vpop.f32.mrb[0].mxu0
      %2297 = vmatprep.mubr.bf16.mxu0 0
      %2298 = vmatmul.mubr.bf16.gmra.mrb[0].mxu0 %v2195
      %v2299 = vpop.f32.mrb[0].mxu0
      %v2300 = vadd.f32 0.0, %v2299
      %v2301 = vpop.f32.mrb[0].mxu0
      %v2302 = vpop.f32.mrb[0].mxu0
      %v2303 = vadd.f32 0.0, %v2302
      %v2304 = vpop.f32.mrb[0].mxu0
      %2305 = vmatprep.mubr.bf16.mxu0 0
      %2306 = vmatmul.mubr.bf16.gmra.mrb[0].mxu0 %v2198
      %v2307 = vpop.f32.mrb[0].mxu0
      %v2308 = vadd.f32 0.0, %v2307
      %v2309 = vpop.f32.mrb[0].mxu0
      %v2310 = vpop.f32.mrb[0].mxu0
      %v2311 = vadd.f32 0.0, %v2310
      %v2312 = vpop.f32.mrb[0].mxu0
      %2313 = vmatprep.mubr.bf16.mxu0 0
      %2314 = vmatmul.mubr.bf16.gmra.mrb[0].mxu0 %v2201
      %v2315 = vpop.f32.mrb[0].mxu0
      %v2316 = vadd.f32 0.0, %v2315
      %v2317 = vpop.f32.mrb[0].mxu0
      %v2318 = vpop.f32.mrb[0].mxu0
      %v2319 = vadd.f32 0.0, %v2318
      %v2320 = vpop.f32.mrb[0].mxu0
      %2321 = vmatprep.mubr.bf16.mxu0 0
      %2322 = vmatmul.mubr.bf16.gmra.mrb[0].mxu0 %v2204
      %v2323 = vpop.f32.mrb[0].mxu0
      %v2324 = vadd.f32 0.0, %v2323
      %v2325 = vpop.f32.mrb[0].mxu0
      %v2326 = vpop.f32.mrb[0].mxu0
      %v2327 = vadd.f32 0.0, %v2326
      %v2328 = vpop.f32.mrb[0].mxu0
      %2329 = vmatprep.mubr.bf16.mxu0 0
      %2330 = vmatmul.mubr.bf16.gmra.mrb[0].mxu0 %v2207
      %v2331 = vpop.f32.mrb[0].mxu0
      %v2332 = vadd.f32 0.0, %v2331
      %v2333 = vpop.f32.mrb[0].mxu0
      %v2334 = vpop.f32.mrb[0].mxu0
      %v2335 = vadd.f32 0.0, %v2334
      %v2336 = vpop.f32.mrb[0].mxu0
      %2337 = vmatprep.mubr.bf16.mxu0 0
      %2338 = vmatmul.mubr.bf16.gmra.mrb[0].mxu0 %v2210
      %v2339 = vpop.f32.mrb[0].mxu0
      %v2340 = vadd.f32 0.0, %v2339
      %v2341 = vpop.f32.mrb[0].mxu0
      %v2342 = vpop.f32.mrb[0].mxu0
      %v2343 = vadd.f32 0.0, %v2342
      %v2344 = vpop.f32.mrb[0].mxu0
      %2345 = vmatprep.mubr.bf16.mxu0 0
      %2346 = vmatmul.mubr.bf16.gmra.mrb[0].mxu0 %v2213
      %v2347 = vpop.f32.mrb[0].mxu0
      %v2348 = vadd.f32 0.0, %v2347
      %v2349 = vpop.f32.mrb[0].mxu0
      %v2350 = vpop.f32.mrb[0].mxu0
      %v2351 = vadd.f32 0.0, %v2350
      %v2352 = vpop.f32.mrb[0].mxu0
      %2353 = vmatprep.mubr.bf16.mxu0 0
      %2354 = vmatmul.mubr.bf16.gmra.mrb[0].mxu0 %v2216
      %v2355 = vpop.f32.mrb[0].mxu0
      %v2356 = vadd.f32 0.0, %v2355
      %v2357 = vpop.f32.mrb[0].mxu0
      %v2358 = vpop.f32.mrb[0].mxu0
      %v2359 = vadd.f32 0.0, %v2358
      %v2360 = vpop.f32.mrb[0].mxu0
      %2361 = vmatprep.mubr.bf16.mxu0 0
      %2362 = vmatmul.mubr.bf16.gmra.mrb[0].mxu0 %v2219
      %v2363 = vpop.f32.mrb[0].mxu0
      %v2364 = vadd.f32 0.0, %v2363
      %v2365 = vpop.f32.mrb[0].mxu0
      %v2366 = vpop.f32.mrb[0].mxu0
      %v2367 = vadd.f32 0.0, %v2366
      %v2368 = vpop.f32.mrb[0].mxu0
      %2369 = vmatprep.mubr.bf16.mxu0 0
      %2370 = vmatmul.mubr.bf16.gmra.mrb[0].mxu0 %v2222
      %v2371 = vpop.f32.mrb[0].mxu0
      %v2372 = vadd.f32 0.0, %v2371
      %v2373 = vpop.f32.mrb[0].mxu0
      %v2374 = vpop.f32.mrb[0].mxu0
      %v2375 = vadd.f32 0.0, %v2374
      %v2376 = vpop.f32.mrb[0].mxu0
      %2377 = vmatprep.mubr.bf16.mxu0 0
      %2378 = vmatmul.mubr.bf16.gmra.mrb[0].mxu0 %v2225
      %v2379 = vpop.f32.mrb[0].mxu0
      %v2380 = vadd.f32 0.0, %v2379
      %v2381 = vpop.f32.mrb[0].mxu0
      %v2382 = vpop.f32.mrb[0].mxu0
      %v2383 = vadd.f32 0.0, %v2382
      %v2384 = vpop.f32.mrb[0].mxu0
      %2385 = vmatprep.mubr.bf16.mxu0 0
      %2386 = vmatmul.mubr.bf16.gmra.mrb[0].mxu0 %v2228
      %v2387 = vpop.f32.mrb[0].mxu0
      %v2388 = vadd.f32 0.0, %v2387
      %v2389 = vpop.f32.mrb[0].mxu0
      %v2390 = vpop.f32.mrb[0].mxu0
      %v2391 = vadd.f32 0.0, %v2390
      %v2392 = vpop.f32.mrb[0].mxu0
      %2393 = vdwg.mxu0
      %v2394 = vadd.f32 %v2100, %v2268
      %v2395 = vadd.f32 %v2101, %v2271
      %v2396 = vadd.f32 %v2102, %v2276
      %v2397 = vadd.f32 %v2103, %v2279
      %v2398 = vadd.f32 %v2104, %v2284
      %v2399 = vadd.f32 %v2105, %v2287
      %v2400 = vadd.f32 %v2106, %v2292
      %v2401 = vadd.f32 %v2107, %v2295
      %v2402 = vadd.f32 %v2108, %v2300
      %v2403 = vadd.f32 %v2109, %v2303
      %v2404 = vadd.f32 %v2110, %v2308
      %v2405 = vadd.f32 %v2111, %v2311
      %v2406 = vadd.f32 %v2112, %v2316
      %v2407 = vadd.f32 %v2113, %v2319
      %v2408 = vadd.f32 %v2114, %v2324
      %v2409 = vadd.f32 %v2115, %v2327
      %v2410 = vadd.f32 %v2116, %v2332
      %v2411 = vadd.f32 %v2117, %v2335
      %v2412 = vadd.f32 %v2118, %v2340
      %v2413 = vadd.f32 %v2119, %v2343
      %v2414 = vadd.f32 %v2120, %v2348
      %v2415 = vadd.f32 %v2121, %v2351
      %v2416 = vadd.f32 %v2122, %v2356
      %v2417 = vadd.f32 %v2123, %v2359
      %v2418 = vadd.f32 %v2124, %v2364
      %v2419 = vadd.f32 %v2125, %v2367
      %v2420 = vadd.f32 %v2126, %v2372
      %v2421 = vadd.f32 %v2127, %v2375
      %v2422 = vadd.f32 %v2128, %v2380
      %v2423 = vadd.f32 %v2129, %v2383
      %v2424 = vadd.f32 %v2130, %v2388
      %v2425 = vadd.f32 %v2131, %v2391
      %s2426 = scalar_lea.vmem [#allocation2], 48
      %v2427 = vld [vmem:[%s2426] sm:$0xff]
      %v2428 = vld [vmem:[%s2426 + $0x8] sm:$0xff]
      %v2429 = vld [vmem:[%s2426 + $0x18] sm:$0xff]
      %v2430 = vld [vmem:[%s2426 + $0x20] sm:$0xff]
      %v2431 = vld [vmem:[%s2426 + $0x30] sm:$0xff]
      %v2432 = vld [vmem:[%s2426 + $0x38] sm:$0xff]
      %v2433 = vld [vmem:[%s2426 + $0x48] sm:$0xff]
      %v2434 = vld [vmem:[%s2426 + $0x50] sm:$0xff]
      %v2435 = vld [vmem:[%s2426 + $0x60] sm:$0xff]
      %v2436 = vld [vmem:[%s2426 + $0x68] sm:$0xff]
      %v2437 = vld [vmem:[%s2426 + $0x78] sm:$0xff]
      %v2438 = vld [vmem:[%s2426 + $0x80] sm:$0xff]
      %v2439 = vld [vmem:[%s2426 + $0x90] sm:$0xff]
      %v2440 = vld [vmem:[%s2426 + $0x98] sm:$0xff]
      %v2441 = vld [vmem:[%s2426 + $0xa8] sm:$0xff]
      %v2442 = vld [vmem:[%s2426 + $0xb0] sm:$0xff]
      %v2443 = vld [vmem:[%s2426 + $0xc0] sm:$0xff]
      %v2444 = vld [vmem:[%s2426 + $0xc8] sm:$0xff]
      %v2445 = vld [vmem:[%s2426 + $0xd8] sm:$0xff]
      %v2446 = vld [vmem:[%s2426 + $0xe0] sm:$0xff]
      %v2447 = vld [vmem:[%s2426 + $0xf0] sm:$0xff]
      %v2448 = vld [vmem:[%s2426 + $0xf8] sm:$0xff]
      %v2449 = vld [vmem:[%s2426 + $0x108] sm:$0xff]
      %v2450 = vld [vmem:[%s2426 + $0x110] sm:$0xff]
      %v2451 = vld [vmem:[%s2426 + $0x120] sm:$0xff]
      %v2452 = vld [vmem:[%s2426 + $0x128] sm:$0xff]
      %v2453 = vld [vmem:[%s2426 + $0x138] sm:$0xff]
      %v2454 = vld [vmem:[%s2426 + $0x140] sm:$0xff]
      %v2455 = vld [vmem:[%s2426 + $0x150] sm:$0xff]
      %v2456 = vld [vmem:[%s2426 + $0x158] sm:$0xff]
      %v2457 = vld [vmem:[%s2426 + $0x168] sm:$0xff]
      %v2458 = vld [vmem:[%s2426 + $0x170] sm:$0xff]
      %v2459 = vpack.c.bf16 %v2428, %v2427
      %v2460 = vpack.c.bf16 %v2430, %v2429
      %v2461 = vpack.c.bf16 %v2432, %v2431
      %v2462 = vpack.c.bf16 %v2434, %v2433
      %v2463 = vpack.c.bf16 %v2436, %v2435
      %v2464 = vpack.c.bf16 %v2438, %v2437
      %v2465 = vpack.c.bf16 %v2440, %v2439
      %v2466 = vpack.c.bf16 %v2442, %v2441
      %v2467 = vpack.c.bf16 %v2444, %v2443
      %v2468 = vpack.c.bf16 %v2446, %v2445
      %v2469 = vpack.c.bf16 %v2448, %v2447
      %v2470 = vpack.c.bf16 %v2450, %v2449
      %v2471 = vpack.c.bf16 %v2452, %v2451
      %v2472 = vpack.c.bf16 %v2454, %v2453
      %v2473 = vpack.c.bf16 %v2456, %v2455
      %v2474 = vpack.c.bf16 %v2458, %v2457
      %s2475 = scalar_lea.vmem %s5, 24
      %v2476 = vld [vmem:[%s2475] sm:$0xf]
      %v2478 = vsel %vm660, %v2459, 0
      %v2481 = vsel %vm660, %v2460, 0
      %v2484 = vsel %vm660, %v2461, 0
      %v2487 = vsel %vm660, %v2462, 0
      %v2490 = vsel %vm660, %v2463, 0
      %v2493 = vsel %vm660, %v2464, 0
      %v2496 = vsel %vm660, %v2465, 0
      %v2499 = vsel %vm660, %v2466, 0
      %v2502 = vsel %vm660, %v2467, 0
      %v2505 = vsel %vm660, %v2468, 0
      %v2508 = vsel %vm660, %v2469, 0
      %v2511 = vsel %vm660, %v2470, 0
      %v2514 = vsel %vm660, %v2471, 0
      %v2517 = vsel %vm660, %v2472, 0
      %v2520 = vsel %vm660, %v2473, 0
      %v2523 = vsel %vm660, %v2474, 0
      %v2526 = vsel %vm873, %v2476, 0
      %2528 = vmatprep.subr.bf16.mxu0 0
      %2529 = vmatpush1.bf16.msra.mxu0 %v2526
      %2530 = vmatprep.subr.bf16.mxu0 0
      %2531 = vmatpush1.bf16.msra.mxu0 0
      %2532 = vmatprep.subr.bf16.mxu0 0
      %2533 = vmatpush1.bf16.msra.mxu0 0
      %2534 = vmatprep.subr.bf16.mxu0 0
      %2535 = vmatpush1.bf16.msra.mxu0 0
      %2536 = vmatprep.subr.bf16.mxu0 0
      %2537 = vmatpush1.bf16.msra.mxu0 0
      %2538 = vmatprep.subr.bf16.mxu0 0
      %2539 = vmatpush1.bf16.msra.mxu0 0
      %2540 = vmatprep.subr.bf16.mxu0 0
      %2541 = vmatpush1.bf16.msra.mxu0 0
      %2542 = vmatprep.subr.bf16.mxu0 0
      %2543 = vmatpush1.bf16.msra.mxu0 0
      %2544 = vmatprep.subr.bf16.mxu0 0
      %2545 = vmatpush1.bf16.msra.mxu0 0
      %2546 = vmatprep.subr.bf16.mxu0 0
      %2547 = vmatpush1.bf16.msra.mxu0 0
      %2548 = vmatprep.subr.bf16.mxu0 0
      %2549 = vmatpush1.bf16.msra.mxu0 0
      %2550 = vmatprep.subr.bf16.mxu0 0
      %2551 = vmatpush1.bf16.msra.mxu0 0
      %2552 = vmatprep.subr.bf16.mxu0 0
      %2553 = vmatpush1.bf16.msra.mxu0 0
      %2554 = vmatprep.subr.bf16.mxu0 0
      %2555 = vmatpush1.bf16.msra.mxu0 0
      %2556 = vmatprep.subr.bf16.mxu0 0
      %2557 = vmatpush1.bf16.msra.mxu0 0
      %2558 = vmatprep.subr.bf16.mxu0 0
      %2559 = vmatpush1.bf16.msra.mxu0 0
      %2560 = vmatprep.mubr.bf16.mxu0 0
      %2561 = vmatmul.mubr.bf16.gmra.mrb[0].mxu0 %v2478
      %v2562 = vpop.f32.mrb[0].mxu0
      %v2563 = vadd.f32 0.0, %v2562
      %v2564 = vpop.f32.mrb[0].mxu0
      %v2565 = vpop.f32.mrb[0].mxu0
      %v2566 = vadd.f32 0.0, %v2565
      %v2567 = vpop.f32.mrb[0].mxu0
      %2568 = vmatprep.mubr.bf16.mxu0 0
      %2569 = vmatmul.mubr.bf16.gmra.mrb[0].mxu0 %v2481
      %v2570 = vpop.f32.mrb[0].mxu0
      %v2571 = vadd.f32 0.0, %v2570
      %v2572 = vpop.f32.mrb[0].mxu0
      %v2573 = vpop.f32.mrb[0].mxu0
      %v2574 = vadd.f32 0.0, %v2573
      %v2575 = vpop.f32.mrb[0].mxu0
      %2576 = vmatprep.mubr.bf16.mxu0 0
      %2577 = vmatmul.mubr.bf16.gmra.mrb[0].mxu0 %v2484
      %v2578 = vpop.f32.mrb[0].mxu0
      %v2579 = vadd.f32 0.0, %v2578
      %v2580 = vpop.f32.mrb[0].mxu0
      %v2581 = vpop.f32.mrb[0].mxu0
      %v2582 = vadd.f32 0.0, %v2581
      %v2583 = vpop.f32.mrb[0].mxu0
      %2584 = vmatprep.mubr.bf16.mxu0 0
      %2585 = vmatmul.mubr.bf16.gmra.mrb[0].mxu0 %v2487
      %v2586 = vpop.f32.mrb[0].mxu0
      %v2587 = vadd.f32 0.0, %v2586
      %v2588 = vpop.f32.mrb[0].mxu0
      %v2589 = vpop.f32.mrb[0].mxu0
      %v2590 = vadd.f32 0.0, %v2589
      %v2591 = vpop.f32.mrb[0].mxu0
      %2592 = vmatprep.mubr.bf16.mxu0 0
      %2593 = vmatmul.mubr.bf16.gmra.mrb[0].mxu0 %v2490
      %v2594 = vpop.f32.mrb[0].mxu0
      %v2595 = vadd.f32 0.0, %v2594
      %v2596 = vpop.f32.mrb[0].mxu0
      %v2597 = vpop.f32.mrb[0].mxu0
      %v2598 = vadd.f32 0.0, %v2597
      %v2599 = vpop.f32.mrb[0].mxu0
      %2600 = vmatprep.mubr.bf16.mxu0 0
      %2601 = vmatmul.mubr.bf16.gmra.mrb[0].mxu0 %v2493
      %v2602 = vpop.f32.mrb[0].mxu0
      %v2603 = vadd.f32 0.0, %v2602
      %v2604 = vpop.f32.mrb[0].mxu0
      %v2605 = vpop.f32.mrb[0].mxu0
      %v2606 = vadd.f32 0.0, %v2605
      %v2607 = vpop.f32.mrb[0].mxu0
      %2608 = vmatprep.mubr.bf16.mxu0 0
      %2609 = vmatmul.mubr.bf16.gmra.mrb[0].mxu0 %v2496
      %v2610 = vpop.f32.mrb[0].mxu0
      %v2611 = vadd.f32 0.0, %v2610
      %v2612 = vpop.f32.mrb[0].mxu0
      %v2613 = vpop.f32.mrb[0].mxu0
      %v2614 = vadd.f32 0.0, %v2613
      %v2615 = vpop.f32.mrb[0].mxu0
      %2616 = vmatprep.mubr.bf16.mxu0 0
      %2617 = vmatmul.mubr.bf16.gmra.mrb[0].mxu0 %v2499
      %v2618 = vpop.f32.mrb[0].mxu0
      %v2619 = vadd.f32 0.0, %v2618
      %v2620 = vpop.f32.mrb[0].mxu0
      %v2621 = vpop.f32.mrb[0].mxu0
      %v2622 = vadd.f32 0.0, %v2621
      %v2623 = vpop.f32.mrb[0].mxu0
      %2624 = vmatprep.mubr.bf16.mxu0 0
      %2625 = vmatmul.mubr.bf16.gmra.mrb[0].mxu0 %v2502
      %v2626 = vpop.f32.mrb[0].mxu0
      %v2627 = vadd.f32 0.0, %v2626
      %v2628 = vpop.f32.mrb[0].mxu0
      %v2629 = vpop.f32.mrb[0].mxu0
      %v2630 = vadd.f32 0.0, %v2629
      %v2631 = vpop.f32.mrb[0].mxu0
      %2632 = vmatprep.mubr.bf16.mxu0 0
      %2633 = vmatmul.mubr.bf16.gmra.mrb[0].mxu0 %v2505
      %v2634 = vpop.f32.mrb[0].mxu0
      %v2635 = vadd.f32 0.0, %v2634
      %v2636 = vpop.f32.mrb[0].mxu0
      %v2637 = vpop.f32.mrb[0].mxu0
      %v2638 = vadd.f32 0.0, %v2637
      %v2639 = vpop.f32.mrb[0].mxu0
      %2640 = vmatprep.mubr.bf16.mxu0 0
      %2641 = vmatmul.mubr.bf16.gmra.mrb[0].mxu0 %v2508
      %v2642 = vpop.f32.mrb[0].mxu0
      %v2643 = vadd.f32 0.0, %v2642
      %v2644 = vpop.f32.mrb[0].mxu0
      %v2645 = vpop.f32.mrb[0].mxu0
      %v2646 = vadd.f32 0.0, %v2645
      %v2647 = vpop.f32.mrb[0].mxu0
      %2648 = vmatprep.mubr.bf16.mxu0 0
      %2649 = vmatmul.mubr.bf16.gmra.mrb[0].mxu0 %v2511
      %v2650 = vpop.f32.mrb[0].mxu0
      %v2651 = vadd.f32 0.0, %v2650
      %v2652 = vpop.f32.mrb[0].mxu0
      %v2653 = vpop.f32.mrb[0].mxu0
      %v2654 = vadd.f32 0.0, %v2653
      %v2655 = vpop.f32.mrb[0].mxu0
      %2656 = vmatprep.mubr.bf16.mxu0 0
      %2657 = vmatmul.mubr.bf16.gmra.mrb[0].mxu0 %v2514
      %v2658 = vpop.f32.mrb[0].mxu0
      %v2659 = vadd.f32 0.0, %v2658
      %v2660 = vpop.f32.mrb[0].mxu0
      %v2661 = vpop.f32.mrb[0].mxu0
      %v2662 = vadd.f32 0.0, %v2661
      %v2663 = vpop.f32.mrb[0].mxu0
      %2664 = vmatprep.mubr.bf16.mxu0 0
      %2665 = vmatmul.mubr.bf16.gmra.mrb[0].mxu0 %v2517
      %v2666 = vpop.f32.mrb[0].mxu0
      %v2667 = vadd.f32 0.0, %v2666
      %v2668 = vpop.f32.mrb[0].mxu0
      %v2669 = vpop.f32.mrb[0].mxu0
      %v2670 = vadd.f32 0.0, %v2669
      %v2671 = vpop.f32.mrb[0].mxu0
      %2672 = vmatprep.mubr.bf16.mxu0 0
      %2673 = vmatmul.mubr.bf16.gmra.mrb[0].mxu0 %v2520
      %v2674 = vpop.f32.mrb[0].mxu0
      %v2675 = vadd.f32 0.0, %v2674
      %v2676 = vpop.f32.mrb[0].mxu0
      %v2677 = vpop.f32.mrb[0].mxu0
      %v2678 = vadd.f32 0.0, %v2677
      %v2679 = vpop.f32.mrb[0].mxu0
      %2680 = vmatprep.mubr.bf16.mxu0 0
      %2681 = vmatmul.mubr.bf16.gmra.mrb[0].mxu0 %v2523
      %v2682 = vpop.f32.mrb[0].mxu0
      %v2683 = vadd.f32 0.0, %v2682
      %v2684 = vpop.f32.mrb[0].mxu0
      %v2685 = vpop.f32.mrb[0].mxu0
      %v2686 = vadd.f32 0.0, %v2685
      %v2687 = vpop.f32.mrb[0].mxu0
      %2688 = vdwg.mxu0
      %v2689 = vadd.f32 %v2394, %v2563
      %v2690 = vadd.f32 %v2395, %v2566
      %v2691 = vadd.f32 %v2396, %v2571
      %v2692 = vadd.f32 %v2397, %v2574
      %v2693 = vadd.f32 %v2398, %v2579
      %v2694 = vadd.f32 %v2399, %v2582
      %v2695 = vadd.f32 %v2400, %v2587
      %v2696 = vadd.f32 %v2401, %v2590
      %v2697 = vadd.f32 %v2402, %v2595
      %v2698 = vadd.f32 %v2403, %v2598
      %v2699 = vadd.f32 %v2404, %v2603
      %v2700 = vadd.f32 %v2405, %v2606
      %v2701 = vadd.f32 %v2406, %v2611
      %v2702 = vadd.f32 %v2407, %v2614
      %v2703 = vadd.f32 %v2408, %v2619
      %v2704 = vadd.f32 %v2409, %v2622
      %v2705 = vadd.f32 %v2410, %v2627
      %v2706 = vadd.f32 %v2411, %v2630
      %v2707 = vadd.f32 %v2412, %v2635
      %v2708 = vadd.f32 %v2413, %v2638
      %v2709 = vadd.f32 %v2414, %v2643
      %v2710 = vadd.f32 %v2415, %v2646
      %v2711 = vadd.f32 %v2416, %v2651
      %v2712 = vadd.f32 %v2417, %v2654
      %v2713 = vadd.f32 %v2418, %v2659
      %v2714 = vadd.f32 %v2419, %v2662
      %v2715 = vadd.f32 %v2420, %v2667
      %v2716 = vadd.f32 %v2421, %v2670
      %v2717 = vadd.f32 %v2422, %v2675
      %v2718 = vadd.f32 %v2423, %v2678
      %v2719 = vadd.f32 %v2424, %v2683
      %v2720 = vadd.f32 %v2425, %v2686
      %v2721 = vld [vmem:[%s2426 + $0x1] sm:$0xff]
      %v2722 = vld [vmem:[%s2426 + $0x9] sm:$0xff]
      %v2723 = vld [vmem:[%s2426 + $0x19] sm:$0xff]
      %v2724 = vld [vmem:[%s2426 + $0x21] sm:$0xff]
      %v2725 = vld [vmem:[%s2426 + $0x31] sm:$0xff]
      %v2726 = vld [vmem:[%s2426 + $0x39] sm:$0xff]
      %v2727 = vld [vmem:[%s2426 + $0x49] sm:$0xff]
      %v2728 = vld [vmem:[%s2426 + $0x51] sm:$0xff]
      %v2729 = vld [vmem:[%s2426 + $0x61] sm:$0xff]
      %v2730 = vld [vmem:[%s2426 + $0x69] sm:$0xff]
      %v2731 = vld [vmem:[%s2426 + $0x79] sm:$0xff]
      %v2732 = vld [vmem:[%s2426 + $0x81] sm:$0xff]
      %v2733 = vld [vmem:[%s2426 + $0x91] sm:$0xff]
      %v2734 = vld [vmem:[%s2426 + $0x99] sm:$0xff]
      %v2735 = vld [vmem:[%s2426 + $0xa9] sm:$0xff]
      %v2736 = vld [vmem:[%s2426 + $0xb1] sm:$0xff]
      %v2737 = vld [vmem:[%s2426 + $0xc1] sm:$0xff]
      %v2738 = vld [vmem:[%s2426 + $0xc9] sm:$0xff]
      %v2739 = vld [vmem:[%s2426 + $0xd9] sm:$0xff]
      %v2740 = vld [vmem:[%s2426 + $0xe1] sm:$0xff]
      %v2741 = vld [vmem:[%s2426 + $0xf1] sm:$0xff]
      %v2742 = vld [vmem:[%s2426 + $0xf9] sm:$0xff]
      %v2743 = vld [vmem:[%s2426 + $0x109] sm:$0xff]
      %v2744 = vld [vmem:[%s2426 + $0x111] sm:$0xff]
      %v2745 = vld [vmem:[%s2426 + $0x121] sm:$0xff]
      %v2746 = vld [vmem:[%s2426 + $0x129] sm:$0xff]
      %v2747 = vld [vmem:[%s2426 + $0x139] sm:$0xff]
      %v2748 = vld [vmem:[%s2426 + $0x141] sm:$0xff]
      %v2749 = vld [vmem:[%s2426 + $0x151] sm:$0xff]
      %v2750 = vld [vmem:[%s2426 + $0x159] sm:$0xff]
      %v2751 = vld [vmem:[%s2426 + $0x169] sm:$0xff]
      %v2752 = vld [vmem:[%s2426 + $0x171] sm:$0xff]
      %v2753 = vpack.c.bf16 %v2722, %v2721
      %v2754 = vpack.c.bf16 %v2724, %v2723
      %v2755 = vpack.c.bf16 %v2726, %v2725
      %v2756 = vpack.c.bf16 %v2728, %v2727
      %v2757 = vpack.c.bf16 %v2730, %v2729
      %v2758 = vpack.c.bf16 %v2732, %v2731
      %v2759 = vpack.c.bf16 %v2734, %v2733
      %v2760 = vpack.c.bf16 %v2736, %v2735
      %v2761 = vpack.c.bf16 %v2738, %v2737
      %v2762 = vpack.c.bf16 %v2740, %v2739
      %v2763 = vpack.c.bf16 %v2742, %v2741
      %v2764 = vpack.c.bf16 %v2744, %v2743
      %v2765 = vpack.c.bf16 %v2746, %v2745
      %v2766 = vpack.c.bf16 %v2748, %v2747
      %v2767 = vpack.c.bf16 %v2750, %v2749
      %v2768 = vpack.c.bf16 %v2752, %v2751
      %s2769 = scalar_lea.vmem %s5, 28
      %v2770 = vld [vmem:[%s2769] sm:$0xf]
      %v2772 = vsel %vm660, %v2753, 0
      %v2775 = vsel %vm660, %v2754, 0
      %v2778 = vsel %vm660, %v2755, 0
      %v2781 = vsel %vm660, %v2756, 0
      %v2784 = vsel %vm660, %v2757, 0
      %v2787 = vsel %vm660, %v2758, 0
      %v2790 = vsel %vm660, %v2759, 0
      %v2793 = vsel %vm660, %v2760, 0
      %v2796 = vsel %vm660, %v2761, 0
      %v2799 = vsel %vm660, %v2762, 0
      %v2802 = vsel %vm660, %v2763, 0
      %v2805 = vsel %vm660, %v2764, 0
      %v2808 = vsel %vm660, %v2765, 0
      %v2811 = vsel %vm660, %v2766, 0
      %v2814 = vsel %vm660, %v2767, 0
      %v2817 = vsel %vm660, %v2768, 0
      %v2820 = vsel %vm873, %v2770, 0
      %2822 = vmatprep.subr.bf16.mxu0 0
      %2823 = vmatpush1.bf16.msra.mxu0 %v2820
      %2824 = vmatprep.subr.bf16.mxu0 0
      %2825 = vmatpush1.bf16.msra.mxu0 0
      %2826 = vmatprep.subr.bf16.mxu0 0
      %2827 = vmatpush1.bf16.msra.mxu0 0
      %2828 = vmatprep.subr.bf16.mxu0 0
      %2829 = vmatpush1.bf16.msra.mxu0 0
      %2830 = vmatprep.subr.bf16.mxu0 0
      %2831 = vmatpush1.bf16.msra.mxu0 0
      %2832 = vmatprep.subr.bf16.mxu0 0
      %2833 = vmatpush1.bf16.msra.mxu0 0
      %2834 = vmatprep.subr.bf16.mxu0 0
      %2835 = vmatpush1.bf16.msra.mxu0 0
      %2836 = vmatprep.subr.bf16.mxu0 0
      %2837 = vmatpush1.bf16.msra.mxu0 0
      %2838 = vmatprep.subr.bf16.mxu0 0
      %2839 = vmatpush1.bf16.msra.mxu0 0
      %2840 = vmatprep.subr.bf16.mxu0 0
      %2841 = vmatpush1.bf16.msra.mxu0 0
      %2842 = vmatprep.subr.bf16.mxu0 0
      %2843 = vmatpush1.bf16.msra.mxu0 0
      %2844 = vmatprep.subr.bf16.mxu0 0
      %2845 = vmatpush1.bf16.msra.mxu0 0
      %2846 = vmatprep.subr.bf16.mxu0 0
      %2847 = vmatpush1.bf16.msra.mxu0 0
      %2848 = vmatprep.subr.bf16.mxu0 0
      %2849 = vmatpush1.bf16.msra.mxu0 0
      %2850 = vmatprep.subr.bf16.mxu0 0
      %2851 = vmatpush1.bf16.msra.mxu0 0
      %2852 = vmatprep.subr.bf16.mxu0 0
      %2853 = vmatpush1.bf16.msra.mxu0 0
      %2854 = vmatprep.mubr.bf16.mxu0 0
      %2855 = vmatmul.mubr.bf16.gmra.mrb[0].mxu0 %v2772
      %v2856 = vpop.f32.mrb[0].mxu0
      %v2857 = vadd.f32 0.0, %v2856
      %v2858 = vpop.f32.mrb[0].mxu0
      %v2859 = vpop.f32.mrb[0].mxu0
      %v2860 = vadd.f32 0.0, %v2859
      %v2861 = vpop.f32.mrb[0].mxu0
      %2862 = vmatprep.mubr.bf16.mxu0 0
      %2863 = vmatmul.mubr.bf16.gmra.mrb[0].mxu0 %v2775
      %v2864 = vpop.f32.mrb[0].mxu0
      %v2865 = vadd.f32 0.0, %v2864
      %v2866 = vpop.f32.mrb[0].mxu0
      %v2867 = vpop.f32.mrb[0].mxu0
      %v2868 = vadd.f32 0.0, %v2867
      %v2869 = vpop.f32.mrb[0].mxu0
      %2870 = vmatprep.mubr.bf16.mxu0 0
      %2871 = vmatmul.mubr.bf16.gmra.mrb[0].mxu0 %v2778
      %v2872 = vpop.f32.mrb[0].mxu0
      %v2873 = vadd.f32 0.0, %v2872
      %v2874 = vpop.f32.mrb[0].mxu0
      %v2875 = vpop.f32.mrb[0].mxu0
      %v2876 = vadd.f32 0.0, %v2875
      %v2877 = vpop.f32.mrb[0].mxu0
      %2878 = vmatprep.mubr.bf16.mxu0 0
      %2879 = vmatmul.mubr.bf16.gmra.mrb[0].mxu0 %v2781
      %v2880 = vpop.f32.mrb[0].mxu0
      %v2881 = vadd.f32 0.0, %v2880
      %v2882 = vpop.f32.mrb[0].mxu0
      %v2883 = vpop.f32.mrb[0].mxu0
      %v2884 = vadd.f32 0.0, %v2883
      %v2885 = vpop.f32.mrb[0].mxu0
      %2886 = vmatprep.mubr.bf16.mxu0 0
      %2887 = vmatmul.mubr.bf16.gmra.mrb[0].mxu0 %v2784
      %v2888 = vpop.f32.mrb[0].mxu0
      %v2889 = vadd.f32 0.0, %v2888
      %v2890 = vpop.f32.mrb[0].mxu0
      %v2891 = vpop.f32.mrb[0].mxu0
      %v2892 = vadd.f32 0.0, %v2891
      %v2893 = vpop.f32.mrb[0].mxu0
      %2894 = vmatprep.mubr.bf16.mxu0 0
      %2895 = vmatmul.mubr.bf16.gmra.mrb[0].mxu0 %v2787
      %v2896 = vpop.f32.mrb[0].mxu0
      %v2897 = vadd.f32 0.0, %v2896
      %v2898 = vpop.f32.mrb[0].mxu0
      %v2899 = vpop.f32.mrb[0].mxu0
      %v2900 = vadd.f32 0.0, %v2899
      %v2901 = vpop.f32.mrb[0].mxu0
      %2902 = vmatprep.mubr.bf16.mxu0 0
      %2903 = vmatmul.mubr.bf16.gmra.mrb[0].mxu0 %v2790
      %v2904 = vpop.f32.mrb[0].mxu0
      %v2905 = vadd.f32 0.0, %v2904
      %v2906 = vpop.f32.mrb[0].mxu0
      %v2907 = vpop.f32.mrb[0].mxu0
      %v2908 = vadd.f32 0.0, %v2907
      %v2909 = vpop.f32.mrb[0].mxu0
      %2910 = vmatprep.mubr.bf16.mxu0 0
      %2911 = vmatmul.mubr.bf16.gmra.mrb[0].mxu0 %v2793
      %v2912 = vpop.f32.mrb[0].mxu0
      %v2913 = vadd.f32 0.0, %v2912
      %v2914 = vpop.f32.mrb[0].mxu0
      %v2915 = vpop.f32.mrb[0].mxu0
      %v2916 = vadd.f32 0.0, %v2915
      %v2917 = vpop.f32.mrb[0].mxu0
      %2918 = vmatprep.mubr.bf16.mxu0 0
      %2919 = vmatmul.mubr.bf16.gmra.mrb[0].mxu0 %v2796
      %v2920 = vpop.f32.mrb[0].mxu0
      %v2921 = vadd.f32 0.0, %v2920
      %v2922 = vpop.f32.mrb[0].mxu0
      %v2923 = vpop.f32.mrb[0].mxu0
      %v2924 = vadd.f32 0.0, %v2923
      %v2925 = vpop.f32.mrb[0].mxu0
      %2926 = vmatprep.mubr.bf16.mxu0 0
      %2927 = vmatmul.mubr.bf16.gmra.mrb[0].mxu0 %v2799
      %v2928 = vpop.f32.mrb[0].mxu0
      %v2929 = vadd.f32 0.0, %v2928
      %v2930 = vpop.f32.mrb[0].mxu0
      %v2931 = vpop.f32.mrb[0].mxu0
      %v2932 = vadd.f32 0.0, %v2931
      %v2933 = vpop.f32.mrb[0].mxu0
      %2934 = vmatprep.mubr.bf16.mxu0 0
      %2935 = vmatmul.mubr.bf16.gmra.mrb[0].mxu0 %v2802
      %v2936 = vpop.f32.mrb[0].mxu0
      %v2937 = vadd.f32 0.0, %v2936
      %v2938 = vpop.f32.mrb[0].mxu0
      %v2939 = vpop.f32.mrb[0].mxu0
      %v2940 = vadd.f32 0.0, %v2939
      %v2941 = vpop.f32.mrb[0].mxu0
      %2942 = vmatprep.mubr.bf16.mxu0 0
      %2943 = vmatmul.mubr.bf16.gmra.mrb[0].mxu0 %v2805
      %v2944 = vpop.f32.mrb[0].mxu0
      %v2945 = vadd.f32 0.0, %v2944
      %v2946 = vpop.f32.mrb[0].mxu0
      %v2947 = vpop.f32.mrb[0].mxu0
      %v2948 = vadd.f32 0.0, %v2947
      %v2949 = vpop.f32.mrb[0].mxu0
      %2950 = vmatprep.mubr.bf16.mxu0 0
      %2951 = vmatmul.mubr.bf16.gmra.mrb[0].mxu0 %v2808
      %v2952 = vpop.f32.mrb[0].mxu0
      %v2953 = vadd.f32 0.0, %v2952
      %v2954 = vpop.f32.mrb[0].mxu0
      %v2955 = vpop.f32.mrb[0].mxu0
      %v2956 = vadd.f32 0.0, %v2955
      %v2957 = vpop.f32.mrb[0].mxu0
      %2958 = vmatprep.mubr.bf16.mxu0 0
      %2959 = vmatmul.mubr.bf16.gmra.mrb[0].mxu0 %v2811
      %v2960 = vpop.f32.mrb[0].mxu0
      %v2961 = vadd.f32 0.0, %v2960
      %v2962 = vpop.f32.mrb[0].mxu0
      %v2963 = vpop.f32.mrb[0].mxu0
      %v2964 = vadd.f32 0.0, %v2963
      %v2965 = vpop.f32.mrb[0].mxu0
      %2966 = vmatprep.mubr.bf16.mxu0 0
      %2967 = vmatmul.mubr.bf16.gmra.mrb[0].mxu0 %v2814
      %v2968 = vpop.f32.mrb[0].mxu0
      %v2969 = vadd.f32 0.0, %v2968
      %v2970 = vpop.f32.mrb[0].mxu0
      %v2971 = vpop.f32.mrb[0].mxu0
      %v2972 = vadd.f32 0.0, %v2971
      %v2973 = vpop.f32.mrb[0].mxu0
      %2974 = vmatprep.mubr.bf16.mxu0 0
      %2975 = vmatmul.mubr.bf16.gmra.mrb[0].mxu0 %v2817
      %v2976 = vpop.f32.mrb[0].mxu0
      %v2977 = vadd.f32 0.0, %v2976
      %v2978 = vpop.f32.mrb[0].mxu0
      %v2979 = vpop.f32.mrb[0].mxu0
      %v2980 = vadd.f32 0.0, %v2979
      %v2981 = vpop.f32.mrb[0].mxu0
      %2982 = vdwg.mxu0
      %v2983 = vadd.f32 %v2689, %v2857
      %v2984 = vadd.f32 %v2690, %v2860
      %v2985 = vadd.f32 %v2691, %v2865
      %v2986 = vadd.f32 %v2692, %v2868
      %v2987 = vadd.f32 %v2693, %v2873
      %v2988 = vadd.f32 %v2694, %v2876
      %v2989 = vadd.f32 %v2695, %v2881
      %v2990 = vadd.f32 %v2696, %v2884
      %v2991 = vadd.f32 %v2697, %v2889
      %v2992 = vadd.f32 %v2698, %v2892
      %v2993 = vadd.f32 %v2699, %v2897
      %v2994 = vadd.f32 %v2700, %v2900
      %v2995 = vadd.f32 %v2701, %v2905
      %v2996 = vadd.f32 %v2702, %v2908
      %v2997 = vadd.f32 %v2703, %v2913
      %v2998 = vadd.f32 %v2704, %v2916
      %v2999 = vadd.f32 %v2705, %v2921
      %v3000 = vadd.f32 %v2706, %v2924
      %v3001 = vadd.f32 %v2707, %v2929
      %v3002 = vadd.f32 %v2708, %v2932
      %v3003 = vadd.f32 %v2709, %v2937
      %v3004 = vadd.f32 %v2710, %v2940
      %v3005 = vadd.f32 %v2711, %v2945
      %v3006 = vadd.f32 %v2712, %v2948
      %v3007 = vadd.f32 %v2713, %v2953
      %v3008 = vadd.f32 %v2714, %v2956
      %v3009 = vadd.f32 %v2715, %v2961
      %v3010 = vadd.f32 %v2716, %v2964
      %v3011 = vadd.f32 %v2717, %v2969
      %v3012 = vadd.f32 %v2718, %v2972
      %v3013 = vadd.f32 %v2719, %v2977
      %v3014 = vadd.f32 %v2720, %v2980
      %v3015 = vld [vmem:[%s2426 + $0x2] sm:$0xff]
      %v3016 = vld [vmem:[%s2426 + $0xa] sm:$0xff]
      %v3017 = vld [vmem:[%s2426 + $0x1a] sm:$0xff]
      %v3018 = vld [vmem:[%s2426 + $0x22] sm:$0xff]
      %v3019 = vld [vmem:[%s2426 + $0x32] sm:$0xff]
      %v3020 = vld [vmem:[%s2426 + $0x3a] sm:$0xff]
      %v3021 = vld [vmem:[%s2426 + $0x4a] sm:$0xff]
      %v3022 = vld [vmem:[%s2426 + $0x52] sm:$0xff]
      %v3023 = vld [vmem:[%s2426 + $0x62] sm:$0xff]
      %v3024 = vld [vmem:[%s2426 + $0x6a] sm:$0xff]
      %v3025 = vld [vmem:[%s2426 + $0x7a] sm:$0xff]
      %v3026 = vld [vmem:[%s2426 + $0x82] sm:$0xff]
      %v3027 = vld [vmem:[%s2426 + $0x92] sm:$0xff]
      %v3028 = vld [vmem:[%s2426 + $0x9a] sm:$0xff]
      %v3029 = vld [vmem:[%s2426 + $0xaa] sm:$0xff]
      %v3030 = vld [vmem:[%s2426 + $0xb2] sm:$0xff]
      %v3031 = vld [vmem:[%s2426 + $0xc2] sm:$0xff]
      %v3032 = vld [vmem:[%s2426 + $0xca] sm:$0xff]
      %v3033 = vld [vmem:[%s2426 + $0xda] sm:$0xff]
      %v3034 = vld [vmem:[%s2426 + $0xe2] sm:$0xff]
      %v3035 = vld [vmem:[%s2426 + $0xf2] sm:$0xff]
      %v3036 = vld [vmem:[%s2426 + $0xfa] sm:$0xff]
      %v3037 = vld [vmem:[%s2426 + $0x10a] sm:$0xff]
      %v3038 = vld [vmem:[%s2426 + $0x112] sm:$0xff]
      %v3039 = vld [vmem:[%s2426 + $0x122] sm:$0xff]
      %v3040 = vld [vmem:[%s2426 + $0x12a] sm:$0xff]
      %v3041 = vld [vmem:[%s2426 + $0x13a] sm:$0xff]
      %v3042 = vld [vmem:[%s2426 + $0x142] sm:$0xff]
      %v3043 = vld [vmem:[%s2426 + $0x152] sm:$0xff]
      %v3044 = vld [vmem:[%s2426 + $0x15a] sm:$0xff]
      %v3045 = vld [vmem:[%s2426 + $0x16a] sm:$0xff]
      %v3046 = vld [vmem:[%s2426 + $0x172] sm:$0xff]
      %v3047 = vpack.c.bf16 %v3016, %v3015
      %v3048 = vpack.c.bf16 %v3018, %v3017
      %v3049 = vpack.c.bf16 %v3020, %v3019
      %v3050 = vpack.c.bf16 %v3022, %v3021
      %v3051 = vpack.c.bf16 %v3024, %v3023
      %v3052 = vpack.c.bf16 %v3026, %v3025
      %v3053 = vpack.c.bf16 %v3028, %v3027
      %v3054 = vpack.c.bf16 %v3030, %v3029
      %v3055 = vpack.c.bf16 %v3032, %v3031
      %v3056 = vpack.c.bf16 %v3034, %v3033
      %v3057 = vpack.c.bf16 %v3036, %v3035
      %v3058 = vpack.c.bf16 %v3038, %v3037
      %v3059 = vpack.c.bf16 %v3040, %v3039
      %v3060 = vpack.c.bf16 %v3042, %v3041
      %v3061 = vpack.c.bf16 %v3044, %v3043
      %v3062 = vpack.c.bf16 %v3046, %v3045
      %s3063 = scalar_lea.vmem %s5, 32
      %v3064 = vld [vmem:[%s3063] sm:$0xf]
      %v3066 = vsel %vm660, %v3047, 0
      %v3069 = vsel %vm660, %v3048, 0
      %v3072 = vsel %vm660, %v3049, 0
      %v3075 = vsel %vm660, %v3050, 0
      %v3078 = vsel %vm660, %v3051, 0
      %v3081 = vsel %vm660, %v3052, 0
      %v3084 = vsel %vm660, %v3053, 0
      %v3087 = vsel %vm660, %v3054, 0
      %v3090 = vsel %vm660, %v3055, 0
      %v3093 = vsel %vm660, %v3056, 0
      %v3096 = vsel %vm660, %v3057, 0
      %v3099 = vsel %vm660, %v3058, 0
      %v3102 = vsel %vm660, %v3059, 0
      %v3105 = vsel %vm660, %v3060, 0
      %v3108 = vsel %vm660, %v3061, 0
      %v3111 = vsel %vm660, %v3062, 0
      %v3114 = vsel %vm873, %v3064, 0
      %3116 = vmatprep.subr.bf16.mxu0 0
      %3117 = vmatpush1.bf16.msra.mxu0 %v3114
      %3118 = vmatprep.subr.bf16.mxu0 0
      %3119 = vmatpush1.bf16.msra.mxu0 0
      %3120 = vmatprep.subr.bf16.mxu0 0
      %3121 = vmatpush1.bf16.msra.mxu0 0
      %3122 = vmatprep.subr.bf16.mxu0 0
      %3123 = vmatpush1.bf16.msra.mxu0 0
      %3124 = vmatprep.subr.bf16.mxu0 0
      %3125 = vmatpush1.bf16.msra.mxu0 0
      %3126 = vmatprep.subr.bf16.mxu0 0
      %3127 = vmatpush1.bf16.msra.mxu0 0
      %3128 = vmatprep.subr.bf16.mxu0 0
      %3129 = vmatpush1.bf16.msra.mxu0 0
      %3130 = vmatprep.subr.bf16.mxu0 0
      %3131 = vmatpush1.bf16.msra.mxu0 0
      %3132 = vmatprep.subr.bf16.mxu0 0
      %3133 = vmatpush1.bf16.msra.mxu0 0
      %3134 = vmatprep.subr.bf16.mxu0 0
      %3135 = vmatpush1.bf16.msra.mxu0 0
      %3136 = vmatprep.subr.bf16.mxu0 0
      %3137 = vmatpush1.bf16.msra.mxu0 0
      %3138 = vmatprep.subr.bf16.mxu0 0
      %3139 = vmatpush1.bf16.msra.mxu0 0
      %3140 = vmatprep.subr.bf16.mxu0 0
      %3141 = vmatpush1.bf16.msra.mxu0 0
      %3142 = vmatprep.subr.bf16.mxu0 0
      %3143 = vmatpush1.bf16.msra.mxu0 0
      %3144 = vmatprep.subr.bf16.mxu0 0
      %3145 = vmatpush1.bf16.msra.mxu0 0
      %3146 = vmatprep.subr.bf16.mxu0 0
      %3147 = vmatpush1.bf16.msra.mxu0 0
      %3148 = vmatprep.mubr.bf16.mxu0 0
      %3149 = vmatmul.mubr.bf16.gmra.mrb[0].mxu0 %v3066
      %v3150 = vpop.f32.mrb[0].mxu0
      %v3151 = vadd.f32 0.0, %v3150
      %v3152 = vpop.f32.mrb[0].mxu0
      %v3153 = vpop.f32.mrb[0].mxu0
      %v3154 = vadd.f32 0.0, %v3153
      %v3155 = vpop.f32.mrb[0].mxu0
      %3156 = vmatprep.mubr.bf16.mxu0 0
      %3157 = vmatmul.mubr.bf16.gmra.mrb[0].mxu0 %v3069
      %v3158 = vpop.f32.mrb[0].mxu0
      %v3159 = vadd.f32 0.0, %v3158
      %v3160 = vpop.f32.mrb[0].mxu0
      %v3161 = vpop.f32.mrb[0].mxu0
      %v3162 = vadd.f32 0.0, %v3161
      %v3163 = vpop.f32.mrb[0].mxu0
      %3164 = vmatprep.mubr.bf16.mxu0 0
      %3165 = vmatmul.mubr.bf16.gmra.mrb[0].mxu0 %v3072
      %v3166 = vpop.f32.mrb[0].mxu0
      %v3167 = vadd.f32 0.0, %v3166
      %v3168 = vpop.f32.mrb[0].mxu0
      %v3169 = vpop.f32.mrb[0].mxu0
      %v3170 = vadd.f32 0.0, %v3169
      %v3171 = vpop.f32.mrb[0].mxu0
      %3172 = vmatprep.mubr.bf16.mxu0 0
      %3173 = vmatmul.mubr.bf16.gmra.mrb[0].mxu0 %v3075
      %v3174 = vpop.f32.mrb[0].mxu0
      %v3175 = vadd.f32 0.0, %v3174
      %v3176 = vpop.f32.mrb[0].mxu0
      %v3177 = vpop.f32.mrb[0].mxu0
      %v3178 = vadd.f32 0.0, %v3177
      %v3179 = vpop.f32.mrb[0].mxu0
      %3180 = vmatprep.mubr.bf16.mxu0 0
      %3181 = vmatmul.mubr.bf16.gmra.mrb[0].mxu0 %v3078
      %v3182 = vpop.f32.mrb[0].mxu0
      %v3183 = vadd.f32 0.0, %v3182
      %v3184 = vpop.f32.mrb[0].mxu0
      %v3185 = vpop.f32.mrb[0].mxu0
      %v3186 = vadd.f32 0.0, %v3185
      %v3187 = vpop.f32.mrb[0].mxu0
      %3188 = vmatprep.mubr.bf16.mxu0 0
      %3189 = vmatmul.mubr.bf16.gmra.mrb[0].mxu0 %v3081
      %v3190 = vpop.f32.mrb[0].mxu0
      %v3191 = vadd.f32 0.0, %v3190
      %v3192 = vpop.f32.mrb[0].mxu0
      %v3193 = vpop.f32.mrb[0].mxu0
      %v3194 = vadd.f32 0.0, %v3193
      %v3195 = vpop.f32.mrb[0].mxu0
      %3196 = vmatprep.mubr.bf16.mxu0 0
      %3197 = vmatmul.mubr.bf16.gmra.mrb[0].mxu0 %v3084
      %v3198 = vpop.f32.mrb[0].mxu0
      %v3199 = vadd.f32 0.0, %v3198
      %v3200 = vpop.f32.mrb[0].mxu0
      %v3201 = vpop.f32.mrb[0].mxu0
      %v3202 = vadd.f32 0.0, %v3201
      %v3203 = vpop.f32.mrb[0].mxu0
      %3204 = vmatprep.mubr.bf16.mxu0 0
      %3205 = vmatmul.mubr.bf16.gmra.mrb[0].mxu0 %v3087
      %v3206 = vpop.f32.mrb[0].mxu0
      %v3207 = vadd.f32 0.0, %v3206
      %v3208 = vpop.f32.mrb[0].mxu0
      %v3209 = vpop.f32.mrb[0].mxu0
      %v3210 = vadd.f32 0.0, %v3209
      %v3211 = vpop.f32.mrb[0].mxu0
      %3212 = vmatprep.mubr.bf16.mxu0 0
      %3213 = vmatmul.mubr.bf16.gmra.mrb[0].mxu0 %v3090
      %v3214 = vpop.f32.mrb[0].mxu0
      %v3215 = vadd.f32 0.0, %v3214
      %v3216 = vpop.f32.mrb[0].mxu0
      %v3217 = vpop.f32.mrb[0].mxu0
      %v3218 = vadd.f32 0.0, %v3217
      %v3219 = vpop.f32.mrb[0].mxu0
      %3220 = vmatprep.mubr.bf16.mxu0 0
      %3221 = vmatmul.mubr.bf16.gmra.mrb[0].mxu0 %v3093
      %v3222 = vpop.f32.mrb[0].mxu0
      %v3223 = vadd.f32 0.0, %v3222
      %v3224 = vpop.f32.mrb[0].mxu0
      %v3225 = vpop.f32.mrb[0].mxu0
      %v3226 = vadd.f32 0.0, %v3225
      %v3227 = vpop.f32.mrb[0].mxu0
      %3228 = vmatprep.mubr.bf16.mxu0 0
      %3229 = vmatmul.mubr.bf16.gmra.mrb[0].mxu0 %v3096
      %v3230 = vpop.f32.mrb[0].mxu0
      %v3231 = vadd.f32 0.0, %v3230
      %v3232 = vpop.f32.mrb[0].mxu0
      %v3233 = vpop.f32.mrb[0].mxu0
      %v3234 = vadd.f32 0.0, %v3233
      %v3235 = vpop.f32.mrb[0].mxu0
      %3236 = vmatprep.mubr.bf16.mxu0 0
      %3237 = vmatmul.mubr.bf16.gmra.mrb[0].mxu0 %v3099
      %v3238 = vpop.f32.mrb[0].mxu0
      %v3239 = vadd.f32 0.0, %v3238
      %v3240 = vpop.f32.mrb[0].mxu0
      %v3241 = vpop.f32.mrb[0].mxu0
      %v3242 = vadd.f32 0.0, %v3241
      %v3243 = vpop.f32.mrb[0].mxu0
      %3244 = vmatprep.mubr.bf16.mxu0 0
      %3245 = vmatmul.mubr.bf16.gmra.mrb[0].mxu0 %v3102
      %v3246 = vpop.f32.mrb[0].mxu0
      %v3247 = vadd.f32 0.0, %v3246
      %v3248 = vpop.f32.mrb[0].mxu0
      %v3249 = vpop.f32.mrb[0].mxu0
      %v3250 = vadd.f32 0.0, %v3249
      %v3251 = vpop.f32.mrb[0].mxu0
      %3252 = vmatprep.mubr.bf16.mxu0 0
      %3253 = vmatmul.mubr.bf16.gmra.mrb[0].mxu0 %v3105
      %v3254 = vpop.f32.mrb[0].mxu0
      %v3255 = vadd.f32 0.0, %v3254
      %v3256 = vpop.f32.mrb[0].mxu0
      %v3257 = vpop.f32.mrb[0].mxu0
      %v3258 = vadd.f32 0.0, %v3257
      %v3259 = vpop.f32.mrb[0].mxu0
      %3260 = vmatprep.mubr.bf16.mxu0 0
      %3261 = vmatmul.mubr.bf16.gmra.mrb[0].mxu0 %v3108
      %v3262 = vpop.f32.mrb[0].mxu0
      %v3263 = vadd.f32 0.0, %v3262
      %v3264 = vpop.f32.mrb[0].mxu0
      %v3265 = vpop.f32.mrb[0].mxu0
      %v3266 = vadd.f32 0.0, %v3265
      %v3267 = vpop.f32.mrb[0].mxu0
      %3268 = vmatprep.mubr.bf16.mxu0 0
      %3269 = vmatmul.mubr.bf16.gmra.mrb[0].mxu0 %v3111
      %v3270 = vpop.f32.mrb[0].mxu0
      %v3271 = vadd.f32 0.0, %v3270
      %v3272 = vpop.f32.mrb[0].mxu0
      %v3273 = vpop.f32.mrb[0].mxu0
      %v3274 = vadd.f32 0.0, %v3273
      %v3275 = vpop.f32.mrb[0].mxu0
      %3276 = vdwg.mxu0
      %v3277 = vadd.f32 %v2983, %v3151
      %v3278 = vadd.f32 %v2984, %v3154
      %v3279 = vadd.f32 %v2985, %v3159
      %v3280 = vadd.f32 %v2986, %v3162
      %v3281 = vadd.f32 %v2987, %v3167
      %v3282 = vadd.f32 %v2988, %v3170
      %v3283 = vadd.f32 %v2989, %v3175
      %v3284 = vadd.f32 %v2990, %v3178
      %v3285 = vadd.f32 %v2991, %v3183
      %v3286 = vadd.f32 %v2992, %v3186
      %v3287 = vadd.f32 %v2993, %v3191
      %v3288 = vadd.f32 %v2994, %v3194
      %v3289 = vadd.f32 %v2995, %v3199
      %v3290 = vadd.f32 %v2996, %v3202
      %v3291 = vadd.f32 %v2997, %v3207
      %v3292 = vadd.f32 %v2998, %v3210
      %v3293 = vadd.f32 %v2999, %v3215
      %v3294 = vadd.f32 %v3000, %v3218
      %v3295 = vadd.f32 %v3001, %v3223
      %v3296 = vadd.f32 %v3002, %v3226
      %v3297 = vadd.f32 %v3003, %v3231
      %v3298 = vadd.f32 %v3004, %v3234
      %v3299 = vadd.f32 %v3005, %v3239
      %v3300 = vadd.f32 %v3006, %v3242
      %v3301 = vadd.f32 %v3007, %v3247
      %v3302 = vadd.f32 %v3008, %v3250
      %v3303 = vadd.f32 %v3009, %v3255
      %v3304 = vadd.f32 %v3010, %v3258
      %v3305 = vadd.f32 %v3011, %v3263
      %v3306 = vadd.f32 %v3012, %v3266
      %v3307 = vadd.f32 %v3013, %v3271
      %v3308 = vadd.f32 %v3014, %v3274
      %v3309 = vld [vmem:[%s6] sm:$0x1]
      %v3311 = vlaneseq
      %v3312 = vshrl.u32 %v3311, 7
      %v3313 = vsub.s32 0, %v3312
      %v3314 = vrot.slane %v3309, %v3313
      %v3316 = vadd.f32 %v3277, %v3314
      %v3317 = vadd.f32 %v3278, %v3314
      %v3318 = vadd.f32 %v3279, %v3314
      %v3319 = vadd.f32 %v3280, %v3314
      %v3320 = vadd.f32 %v3281, %v3314
      %v3321 = vadd.f32 %v3282, %v3314
      %v3322 = vadd.f32 %v3283, %v3314
      %v3323 = vadd.f32 %v3284, %v3314
      %v3324 = vadd.f32 %v3285, %v3314
      %v3325 = vadd.f32 %v3286, %v3314
      %v3326 = vadd.f32 %v3287, %v3314
      %v3327 = vadd.f32 %v3288, %v3314
      %v3328 = vadd.f32 %v3289, %v3314
      %v3329 = vadd.f32 %v3290, %v3314
      %v3330 = vadd.f32 %v3291, %v3314
      %v3331 = vadd.f32 %v3292, %v3314
      %v3332 = vadd.f32 %v3293, %v3314
      %v3333 = vadd.f32 %v3294, %v3314
      %v3334 = vadd.f32 %v3295, %v3314
      %v3335 = vadd.f32 %v3296, %v3314
      %v3336 = vadd.f32 %v3297, %v3314
      %v3337 = vadd.f32 %v3298, %v3314
      %v3338 = vadd.f32 %v3299, %v3314
      %v3339 = vadd.f32 %v3300, %v3314
      %v3340 = vadd.f32 %v3301, %v3314
      %v3341 = vadd.f32 %v3302, %v3314
      %v3342 = vadd.f32 %v3303, %v3314
      %v3343 = vadd.f32 %v3304, %v3314
      %v3344 = vadd.f32 %v3305, %v3314
      %v3345 = vadd.f32 %v3306, %v3314
      %v3346 = vadd.f32 %v3307, %v3314
      %v3347 = vadd.f32 %v3308, %v3314
      %3348 = vst.msk [vmem:[%s445] sm:$0xff] %vm660, %v3316
      %3349 = vst.msk [vmem:[%s445 + $0x8] sm:$0xff] %vm660, %v3317
      %3350 = vst.msk [vmem:[%s445 + $0x10] sm:$0xff] %vm660, %v3318
      %3351 = vst.msk [vmem:[%s445 + $0x18] sm:$0xff] %vm660, %v3319
      %3352 = vst.msk [vmem:[%s445 + $0x20] sm:$0xff] %vm660, %v3320
      %3353 = vst.msk [vmem:[%s445 + $0x28] sm:$0xff] %vm660, %v3321
      %3354 = vst.msk [vmem:[%s445 + $0x30] sm:$0xff] %vm660, %v3322
      %3355 = vst.msk [vmem:[%s445 + $0x38] sm:$0xff] %vm660, %v3323
      %3356 = vst.msk [vmem:[%s445 + $0x40] sm:$0xff] %vm660, %v3324
      %3357 = vst.msk [vmem:[%s445 + $0x48] sm:$0xff] %vm660, %v3325
      %3358 = vst.msk [vmem:[%s445 + $0x50] sm:$0xff] %vm660, %v3326
      %3359 = vst.msk [vmem:[%s445 + $0x58] sm:$0xff] %vm660, %v3327
      %3360 = vst.msk [vmem:[%s445 + $0x60] sm:$0xff] %vm660, %v3328
      %3361 = vst.msk [vmem:[%s445 + $0x68] sm:$0xff] %vm660, %v3329
      %3362 = vst.msk [vmem:[%s445 + $0x70] sm:$0xff] %vm660, %v3330
      %3363 = vst.msk [vmem:[%s445 + $0x78] sm:$0xff] %vm660, %v3331
      %3364 = vst.msk [vmem:[%s445 + $0x80] sm:$0xff] %vm660, %v3332
      %3365 = vst.msk [vmem:[%s445 + $0x88] sm:$0xff] %vm660, %v3333
      %3366 = vst.msk [vmem:[%s445 + $0x90] sm:$0xff] %vm660, %v3334
      %3367 = vst.msk [vmem:[%s445 + $0x98] sm:$0xff] %vm660, %v3335
      %3368 = vst.msk [vmem:[%s445 + $0xa0] sm:$0xff] %vm660, %v3336
      %3369 = vst.msk [vmem:[%s445 + $0xa8] sm:$0xff] %vm660, %v3337
      %3370 = vst.msk [vmem:[%s445 + $0xb0] sm:$0xff] %vm660, %v3338
      %3371 = vst.msk [vmem:[%s445 + $0xb8] sm:$0xff] %vm660, %v3339
      %3372 = vst.msk [vmem:[%s445 + $0xc0] sm:$0xff] %vm660, %v3340
      %3373 = vst.msk [vmem:[%s445 + $0xc8] sm:$0xff] %vm660, %v3341
      %3374 = vst.msk [vmem:[%s445 + $0xd0] sm:$0xff] %vm660, %v3342
      %3375 = vst.msk [vmem:[%s445 + $0xd8] sm:$0xff] %vm660, %v3343
      %3376 = vst.msk [vmem:[%s445 + $0xe0] sm:$0xff] %vm660, %v3344
      %3377 = vst.msk [vmem:[%s445 + $0xe8] sm:$0xff] %vm660, %v3345
      %3378 = vst.msk [vmem:[%s445 + $0xf0] sm:$0xff] %vm660, %v3346
      %3379 = vst.msk [vmem:[%s445 + $0xf8] sm:$0xff] %vm660, %v3347
      %s3380 = smul.u32 16, %s23
      %p3381 = scmp.lt.s32.totalorder %s22, 1
      %s3382 = scalar_select %p3381, %s22, 1
      %p3383 = scmp.lt.s32.totalorder %s3380, 15
      %s3384 = scalar_select %p3383, %s3380, 15
      %s3385 = smul.addr %s3384, 2
      %s3386 = smul.addr %s3382, 32
      %s3387 = sadd.s32 %s3385, %s3386
      %s3388 = smul.addr %s3387, 8
      %s3389 = scalar_lea.vmem %s7, %s3388
      // Predicated region
      $region49: #{pre_activate_double_conv.3} parent=47 // pred_check
        %p3390 = pneg %p234
      $region50: #{pre_activate_double_conv.3} parent=47 // pred_check_branch
        %3392 = sbr.rel (%p3390) target = $region52
      $region51: #{pre_activate_double_conv.3} parent=47 // pred_region
        %s3393 = smul.u32 16, %s23
      $region52: #{pre_activate_double_conv.3} parent=47 // pred_fallthru
        _
    $region48: #{pre_activate_double_conv.3} parent=5 // pred_fallthru
      _
    %p3394 = scmp.le.s32.totalorder 2, %s13
    // Predicated region
    $region53: #{pre_activate_double_conv.3} parent=5 // pred_check
      %p3395 = pneg %p3394
    $region54: #{pre_activate_double_conv.3} parent=5 // pred_check_branch
      %3397 = sbr.rel (%p3395) target = $region56
    $region55: #{pre_activate_double_conv.3} parent=5 // pred_region
      %s3398 = ssub.s32 %s13, 2
      // Predicated region
      $region57: #{pre_activate_double_conv.3} parent=55 // pred_check
        %p3399 = pneg %p240
      $region58: #{pre_activate_double_conv.3} parent=55 // pred_check_branch
        %3401 = sbr.rel (%p3399) target = $region60
      $region59: #{pre_activate_double_conv.3} parent=55 // pred_region
        %s3402 = smul.u32 16, %s25
        %p3403 = scmp.lt.s32.totalorder %s24, 1
        %s3404 = scalar_select %p3403, %s24, 1
        %p3405 = scmp.lt.s32.totalorder %s3402, 15
        %s3406 = scalar_select %p3405, %s3402, 15
        %s3407 = smul.addr %s3406, 2
        %s3408 = smul.addr %s3404, 32
        %s3409 = sadd.s32 %s3407, %s3408
        %s3410 = smul.addr %s3409, 8
        %s3411 = scalar_lea.vmem %s7, %s3410
      $region60: #{pre_activate_double_conv.3} parent=55 // pred_fallthru
        _
    $region56: #{pre_activate_double_conv.3} parent=5 // pred_fallthru
      _
  $region6: #{pre_activate_double_conv.3} parent=0 // loop_footer
    %s17 = sadd.s32 1, %s13
  $region7: #{pre_activate_double_conv.3} parent=0 // loop_footer_branch
    %12 = sbr.rel target = $region3
  $region8: #{pre_activate_double_conv.3} parent=0 // loop_exit
    _

// kernel: pre_activate_double_conv.2
$region0: #{pre_activate_double_conv.2}
  #allocation0 [shape = 'u32[]', space=smem, size = 0x4, offset = 0x4, fixed_abs, tag = 'smem constant byte address 0x4 - core index']
  #allocation1 [shape = 'u32[144,128]{1,0:T(1,128)}', space=vmem, size = 0x12000, scoped, tag = 'internal scratch']
  #allocation2 [shape = 'f32[18,18,4]{2,1,0:T(8,128)}', space=vmem, size = 0x36000, scoped, tag = 'scratch operand']
  %s0 = inlined_call_operand.vmem [shape: f32[2,16,16,4], index: 0, kind: input, shape index: {}, may-alias: {0,1,2}]
  %s1 = inlined_call_operand.vmem [shape: f32[2,16,16,4], index: 1, kind: input, shape index: {}, may-alias: {0,1,2}]
  %s2 = inlined_call_operand.vmem [shape: f32[2,16,16,4], index: 2, kind: input, shape index: {}, may-alias: {0,1,2}]
  %s3 = inlined_call_operand.vmem [shape: f32[1,1,4], index: 3, kind: input, shape index: {}]
  %s4 = inlined_call_operand.vmem [shape: f32[1,1,4], index: 4, kind: input, shape index: {}]
  %s5 = inlined_call_operand.vmem [shape: bf16[9,4,8], index: 5, kind: input, shape index: {}]
  %s6 = inlined_call_operand.vmem [shape: f32[1,8], index: 6, kind: input, shape index: {}]
  %s7 = inlined_call_operand.vmem [shape: bf16[2,16,16,8], index: 7, kind: output, shape index: {0}]
  %s8 = inlined_call_operand.vmem [shape: f32[2,1,2,8], index: 8, kind: output, shape index: {1}]
  %9 = xla_tuple %s7, %s8
  %s10 = sld [smem:[#allocation0]]
  $region69: #{pre_activate_double_conv.2} parent=0
    _
  %s12 = ssub.s32 1, %s10
  %s13 = scalar_select 0, %s12, %s10
  loop: start=0, step=1, limit=4
  $region2: #{pre_activate_double_conv.2} parent=0 // loop_pre_header
    _
  $region3: #{pre_activate_double_conv.2} parent=0 // loop_header
    %s15 = sphi 0, %s19
    %p16 = scmp.ge.s32.totalorder %s15, 4
    %s22 = sphi 0, %s34
    %s23 = sphi 0, %s30
    %s24 = sphi 0, %s22
    %s25 = sphi 0, %s23
    %s26 = sphi 0, %s24
    %s27 = sphi 0, %s25
    %s47 = sphi 0, %s49
    %s50 = sphi 0, %s47
    %s51 = sphi 0, %s50
    %s67 = sphi 0, %s51
    %s75 = sphi 0, %s77
    %s78 = sphi 0, %s75
    %s79 = sphi 0, %s78
    %s95 = sphi 0, %s79
    %s111 = sphi 0, %s113
    %s114 = sphi 0, %s111
    %s115 = sphi 0, %s114
    %s131 = sphi 0, %s115
    %s135 = sphi 0, %s135
    %s137 = sphi 0, %s135
    %s138 = sphi 0, %s137
    %s152 = sphi 0, %s138
    %s156 = sphi 0, %s156
    %s158 = sphi 0, %s156
    %s159 = sphi 0, %s158
    %s173 = sphi 0, %s159
    %s177 = sphi 0, %s177
    %s179 = sphi 0, %s177
    %s180 = sphi 0, %s179
    %s194 = sphi 0, %s180
    %s198 = sphi 0, %s198
    %s200 = sphi 0, %s198
    %s201 = sphi 0, %s200
    %s215 = sphi 0, %s201
    %s223 = sphi 0, %s225
    %s226 = sphi 0, %s223
    %s227 = sphi 0, %s226
    %s243 = sphi 0, %s227
    %s251 = sphi 0, %s253
    %s254 = sphi 0, %s251
    %s255 = sphi 0, %s254
    %s271 = sphi 0, %s255
  $region4: #{pre_activate_double_conv.2} parent=0 // loop_header_branch
    %18 = sbr.rel (%p16) target = $region8
  $region5: #{pre_activate_double_conv.2} parent=0 // loop_body
    %s20 = ssub.s32 %s15, 1
    %s21 = ssub.s32 %s15, 2
    %s28 = sadd.s32 1, %s23
    %p29 = scmp.ge.s32.totalorder %s28, 1
    %s30 = scalar_select %p29, 0, %s28
    %s31 = sadd.s32 1, %s22
    %s32 = scalar_select %p29, %s31, %s22
    %p33 = scmp.ge.s32.totalorder %s32, 2
    %s34 = scalar_select %p33, 0, %s32
    %s35 = smul.u32 %s23, 16
    %s36 = ssub.s32 %s35, 1
    %p37 = scmp.gt.s32.totalorder %s36, 0
    %s38 = scalar_select %p37, %s36, 0
    %s39 = smul.u32 %s30, 16
    %s40 = ssub.s32 %s39, 1
    %p41 = scmp.gt.s32.totalorder %s40, 0
    %s42 = scalar_select %p41, %s40, 0
    %s43 = ssub.s32 %s22, %s34
    %s44 = ssub.s32 %s38, %s42
    %s45 = sor.u32 %s43, %s44
    %p46 = scmp.eq.s32.totalorder %s45, 0
    %s48 = sadd.s32 %s47, 1
    %s49 = scalar_select %p46, %s47, %s48
    %p52 = pneg %p46
    %p53 = scmp.eq.s32.totalorder %s15, 1
    %p54 = por %p52, %p53
    %p55 = scmp.ne.s32.totalorder %s47, %s50
    %p56 = scmp.eq.s32.totalorder %s15, 0
    %p57 = por %p55, %p56
    %p58 = scmp.ne.s32.totalorder %s47, %s50
    %p59 = scmp.eq.s32.totalorder %s20, 1
    %p60 = por %p58, %p59
    %p61 = scmp.ne.s32.totalorder %s50, %s51
    %p62 = scmp.eq.s32.totalorder %s20, 0
    %p63 = por %p61, %p62
    %p64 = scmp.ne.s32.totalorder %s50, %s51
    %p65 = scmp.eq.s32.totalorder %s21, 1
    %p66 = por %p64, %p65
    %p68 = scmp.ne.s32.totalorder %s51, %s67
    %p69 = scmp.eq.s32.totalorder %s21, 0
    %p70 = por %p68, %p69
    %s71 = ssub.s32 %s22, %s34
    %s72 = ssub.s32 %s23, %s30
    %s73 = sor.u32 %s71, %s72
    %p74 = scmp.eq.s32.totalorder %s73, 0
    %s76 = sadd.s32 %s75, 1
    %s77 = scalar_select %p74, %s75, %s76
    %p80 = pneg %p74
    %p81 = scmp.eq.s32.totalorder %s15, 1
    %p82 = por %p80, %p81
    %p83 = scmp.ne.s32.totalorder %s75, %s78
    %p84 = scmp.eq.s32.totalorder %s15, 0
    %p85 = por %p83, %p84
    %p86 = scmp.ne.s32.totalorder %s75, %s78
    %p87 = scmp.eq.s32.totalorder %s20, 1
    %p88 = por %p86, %p87
    %p89 = scmp.ne.s32.totalorder %s78, %s79
    %p90 = scmp.eq.s32.totalorder %s20, 0
    %p91 = por %p89, %p90
    %p92 = scmp.ne.s32.totalorder %s78, %s79
    %p93 = scmp.eq.s32.totalorder %s21, 1
    %p94 = por %p92, %p93
    %p96 = scmp.ne.s32.totalorder %s79, %s95
    %p97 = scmp.eq.s32.totalorder %s21, 0
    %p98 = por %p96, %p97
    %s99 = sadd.s32 %s23, 1
    %s100 = smul.u32 %s99, 16
    %p101 = scmp.lt.s32.totalorder %s100, 15
    %s102 = scalar_select %p101, %s100, 15
    %s103 = sadd.s32 %s30, 1
    %s104 = smul.u32 %s103, 16
    %p105 = scmp.lt.s32.totalorder %s104, 15
    %s106 = scalar_select %p105, %s104, 15
    %s107 = ssub.s32 %s22, %s34
    %s108 = ssub.s32 %s102, %s106
    %s109 = sor.u32 %s107, %s108
    %p110 = scmp.eq.s32.totalorder %s109, 0
    %s112 = sadd.s32 %s111, 1
    %s113 = scalar_select %p110, %s111, %s112
    %p116 = pneg %p110
    %p117 = scmp.eq.s32.totalorder %s15, 1
    %p118 = por %p116, %p117
    %p119 = scmp.ne.s32.totalorder %s111, %s114
    %p120 = scmp.eq.s32.totalorder %s15, 0
    %p121 = por %p119, %p120
    %p122 = scmp.ne.s32.totalorder %s111, %s114
    %p123 = scmp.eq.s32.totalorder %s20, 1
    %p124 = por %p122, %p123
    %p125 = scmp.ne.s32.totalorder %s114, %s115
    %p126 = scmp.eq.s32.totalorder %s20, 0
    %p127 = por %p125, %p126
    %p128 = scmp.ne.s32.totalorder %s114, %s115
    %p129 = scmp.eq.s32.totalorder %s21, 1
    %p130 = por %p128, %p129
    %p132 = scmp.ne.s32.totalorder %s115, %s131
    %p133 = scmp.eq.s32.totalorder %s21, 0
    %p134 = por %p132, %p133
    %s136 = sadd.s32 %s135, 1
    %p139 = scmp.eq.s32.totalorder %s15, 1
    %p140 = scmp.ne.s32.totalorder %s135, %s137
    %p141 = scmp.eq.s32.totalorder %s15, 0
    %p142 = por %p140, %p141
    %p143 = scmp.ne.s32.totalorder %s135, %s137
    %p144 = scmp.eq.s32.totalorder %s20, 1
    %p145 = por %p143, %p144
    %p146 = scmp.ne.s32.totalorder %s137, %s138
    %p147 = scmp.eq.s32.totalorder %s20, 0
    %p148 = por %p146, %p147
    %p149 = scmp.ne.s32.totalorder %s137, %s138
    %p150 = scmp.eq.s32.totalorder %s21, 1
    %p151 = por %p149, %p150
    %p153 = scmp.ne.s32.totalorder %s138, %s152
    %p154 = scmp.eq.s32.totalorder %s21, 0
    %p155 = por %p153, %p154
    %s157 = sadd.s32 %s156, 1
    %p160 = scmp.eq.s32.totalorder %s15, 1
    %p161 = scmp.ne.s32.totalorder %s156, %s158
    %p162 = scmp.eq.s32.totalorder %s15, 0
    %p163 = por %p161, %p162
    %p164 = scmp.ne.s32.totalorder %s156, %s158
    %p165 = scmp.eq.s32.totalorder %s20, 1
    %p166 = por %p164, %p165
    %p167 = scmp.ne.s32.totalorder %s158, %s159
    %p168 = scmp.eq.s32.totalorder %s20, 0
    %p169 = por %p167, %p168
    %p170 = scmp.ne.s32.totalorder %s158, %s159
    %p171 = scmp.eq.s32.totalorder %s21, 1
    %p172 = por %p170, %p171
    %p174 = scmp.ne.s32.totalorder %s159, %s173
    %p175 = scmp.eq.s32.totalorder %s21, 0
    %p176 = por %p174, %p175
    %s178 = sadd.s32 %s177, 1
    %p181 = scmp.eq.s32.totalorder %s15, 1
    %p182 = scmp.ne.s32.totalorder %s177, %s179
    %p183 = scmp.eq.s32.totalorder %s15, 0
    %p184 = por %p182, %p183
    %p185 = scmp.ne.s32.totalorder %s177, %s179
    %p186 = scmp.eq.s32.totalorder %s20, 1
    %p187 = por %p185, %p186
    %p188 = scmp.ne.s32.totalorder %s179, %s180
    %p189 = scmp.eq.s32.totalorder %s20, 0
    %p190 = por %p188, %p189
    %p191 = scmp.ne.s32.totalorder %s179, %s180
    %p192 = scmp.eq.s32.totalorder %s21, 1
    %p193 = por %p191, %p192
    %p195 = scmp.ne.s32.totalorder %s180, %s194
    %p196 = scmp.eq.s32.totalorder %s21, 0
    %p197 = por %p195, %p196
    %s199 = sadd.s32 %s198, 1
    %p202 = scmp.eq.s32.totalorder %s15, 1
    %p203 = scmp.ne.s32.totalorder %s198, %s200
    %p204 = scmp.eq.s32.totalorder %s15, 0
    %p205 = por %p203, %p204
    %p206 = scmp.ne.s32.totalorder %s198, %s200
    %p207 = scmp.eq.s32.totalorder %s20, 1
    %p208 = por %p206, %p207
    %p209 = scmp.ne.s32.totalorder %s200, %s201
    %p210 = scmp.eq.s32.totalorder %s20, 0
    %p211 = por %p209, %p210
    %p212 = scmp.ne.s32.totalorder %s200, %s201
    %p213 = scmp.eq.s32.totalorder %s21, 1
    %p214 = por %p212, %p213
    %p216 = scmp.ne.s32.totalorder %s201, %s215
    %p217 = scmp.eq.s32.totalorder %s21, 0
    %p218 = por %p216, %p217
    %s219 = ssub.s32 %s22, %s34
    %s220 = ssub.s32 %s23, %s30
    %s221 = sor.u32 %s219, %s220
    %p222 = scmp.eq.s32.totalorder %s221, 0
    %s224 = sadd.s32 %s223, 1
    %s225 = scalar_select %p222, %s223, %s224
    %p228 = pneg %p222
    %p229 = scmp.eq.s32.totalorder %s15, 1
    %p230 = por %p228, %p229
    %p231 = scmp.ne.s32.totalorder %s223, %s226
    %p232 = scmp.eq.s32.totalorder %s15, 0
    %p233 = por %p231, %p232
    %p234 = scmp.ne.s32.totalorder %s223, %s226
    %p235 = scmp.eq.s32.totalorder %s20, 1
    %p236 = por %p234, %p235
    %p237 = scmp.ne.s32.totalorder %s226, %s227
    %p238 = scmp.eq.s32.totalorder %s20, 0
    %p239 = por %p237, %p238
    %p240 = scmp.ne.s32.totalorder %s226, %s227
    %p241 = scmp.eq.s32.totalorder %s21, 1
    %p242 = por %p240, %p241
    %p244 = scmp.ne.s32.totalorder %s227, %s243
    %p245 = scmp.eq.s32.totalorder %s21, 0
    %p246 = por %p244, %p245
    %s247 = ssub.s32 %s22, %s34
    %s248 = ssub.s32 %s23, %s30
    %s249 = sor.u32 %s247, %s248
    %p250 = scmp.eq.s32.totalorder %s249, 0
    %s252 = sadd.s32 %s251, 1
    %s253 = scalar_select %p250, %s251, %s252
    %p256 = pneg %p250
    %p257 = scmp.eq.s32.totalorder %s15, 1
    %p258 = por %p256, %p257
    %p259 = scmp.ne.s32.totalorder %s251, %s254
    %p260 = scmp.eq.s32.totalorder %s15, 0
    %p261 = por %p259, %p260
    %p262 = scmp.ne.s32.totalorder %s251, %s254
    %p263 = scmp.eq.s32.totalorder %s20, 1
    %p264 = por %p262, %p263
    %p265 = scmp.ne.s32.totalorder %s254, %s255
    %p266 = scmp.eq.s32.totalorder %s20, 0
    %p267 = por %p265, %p266
    %p268 = scmp.ne.s32.totalorder %s254, %s255
    %p269 = scmp.eq.s32.totalorder %s21, 1
    %p270 = por %p268, %p269
    %p272 = scmp.ne.s32.totalorder %s255, %s271
    %p273 = scmp.eq.s32.totalorder %s21, 0
    %p274 = por %p272, %p273
    %p275 = scmp.le.s32.totalorder 1, %s15
    %p276 = scmp.lt.s32.totalorder %s15, 3
    %p277 = pnand %p275, %p276
    %p278 = pneg %p277
    // Predicated region
    $region9: #{pre_activate_double_conv.2} parent=5 // pred_check
      _
    $region10: #{pre_activate_double_conv.2} parent=5 // pred_check_branch
      %280 = sbr.rel (%p277) target = $region12
    $region11: #{pre_activate_double_conv.2} parent=5 // pred_region
      %s281 = ssub.s32 %s15, 1
      // Predicated region
      $region13: #{pre_activate_double_conv.2} parent=11 // pred_check
        %p282 = pneg %p148
      $region14: #{pre_activate_double_conv.2} parent=11 // pred_check_branch
        %284 = sbr.rel (%p282) target = $region16
      $region15: #{pre_activate_double_conv.2} parent=11 // pred_region
        _
      $region16: #{pre_activate_double_conv.2} parent=11 // pred_fallthru
        _
      // Predicated region
      $region17: #{pre_activate_double_conv.2} parent=11 // pred_check
        %p285 = pneg %p169
      $region18: #{pre_activate_double_conv.2} parent=11 // pred_check_branch
        %287 = sbr.rel (%p285) target = $region20
      $region19: #{pre_activate_double_conv.2} parent=11 // pred_region
        _
      $region20: #{pre_activate_double_conv.2} parent=11 // pred_fallthru
        _
      // Predicated region
      $region21: #{pre_activate_double_conv.2} parent=11 // pred_check
        %p288 = pneg %p190
      $region22: #{pre_activate_double_conv.2} parent=11 // pred_check_branch
        %290 = sbr.rel (%p288) target = $region24
      $region23: #{pre_activate_double_conv.2} parent=11 // pred_region
        _
      $region24: #{pre_activate_double_conv.2} parent=11 // pred_fallthru
        _
      // Predicated region
      $region25: #{pre_activate_double_conv.2} parent=11 // pred_check
        %p291 = pneg %p211
      $region26: #{pre_activate_double_conv.2} parent=11 // pred_check_branch
        %293 = sbr.rel (%p291) target = $region28
      $region27: #{pre_activate_double_conv.2} parent=11 // pred_region
        _
      $region28: #{pre_activate_double_conv.2} parent=11 // pred_fallthru
        _
    $region12: #{pre_activate_double_conv.2} parent=5 // pred_fallthru
      _
    %p294 = scmp.lt.s32.totalorder %s15, 2
    // Predicated region
    $region29: #{pre_activate_double_conv.2} parent=5 // pred_check
      %p295 = pneg %p294
    $region30: #{pre_activate_double_conv.2} parent=5 // pred_check_branch
      %297 = sbr.rel (%p295) target = $region32
    $region31: #{pre_activate_double_conv.2} parent=5 // pred_region
      // Predicated region
      $region33: #{pre_activate_double_conv.2} parent=31 // pred_check
        %p298 = pneg %p57
      $region34: #{pre_activate_double_conv.2} parent=31 // pred_check_branch
        %300 = sbr.rel (%p298) target = $region36
      $region35: #{pre_activate_double_conv.2} parent=31 // pred_region
        %s301 = smul.u32 %s23, 16
        %s302 = ssub.s32 %s301, 1
        %p303 = scmp.gt.s32.totalorder %s302, 0
        %s304 = scalar_select %p303, %s302, 0
        %p305 = scmp.lt.s32.totalorder %s22, 1
        %s306 = scalar_select %p305, %s22, 1
        %p307 = scmp.lt.s32.totalorder %s304, 15
        %s308 = scalar_select %p307, %s304, 15
        %s309 = smul.addr %s308, 2
        %s310 = smul.addr %s306, 32
        %s311 = sadd.s32 %s309, %s310
        %s312 = smul.addr %s311, 8
        %s313 = scalar_lea.vmem %s0, %s312
        %s314 = smul.u32 %s23, 16
        %s315 = ssub.s32 %s314, 1
        %p316 = scmp.gt.s32.totalorder %s315, 0
        %s317 = scalar_select %p316, %s315, 0
      $region36: #{pre_activate_double_conv.2} parent=31 // pred_fallthru
        _
      // Predicated region
      $region37: #{pre_activate_double_conv.2} parent=31 // pred_check
        %p318 = pneg %p85
      $region38: #{pre_activate_double_conv.2} parent=31 // pred_check_branch
        %320 = sbr.rel (%p318) target = $region40
      $region39: #{pre_activate_double_conv.2} parent=31 // pred_region
        %s321 = smul.u32 16, %s23
        %p322 = scmp.lt.s32.totalorder %s22, 1
        %s323 = scalar_select %p322, %s22, 1
        %p324 = scmp.lt.s32.totalorder %s321, 15
        %s325 = scalar_select %p324, %s321, 15
        %s326 = smul.addr %s325, 2
        %s327 = smul.addr %s323, 32
        %s328 = sadd.s32 %s326, %s327
        %s329 = smul.addr %s328, 8
        %s330 = scalar_lea.vmem %s1, %s329
        %s331 = smul.u32 16, %s23
      $region40: #{pre_activate_double_conv.2} parent=31 // pred_fallthru
        _
      // Predicated region
      $region41: #{pre_activate_double_conv.2} parent=31 // pred_check
        %p332 = pneg %p121
      $region42: #{pre_activate_double_conv.2} parent=31 // pred_check_branch
        %334 = sbr.rel (%p332) target = $region44
      $region43: #{pre_activate_double_conv.2} parent=31 // pred_region
        %s335 = sadd.s32 %s23, 1
        %s336 = smul.u32 %s335, 16
        %p337 = scmp.lt.s32.totalorder %s336, 15
        %s338 = scalar_select %p337, %s336, 15
        %p339 = scmp.lt.s32.totalorder %s22, 1
        %s340 = scalar_select %p339, %s22, 1
        %p341 = scmp.lt.s32.totalorder %s338, 15
        %s342 = scalar_select %p341, %s338, 15
        %s343 = smul.addr %s342, 2
        %s344 = smul.addr %s340, 32
        %s345 = sadd.s32 %s343, %s344
        %s346 = smul.addr %s345, 8
        %s347 = scalar_lea.vmem %s2, %s346
        %s348 = sadd.s32 %s23, 1
        %s349 = smul.u32 %s348, 16
        %p350 = scmp.lt.s32.totalorder %s349, 15
        %s351 = scalar_select %p350, %s349, 15
      $region44: #{pre_activate_double_conv.2} parent=31 // pred_fallthru
        _
    $region32: #{pre_activate_double_conv.2} parent=5 // pred_fallthru
      _
    %p352 = scmp.le.s32.totalorder 1, %s15
    %p353 = scmp.lt.s32.totalorder %s15, 3
    %p354 = pnand %p352, %p353
    %p355 = pneg %p354
    // Predicated region
    $region45: #{pre_activate_double_conv.2} parent=5 // pred_check
      _
    $region46: #{pre_activate_double_conv.2} parent=5 // pred_check_branch
      %357 = sbr.rel (%p354) target = $region48
    $region47: #{pre_activate_double_conv.2} parent=5 // pred_region
      %s358 = ssub.s32 %s15, 1
      %s359 = smul.u32 %s25, 16
      %s360 = ssub.s32 %s359, 1
      %p361 = scmp.gt.s32.totalorder %s360, 0
      %s362 = scalar_select %p361, %s360, 0
      %p363 = scmp.lt.s32.totalorder %s24, 1
      %s364 = scalar_select %p363, %s24, 1
      %p365 = scmp.lt.s32.totalorder %s362, 15
      %s366 = scalar_select %p365, %s362, 15
      %s367 = smul.addr %s366, 2
      %s368 = smul.addr %s364, 32
      %s369 = sadd.s32 %s367, %s368
      %s370 = smul.addr %s369, 8
      %s371 = scalar_lea.vmem %s0, %s370
      %p372 = pneg %p63
      %p373 = pneg %p60
      %s374 = smul.u32 16, %s25
      %p375 = scmp.lt.s32.totalorder %s24, 1
      %s376 = scalar_select %p375, %s24, 1
      %p377 = scmp.lt.s32.totalorder %s374, 15
      %s378 = scalar_select %p377, %s374, 15
      %s379 = smul.addr %s378, 2
      %s380 = smul.addr %s376, 32
      %s381 = sadd.s32 %s379, %s380
      %s382 = smul.addr %s381, 8
      %s383 = scalar_lea.vmem %s1, %s382
      %p384 = pneg %p91
      %p385 = pneg %p88
      %s386 = sadd.s32 %s25, 1
      %s387 = smul.u32 %s386, 16
      %p388 = scmp.lt.s32.totalorder %s387, 15
      %s389 = scalar_select %p388, %s387, 15
      %p390 = scmp.lt.s32.totalorder %s24, 1
      %s391 = scalar_select %p390, %s24, 1
      %p392 = scmp.lt.s32.totalorder %s389, 15
      %s393 = scalar_select %p392, %s389, 15
      %s394 = smul.addr %s393, 2
      %s395 = smul.addr %s391, 32
      %s396 = sadd.s32 %s394, %s395
      %s397 = smul.addr %s396, 8
      %s398 = scalar_lea.vmem %s2, %s397
      %p399 = pneg %p127
      %p400 = pneg %p124
      %p401 = pneg %p148
      %p402 = pneg %p145
      %p403 = pneg %p169
      %p404 = pneg %p166
      %p405 = pneg %p190
      %p406 = pneg %p187
      %p407 = pneg %p211
      %p408 = pneg %p208
      %p409 = pneg %p239
      %p410 = pneg %p236
      %s411 = smul.u32 16, %s25
      %p412 = scmp.lt.s32.totalorder %s24, 1
      %s413 = scalar_select %p412, %s24, 1
      %p414 = scmp.lt.s32.totalorder %s411, 15
      %s415 = scalar_select %p414, %s411, 15
      %s416 = smul.addr %s415, 2
      %s417 = smul.addr %s413, 32
      %s418 = sadd.s32 %s416, %s417
      %s419 = smul.addr %s418, 4
      %s420 = scalar_lea.vmem %s7, %s419
      %p421 = pneg %p267
      %p422 = pneg %p264
      %p423 = scmp.lt.s32.totalorder %s24, 1
      %s424 = scalar_select %p423, %s24, 1
      %p425 = scmp.lt.s32.totalorder %s25, 0
      %s426 = scalar_select %p425, %s25, 0
      %s427 = sadd.s32 %s426, %s424
      %s428 = smul.addr %s427, 2
      %s429 = scalar_lea.vmem %s8, %s428
      %s430 = smul.u32 %s25, 16
      %s431 = ssub.s32 %s430, 1
      %p432 = scmp.gt.s32.totalorder %s431, 0
      %s433 = scalar_select %p432, %s431, 0
      %p434 = scmp.lt.s32.totalorder %s24, 1
      %s435 = scalar_select %p434, %s24, 1
      %p436 = scmp.lt.s32.totalorder %s433, 15
      %s437 = scalar_select %p436, %s433, 15
      %s438 = smul.addr %s437, 2
      %s439 = smul.addr %s435, 32
      %s440 = sadd.s32 %s438, %s439
      %s441 = smul.addr %s440, 8
      %s442 = scalar_lea.vmem %s0, %s441
      %s443 = smul.u32 %s25, 16
      %s444 = ssub.s32 %s443, 1
      %p445 = scmp.gt.s32.totalorder %s444, 0
      %s446 = scalar_select %p445, %s444, 0
      %s447 = smul.u32 16, %s25
      %p448 = scmp.lt.s32.totalorder %s24, 1
      %s449 = scalar_select %p448, %s24, 1
      %p450 = scmp.lt.s32.totalorder %s447, 15
      %s451 = scalar_select %p450, %s447, 15
      %s452 = smul.addr %s451, 2
      %s453 = smul.addr %s449, 32
      %s454 = sadd.s32 %s452, %s453
      %s455 = smul.addr %s454, 8
      %s456 = scalar_lea.vmem %s1, %s455
      %s457 = smul.u32 16, %s25
      %s458 = sadd.s32 %s25, 1
      %s459 = smul.u32 %s458, 16
      %p460 = scmp.lt.s32.totalorder %s459, 15
      %s461 = scalar_select %p460, %s459, 15
      %p462 = scmp.lt.s32.totalorder %s24, 1
      %s463 = scalar_select %p462, %s24, 1
      %p464 = scmp.lt.s32.totalorder %s461, 15
      %s465 = scalar_select %p464, %s461, 15
      %s466 = smul.addr %s465, 2
      %s467 = smul.addr %s463, 32
      %s468 = sadd.s32 %s466, %s467
      %s469 = smul.addr %s468, 8
      %s470 = scalar_lea.vmem %s2, %s469
      %s471 = sadd.s32 %s25, 1
      %s472 = smul.u32 %s471, 16
      %p473 = scmp.lt.s32.totalorder %s472, 15
      %s474 = scalar_select %p473, %s472, 15
      %s475 = smul.u32 16, %s25
      %p476 = scmp.lt.s32.totalorder %s24, 1
      %s477 = scalar_select %p476, %s24, 1
      %p478 = scmp.lt.s32.totalorder %s475, 15
      %s479 = scalar_select %p478, %s475, 15
      %s480 = smul.addr %s479, 2
      %s481 = smul.addr %s477, 32
      %s482 = sadd.s32 %s480, %s481
      %s483 = smul.addr %s482, 4
      %s484 = scalar_lea.vmem %s7, %s483
      %s485 = smul.u32 16, %s25
      %p486 = scmp.lt.s32.totalorder %s24, 1
      %s487 = scalar_select %p486, %s24, 1
      %p488 = scmp.lt.s32.totalorder %s25, 0
      %s489 = scalar_select %p488, %s25, 0
      %s490 = sadd.s32 %s489, %s487
      %s491 = smul.addr %s490, 2
      %s492 = scalar_lea.vmem %s8, %s491
      %v494 = vld [vmem:[%s3] sm:$0x1]
      %v495 = vld [vmem:[%s4] sm:$0x1]
      %vm496 = vcmask 24576
      %497 = vst.msk [vmem:[#allocation2] sm:$0x1] %vm496, 0.0
      %498 = vst.msk [vmem:[#allocation2 + $0x18] sm:$0x1] %vm496, 0.0
      %499 = vst.msk [vmem:[#allocation2 + $0x30] sm:$0x1] %vm496, 0.0
      %500 = vst.msk [vmem:[#allocation2 + $0x48] sm:$0x1] %vm496, 0.0
      %501 = vst.msk [vmem:[#allocation2 + $0x60] sm:$0x1] %vm496, 0.0
      %502 = vst.msk [vmem:[#allocation2 + $0x78] sm:$0x1] %vm496, 0.0
      %503 = vst.msk [vmem:[#allocation2 + $0x90] sm:$0x1] %vm496, 0.0
      %504 = vst.msk [vmem:[#allocation2 + $0xa8] sm:$0x1] %vm496, 0.0
      %505 = vst.msk [vmem:[#allocation2 + $0xc0] sm:$0x1] %vm496, 0.0
      %506 = vst.msk [vmem:[#allocation2 + $0xd8] sm:$0x1] %vm496, 0.0
      %507 = vst.msk [vmem:[#allocation2 + $0xf0] sm:$0x1] %vm496, 0.0
      %508 = vst.msk [vmem:[#allocation2 + $0x108] sm:$0x1] %vm496, 0.0
      %509 = vst.msk [vmem:[#allocation2 + $0x120] sm:$0x1] %vm496, 0.0
      %510 = vst.msk [vmem:[#allocation2 + $0x138] sm:$0x1] %vm496, 0.0
      %511 = vst.msk [vmem:[#allocation2 + $0x150] sm:$0x1] %vm496, 0.0
      %512 = vst.msk [vmem:[#allocation2 + $0x168] sm:$0x1] %vm496, 0.0
      %513 = vst.msk [vmem:[#allocation2 + $0x180] sm:$0x1] %vm496, 0.0
      %514 = vst.msk [vmem:[#allocation2 + $0x198] sm:$0x1] %vm496, 0.0
      %515 = vst.msk [vmem:[#allocation2 + $0x11] sm:$0x1] %vm496, 0.0
      %516 = vst.msk [vmem:[#allocation2 + $0x29] sm:$0x1] %vm496, 0.0
      %517 = vst.msk [vmem:[#allocation2 + $0x41] sm:$0x1] %vm496, 0.0
      %518 = vst.msk [vmem:[#allocation2 + $0x59] sm:$0x1] %vm496, 0.0
      %519 = vst.msk [vmem:[#allocation2 + $0x71] sm:$0x1] %vm496, 0.0
      %520 = vst.msk [vmem:[#allocation2 + $0x89] sm:$0x1] %vm496, 0.0
      %521 = vst.msk [vmem:[#allocation2 + $0xa1] sm:$0x1] %vm496, 0.0
      %522 = vst.msk [vmem:[#allocation2 + $0xb9] sm:$0x1] %vm496, 0.0
      %523 = vst.msk [vmem:[#allocation2 + $0xd1] sm:$0x1] %vm496, 0.0
      %524 = vst.msk [vmem:[#allocation2 + $0xe9] sm:$0x1] %vm496, 0.0
      %525 = vst.msk [vmem:[#allocation2 + $0x101] sm:$0x1] %vm496, 0.0
      %526 = vst.msk [vmem:[#allocation2 + $0x119] sm:$0x1] %vm496, 0.0
      %527 = vst.msk [vmem:[#allocation2 + $0x131] sm:$0x1] %vm496, 0.0
      %528 = vst.msk [vmem:[#allocation2 + $0x149] sm:$0x1] %vm496, 0.0
      %529 = vst.msk [vmem:[#allocation2 + $0x161] sm:$0x1] %vm496, 0.0
      %530 = vst.msk [vmem:[#allocation2 + $0x179] sm:$0x1] %vm496, 0.0
      %531 = vst.msk [vmem:[#allocation2 + $0x191] sm:$0x1] %vm496, 0.0
      %532 = vst.msk [vmem:[#allocation2 + $0x1a9] sm:$0x1] %vm496, 0.0
      %v533 = vld [vmem:[%s456] sm:$0xff]
      %v534 = vld [vmem:[%s456 + $0x8] sm:$0xff]
      %v535 = vld [vmem:[%s456 + $0x10] sm:$0xff]
      %v536 = vld [vmem:[%s456 + $0x18] sm:$0xff]
      %v537 = vld [vmem:[%s456 + $0x20] sm:$0xff]
      %v538 = vld [vmem:[%s456 + $0x28] sm:$0xff]
      %v539 = vld [vmem:[%s456 + $0x30] sm:$0xff]
      %v540 = vld [vmem:[%s456 + $0x38] sm:$0xff]
      %v541 = vld [vmem:[%s456 + $0x40] sm:$0xff]
      %v542 = vld [vmem:[%s456 + $0x48] sm:$0xff]
      %v543 = vld [vmem:[%s456 + $0x50] sm:$0xff]
      %v544 = vld [vmem:[%s456 + $0x58] sm:$0xff]
      %v545 = vld [vmem:[%s456 + $0x60] sm:$0xff]
      %v546 = vld [vmem:[%s456 + $0x68] sm:$0xff]
      %v547 = vld [vmem:[%s456 + $0x70] sm:$0xff]
      %v548 = vld [vmem:[%s456 + $0x78] sm:$0xff]
      %v549 = vld [vmem:[%s456 + $0x80] sm:$0xff]
      %v550 = vld [vmem:[%s456 + $0x88] sm:$0xff]
      %v551 = vld [vmem:[%s456 + $0x90] sm:$0xff]
      %v552 = vld [vmem:[%s456 + $0x98] sm:$0xff]
      %v553 = vld [vmem:[%s456 + $0xa0] sm:$0xff]
      %v554 = vld [vmem:[%s456 + $0xa8] sm:$0xff]
      %v555 = vld [vmem:[%s456 + $0xb0] sm:$0xff]
      %v556 = vld [vmem:[%s456 + $0xb8] sm:$0xff]
      %v557 = vld [vmem:[%s456 + $0xc0] sm:$0xff]
      %v558 = vld [vmem:[%s456 + $0xc8] sm:$0xff]
      %v559 = vld [vmem:[%s456 + $0xd0] sm:$0xff]
      %v560 = vld [vmem:[%s456 + $0xd8] sm:$0xff]
      %v561 = vld [vmem:[%s456 + $0xe0] sm:$0xff]
      %v562 = vld [vmem:[%s456 + $0xe8] sm:$0xff]
      %v563 = vld [vmem:[%s456 + $0xf0] sm:$0xff]
      %v564 = vld [vmem:[%s456 + $0xf8] sm:$0xff]
      %v566 = vlaneseq
      %v567 = vshrl.u32 %v566, 7
      %v568 = vsub.s32 0, %v567
      %v569 = vrot.slane %v494, %v568
      %v571 = vmul.f32 %v533, %v569
      %v572 = vmul.f32 %v534, %v569
      %v573 = vmul.f32 %v535, %v569
      %v574 = vmul.f32 %v536, %v569
      %v575 = vmul.f32 %v537, %v569
      %v576 = vmul.f32 %v538, %v569
      %v577 = vmul.f32 %v539, %v569
      %v578 = vmul.f32 %v540, %v569
      %v579 = vmul.f32 %v541, %v569
      %v580 = vmul.f32 %v542, %v569
      %v581 = vmul.f32 %v543, %v569
      %v582 = vmul.f32 %v544, %v569
      %v583 = vmul.f32 %v545, %v569
      %v584 = vmul.f32 %v546, %v569
      %v585 = vmul.f32 %v547, %v569
      %v586 = vmul.f32 %v548, %v569
      %v587 = vmul.f32 %v549, %v569
      %v588 = vmul.f32 %v550, %v569
      %v589 = vmul.f32 %v551, %v569
      %v590 = vmul.f32 %v552, %v569
      %v591 = vmul.f32 %v553, %v569
      %v592 = vmul.f32 %v554, %v569
      %v593 = vmul.f32 %v555, %v569
      %v594 = vmul.f32 %v556, %v569
      %v595 = vmul.f32 %v557, %v569
      %v596 = vmul.f32 %v558, %v569
      %v597 = vmul.f32 %v559, %v569
      %v598 = vmul.f32 %v560, %v569
      %v599 = vmul.f32 %v561, %v569
      %v600 = vmul.f32 %v562, %v569
      %v601 = vmul.f32 %v563, %v569
      %v602 = vmul.f32 %v564, %v569
      %v604 = vlaneseq
      %v605 = vshrl.u32 %v604, 7
      %v606 = vsub.s32 0, %v605
      %v607 = vrot.slane %v495, %v606
      %v609 = vadd.f32 %v571, %v607
      %v610 = vadd.f32 %v572, %v607
      %v611 = vadd.f32 %v573, %v607
      %v612 = vadd.f32 %v574, %v607
      %v613 = vadd.f32 %v575, %v607
      %v614 = vadd.f32 %v576, %v607
      %v615 = vadd.f32 %v577, %v607
      %v616 = vadd.f32 %v578, %v607
      %v617 = vadd.f32 %v579, %v607
      %v618 = vadd.f32 %v580, %v607
      %v619 = vadd.f32 %v581, %v607
      %v620 = vadd.f32 %v582, %v607
      %v621 = vadd.f32 %v583, %v607
      %v622 = vadd.f32 %v584, %v607
      %v623 = vadd.f32 %v585, %v607
      %v624 = vadd.f32 %v586, %v607
      %v625 = vadd.f32 %v587, %v607
      %v626 = vadd.f32 %v588, %v607
      %v627 = vadd.f32 %v589, %v607
      %v628 = vadd.f32 %v590, %v607
      %v629 = vadd.f32 %v591, %v607
      %v630 = vadd.f32 %v592, %v607
      %v631 = vadd.f32 %v593, %v607
      %v632 = vadd.f32 %v594, %v607
      %v633 = vadd.f32 %v595, %v607
      %v634 = vadd.f32 %v596, %v607
      %v635 = vadd.f32 %v597, %v607
      %v636 = vadd.f32 %v598, %v607
      %v637 = vadd.f32 %v599, %v607
      %v638 = vadd.f32 %v600, %v607
      %v639 = vadd.f32 %v601, %v607
      %v640 = vadd.f32 %v602, %v607
      %v641 = vmax.f32 %v609, 0.0
      %v642 = vmax.f32 %v610, 0.0
      %v643 = vmax.f32 %v611, 0.0
      %v644 = vmax.f32 %v612, 0.0
      %v645 = vmax.f32 %v613, 0.0
      %v646 = vmax.f32 %v614, 0.0
      %v647 = vmax.f32 %v615, 0.0
      %v648 = vmax.f32 %v616, 0.0
      %v649 = vmax.f32 %v617, 0.0
      %v650 = vmax.f32 %v618, 0.0
      %v651 = vmax.f32 %v619, 0.0
      %v652 = vmax.f32 %v620, 0.0
      %v653 = vmax.f32 %v621, 0.0
      %v654 = vmax.f32 %v622, 0.0
      %v655 = vmax.f32 %v623, 0.0
      %v656 = vmax.f32 %v624, 0.0
      %v657 = vmax.f32 %v625, 0.0
      %v658 = vmax.f32 %v626, 0.0
      %v659 = vmax.f32 %v627, 0.0
      %v660 = vmax.f32 %v628, 0.0
      %v661 = vmax.f32 %v629, 0.0
      %v662 = vmax.f32 %v630, 0.0
      %v663 = vmax.f32 %v631, 0.0
      %v664 = vmax.f32 %v632, 0.0
      %v665 = vmax.f32 %v633, 0.0
      %v666 = vmax.f32 %v634, 0.0
      %v667 = vmax.f32 %v635, 0.0
      %v668 = vmax.f32 %v636, 0.0
      %v669 = vmax.f32 %v637, 0.0
      %v670 = vmax.f32 %v638, 0.0
      %v671 = vmax.f32 %v639, 0.0
      %v672 = vmax.f32 %v640, 0.0
      %s673 = scalar_lea.vmem [#allocation2], 24
      %vm674 = vcmask 31744
      %675 = vst.msk [vmem:[%s673 + $0x1] sm:$0xff] %vm674, %v641
      %676 = vst.msk [vmem:[%s673 + $0x9] sm:$0xff] %vm674, %v642
      %677 = vst.msk [vmem:[%s673 + $0x19] sm:$0xff] %vm674, %v643
      %678 = vst.msk [vmem:[%s673 + $0x21] sm:$0xff] %vm674, %v644
      %679 = vst.msk [vmem:[%s673 + $0x31] sm:$0xff] %vm674, %v645
      %680 = vst.msk [vmem:[%s673 + $0x39] sm:$0xff] %vm674, %v646
      %681 = vst.msk [vmem:[%s673 + $0x49] sm:$0xff] %vm674, %v647
      %682 = vst.msk [vmem:[%s673 + $0x51] sm:$0xff] %vm674, %v648
      %683 = vst.msk [vmem:[%s673 + $0x61] sm:$0xff] %vm674, %v649
      %684 = vst.msk [vmem:[%s673 + $0x69] sm:$0xff] %vm674, %v650
      %685 = vst.msk [vmem:[%s673 + $0x79] sm:$0xff] %vm674, %v651
      %686 = vst.msk [vmem:[%s673 + $0x81] sm:$0xff] %vm674, %v652
      %687 = vst.msk [vmem:[%s673 + $0x91] sm:$0xff] %vm674, %v653
      %688 = vst.msk [vmem:[%s673 + $0x99] sm:$0xff] %vm674, %v654
      %689 = vst.msk [vmem:[%s673 + $0xa9] sm:$0xff] %vm674, %v655
      %690 = vst.msk [vmem:[%s673 + $0xb1] sm:$0xff] %vm674, %v656
      %691 = vst.msk [vmem:[%s673 + $0xc1] sm:$0xff] %vm674, %v657
      %692 = vst.msk [vmem:[%s673 + $0xc9] sm:$0xff] %vm674, %v658
      %693 = vst.msk [vmem:[%s673 + $0xd9] sm:$0xff] %vm674, %v659
      %694 = vst.msk [vmem:[%s673 + $0xe1] sm:$0xff] %vm674, %v660
      %695 = vst.msk [vmem:[%s673 + $0xf1] sm:$0xff] %vm674, %v661
      %696 = vst.msk [vmem:[%s673 + $0xf9] sm:$0xff] %vm674, %v662
      %697 = vst.msk [vmem:[%s673 + $0x109] sm:$0xff] %vm674, %v663
      %698 = vst.msk [vmem:[%s673 + $0x111] sm:$0xff] %vm674, %v664
      %699 = vst.msk [vmem:[%s673 + $0x121] sm:$0xff] %vm674, %v665
      %700 = vst.msk [vmem:[%s673 + $0x129] sm:$0xff] %vm674, %v666
      %701 = vst.msk [vmem:[%s673 + $0x139] sm:$0xff] %vm674, %v667
      %702 = vst.msk [vmem:[%s673 + $0x141] sm:$0xff] %vm674, %v668
      %703 = vst.msk [vmem:[%s673 + $0x151] sm:$0xff] %vm674, %v669
      %704 = vst.msk [vmem:[%s673 + $0x159] sm:$0xff] %vm674, %v670
      %705 = vst.msk [vmem:[%s673 + $0x169] sm:$0xff] %vm674, %v671
      %706 = vst.msk [vmem:[%s673 + $0x171] sm:$0xff] %vm674, %v672
      %p707 = scmp.ne.s32.totalorder %s25, 0
      %s708 = scalar_select %p707, 1, 0
      %s709 = scvt.s32.f32 %s708
      %v710 = vld [vmem:[%s442] sm:$0xff]
      %v711 = vld [vmem:[%s442 + $0x8] sm:$0xff]
      %v712 = vmul.f32 %v710, %v569
      %v713 = vmul.f32 %v711, %v569
      %v714 = vadd.f32 %v712, %v607
      %v715 = vadd.f32 %v713, %v607
      %v716 = vmax.f32 %v714, 0.0
      %v717 = vmax.f32 %v715, 0.0
      %v718 = vstv %s709
      %v719 = vmul.f32 %v716, %v718
      %v720 = vmul.f32 %v717, %v718
      %721 = vst.msk [vmem:[#allocation2 + $0x1] sm:$0xff] %vm674, %v719
      %722 = vst.msk [vmem:[#allocation2 + $0x9] sm:$0xff] %vm674, %v720
      %v723 = vld [vmem:[%s470] sm:$0xff]
      %v724 = vld [vmem:[%s470 + $0x8] sm:$0xff]
      %v725 = vmul.f32 %v723, %v569
      %v726 = vmul.f32 %v724, %v569
      %v727 = vadd.f32 %v725, %v607
      %v728 = vadd.f32 %v726, %v607
      %v729 = vmax.f32 %v727, 0.0
      %v730 = vmax.f32 %v728, 0.0
      %v731 = vmul.f32 %v729, %v718
      %v732 = vmul.f32 %v730, %v718
      %s733 = scalar_lea.vmem [#allocation2], 408
      %734 = vst.msk [vmem:[%s733 + $0x1] sm:$0xff] %vm674, %v731
      %735 = vst.msk [vmem:[%s733 + $0x9] sm:$0xff] %vm674, %v732
      %v736 = vld [vmem:[#allocation2] sm:$0xff]
      %v737 = vld [vmem:[#allocation2 + $0x8] sm:$0xff]
      %v738 = vld [vmem:[#allocation2 + $0x18] sm:$0xff]
      %v739 = vld [vmem:[#allocation2 + $0x20] sm:$0xff]
      %v740 = vld [vmem:[#allocation2 + $0x30] sm:$0xff]
      %v741 = vld [vmem:[#allocation2 + $0x38] sm:$0xff]
      %v742 = vld [vmem:[#allocation2 + $0x48] sm:$0xff]
      %v743 = vld [vmem:[#allocation2 + $0x50] sm:$0xff]
      %v744 = vld [vmem:[#allocation2 + $0x60] sm:$0xff]
      %v745 = vld [vmem:[#allocation2 + $0x68] sm:$0xff]
      %v746 = vld [vmem:[#allocation2 + $0x78] sm:$0xff]
      %v747 = vld [vmem:[#allocation2 + $0x80] sm:$0xff]
      %v748 = vld [vmem:[#allocation2 + $0x90] sm:$0xff]
      %v749 = vld [vmem:[#allocation2 + $0x98] sm:$0xff]
      %v750 = vld [vmem:[#allocation2 + $0xa8] sm:$0xff]
      %v751 = vld [vmem:[#allocation2 + $0xb0] sm:$0xff]
      %v752 = vld [vmem:[#allocation2 + $0xc0] sm:$0xff]
      %v753 = vld [vmem:[#allocation2 + $0xc8] sm:$0xff]
      %v754 = vld [vmem:[#allocation2 + $0xd8] sm:$0xff]
      %v755 = vld [vmem:[#allocation2 + $0xe0] sm:$0xff]
      %v756 = vld [vmem:[#allocation2 + $0xf0] sm:$0xff]
      %v757 = vld [vmem:[#allocation2 + $0xf8] sm:$0xff]
      %v758 = vld [vmem:[#allocation2 + $0x108] sm:$0xff]
      %v759 = vld [vmem:[#allocation2 + $0x110] sm:$0xff]
      %v760 = vld [vmem:[#allocation2 + $0x120] sm:$0xff]
      %v761 = vld [vmem:[#allocation2 + $0x128] sm:$0xff]
      %v762 = vld [vmem:[#allocation2 + $0x138] sm:$0xff]
      %v763 = vld [vmem:[#allocation2 + $0x140] sm:$0xff]
      %v764 = vld [vmem:[#allocation2 + $0x150] sm:$0xff]
      %v765 = vld [vmem:[#allocation2 + $0x158] sm:$0xff]
      %v766 = vld [vmem:[#allocation2 + $0x168] sm:$0xff]
      %v767 = vld [vmem:[#allocation2 + $0x170] sm:$0xff]
      %v768 = vpack.c.bf16 %v737, %v736
      %v769 = vpack.c.bf16 %v739, %v738
      %v770 = vpack.c.bf16 %v741, %v740
      %v771 = vpack.c.bf16 %v743, %v742
      %v772 = vpack.c.bf16 %v745, %v744
      %v773 = vpack.c.bf16 %v747, %v746
      %v774 = vpack.c.bf16 %v749, %v748
      %v775 = vpack.c.bf16 %v751, %v750
      %v776 = vpack.c.bf16 %v753, %v752
      %v777 = vpack.c.bf16 %v755, %v754
      %v778 = vpack.c.bf16 %v757, %v756
      %v779 = vpack.c.bf16 %v759, %v758
      %v780 = vpack.c.bf16 %v761, %v760
      %v781 = vpack.c.bf16 %v763, %v762
      %v782 = vpack.c.bf16 %v765, %v764
      %v783 = vpack.c.bf16 %v767, %v766
      %v784 = vld [vmem:[%s5] sm:$0x3]
      %v785 = vld [vmem:[#allocation2 + $0x1] sm:$0xff]
      %v786 = vld [vmem:[#allocation2 + $0x9] sm:$0xff]
      %v787 = vld [vmem:[#allocation2 + $0x19] sm:$0xff]
      %v788 = vld [vmem:[#allocation2 + $0x21] sm:$0xff]
      %v789 = vld [vmem:[#allocation2 + $0x31] sm:$0xff]
      %v790 = vld [vmem:[#allocation2 + $0x39] sm:$0xff]
      %v791 = vld [vmem:[#allocation2 + $0x49] sm:$0xff]
      %v792 = vld [vmem:[#allocation2 + $0x51] sm:$0xff]
      %v793 = vld [vmem:[#allocation2 + $0x61] sm:$0xff]
      %v794 = vld [vmem:[#allocation2 + $0x69] sm:$0xff]
      %v795 = vld [vmem:[#allocation2 + $0x79] sm:$0xff]
      %v796 = vld [vmem:[#allocation2 + $0x81] sm:$0xff]
      %v797 = vld [vmem:[#allocation2 + $0x91] sm:$0xff]
      %v798 = vld [vmem:[#allocation2 + $0x99] sm:$0xff]
      %v799 = vld [vmem:[#allocation2 + $0xa9] sm:$0xff]
      %v800 = vld [vmem:[#allocation2 + $0xb1] sm:$0xff]
      %v801 = vld [vmem:[#allocation2 + $0xc1] sm:$0xff]
      %v802 = vld [vmem:[#allocation2 + $0xc9] sm:$0xff]
      %v803 = vld [vmem:[#allocation2 + $0xd9] sm:$0xff]
      %v804 = vld [vmem:[#allocation2 + $0xe1] sm:$0xff]
      %v805 = vld [vmem:[#allocation2 + $0xf1] sm:$0xff]
      %v806 = vld [vmem:[#allocation2 + $0xf9] sm:$0xff]
      %v807 = vld [vmem:[#allocation2 + $0x109] sm:$0xff]
      %v808 = vld [vmem:[#allocation2 + $0x111] sm:$0xff]
      %v809 = vld [vmem:[#allocation2 + $0x121] sm:$0xff]
      %v810 = vld [vmem:[#allocation2 + $0x129] sm:$0xff]
      %v811 = vld [vmem:[#allocation2 + $0x139] sm:$0xff]
      %v812 = vld [vmem:[#allocation2 + $0x141] sm:$0xff]
      %v813 = vld [vmem:[#allocation2 + $0x151] sm:$0xff]
      %v814 = vld [vmem:[#allocation2 + $0x159] sm:$0xff]
      %v815 = vld [vmem:[#allocation2 + $0x169] sm:$0xff]
      %v816 = vld [vmem:[#allocation2 + $0x171] sm:$0xff]
      %v817 = vpack.c.bf16 %v786, %v785
      %v818 = vpack.c.bf16 %v788, %v787
      %v819 = vpack.c.bf16 %v790, %v789
      %v820 = vpack.c.bf16 %v792, %v791
      %v821 = vpack.c.bf16 %v794, %v793
      %v822 = vpack.c.bf16 %v796, %v795
      %v823 = vpack.c.bf16 %v798, %v797
      %v824 = vpack.c.bf16 %v800, %v799
      %v825 = vpack.c.bf16 %v802, %v801
      %v826 = vpack.c.bf16 %v804, %v803
      %v827 = vpack.c.bf16 %v806, %v805
      %v828 = vpack.c.bf16 %v808, %v807
      %v829 = vpack.c.bf16 %v810, %v809
      %v830 = vpack.c.bf16 %v812, %v811
      %v831 = vpack.c.bf16 %v814, %v813
      %v832 = vpack.c.bf16 %v816, %v815
      %s833 = scalar_lea.vmem %s5, 2
      %v834 = vld [vmem:[%s833] sm:$0x3]
      %v836 = vsel %vm674, %v817, 0
      %v839 = vsel %vm674, %v818, 0
      %v842 = vsel %vm674, %v819, 0
      %v845 = vsel %vm674, %v820, 0
      %v848 = vsel %vm674, %v821, 0
      %v851 = vsel %vm674, %v822, 0
      %v854 = vsel %vm674, %v823, 0
      %v857 = vsel %vm674, %v824, 0
      %v860 = vsel %vm674, %v825, 0
      %v863 = vsel %vm674, %v826, 0
      %v866 = vsel %vm674, %v827, 0
      %v869 = vsel %vm674, %v828, 0
      %v872 = vsel %vm674, %v829, 0
      %v875 = vsel %vm674, %v830, 0
      %v878 = vsel %vm674, %v831, 0
      %v881 = vsel %vm674, %v832, 0
      %vm883 = vcmask 1041408
      %v885 = vsel %vm883, %v834, 0
      %887 = vmatprep.subr.bf16.mxu0 0
      %888 = vmatpush1.bf16.msra.mxu0 %v885
      %889 = vmatprep.subr.bf16.mxu0 0
      %890 = vmatpush1.bf16.msra.mxu0 0
      %891 = vmatprep.subr.bf16.mxu0 0
      %892 = vmatpush1.bf16.msra.mxu0 0
      %893 = vmatprep.subr.bf16.mxu0 0
      %894 = vmatpush1.bf16.msra.mxu0 0
      %895 = vmatprep.subr.bf16.mxu0 0
      %896 = vmatpush1.bf16.msra.mxu0 0
      %897 = vmatprep.subr.bf16.mxu0 0
      %898 = vmatpush1.bf16.msra.mxu0 0
      %899 = vmatprep.subr.bf16.mxu0 0
      %900 = vmatpush1.bf16.msra.mxu0 0
      %901 = vmatprep.subr.bf16.mxu0 0
      %902 = vmatpush1.bf16.msra.mxu0 0
      %903 = vmatprep.subr.bf16.mxu0 0
      %904 = vmatpush1.bf16.msra.mxu0 0
      %905 = vmatprep.subr.bf16.mxu0 0
      %906 = vmatpush1.bf16.msra.mxu0 0
      %907 = vmatprep.subr.bf16.mxu0 0
      %908 = vmatpush1.bf16.msra.mxu0 0
      %909 = vmatprep.subr.bf16.mxu0 0
      %910 = vmatpush1.bf16.msra.mxu0 0
      %911 = vmatprep.subr.bf16.mxu0 0
      %912 = vmatpush1.bf16.msra.mxu0 0
      %913 = vmatprep.subr.bf16.mxu0 0
      %914 = vmatpush1.bf16.msra.mxu0 0
      %915 = vmatprep.subr.bf16.mxu0 0
      %916 = vmatpush1.bf16.msra.mxu0 0
      %917 = vmatprep.subr.bf16.mxu0 0
      %918 = vmatpush1.bf16.msra.mxu0 0
      %919 = vmatprep.mubr.bf16.mxu0 0
      %920 = vmatmul.mubr.bf16.gmra.mrb[0].mxu0 %v836
      %v921 = vpop.f32.mrb[0].mxu0
      %v922 = vadd.f32 0.0, %v921
      %v923 = vpop.f32.mrb[0].mxu0
      %v924 = vpop.f32.mrb[0].mxu0
      %v925 = vadd.f32 0.0, %v924
      %v926 = vpop.f32.mrb[0].mxu0
      %927 = vmatprep.mubr.bf16.mxu0 0
      %928 = vmatmul.mubr.bf16.gmra.mrb[0].mxu0 %v839
      %v929 = vpop.f32.mrb[0].mxu0
      %v930 = vadd.f32 0.0, %v929
      %v931 = vpop.f32.mrb[0].mxu0
      %v932 = vpop.f32.mrb[0].mxu0
      %v933 = vadd.f32 0.0, %v932
      %v934 = vpop.f32.mrb[0].mxu0
      %935 = vmatprep.mubr.bf16.mxu0 0
      %936 = vmatmul.mubr.bf16.gmra.mrb[0].mxu0 %v842
      %v937 = vpop.f32.mrb[0].mxu0
      %v938 = vadd.f32 0.0, %v937
      %v939 = vpop.f32.mrb[0].mxu0
      %v940 = vpop.f32.mrb[0].mxu0
      %v941 = vadd.f32 0.0, %v940
      %v942 = vpop.f32.mrb[0].mxu0
      %943 = vmatprep.mubr.bf16.mxu0 0
      %944 = vmatmul.mubr.bf16.gmra.mrb[0].mxu0 %v845
      %v945 = vpop.f32.mrb[0].mxu0
      %v946 = vadd.f32 0.0, %v945
      %v947 = vpop.f32.mrb[0].mxu0
      %v948 = vpop.f32.mrb[0].mxu0
      %v949 = vadd.f32 0.0, %v948
      %v950 = vpop.f32.mrb[0].mxu0
      %951 = vmatprep.mubr.bf16.mxu0 0
      %952 = vmatmul.mubr.bf16.gmra.mrb[0].mxu0 %v848
      %v953 = vpop.f32.mrb[0].mxu0
      %v954 = vadd.f32 0.0, %v953
      %v955 = vpop.f32.mrb[0].mxu0
      %v956 = vpop.f32.mrb[0].mxu0
      %v957 = vadd.f32 0.0, %v956
      %v958 = vpop.f32.mrb[0].mxu0
      %959 = vmatprep.mubr.bf16.mxu0 0
      %960 = vmatmul.mubr.bf16.gmra.mrb[0].mxu0 %v851
      %v961 = vpop.f32.mrb[0].mxu0
      %v962 = vadd.f32 0.0, %v961
      %v963 = vpop.f32.mrb[0].mxu0
      %v964 = vpop.f32.mrb[0].mxu0
      %v965 = vadd.f32 0.0, %v964
      %v966 = vpop.f32.mrb[0].mxu0
      %967 = vmatprep.mubr.bf16.mxu0 0
      %968 = vmatmul.mubr.bf16.gmra.mrb[0].mxu0 %v854
      %v969 = vpop.f32.mrb[0].mxu0
      %v970 = vadd.f32 0.0, %v969
      %v971 = vpop.f32.mrb[0].mxu0
      %v972 = vpop.f32.mrb[0].mxu0
      %v973 = vadd.f32 0.0, %v972
      %v974 = vpop.f32.mrb[0].mxu0
      %975 = vmatprep.mubr.bf16.mxu0 0
      %976 = vmatmul.mubr.bf16.gmra.mrb[0].mxu0 %v857
      %v977 = vpop.f32.mrb[0].mxu0
      %v978 = vadd.f32 0.0, %v977
      %v979 = vpop.f32.mrb[0].mxu0
      %v980 = vpop.f32.mrb[0].mxu0
      %v981 = vadd.f32 0.0, %v980
      %v982 = vpop.f32.mrb[0].mxu0
      %983 = vmatprep.mubr.bf16.mxu0 0
      %984 = vmatmul.mubr.bf16.gmra.mrb[0].mxu0 %v860
      %v985 = vpop.f32.mrb[0].mxu0
      %v986 = vadd.f32 0.0, %v985
      %v987 = vpop.f32.mrb[0].mxu0
      %v988 = vpop.f32.mrb[0].mxu0
      %v989 = vadd.f32 0.0, %v988
      %v990 = vpop.f32.mrb[0].mxu0
      %991 = vmatprep.mubr.bf16.mxu0 0
      %992 = vmatmul.mubr.bf16.gmra.mrb[0].mxu0 %v863
      %v993 = vpop.f32.mrb[0].mxu0
      %v994 = vadd.f32 0.0, %v993
      %v995 = vpop.f32.mrb[0].mxu0
      %v996 = vpop.f32.mrb[0].mxu0
      %v997 = vadd.f32 0.0, %v996
      %v998 = vpop.f32.mrb[0].mxu0
      %999 = vmatprep.mubr.bf16.mxu0 0
      %1000 = vmatmul.mubr.bf16.gmra.mrb[0].mxu0 %v866
      %v1001 = vpop.f32.mrb[0].mxu0
      %v1002 = vadd.f32 0.0, %v1001
      %v1003 = vpop.f32.mrb[0].mxu0
      %v1004 = vpop.f32.mrb[0].mxu0
      %v1005 = vadd.f32 0.0, %v1004
      %v1006 = vpop.f32.mrb[0].mxu0
      %1007 = vmatprep.mubr.bf16.mxu0 0
      %1008 = vmatmul.mubr.bf16.gmra.mrb[0].mxu0 %v869
      %v1009 = vpop.f32.mrb[0].mxu0
      %v1010 = vadd.f32 0.0, %v1009
      %v1011 = vpop.f32.mrb[0].mxu0
      %v1012 = vpop.f32.mrb[0].mxu0
      %v1013 = vadd.f32 0.0, %v1012
      %v1014 = vpop.f32.mrb[0].mxu0
      %1015 = vmatprep.mubr.bf16.mxu0 0
      %1016 = vmatmul.mubr.bf16.gmra.mrb[0].mxu0 %v872
      %v1017 = vpop.f32.mrb[0].mxu0
      %v1018 = vadd.f32 0.0, %v1017
      %v1019 = vpop.f32.mrb[0].mxu0
      %v1020 = vpop.f32.mrb[0].mxu0
      %v1021 = vadd.f32 0.0, %v1020
      %v1022 = vpop.f32.mrb[0].mxu0
      %1023 = vmatprep.mubr.bf16.mxu0 0
      %1024 = vmatmul.mubr.bf16.gmra.mrb[0].mxu0 %v875
      %v1025 = vpop.f32.mrb[0].mxu0
      %v1026 = vadd.f32 0.0, %v1025
      %v1027 = vpop.f32.mrb[0].mxu0
      %v1028 = vpop.f32.mrb[0].mxu0
      %v1029 = vadd.f32 0.0, %v1028
      %v1030 = vpop.f32.mrb[0].mxu0
      %1031 = vmatprep.mubr.bf16.mxu0 0
      %1032 = vmatmul.mubr.bf16.gmra.mrb[0].mxu0 %v878
      %v1033 = vpop.f32.mrb[0].mxu0
      %v1034 = vadd.f32 0.0, %v1033
      %v1035 = vpop.f32.mrb[0].mxu0
      %v1036 = vpop.f32.mrb[0].mxu0
      %v1037 = vadd.f32 0.0, %v1036
      %v1038 = vpop.f32.mrb[0].mxu0
      %1039 = vmatprep.mubr.bf16.mxu0 0
      %1040 = vmatmul.mubr.bf16.gmra.mrb[0].mxu0 %v881
      %v1041 = vpop.f32.mrb[0].mxu0
      %v1042 = vadd.f32 0.0, %v1041
      %v1043 = vpop.f32.mrb[0].mxu0
      %v1044 = vpop.f32.mrb[0].mxu0
      %v1045 = vadd.f32 0.0, %v1044
      %v1046 = vpop.f32.mrb[0].mxu0
      %1047 = vdwg.mxu0
      %v1049 = vsel %vm674, %v768, 0
      %v1052 = vsel %vm674, %v769, 0
      %v1055 = vsel %vm674, %v770, 0
      %v1058 = vsel %vm674, %v771, 0
      %v1061 = vsel %vm674, %v772, 0
      %v1064 = vsel %vm674, %v773, 0
      %v1067 = vsel %vm674, %v774, 0
      %v1070 = vsel %vm674, %v775, 0
      %v1073 = vsel %vm674, %v776, 0
      %v1076 = vsel %vm674, %v777, 0
      %v1079 = vsel %vm674, %v778, 0
      %v1082 = vsel %vm674, %v779, 0
      %v1085 = vsel %vm674, %v780, 0
      %v1088 = vsel %vm674, %v781, 0
      %v1091 = vsel %vm674, %v782, 0
      %v1094 = vsel %vm674, %v783, 0
      %v1097 = vsel %vm883, %v784, 0
      %1099 = vmatprep.subr.bf16.mxu0 0
      %1100 = vmatpush1.bf16.msra.mxu0 %v1097
      %1101 = vmatprep.subr.bf16.mxu0 0
      %1102 = vmatpush1.bf16.msra.mxu0 0
      %1103 = vmatprep.subr.bf16.mxu0 0
      %1104 = vmatpush1.bf16.msra.mxu0 0
      %1105 = vmatprep.subr.bf16.mxu0 0
      %1106 = vmatpush1.bf16.msra.mxu0 0
      %1107 = vmatprep.subr.bf16.mxu0 0
      %1108 = vmatpush1.bf16.msra.mxu0 0
      %1109 = vmatprep.subr.bf16.mxu0 0
      %1110 = vmatpush1.bf16.msra.mxu0 0
      %1111 = vmatprep.subr.bf16.mxu0 0
      %1112 = vmatpush1.bf16.msra.mxu0 0
      %1113 = vmatprep.subr.bf16.mxu0 0
      %1114 = vmatpush1.bf16.msra.mxu0 0
      %1115 = vmatprep.subr.bf16.mxu0 0
      %1116 = vmatpush1.bf16.msra.mxu0 0
      %1117 = vmatprep.subr.bf16.mxu0 0
      %1118 = vmatpush1.bf16.msra.mxu0 0
      %1119 = vmatprep.subr.bf16.mxu0 0
      %1120 = vmatpush1.bf16.msra.mxu0 0
      %1121 = vmatprep.subr.bf16.mxu0 0
      %1122 = vmatpush1.bf16.msra.mxu0 0
      %1123 = vmatprep.subr.bf16.mxu0 0
      %1124 = vmatpush1.bf16.msra.mxu0 0
      %1125 = vmatprep.subr.bf16.mxu0 0
      %1126 = vmatpush1.bf16.msra.mxu0 0
      %1127 = vmatprep.subr.bf16.mxu0 0
      %1128 = vmatpush1.bf16.msra.mxu0 0
      %1129 = vmatprep.subr.bf16.mxu0 0
      %1130 = vmatpush1.bf16.msra.mxu0 0
      %1131 = vmatprep.mubr.bf16.mxu0 0
      %1132 = vmatmul.mubr.bf16.gmra.mrb[0].mxu0 %v1049
      %v1133 = vpop.f32.mrb[0].mxu0
      %v1134 = vadd.f32 %v922, %v1133
      %v1135 = vpop.f32.mrb[0].mxu0
      %v1136 = vpop.f32.mrb[0].mxu0
      %v1137 = vadd.f32 %v925, %v1136
      %v1138 = vpop.f32.mrb[0].mxu0
      %1139 = vmatprep.mubr.bf16.mxu0 0
      %1140 = vmatmul.mubr.bf16.gmra.mrb[0].mxu0 %v1052
      %v1141 = vpop.f32.mrb[0].mxu0
      %v1142 = vadd.f32 %v930, %v1141
      %v1143 = vpop.f32.mrb[0].mxu0
      %v1144 = vpop.f32.mrb[0].mxu0
      %v1145 = vadd.f32 %v933, %v1144
      %v1146 = vpop.f32.mrb[0].mxu0
      %1147 = vmatprep.mubr.bf16.mxu0 0
      %1148 = vmatmul.mubr.bf16.gmra.mrb[0].mxu0 %v1055
      %v1149 = vpop.f32.mrb[0].mxu0
      %v1150 = vadd.f32 %v938, %v1149
      %v1151 = vpop.f32.mrb[0].mxu0
      %v1152 = vpop.f32.mrb[0].mxu0
      %v1153 = vadd.f32 %v941, %v1152
      %v1154 = vpop.f32.mrb[0].mxu0
      %1155 = vmatprep.mubr.bf16.mxu0 0
      %1156 = vmatmul.mubr.bf16.gmra.mrb[0].mxu0 %v1058
      %v1157 = vpop.f32.mrb[0].mxu0
      %v1158 = vadd.f32 %v946, %v1157
      %v1159 = vpop.f32.mrb[0].mxu0
      %v1160 = vpop.f32.mrb[0].mxu0
      %v1161 = vadd.f32 %v949, %v1160
      %v1162 = vpop.f32.mrb[0].mxu0
      %1163 = vmatprep.mubr.bf16.mxu0 0
      %1164 = vmatmul.mubr.bf16.gmra.mrb[0].mxu0 %v1061
      %v1165 = vpop.f32.mrb[0].mxu0
      %v1166 = vadd.f32 %v954, %v1165
      %v1167 = vpop.f32.mrb[0].mxu0
      %v1168 = vpop.f32.mrb[0].mxu0
      %v1169 = vadd.f32 %v957, %v1168
      %v1170 = vpop.f32.mrb[0].mxu0
      %1171 = vmatprep.mubr.bf16.mxu0 0
      %1172 = vmatmul.mubr.bf16.gmra.mrb[0].mxu0 %v1064
      %v1173 = vpop.f32.mrb[0].mxu0
      %v1174 = vadd.f32 %v962, %v1173
      %v1175 = vpop.f32.mrb[0].mxu0
      %v1176 = vpop.f32.mrb[0].mxu0
      %v1177 = vadd.f32 %v965, %v1176
      %v1178 = vpop.f32.mrb[0].mxu0
      %1179 = vmatprep.mubr.bf16.mxu0 0
      %1180 = vmatmul.mubr.bf16.gmra.mrb[0].mxu0 %v1067
      %v1181 = vpop.f32.mrb[0].mxu0
      %v1182 = vadd.f32 %v970, %v1181
      %v1183 = vpop.f32.mrb[0].mxu0
      %v1184 = vpop.f32.mrb[0].mxu0
      %v1185 = vadd.f32 %v973, %v1184
      %v1186 = vpop.f32.mrb[0].mxu0
      %1187 = vmatprep.mubr.bf16.mxu0 0
      %1188 = vmatmul.mubr.bf16.gmra.mrb[0].mxu0 %v1070
      %v1189 = vpop.f32.mrb[0].mxu0
      %v1190 = vadd.f32 %v978, %v1189
      %v1191 = vpop.f32.mrb[0].mxu0
      %v1192 = vpop.f32.mrb[0].mxu0
      %v1193 = vadd.f32 %v981, %v1192
      %v1194 = vpop.f32.mrb[0].mxu0
      %1195 = vmatprep.mubr.bf16.mxu0 0
      %1196 = vmatmul.mubr.bf16.gmra.mrb[0].mxu0 %v1073
      %v1197 = vpop.f32.mrb[0].mxu0
      %v1198 = vadd.f32 %v986, %v1197
      %v1199 = vpop.f32.mrb[0].mxu0
      %v1200 = vpop.f32.mrb[0].mxu0
      %v1201 = vadd.f32 %v989, %v1200
      %v1202 = vpop.f32.mrb[0].mxu0
      %1203 = vmatprep.mubr.bf16.mxu0 0
      %1204 = vmatmul.mubr.bf16.gmra.mrb[0].mxu0 %v1076
      %v1205 = vpop.f32.mrb[0].mxu0
      %v1206 = vadd.f32 %v994, %v1205
      %v1207 = vpop.f32.mrb[0].mxu0
      %v1208 = vpop.f32.mrb[0].mxu0
      %v1209 = vadd.f32 %v997, %v1208
      %v1210 = vpop.f32.mrb[0].mxu0
      %1211 = vmatprep.mubr.bf16.mxu0 0
      %1212 = vmatmul.mubr.bf16.gmra.mrb[0].mxu0 %v1079
      %v1213 = vpop.f32.mrb[0].mxu0
      %v1214 = vadd.f32 %v1002, %v1213
      %v1215 = vpop.f32.mrb[0].mxu0
      %v1216 = vpop.f32.mrb[0].mxu0
      %v1217 = vadd.f32 %v1005, %v1216
      %v1218 = vpop.f32.mrb[0].mxu0
      %1219 = vmatprep.mubr.bf16.mxu0 0
      %1220 = vmatmul.mubr.bf16.gmra.mrb[0].mxu0 %v1082
      %v1221 = vpop.f32.mrb[0].mxu0
      %v1222 = vadd.f32 %v1010, %v1221
      %v1223 = vpop.f32.mrb[0].mxu0
      %v1224 = vpop.f32.mrb[0].mxu0
      %v1225 = vadd.f32 %v1013, %v1224
      %v1226 = vpop.f32.mrb[0].mxu0
      %1227 = vmatprep.mubr.bf16.mxu0 0
      %1228 = vmatmul.mubr.bf16.gmra.mrb[0].mxu0 %v1085
      %v1229 = vpop.f32.mrb[0].mxu0
      %v1230 = vadd.f32 %v1018, %v1229
      %v1231 = vpop.f32.mrb[0].mxu0
      %v1232 = vpop.f32.mrb[0].mxu0
      %v1233 = vadd.f32 %v1021, %v1232
      %v1234 = vpop.f32.mrb[0].mxu0
      %1235 = vmatprep.mubr.bf16.mxu0 0
      %1236 = vmatmul.mubr.bf16.gmra.mrb[0].mxu0 %v1088
      %v1237 = vpop.f32.mrb[0].mxu0
      %v1238 = vadd.f32 %v1026, %v1237
      %v1239 = vpop.f32.mrb[0].mxu0
      %v1240 = vpop.f32.mrb[0].mxu0
      %v1241 = vadd.f32 %v1029, %v1240
      %v1242 = vpop.f32.mrb[0].mxu0
      %1243 = vmatprep.mubr.bf16.mxu0 0
      %1244 = vmatmul.mubr.bf16.gmra.mrb[0].mxu0 %v1091
      %v1245 = vpop.f32.mrb[0].mxu0
      %v1246 = vadd.f32 %v1034, %v1245
      %v1247 = vpop.f32.mrb[0].mxu0
      %v1248 = vpop.f32.mrb[0].mxu0
      %v1249 = vadd.f32 %v1037, %v1248
      %v1250 = vpop.f32.mrb[0].mxu0
      %1251 = vmatprep.mubr.bf16.mxu0 0
      %1252 = vmatmul.mubr.bf16.gmra.mrb[0].mxu0 %v1094
      %v1253 = vpop.f32.mrb[0].mxu0
      %v1254 = vadd.f32 %v1042, %v1253
      %v1255 = vpop.f32.mrb[0].mxu0
      %v1256 = vpop.f32.mrb[0].mxu0
      %v1257 = vadd.f32 %v1045, %v1256
      %v1258 = vpop.f32.mrb[0].mxu0
      %1259 = vdwg.mxu0
      %v1260 = vld [vmem:[#allocation2 + $0x2] sm:$0xff]
      %v1261 = vld [vmem:[#allocation2 + $0xa] sm:$0xff]
      %v1262 = vld [vmem:[#allocation2 + $0x1a] sm:$0xff]
      %v1263 = vld [vmem:[#allocation2 + $0x22] sm:$0xff]
      %v1264 = vld [vmem:[#allocation2 + $0x32] sm:$0xff]
      %v1265 = vld [vmem:[#allocation2 + $0x3a] sm:$0xff]
      %v1266 = vld [vmem:[#allocation2 + $0x4a] sm:$0xff]
      %v1267 = vld [vmem:[#allocation2 + $0x52] sm:$0xff]
      %v1268 = vld [vmem:[#allocation2 + $0x62] sm:$0xff]
      %v1269 = vld [vmem:[#allocation2 + $0x6a] sm:$0xff]
      %v1270 = vld [vmem:[#allocation2 + $0x7a] sm:$0xff]
      %v1271 = vld [vmem:[#allocation2 + $0x82] sm:$0xff]
      %v1272 = vld [vmem:[#allocation2 + $0x92] sm:$0xff]
      %v1273 = vld [vmem:[#allocation2 + $0x9a] sm:$0xff]
      %v1274 = vld [vmem:[#allocation2 + $0xaa] sm:$0xff]
      %v1275 = vld [vmem:[#allocation2 + $0xb2] sm:$0xff]
      %v1276 = vld [vmem:[#allocation2 + $0xc2] sm:$0xff]
      %v1277 = vld [vmem:[#allocation2 + $0xca] sm:$0xff]
      %v1278 = vld [vmem:[#allocation2 + $0xda] sm:$0xff]
      %v1279 = vld [vmem:[#allocation2 + $0xe2] sm:$0xff]
      %v1280 = vld [vmem:[#allocation2 + $0xf2] sm:$0xff]
      %v1281 = vld [vmem:[#allocation2 + $0xfa] sm:$0xff]
      %v1282 = vld [vmem:[#allocation2 + $0x10a] sm:$0xff]
      %v1283 = vld [vmem:[#allocation2 + $0x112] sm:$0xff]
      %v1284 = vld [vmem:[#allocation2 + $0x122] sm:$0xff]
      %v1285 = vld [vmem:[#allocation2 + $0x12a] sm:$0xff]
      %v1286 = vld [vmem:[#allocation2 + $0x13a] sm:$0xff]
      %v1287 = vld [vmem:[#allocation2 + $0x142] sm:$0xff]
      %v1288 = vld [vmem:[#allocation2 + $0x152] sm:$0xff]
      %v1289 = vld [vmem:[#allocation2 + $0x15a] sm:$0xff]
      %v1290 = vld [vmem:[#allocation2 + $0x16a] sm:$0xff]
      %v1291 = vld [vmem:[#allocation2 + $0x172] sm:$0xff]
      %v1292 = vpack.c.bf16 %v1261, %v1260
      %v1293 = vpack.c.bf16 %v1263, %v1262
      %v1294 = vpack.c.bf16 %v1265, %v1264
      %v1295 = vpack.c.bf16 %v1267, %v1266
      %v1296 = vpack.c.bf16 %v1269, %v1268
      %v1297 = vpack.c.bf16 %v1271, %v1270
      %v1298 = vpack.c.bf16 %v1273, %v1272
      %v1299 = vpack.c.bf16 %v1275, %v1274
      %v1300 = vpack.c.bf16 %v1277, %v1276
      %v1301 = vpack.c.bf16 %v1279, %v1278
      %v1302 = vpack.c.bf16 %v1281, %v1280
      %v1303 = vpack.c.bf16 %v1283, %v1282
      %v1304 = vpack.c.bf16 %v1285, %v1284
      %v1305 = vpack.c.bf16 %v1287, %v1286
      %v1306 = vpack.c.bf16 %v1289, %v1288
      %v1307 = vpack.c.bf16 %v1291, %v1290
      %s1308 = scalar_lea.vmem %s5, 4
      %v1309 = vld [vmem:[%s1308] sm:$0x3]
      %v1311 = vsel %vm674, %v1292, 0
      %v1314 = vsel %vm674, %v1293, 0
      %v1317 = vsel %vm674, %v1294, 0
      %v1320 = vsel %vm674, %v1295, 0
      %v1323 = vsel %vm674, %v1296, 0
      %v1326 = vsel %vm674, %v1297, 0
      %v1329 = vsel %vm674, %v1298, 0
      %v1332 = vsel %vm674, %v1299, 0
      %v1335 = vsel %vm674, %v1300, 0
      %v1338 = vsel %vm674, %v1301, 0
      %v1341 = vsel %vm674, %v1302, 0
      %v1344 = vsel %vm674, %v1303, 0
      %v1347 = vsel %vm674, %v1304, 0
      %v1350 = vsel %vm674, %v1305, 0
      %v1353 = vsel %vm674, %v1306, 0
      %v1356 = vsel %vm674, %v1307, 0
      %v1359 = vsel %vm883, %v1309, 0
      %1361 = vmatprep.subr.bf16.mxu0 0
      %1362 = vmatpush1.bf16.msra.mxu0 %v1359
      %1363 = vmatprep.subr.bf16.mxu0 0
      %1364 = vmatpush1.bf16.msra.mxu0 0
      %1365 = vmatprep.subr.bf16.mxu0 0
      %1366 = vmatpush1.bf16.msra.mxu0 0
      %1367 = vmatprep.subr.bf16.mxu0 0
      %1368 = vmatpush1.bf16.msra.mxu0 0
      %1369 = vmatprep.subr.bf16.mxu0 0
      %1370 = vmatpush1.bf16.msra.mxu0 0
      %1371 = vmatprep.subr.bf16.mxu0 0
      %1372 = vmatpush1.bf16.msra.mxu0 0
      %1373 = vmatprep.subr.bf16.mxu0 0
      %1374 = vmatpush1.bf16.msra.mxu0 0
      %1375 = vmatprep.subr.bf16.mxu0 0
      %1376 = vmatpush1.bf16.msra.mxu0 0
      %1377 = vmatprep.subr.bf16.mxu0 0
      %1378 = vmatpush1.bf16.msra.mxu0 0
      %1379 = vmatprep.subr.bf16.mxu0 0
      %1380 = vmatpush1.bf16.msra.mxu0 0
      %1381 = vmatprep.subr.bf16.mxu0 0
      %1382 = vmatpush1.bf16.msra.mxu0 0
      %1383 = vmatprep.subr.bf16.mxu0 0
      %1384 = vmatpush1.bf16.msra.mxu0 0
      %1385 = vmatprep.subr.bf16.mxu0 0
      %1386 = vmatpush1.bf16.msra.mxu0 0
      %1387 = vmatprep.subr.bf16.mxu0 0
      %1388 = vmatpush1.bf16.msra.mxu0 0
      %1389 = vmatprep.subr.bf16.mxu0 0
      %1390 = vmatpush1.bf16.msra.mxu0 0
      %1391 = vmatprep.subr.bf16.mxu0 0
      %1392 = vmatpush1.bf16.msra.mxu0 0
      %1393 = vmatprep.mubr.bf16.mxu0 0
      %1394 = vmatmul.mubr.bf16.gmra.mrb[0].mxu0 %v1311
      %v1395 = vpop.f32.mrb[0].mxu0
      %v1396 = vadd.f32 0.0, %v1395
      %v1397 = vpop.f32.mrb[0].mxu0
      %v1398 = vpop.f32.mrb[0].mxu0
      %v1399 = vadd.f32 0.0, %v1398
      %v1400 = vpop.f32.mrb[0].mxu0
      %1401 = vmatprep.mubr.bf16.mxu0 0
      %1402 = vmatmul.mubr.bf16.gmra.mrb[0].mxu0 %v1314
      %v1403 = vpop.f32.mrb[0].mxu0
      %v1404 = vadd.f32 0.0, %v1403
      %v1405 = vpop.f32.mrb[0].mxu0
      %v1406 = vpop.f32.mrb[0].mxu0
      %v1407 = vadd.f32 0.0, %v1406
      %v1408 = vpop.f32.mrb[0].mxu0
      %1409 = vmatprep.mubr.bf16.mxu0 0
      %1410 = vmatmul.mubr.bf16.gmra.mrb[0].mxu0 %v1317
      %v1411 = vpop.f32.mrb[0].mxu0
      %v1412 = vadd.f32 0.0, %v1411
      %v1413 = vpop.f32.mrb[0].mxu0
      %v1414 = vpop.f32.mrb[0].mxu0
      %v1415 = vadd.f32 0.0, %v1414
      %v1416 = vpop.f32.mrb[0].mxu0
      %1417 = vmatprep.mubr.bf16.mxu0 0
      %1418 = vmatmul.mubr.bf16.gmra.mrb[0].mxu0 %v1320
      %v1419 = vpop.f32.mrb[0].mxu0
      %v1420 = vadd.f32 0.0, %v1419
      %v1421 = vpop.f32.mrb[0].mxu0
      %v1422 = vpop.f32.mrb[0].mxu0
      %v1423 = vadd.f32 0.0, %v1422
      %v1424 = vpop.f32.mrb[0].mxu0
      %1425 = vmatprep.mubr.bf16.mxu0 0
      %1426 = vmatmul.mubr.bf16.gmra.mrb[0].mxu0 %v1323
      %v1427 = vpop.f32.mrb[0].mxu0
      %v1428 = vadd.f32 0.0, %v1427
      %v1429 = vpop.f32.mrb[0].mxu0
      %v1430 = vpop.f32.mrb[0].mxu0
      %v1431 = vadd.f32 0.0, %v1430
      %v1432 = vpop.f32.mrb[0].mxu0
      %1433 = vmatprep.mubr.bf16.mxu0 0
      %1434 = vmatmul.mubr.bf16.gmra.mrb[0].mxu0 %v1326
      %v1435 = vpop.f32.mrb[0].mxu0
      %v1436 = vadd.f32 0.0, %v1435
      %v1437 = vpop.f32.mrb[0].mxu0
      %v1438 = vpop.f32.mrb[0].mxu0
      %v1439 = vadd.f32 0.0, %v1438
      %v1440 = vpop.f32.mrb[0].mxu0
      %1441 = vmatprep.mubr.bf16.mxu0 0
      %1442 = vmatmul.mubr.bf16.gmra.mrb[0].mxu0 %v1329
      %v1443 = vpop.f32.mrb[0].mxu0
      %v1444 = vadd.f32 0.0, %v1443
      %v1445 = vpop.f32.mrb[0].mxu0
      %v1446 = vpop.f32.mrb[0].mxu0
      %v1447 = vadd.f32 0.0, %v1446
      %v1448 = vpop.f32.mrb[0].mxu0
      %1449 = vmatprep.mubr.bf16.mxu0 0
      %1450 = vmatmul.mubr.bf16.gmra.mrb[0].mxu0 %v1332
      %v1451 = vpop.f32.mrb[0].mxu0
      %v1452 = vadd.f32 0.0, %v1451
      %v1453 = vpop.f32.mrb[0].mxu0
      %v1454 = vpop.f32.mrb[0].mxu0
      %v1455 = vadd.f32 0.0, %v1454
      %v1456 = vpop.f32.mrb[0].mxu0
      %1457 = vmatprep.mubr.bf16.mxu0 0
      %1458 = vmatmul.mubr.bf16.gmra.mrb[0].mxu0 %v1335
      %v1459 = vpop.f32.mrb[0].mxu0
      %v1460 = vadd.f32 0.0, %v1459
      %v1461 = vpop.f32.mrb[0].mxu0
      %v1462 = vpop.f32.mrb[0].mxu0
      %v1463 = vadd.f32 0.0, %v1462
      %v1464 = vpop.f32.mrb[0].mxu0
      %1465 = vmatprep.mubr.bf16.mxu0 0
      %1466 = vmatmul.mubr.bf16.gmra.mrb[0].mxu0 %v1338
      %v1467 = vpop.f32.mrb[0].mxu0
      %v1468 = vadd.f32 0.0, %v1467
      %v1469 = vpop.f32.mrb[0].mxu0
      %v1470 = vpop.f32.mrb[0].mxu0
      %v1471 = vadd.f32 0.0, %v1470
      %v1472 = vpop.f32.mrb[0].mxu0
      %1473 = vmatprep.mubr.bf16.mxu0 0
      %1474 = vmatmul.mubr.bf16.gmra.mrb[0].mxu0 %v1341
      %v1475 = vpop.f32.mrb[0].mxu0
      %v1476 = vadd.f32 0.0, %v1475
      %v1477 = vpop.f32.mrb[0].mxu0
      %v1478 = vpop.f32.mrb[0].mxu0
      %v1479 = vadd.f32 0.0, %v1478
      %v1480 = vpop.f32.mrb[0].mxu0
      %1481 = vmatprep.mubr.bf16.mxu0 0
      %1482 = vmatmul.mubr.bf16.gmra.mrb[0].mxu0 %v1344
      %v1483 = vpop.f32.mrb[0].mxu0
      %v1484 = vadd.f32 0.0, %v1483
      %v1485 = vpop.f32.mrb[0].mxu0
      %v1486 = vpop.f32.mrb[0].mxu0
      %v1487 = vadd.f32 0.0, %v1486
      %v1488 = vpop.f32.mrb[0].mxu0
      %1489 = vmatprep.mubr.bf16.mxu0 0
      %1490 = vmatmul.mubr.bf16.gmra.mrb[0].mxu0 %v1347
      %v1491 = vpop.f32.mrb[0].mxu0
      %v1492 = vadd.f32 0.0, %v1491
      %v1493 = vpop.f32.mrb[0].mxu0
      %v1494 = vpop.f32.mrb[0].mxu0
      %v1495 = vadd.f32 0.0, %v1494
      %v1496 = vpop.f32.mrb[0].mxu0
      %1497 = vmatprep.mubr.bf16.mxu0 0
      %1498 = vmatmul.mubr.bf16.gmra.mrb[0].mxu0 %v1350
      %v1499 = vpop.f32.mrb[0].mxu0
      %v1500 = vadd.f32 0.0, %v1499
      %v1501 = vpop.f32.mrb[0].mxu0
      %v1502 = vpop.f32.mrb[0].mxu0
      %v1503 = vadd.f32 0.0, %v1502
      %v1504 = vpop.f32.mrb[0].mxu0
      %1505 = vmatprep.mubr.bf16.mxu0 0
      %1506 = vmatmul.mubr.bf16.gmra.mrb[0].mxu0 %v1353
      %v1507 = vpop.f32.mrb[0].mxu0
      %v1508 = vadd.f32 0.0, %v1507
      %v1509 = vpop.f32.mrb[0].mxu0
      %v1510 = vpop.f32.mrb[0].mxu0
      %v1511 = vadd.f32 0.0, %v1510
      %v1512 = vpop.f32.mrb[0].mxu0
      %1513 = vmatprep.mubr.bf16.mxu0 0
      %1514 = vmatmul.mubr.bf16.gmra.mrb[0].mxu0 %v1356
      %v1515 = vpop.f32.mrb[0].mxu0
      %v1516 = vadd.f32 0.0, %v1515
      %v1517 = vpop.f32.mrb[0].mxu0
      %v1518 = vpop.f32.mrb[0].mxu0
      %v1519 = vadd.f32 0.0, %v1518
      %v1520 = vpop.f32.mrb[0].mxu0
      %1521 = vdwg.mxu0
      %v1522 = vadd.f32 %v1134, %v1396
      %v1523 = vadd.f32 %v1137, %v1399
      %v1524 = vadd.f32 %v1142, %v1404
      %v1525 = vadd.f32 %v1145, %v1407
      %v1526 = vadd.f32 %v1150, %v1412
      %v1527 = vadd.f32 %v1153, %v1415
      %v1528 = vadd.f32 %v1158, %v1420
      %v1529 = vadd.f32 %v1161, %v1423
      %v1530 = vadd.f32 %v1166, %v1428
      %v1531 = vadd.f32 %v1169, %v1431
      %v1532 = vadd.f32 %v1174, %v1436
      %v1533 = vadd.f32 %v1177, %v1439
      %v1534 = vadd.f32 %v1182, %v1444
      %v1535 = vadd.f32 %v1185, %v1447
      %v1536 = vadd.f32 %v1190, %v1452
      %v1537 = vadd.f32 %v1193, %v1455
      %v1538 = vadd.f32 %v1198, %v1460
      %v1539 = vadd.f32 %v1201, %v1463
      %v1540 = vadd.f32 %v1206, %v1468
      %v1541 = vadd.f32 %v1209, %v1471
      %v1542 = vadd.f32 %v1214, %v1476
      %v1543 = vadd.f32 %v1217, %v1479
      %v1544 = vadd.f32 %v1222, %v1484
      %v1545 = vadd.f32 %v1225, %v1487
      %v1546 = vadd.f32 %v1230, %v1492
      %v1547 = vadd.f32 %v1233, %v1495
      %v1548 = vadd.f32 %v1238, %v1500
      %v1549 = vadd.f32 %v1241, %v1503
      %v1550 = vadd.f32 %v1246, %v1508
      %v1551 = vadd.f32 %v1249, %v1511
      %v1552 = vadd.f32 %v1254, %v1516
      %v1553 = vadd.f32 %v1257, %v1519
      %v1554 = vld [vmem:[%s673] sm:$0xff]
      %v1555 = vld [vmem:[%s673 + $0x8] sm:$0xff]
      %v1556 = vld [vmem:[%s673 + $0x18] sm:$0xff]
      %v1557 = vld [vmem:[%s673 + $0x20] sm:$0xff]
      %v1558 = vld [vmem:[%s673 + $0x30] sm:$0xff]
      %v1559 = vld [vmem:[%s673 + $0x38] sm:$0xff]
      %v1560 = vld [vmem:[%s673 + $0x48] sm:$0xff]
      %v1561 = vld [vmem:[%s673 + $0x50] sm:$0xff]
      %v1562 = vld [vmem:[%s673 + $0x60] sm:$0xff]
      %v1563 = vld [vmem:[%s673 + $0x68] sm:$0xff]
      %v1564 = vld [vmem:[%s673 + $0x78] sm:$0xff]
      %v1565 = vld [vmem:[%s673 + $0x80] sm:$0xff]
      %v1566 = vld [vmem:[%s673 + $0x90] sm:$0xff]
      %v1567 = vld [vmem:[%s673 + $0x98] sm:$0xff]
      %v1568 = vld [vmem:[%s673 + $0xa8] sm:$0xff]
      %v1569 = vld [vmem:[%s673 + $0xb0] sm:$0xff]
      %v1570 = vld [vmem:[%s673 + $0xc0] sm:$0xff]
      %v1571 = vld [vmem:[%s673 + $0xc8] sm:$0xff]
      %v1572 = vld [vmem:[%s673 + $0xd8] sm:$0xff]
      %v1573 = vld [vmem:[%s673 + $0xe0] sm:$0xff]
      %v1574 = vld [vmem:[%s673 + $0xf0] sm:$0xff]
      %v1575 = vld [vmem:[%s673 + $0xf8] sm:$0xff]
      %v1576 = vld [vmem:[%s673 + $0x108] sm:$0xff]
      %v1577 = vld [vmem:[%s673 + $0x110] sm:$0xff]
      %v1578 = vld [vmem:[%s673 + $0x120] sm:$0xff]
      %v1579 = vld [vmem:[%s673 + $0x128] sm:$0xff]
      %v1580 = vld [vmem:[%s673 + $0x138] sm:$0xff]
      %v1581 = vld [vmem:[%s673 + $0x140] sm:$0xff]
      %v1582 = vld [vmem:[%s673 + $0x150] sm:$0xff]
      %v1583 = vld [vmem:[%s673 + $0x158] sm:$0xff]
      %v1584 = vld [vmem:[%s673 + $0x168] sm:$0xff]
      %v1585 = vld [vmem:[%s673 + $0x170] sm:$0xff]
      %v1586 = vpack.c.bf16 %v1555, %v1554
      %v1587 = vpack.c.bf16 %v1557, %v1556
      %v1588 = vpack.c.bf16 %v1559, %v1558
      %v1589 = vpack.c.bf16 %v1561, %v1560
      %v1590 = vpack.c.bf16 %v1563, %v1562
      %v1591 = vpack.c.bf16 %v1565, %v1564
      %v1592 = vpack.c.bf16 %v1567, %v1566
      %v1593 = vpack.c.bf16 %v1569, %v1568
      %v1594 = vpack.c.bf16 %v1571, %v1570
      %v1595 = vpack.c.bf16 %v1573, %v1572
      %v1596 = vpack.c.bf16 %v1575, %v1574
      %v1597 = vpack.c.bf16 %v1577, %v1576
      %v1598 = vpack.c.bf16 %v1579, %v1578
      %v1599 = vpack.c.bf16 %v1581, %v1580
      %v1600 = vpack.c.bf16 %v1583, %v1582
      %v1601 = vpack.c.bf16 %v1585, %v1584
      %s1602 = scalar_lea.vmem %s5, 6
      %v1603 = vld [vmem:[%s1602] sm:$0x3]
      %v1605 = vsel %vm674, %v1586, 0
      %v1608 = vsel %vm674, %v1587, 0
      %v1611 = vsel %vm674, %v1588, 0
      %v1614 = vsel %vm674, %v1589, 0
      %v1617 = vsel %vm674, %v1590, 0
      %v1620 = vsel %vm674, %v1591, 0
      %v1623 = vsel %vm674, %v1592, 0
      %v1626 = vsel %vm674, %v1593, 0
      %v1629 = vsel %vm674, %v1594, 0
      %v1632 = vsel %vm674, %v1595, 0
      %v1635 = vsel %vm674, %v1596, 0
      %v1638 = vsel %vm674, %v1597, 0
      %v1641 = vsel %vm674, %v1598, 0
      %v1644 = vsel %vm674, %v1599, 0
      %v1647 = vsel %vm674, %v1600, 0
      %v1650 = vsel %vm674, %v1601, 0
      %v1653 = vsel %vm883, %v1603, 0
      %1655 = vmatprep.subr.bf16.mxu0 0
      %1656 = vmatpush1.bf16.msra.mxu0 %v1653
      %1657 = vmatprep.subr.bf16.mxu0 0
      %1658 = vmatpush1.bf16.msra.mxu0 0
      %1659 = vmatprep.subr.bf16.mxu0 0
      %1660 = vmatpush1.bf16.msra.mxu0 0
      %1661 = vmatprep.subr.bf16.mxu0 0
      %1662 = vmatpush1.bf16.msra.mxu0 0
      %1663 = vmatprep.subr.bf16.mxu0 0
      %1664 = vmatpush1.bf16.msra.mxu0 0
      %1665 = vmatprep.subr.bf16.mxu0 0
      %1666 = vmatpush1.bf16.msra.mxu0 0
      %1667 = vmatprep.subr.bf16.mxu0 0
      %1668 = vmatpush1.bf16.msra.mxu0 0
      %1669 = vmatprep.subr.bf16.mxu0 0
      %1670 = vmatpush1.bf16.msra.mxu0 0
      %1671 = vmatprep.subr.bf16.mxu0 0
      %1672 = vmatpush1.bf16.msra.mxu0 0
      %1673 = vmatprep.subr.bf16.mxu0 0
      %1674 = vmatpush1.bf16.msra.mxu0 0
      %1675 = vmatprep.subr.bf16.mxu0 0
      %1676 = vmatpush1.bf16.msra.mxu0 0
      %1677 = vmatprep.subr.bf16.mxu0 0
      %1678 = vmatpush1.bf16.msra.mxu0 0
      %1679 = vmatprep.subr.bf16.mxu0 0
      %1680 = vmatpush1.bf16.msra.mxu0 0
      %1681 = vmatprep.subr.bf16.mxu0 0
      %1682 = vmatpush1.bf16.msra.mxu0 0
      %1683 = vmatprep.subr.bf16.mxu0 0
      %1684 = vmatpush1.bf16.msra.mxu0 0
      %1685 = vmatprep.subr.bf16.mxu0 0
      %1686 = vmatpush1.bf16.msra.mxu0 0
      %1687 = vmatprep.mubr.bf16.mxu0 0
      %1688 = vmatmul.mubr.bf16.gmra.mrb[0].mxu0 %v1605
      %v1689 = vpop.f32.mrb[0].mxu0
      %v1690 = vadd.f32 0.0, %v1689
      %v1691 = vpop.f32.mrb[0].mxu0
      %v1692 = vpop.f32.mrb[0].mxu0
      %v1693 = vadd.f32 0.0, %v1692
      %v1694 = vpop.f32.mrb[0].mxu0
      %1695 = vmatprep.mubr.bf16.mxu0 0
      %1696 = vmatmul.mubr.bf16.gmra.mrb[0].mxu0 %v1608
      %v1697 = vpop.f32.mrb[0].mxu0
      %v1698 = vadd.f32 0.0, %v1697
      %v1699 = vpop.f32.mrb[0].mxu0
      %v1700 = vpop.f32.mrb[0].mxu0
      %v1701 = vadd.f32 0.0, %v1700
      %v1702 = vpop.f32.mrb[0].mxu0
      %1703 = vmatprep.mubr.bf16.mxu0 0
      %1704 = vmatmul.mubr.bf16.gmra.mrb[0].mxu0 %v1611
      %v1705 = vpop.f32.mrb[0].mxu0
      %v1706 = vadd.f32 0.0, %v1705
      %v1707 = vpop.f32.mrb[0].mxu0
      %v1708 = vpop.f32.mrb[0].mxu0
      %v1709 = vadd.f32 0.0, %v1708
      %v1710 = vpop.f32.mrb[0].mxu0
      %1711 = vmatprep.mubr.bf16.mxu0 0
      %1712 = vmatmul.mubr.bf16.gmra.mrb[0].mxu0 %v1614
      %v1713 = vpop.f32.mrb[0].mxu0
      %v1714 = vadd.f32 0.0, %v1713
      %v1715 = vpop.f32.mrb[0].mxu0
      %v1716 = vpop.f32.mrb[0].mxu0
      %v1717 = vadd.f32 0.0, %v1716
      %v1718 = vpop.f32.mrb[0].mxu0
      %1719 = vmatprep.mubr.bf16.mxu0 0
      %1720 = vmatmul.mubr.bf16.gmra.mrb[0].mxu0 %v1617
      %v1721 = vpop.f32.mrb[0].mxu0
      %v1722 = vadd.f32 0.0, %v1721
      %v1723 = vpop.f32.mrb[0].mxu0
      %v1724 = vpop.f32.mrb[0].mxu0
      %v1725 = vadd.f32 0.0, %v1724
      %v1726 = vpop.f32.mrb[0].mxu0
      %1727 = vmatprep.mubr.bf16.mxu0 0
      %1728 = vmatmul.mubr.bf16.gmra.mrb[0].mxu0 %v1620
      %v1729 = vpop.f32.mrb[0].mxu0
      %v1730 = vadd.f32 0.0, %v1729
      %v1731 = vpop.f32.mrb[0].mxu0
      %v1732 = vpop.f32.mrb[0].mxu0
      %v1733 = vadd.f32 0.0, %v1732
      %v1734 = vpop.f32.mrb[0].mxu0
      %1735 = vmatprep.mubr.bf16.mxu0 0
      %1736 = vmatmul.mubr.bf16.gmra.mrb[0].mxu0 %v1623
      %v1737 = vpop.f32.mrb[0].mxu0
      %v1738 = vadd.f32 0.0, %v1737
      %v1739 = vpop.f32.mrb[0].mxu0
      %v1740 = vpop.f32.mrb[0].mxu0
      %v1741 = vadd.f32 0.0, %v1740
      %v1742 = vpop.f32.mrb[0].mxu0
      %1743 = vmatprep.mubr.bf16.mxu0 0
      %1744 = vmatmul.mubr.bf16.gmra.mrb[0].mxu0 %v1626
      %v1745 = vpop.f32.mrb[0].mxu0
      %v1746 = vadd.f32 0.0, %v1745
      %v1747 = vpop.f32.mrb[0].mxu0
      %v1748 = vpop.f32.mrb[0].mxu0
      %v1749 = vadd.f32 0.0, %v1748
      %v1750 = vpop.f32.mrb[0].mxu0
      %1751 = vmatprep.mubr.bf16.mxu0 0
      %1752 = vmatmul.mubr.bf16.gmra.mrb[0].mxu0 %v1629
      %v1753 = vpop.f32.mrb[0].mxu0
      %v1754 = vadd.f32 0.0, %v1753
      %v1755 = vpop.f32.mrb[0].mxu0
      %v1756 = vpop.f32.mrb[0].mxu0
      %v1757 = vadd.f32 0.0, %v1756
      %v1758 = vpop.f32.mrb[0].mxu0
      %1759 = vmatprep.mubr.bf16.mxu0 0
      %1760 = vmatmul.mubr.bf16.gmra.mrb[0].mxu0 %v1632
      %v1761 = vpop.f32.mrb[0].mxu0
      %v1762 = vadd.f32 0.0, %v1761
      %v1763 = vpop.f32.mrb[0].mxu0
      %v1764 = vpop.f32.mrb[0].mxu0
      %v1765 = vadd.f32 0.0, %v1764
      %v1766 = vpop.f32.mrb[0].mxu0
      %1767 = vmatprep.mubr.bf16.mxu0 0
      %1768 = vmatmul.mubr.bf16.gmra.mrb[0].mxu0 %v1635
      %v1769 = vpop.f32.mrb[0].mxu0
      %v1770 = vadd.f32 0.0, %v1769
      %v1771 = vpop.f32.mrb[0].mxu0
      %v1772 = vpop.f32.mrb[0].mxu0
      %v1773 = vadd.f32 0.0, %v1772
      %v1774 = vpop.f32.mrb[0].mxu0
      %1775 = vmatprep.mubr.bf16.mxu0 0
      %1776 = vmatmul.mubr.bf16.gmra.mrb[0].mxu0 %v1638
      %v1777 = vpop.f32.mrb[0].mxu0
      %v1778 = vadd.f32 0.0, %v1777
      %v1779 = vpop.f32.mrb[0].mxu0
      %v1780 = vpop.f32.mrb[0].mxu0
      %v1781 = vadd.f32 0.0, %v1780
      %v1782 = vpop.f32.mrb[0].mxu0
      %1783 = vmatprep.mubr.bf16.mxu0 0
      %1784 = vmatmul.mubr.bf16.gmra.mrb[0].mxu0 %v1641
      %v1785 = vpop.f32.mrb[0].mxu0
      %v1786 = vadd.f32 0.0, %v1785
      %v1787 = vpop.f32.mrb[0].mxu0
      %v1788 = vpop.f32.mrb[0].mxu0
      %v1789 = vadd.f32 0.0, %v1788
      %v1790 = vpop.f32.mrb[0].mxu0
      %1791 = vmatprep.mubr.bf16.mxu0 0
      %1792 = vmatmul.mubr.bf16.gmra.mrb[0].mxu0 %v1644
      %v1793 = vpop.f32.mrb[0].mxu0
      %v1794 = vadd.f32 0.0, %v1793
      %v1795 = vpop.f32.mrb[0].mxu0
      %v1796 = vpop.f32.mrb[0].mxu0
      %v1797 = vadd.f32 0.0, %v1796
      %v1798 = vpop.f32.mrb[0].mxu0
      %1799 = vmatprep.mubr.bf16.mxu0 0
      %1800 = vmatmul.mubr.bf16.gmra.mrb[0].mxu0 %v1647
      %v1801 = vpop.f32.mrb[0].mxu0
      %v1802 = vadd.f32 0.0, %v1801
      %v1803 = vpop.f32.mrb[0].mxu0
      %v1804 = vpop.f32.mrb[0].mxu0
      %v1805 = vadd.f32 0.0, %v1804
      %v1806 = vpop.f32.mrb[0].mxu0
      %1807 = vmatprep.mubr.bf16.mxu0 0
      %1808 = vmatmul.mubr.bf16.gmra.mrb[0].mxu0 %v1650
      %v1809 = vpop.f32.mrb[0].mxu0
      %v1810 = vadd.f32 0.0, %v1809
      %v1811 = vpop.f32.mrb[0].mxu0
      %v1812 = vpop.f32.mrb[0].mxu0
      %v1813 = vadd.f32 0.0, %v1812
      %v1814 = vpop.f32.mrb[0].mxu0
      %1815 = vdwg.mxu0
      %v1816 = vadd.f32 %v1522, %v1690
      %v1817 = vadd.f32 %v1523, %v1693
      %v1818 = vadd.f32 %v1524, %v1698
      %v1819 = vadd.f32 %v1525, %v1701
      %v1820 = vadd.f32 %v1526, %v1706
      %v1821 = vadd.f32 %v1527, %v1709
      %v1822 = vadd.f32 %v1528, %v1714
      %v1823 = vadd.f32 %v1529, %v1717
      %v1824 = vadd.f32 %v1530, %v1722
      %v1825 = vadd.f32 %v1531, %v1725
      %v1826 = vadd.f32 %v1532, %v1730
      %v1827 = vadd.f32 %v1533, %v1733
      %v1828 = vadd.f32 %v1534, %v1738
      %v1829 = vadd.f32 %v1535, %v1741
      %v1830 = vadd.f32 %v1536, %v1746
      %v1831 = vadd.f32 %v1537, %v1749
      %v1832 = vadd.f32 %v1538, %v1754
      %v1833 = vadd.f32 %v1539, %v1757
      %v1834 = vadd.f32 %v1540, %v1762
      %v1835 = vadd.f32 %v1541, %v1765
      %v1836 = vadd.f32 %v1542, %v1770
      %v1837 = vadd.f32 %v1543, %v1773
      %v1838 = vadd.f32 %v1544, %v1778
      %v1839 = vadd.f32 %v1545, %v1781
      %v1840 = vadd.f32 %v1546, %v1786
      %v1841 = vadd.f32 %v1547, %v1789
      %v1842 = vadd.f32 %v1548, %v1794
      %v1843 = vadd.f32 %v1549, %v1797
      %v1844 = vadd.f32 %v1550, %v1802
      %v1845 = vadd.f32 %v1551, %v1805
      %v1846 = vadd.f32 %v1552, %v1810
      %v1847 = vadd.f32 %v1553, %v1813
      %v1848 = vld [vmem:[%s673 + $0x1] sm:$0xff]
      %v1849 = vld [vmem:[%s673 + $0x9] sm:$0xff]
      %v1850 = vld [vmem:[%s673 + $0x19] sm:$0xff]
      %v1851 = vld [vmem:[%s673 + $0x21] sm:$0xff]
      %v1852 = vld [vmem:[%s673 + $0x31] sm:$0xff]
      %v1853 = vld [vmem:[%s673 + $0x39] sm:$0xff]
      %v1854 = vld [vmem:[%s673 + $0x49] sm:$0xff]
      %v1855 = vld [vmem:[%s673 + $0x51] sm:$0xff]
      %v1856 = vld [vmem:[%s673 + $0x61] sm:$0xff]
      %v1857 = vld [vmem:[%s673 + $0x69] sm:$0xff]
      %v1858 = vld [vmem:[%s673 + $0x79] sm:$0xff]
      %v1859 = vld [vmem:[%s673 + $0x81] sm:$0xff]
      %v1860 = vld [vmem:[%s673 + $0x91] sm:$0xff]
      %v1861 = vld [vmem:[%s673 + $0x99] sm:$0xff]
      %v1862 = vld [vmem:[%s673 + $0xa9] sm:$0xff]
      %v1863 = vld [vmem:[%s673 + $0xb1] sm:$0xff]
      %v1864 = vld [vmem:[%s673 + $0xc1] sm:$0xff]
      %v1865 = vld [vmem:[%s673 + $0xc9] sm:$0xff]
      %v1866 = vld [vmem:[%s673 + $0xd9] sm:$0xff]
      %v1867 = vld [vmem:[%s673 + $0xe1] sm:$0xff]
      %v1868 = vld [vmem:[%s673 + $0xf1] sm:$0xff]
      %v1869 = vld [vmem:[%s673 + $0xf9] sm:$0xff]
      %v1870 = vld [vmem:[%s673 + $0x109] sm:$0xff]
      %v1871 = vld [vmem:[%s673 + $0x111] sm:$0xff]
      %v1872 = vld [vmem:[%s673 + $0x121] sm:$0xff]
      %v1873 = vld [vmem:[%s673 + $0x129] sm:$0xff]
      %v1874 = vld [vmem:[%s673 + $0x139] sm:$0xff]
      %v1875 = vld [vmem:[%s673 + $0x141] sm:$0xff]
      %v1876 = vld [vmem:[%s673 + $0x151] sm:$0xff]
      %v1877 = vld [vmem:[%s673 + $0x159] sm:$0xff]
      %v1878 = vld [vmem:[%s673 + $0x169] sm:$0xff]
      %v1879 = vld [vmem:[%s673 + $0x171] sm:$0xff]
      %v1880 = vpack.c.bf16 %v1849, %v1848
      %v1881 = vpack.c.bf16 %v1851, %v1850
      %v1882 = vpack.c.bf16 %v1853, %v1852
      %v1883 = vpack.c.bf16 %v1855, %v1854
      %v1884 = vpack.c.bf16 %v1857, %v1856
      %v1885 = vpack.c.bf16 %v1859, %v1858
      %v1886 = vpack.c.bf16 %v1861, %v1860
      %v1887 = vpack.c.bf16 %v1863, %v1862
      %v1888 = vpack.c.bf16 %v1865, %v1864
      %v1889 = vpack.c.bf16 %v1867, %v1866
      %v1890 = vpack.c.bf16 %v1869, %v1868
      %v1891 = vpack.c.bf16 %v1871, %v1870
      %v1892 = vpack.c.bf16 %v1873, %v1872
      %v1893 = vpack.c.bf16 %v1875, %v1874
      %v1894 = vpack.c.bf16 %v1877, %v1876
      %v1895 = vpack.c.bf16 %v1879, %v1878
      %s1896 = scalar_lea.vmem %s5, 8
      %v1897 = vld [vmem:[%s1896] sm:$0x3]
      %v1899 = vsel %vm674, %v1880, 0
      %v1902 = vsel %vm674, %v1881, 0
      %v1905 = vsel %vm674, %v1882, 0
      %v1908 = vsel %vm674, %v1883, 0
      %v1911 = vsel %vm674, %v1884, 0
      %v1914 = vsel %vm674, %v1885, 0
      %v1917 = vsel %vm674, %v1886, 0
      %v1920 = vsel %vm674, %v1887, 0
      %v1923 = vsel %vm674, %v1888, 0
      %v1926 = vsel %vm674, %v1889, 0
      %v1929 = vsel %vm674, %v1890, 0
      %v1932 = vsel %vm674, %v1891, 0
      %v1935 = vsel %vm674, %v1892, 0
      %v1938 = vsel %vm674, %v1893, 0
      %v1941 = vsel %vm674, %v1894, 0
      %v1944 = vsel %vm674, %v1895, 0
      %v1947 = vsel %vm883, %v1897, 0
      %1949 = vmatprep.subr.bf16.mxu0 0
      %1950 = vmatpush1.bf16.msra.mxu0 %v1947
      %1951 = vmatprep.subr.bf16.mxu0 0
      %1952 = vmatpush1.bf16.msra.mxu0 0
      %1953 = vmatprep.subr.bf16.mxu0 0
      %1954 = vmatpush1.bf16.msra.mxu0 0
      %1955 = vmatprep.subr.bf16.mxu0 0
      %1956 = vmatpush1.bf16.msra.mxu0 0
      %1957 = vmatprep.subr.bf16.mxu0 0
      %1958 = vmatpush1.bf16.msra.mxu0 0
      %1959 = vmatprep.subr.bf16.mxu0 0
      %1960 = vmatpush1.bf16.msra.mxu0 0
      %1961 = vmatprep.subr.bf16.mxu0 0
      %1962 = vmatpush1.bf16.msra.mxu0 0
      %1963 = vmatprep.subr.bf16.mxu0 0
      %1964 = vmatpush1.bf16.msra.mxu0 0
      %1965 = vmatprep.subr.bf16.mxu0 0
      %1966 = vmatpush1.bf16.msra.mxu0 0
      %1967 = vmatprep.subr.bf16.mxu0 0
      %1968 = vmatpush1.bf16.msra.mxu0 0
      %1969 = vmatprep.subr.bf16.mxu0 0
      %1970 = vmatpush1.bf16.msra.mxu0 0
      %1971 = vmatprep.subr.bf16.mxu0 0
      %1972 = vmatpush1.bf16.msra.mxu0 0
      %1973 = vmatprep.subr.bf16.mxu0 0
      %1974 = vmatpush1.bf16.msra.mxu0 0
      %1975 = vmatprep.subr.bf16.mxu0 0
      %1976 = vmatpush1.bf16.msra.mxu0 0
      %1977 = vmatprep.subr.bf16.mxu0 0
      %1978 = vmatpush1.bf16.msra.mxu0 0
      %1979 = vmatprep.subr.bf16.mxu0 0
      %1980 = vmatpush1.bf16.msra.mxu0 0
      %1981 = vmatprep.mubr.bf16.mxu0 0
      %1982 = vmatmul.mubr.bf16.gmra.mrb[0].mxu0 %v1899
      %v1983 = vpop.f32.mrb[0].mxu0
      %v1984 = vadd.f32 0.0, %v1983
      %v1985 = vpop.f32.mrb[0].mxu0
      %v1986 = vpop.f32.mrb[0].mxu0
      %v1987 = vadd.f32 0.0, %v1986
      %v1988 = vpop.f32.mrb[0].mxu0
      %1989 = vmatprep.mubr.bf16.mxu0 0
      %1990 = vmatmul.mubr.bf16.gmra.mrb[0].mxu0 %v1902
      %v1991 = vpop.f32.mrb[0].mxu0
      %v1992 = vadd.f32 0.0, %v1991
      %v1993 = vpop.f32.mrb[0].mxu0
      %v1994 = vpop.f32.mrb[0].mxu0
      %v1995 = vadd.f32 0.0, %v1994
      %v1996 = vpop.f32.mrb[0].mxu0
      %1997 = vmatprep.mubr.bf16.mxu0 0
      %1998 = vmatmul.mubr.bf16.gmra.mrb[0].mxu0 %v1905
      %v1999 = vpop.f32.mrb[0].mxu0
      %v2000 = vadd.f32 0.0, %v1999
      %v2001 = vpop.f32.mrb[0].mxu0
      %v2002 = vpop.f32.mrb[0].mxu0
      %v2003 = vadd.f32 0.0, %v2002
      %v2004 = vpop.f32.mrb[0].mxu0
      %2005 = vmatprep.mubr.bf16.mxu0 0
      %2006 = vmatmul.mubr.bf16.gmra.mrb[0].mxu0 %v1908
      %v2007 = vpop.f32.mrb[0].mxu0
      %v2008 = vadd.f32 0.0, %v2007
      %v2009 = vpop.f32.mrb[0].mxu0
      %v2010 = vpop.f32.mrb[0].mxu0
      %v2011 = vadd.f32 0.0, %v2010
      %v2012 = vpop.f32.mrb[0].mxu0
      %2013 = vmatprep.mubr.bf16.mxu0 0
      %2014 = vmatmul.mubr.bf16.gmra.mrb[0].mxu0 %v1911
      %v2015 = vpop.f32.mrb[0].mxu0
      %v2016 = vadd.f32 0.0, %v2015
      %v2017 = vpop.f32.mrb[0].mxu0
      %v2018 = vpop.f32.mrb[0].mxu0
      %v2019 = vadd.f32 0.0, %v2018
      %v2020 = vpop.f32.mrb[0].mxu0
      %2021 = vmatprep.mubr.bf16.mxu0 0
      %2022 = vmatmul.mubr.bf16.gmra.mrb[0].mxu0 %v1914
      %v2023 = vpop.f32.mrb[0].mxu0
      %v2024 = vadd.f32 0.0, %v2023
      %v2025 = vpop.f32.mrb[0].mxu0
      %v2026 = vpop.f32.mrb[0].mxu0
      %v2027 = vadd.f32 0.0, %v2026
      %v2028 = vpop.f32.mrb[0].mxu0
      %2029 = vmatprep.mubr.bf16.mxu0 0
      %2030 = vmatmul.mubr.bf16.gmra.mrb[0].mxu0 %v1917
      %v2031 = vpop.f32.mrb[0].mxu0
      %v2032 = vadd.f32 0.0, %v2031
      %v2033 = vpop.f32.mrb[0].mxu0
      %v2034 = vpop.f32.mrb[0].mxu0
      %v2035 = vadd.f32 0.0, %v2034
      %v2036 = vpop.f32.mrb[0].mxu0
      %2037 = vmatprep.mubr.bf16.mxu0 0
      %2038 = vmatmul.mubr.bf16.gmra.mrb[0].mxu0 %v1920
      %v2039 = vpop.f32.mrb[0].mxu0
      %v2040 = vadd.f32 0.0, %v2039
      %v2041 = vpop.f32.mrb[0].mxu0
      %v2042 = vpop.f32.mrb[0].mxu0
      %v2043 = vadd.f32 0.0, %v2042
      %v2044 = vpop.f32.mrb[0].mxu0
      %2045 = vmatprep.mubr.bf16.mxu0 0
      %2046 = vmatmul.mubr.bf16.gmra.mrb[0].mxu0 %v1923
      %v2047 = vpop.f32.mrb[0].mxu0
      %v2048 = vadd.f32 0.0, %v2047
      %v2049 = vpop.f32.mrb[0].mxu0
      %v2050 = vpop.f32.mrb[0].mxu0
      %v2051 = vadd.f32 0.0, %v2050
      %v2052 = vpop.f32.mrb[0].mxu0
      %2053 = vmatprep.mubr.bf16.mxu0 0
      %2054 = vmatmul.mubr.bf16.gmra.mrb[0].mxu0 %v1926
      %v2055 = vpop.f32.mrb[0].mxu0
      %v2056 = vadd.f32 0.0, %v2055
      %v2057 = vpop.f32.mrb[0].mxu0
      %v2058 = vpop.f32.mrb[0].mxu0
      %v2059 = vadd.f32 0.0, %v2058
      %v2060 = vpop.f32.mrb[0].mxu0
      %2061 = vmatprep.mubr.bf16.mxu0 0
      %2062 = vmatmul.mubr.bf16.gmra.mrb[0].mxu0 %v1929
      %v2063 = vpop.f32.mrb[0].mxu0
      %v2064 = vadd.f32 0.0, %v2063
      %v2065 = vpop.f32.mrb[0].mxu0
      %v2066 = vpop.f32.mrb[0].mxu0
      %v2067 = vadd.f32 0.0, %v2066
      %v2068 = vpop.f32.mrb[0].mxu0
      %2069 = vmatprep.mubr.bf16.mxu0 0
      %2070 = vmatmul.mubr.bf16.gmra.mrb[0].mxu0 %v1932
      %v2071 = vpop.f32.mrb[0].mxu0
      %v2072 = vadd.f32 0.0, %v2071
      %v2073 = vpop.f32.mrb[0].mxu0
      %v2074 = vpop.f32.mrb[0].mxu0
      %v2075 = vadd.f32 0.0, %v2074
      %v2076 = vpop.f32.mrb[0].mxu0
      %2077 = vmatprep.mubr.bf16.mxu0 0
      %2078 = vmatmul.mubr.bf16.gmra.mrb[0].mxu0 %v1935
      %v2079 = vpop.f32.mrb[0].mxu0
      %v2080 = vadd.f32 0.0, %v2079
      %v2081 = vpop.f32.mrb[0].mxu0
      %v2082 = vpop.f32.mrb[0].mxu0
      %v2083 = vadd.f32 0.0, %v2082
      %v2084 = vpop.f32.mrb[0].mxu0
      %2085 = vmatprep.mubr.bf16.mxu0 0
      %2086 = vmatmul.mubr.bf16.gmra.mrb[0].mxu0 %v1938
      %v2087 = vpop.f32.mrb[0].mxu0
      %v2088 = vadd.f32 0.0, %v2087
      %v2089 = vpop.f32.mrb[0].mxu0
      %v2090 = vpop.f32.mrb[0].mxu0
      %v2091 = vadd.f32 0.0, %v2090
      %v2092 = vpop.f32.mrb[0].mxu0
      %2093 = vmatprep.mubr.bf16.mxu0 0
      %2094 = vmatmul.mubr.bf16.gmra.mrb[0].mxu0 %v1941
      %v2095 = vpop.f32.mrb[0].mxu0
      %v2096 = vadd.f32 0.0, %v2095
      %v2097 = vpop.f32.mrb[0].mxu0
      %v2098 = vpop.f32.mrb[0].mxu0
      %v2099 = vadd.f32 0.0, %v2098
      %v2100 = vpop.f32.mrb[0].mxu0
      %2101 = vmatprep.mubr.bf16.mxu0 0
      %2102 = vmatmul.mubr.bf16.gmra.mrb[0].mxu0 %v1944
      %v2103 = vpop.f32.mrb[0].mxu0
      %v2104 = vadd.f32 0.0, %v2103
      %v2105 = vpop.f32.mrb[0].mxu0
      %v2106 = vpop.f32.mrb[0].mxu0
      %v2107 = vadd.f32 0.0, %v2106
      %v2108 = vpop.f32.mrb[0].mxu0
      %2109 = vdwg.mxu0
      %v2110 = vadd.f32 %v1816, %v1984
      %v2111 = vadd.f32 %v1817, %v1987
      %v2112 = vadd.f32 %v1818, %v1992
      %v2113 = vadd.f32 %v1819, %v1995
      %v2114 = vadd.f32 %v1820, %v2000
      %v2115 = vadd.f32 %v1821, %v2003
      %v2116 = vadd.f32 %v1822, %v2008
      %v2117 = vadd.f32 %v1823, %v2011
      %v2118 = vadd.f32 %v1824, %v2016
      %v2119 = vadd.f32 %v1825, %v2019
      %v2120 = vadd.f32 %v1826, %v2024
      %v2121 = vadd.f32 %v1827, %v2027
      %v2122 = vadd.f32 %v1828, %v2032
      %v2123 = vadd.f32 %v1829, %v2035
      %v2124 = vadd.f32 %v1830, %v2040
      %v2125 = vadd.f32 %v1831, %v2043
      %v2126 = vadd.f32 %v1832, %v2048
      %v2127 = vadd.f32 %v1833, %v2051
      %v2128 = vadd.f32 %v1834, %v2056
      %v2129 = vadd.f32 %v1835, %v2059
      %v2130 = vadd.f32 %v1836, %v2064
      %v2131 = vadd.f32 %v1837, %v2067
      %v2132 = vadd.f32 %v1838, %v2072
      %v2133 = vadd.f32 %v1839, %v2075
      %v2134 = vadd.f32 %v1840, %v2080
      %v2135 = vadd.f32 %v1841, %v2083
      %v2136 = vadd.f32 %v1842, %v2088
      %v2137 = vadd.f32 %v1843, %v2091
      %v2138 = vadd.f32 %v1844, %v2096
      %v2139 = vadd.f32 %v1845, %v2099
      %v2140 = vadd.f32 %v1846, %v2104
      %v2141 = vadd.f32 %v1847, %v2107
      %v2142 = vld [vmem:[%s673 + $0x2] sm:$0xff]
      %v2143 = vld [vmem:[%s673 + $0xa] sm:$0xff]
      %v2144 = vld [vmem:[%s673 + $0x1a] sm:$0xff]
      %v2145 = vld [vmem:[%s673 + $0x22] sm:$0xff]
      %v2146 = vld [vmem:[%s673 + $0x32] sm:$0xff]
      %v2147 = vld [vmem:[%s673 + $0x3a] sm:$0xff]
      %v2148 = vld [vmem:[%s673 + $0x4a] sm:$0xff]
      %v2149 = vld [vmem:[%s673 + $0x52] sm:$0xff]
      %v2150 = vld [vmem:[%s673 + $0x62] sm:$0xff]
      %v2151 = vld [vmem:[%s673 + $0x6a] sm:$0xff]
      %v2152 = vld [vmem:[%s673 + $0x7a] sm:$0xff]
      %v2153 = vld [vmem:[%s673 + $0x82] sm:$0xff]
      %v2154 = vld [vmem:[%s673 + $0x92] sm:$0xff]
      %v2155 = vld [vmem:[%s673 + $0x9a] sm:$0xff]
      %v2156 = vld [vmem:[%s673 + $0xaa] sm:$0xff]
      %v2157 = vld [vmem:[%s673 + $0xb2] sm:$0xff]
      %v2158 = vld [vmem:[%s673 + $0xc2] sm:$0xff]
      %v2159 = vld [vmem:[%s673 + $0xca] sm:$0xff]
      %v2160 = vld [vmem:[%s673 + $0xda] sm:$0xff]
      %v2161 = vld [vmem:[%s673 + $0xe2] sm:$0xff]
      %v2162 = vld [vmem:[%s673 + $0xf2] sm:$0xff]
      %v2163 = vld [vmem:[%s673 + $0xfa] sm:$0xff]
      %v2164 = vld [vmem:[%s673 + $0x10a] sm:$0xff]
      %v2165 = vld [vmem:[%s673 + $0x112] sm:$0xff]
      %v2166 = vld [vmem:[%s673 + $0x122] sm:$0xff]
      %v2167 = vld [vmem:[%s673 + $0x12a] sm:$0xff]
      %v2168 = vld [vmem:[%s673 + $0x13a] sm:$0xff]
      %v2169 = vld [vmem:[%s673 + $0x142] sm:$0xff]
      %v2170 = vld [vmem:[%s673 + $0x152] sm:$0xff]
      %v2171 = vld [vmem:[%s673 + $0x15a] sm:$0xff]
      %v2172 = vld [vmem:[%s673 + $0x16a] sm:$0xff]
      %v2173 = vld [vmem:[%s673 + $0x172] sm:$0xff]
      %v2174 = vpack.c.bf16 %v2143, %v2142
      %v2175 = vpack.c.bf16 %v2145, %v2144
      %v2176 = vpack.c.bf16 %v2147, %v2146
      %v2177 = vpack.c.bf16 %v2149, %v2148
      %v2178 = vpack.c.bf16 %v2151, %v2150
      %v2179 = vpack.c.bf16 %v2153, %v2152
      %v2180 = vpack.c.bf16 %v2155, %v2154
      %v2181 = vpack.c.bf16 %v2157, %v2156
      %v2182 = vpack.c.bf16 %v2159, %v2158
      %v2183 = vpack.c.bf16 %v2161, %v2160
      %v2184 = vpack.c.bf16 %v2163, %v2162
      %v2185 = vpack.c.bf16 %v2165, %v2164
      %v2186 = vpack.c.bf16 %v2167, %v2166
      %v2187 = vpack.c.bf16 %v2169, %v2168
      %v2188 = vpack.c.bf16 %v2171, %v2170
      %v2189 = vpack.c.bf16 %v2173, %v2172
      %s2190 = scalar_lea.vmem %s5, 10
      %v2191 = vld [vmem:[%s2190] sm:$0x3]
      %v2193 = vsel %vm674, %v2174, 0
      %v2196 = vsel %vm674, %v2175, 0
      %v2199 = vsel %vm674, %v2176, 0
      %v2202 = vsel %vm674, %v2177, 0
      %v2205 = vsel %vm674, %v2178, 0
      %v2208 = vsel %vm674, %v2179, 0
      %v2211 = vsel %vm674, %v2180, 0
      %v2214 = vsel %vm674, %v2181, 0
      %v2217 = vsel %vm674, %v2182, 0
      %v2220 = vsel %vm674, %v2183, 0
      %v2223 = vsel %vm674, %v2184, 0
      %v2226 = vsel %vm674, %v2185, 0
      %v2229 = vsel %vm674, %v2186, 0
      %v2232 = vsel %vm674, %v2187, 0
      %v2235 = vsel %vm674, %v2188, 0
      %v2238 = vsel %vm674, %v2189, 0
      %v2241 = vsel %vm883, %v2191, 0
      %2243 = vmatprep.subr.bf16.mxu0 0
      %2244 = vmatpush1.bf16.msra.mxu0 %v2241
      %2245 = vmatprep.subr.bf16.mxu0 0
      %2246 = vmatpush1.bf16.msra.mxu0 0
      %2247 = vmatprep.subr.bf16.mxu0 0
      %2248 = vmatpush1.bf16.msra.mxu0 0
      %2249 = vmatprep.subr.bf16.mxu0 0
      %2250 = vmatpush1.bf16.msra.mxu0 0
      %2251 = vmatprep.subr.bf16.mxu0 0
      %2252 = vmatpush1.bf16.msra.mxu0 0
      %2253 = vmatprep.subr.bf16.mxu0 0
      %2254 = vmatpush1.bf16.msra.mxu0 0
      %2255 = vmatprep.subr.bf16.mxu0 0
      %2256 = vmatpush1.bf16.msra.mxu0 0
      %2257 = vmatprep.subr.bf16.mxu0 0
      %2258 = vmatpush1.bf16.msra.mxu0 0
      %2259 = vmatprep.subr.bf16.mxu0 0
      %2260 = vmatpush1.bf16.msra.mxu0 0
      %2261 = vmatprep.subr.bf16.mxu0 0
      %2262 = vmatpush1.bf16.msra.mxu0 0
      %2263 = vmatprep.subr.bf16.mxu0 0
      %2264 = vmatpush1.bf16.msra.mxu0 0
      %2265 = vmatprep.subr.bf16.mxu0 0
      %2266 = vmatpush1.bf16.msra.mxu0 0
      %2267 = vmatprep.subr.bf16.mxu0 0
      %2268 = vmatpush1.bf16.msra.mxu0 0
      %2269 = vmatprep.subr.bf16.mxu0 0
      %2270 = vmatpush1.bf16.msra.mxu0 0
      %2271 = vmatprep.subr.bf16.mxu0 0
      %2272 = vmatpush1.bf16.msra.mxu0 0
      %2273 = vmatprep.subr.bf16.mxu0 0
      %2274 = vmatpush1.bf16.msra.mxu0 0
      %2275 = vmatprep.mubr.bf16.mxu0 0
      %2276 = vmatmul.mubr.bf16.gmra.mrb[0].mxu0 %v2193
      %v2277 = vpop.f32.mrb[0].mxu0
      %v2278 = vadd.f32 0.0, %v2277
      %v2279 = vpop.f32.mrb[0].mxu0
      %v2280 = vpop.f32.mrb[0].mxu0
      %v2281 = vadd.f32 0.0, %v2280
      %v2282 = vpop.f32.mrb[0].mxu0
      %2283 = vmatprep.mubr.bf16.mxu0 0
      %2284 = vmatmul.mubr.bf16.gmra.mrb[0].mxu0 %v2196
      %v2285 = vpop.f32.mrb[0].mxu0
      %v2286 = vadd.f32 0.0, %v2285
      %v2287 = vpop.f32.mrb[0].mxu0
      %v2288 = vpop.f32.mrb[0].mxu0
      %v2289 = vadd.f32 0.0, %v2288
      %v2290 = vpop.f32.mrb[0].mxu0
      %2291 = vmatprep.mubr.bf16.mxu0 0
      %2292 = vmatmul.mubr.bf16.gmra.mrb[0].mxu0 %v2199
      %v2293 = vpop.f32.mrb[0].mxu0
      %v2294 = vadd.f32 0.0, %v2293
      %v2295 = vpop.f32.mrb[0].mxu0
      %v2296 = vpop.f32.mrb[0].mxu0
      %v2297 = vadd.f32 0.0, %v2296
      %v2298 = vpop.f32.mrb[0].mxu0
      %2299 = vmatprep.mubr.bf16.mxu0 0
      %2300 = vmatmul.mubr.bf16.gmra.mrb[0].mxu0 %v2202
      %v2301 = vpop.f32.mrb[0].mxu0
      %v2302 = vadd.f32 0.0, %v2301
      %v2303 = vpop.f32.mrb[0].mxu0
      %v2304 = vpop.f32.mrb[0].mxu0
      %v2305 = vadd.f32 0.0, %v2304
      %v2306 = vpop.f32.mrb[0].mxu0
      %2307 = vmatprep.mubr.bf16.mxu0 0
      %2308 = vmatmul.mubr.bf16.gmra.mrb[0].mxu0 %v2205
      %v2309 = vpop.f32.mrb[0].mxu0
      %v2310 = vadd.f32 0.0, %v2309
      %v2311 = vpop.f32.mrb[0].mxu0
      %v2312 = vpop.f32.mrb[0].mxu0
      %v2313 = vadd.f32 0.0, %v2312
      %v2314 = vpop.f32.mrb[0].mxu0
      %2315 = vmatprep.mubr.bf16.mxu0 0
      %2316 = vmatmul.mubr.bf16.gmra.mrb[0].mxu0 %v2208
      %v2317 = vpop.f32.mrb[0].mxu0
      %v2318 = vadd.f32 0.0, %v2317
      %v2319 = vpop.f32.mrb[0].mxu0
      %v2320 = vpop.f32.mrb[0].mxu0
      %v2321 = vadd.f32 0.0, %v2320
      %v2322 = vpop.f32.mrb[0].mxu0
      %2323 = vmatprep.mubr.bf16.mxu0 0
      %2324 = vmatmul.mubr.bf16.gmra.mrb[0].mxu0 %v2211
      %v2325 = vpop.f32.mrb[0].mxu0
      %v2326 = vadd.f32 0.0, %v2325
      %v2327 = vpop.f32.mrb[0].mxu0
      %v2328 = vpop.f32.mrb[0].mxu0
      %v2329 = vadd.f32 0.0, %v2328
      %v2330 = vpop.f32.mrb[0].mxu0
      %2331 = vmatprep.mubr.bf16.mxu0 0
      %2332 = vmatmul.mubr.bf16.gmra.mrb[0].mxu0 %v2214
      %v2333 = vpop.f32.mrb[0].mxu0
      %v2334 = vadd.f32 0.0, %v2333
      %v2335 = vpop.f32.mrb[0].mxu0
      %v2336 = vpop.f32.mrb[0].mxu0
      %v2337 = vadd.f32 0.0, %v2336
      %v2338 = vpop.f32.mrb[0].mxu0
      %2339 = vmatprep.mubr.bf16.mxu0 0
      %2340 = vmatmul.mubr.bf16.gmra.mrb[0].mxu0 %v2217
      %v2341 = vpop.f32.mrb[0].mxu0
      %v2342 = vadd.f32 0.0, %v2341
      %v2343 = vpop.f32.mrb[0].mxu0
      %v2344 = vpop.f32.mrb[0].mxu0
      %v2345 = vadd.f32 0.0, %v2344
      %v2346 = vpop.f32.mrb[0].mxu0
      %2347 = vmatprep.mubr.bf16.mxu0 0
      %2348 = vmatmul.mubr.bf16.gmra.mrb[0].mxu0 %v2220
      %v2349 = vpop.f32.mrb[0].mxu0
      %v2350 = vadd.f32 0.0, %v2349
      %v2351 = vpop.f32.mrb[0].mxu0
      %v2352 = vpop.f32.mrb[0].mxu0
      %v2353 = vadd.f32 0.0, %v2352
      %v2354 = vpop.f32.mrb[0].mxu0
      %2355 = vmatprep.mubr.bf16.mxu0 0
      %2356 = vmatmul.mubr.bf16.gmra.mrb[0].mxu0 %v2223
      %v2357 = vpop.f32.mrb[0].mxu0
      %v2358 = vadd.f32 0.0, %v2357
      %v2359 = vpop.f32.mrb[0].mxu0
      %v2360 = vpop.f32.mrb[0].mxu0
      %v2361 = vadd.f32 0.0, %v2360
      %v2362 = vpop.f32.mrb[0].mxu0
      %2363 = vmatprep.mubr.bf16.mxu0 0
      %2364 = vmatmul.mubr.bf16.gmra.mrb[0].mxu0 %v2226
      %v2365 = vpop.f32.mrb[0].mxu0
      %v2366 = vadd.f32 0.0, %v2365
      %v2367 = vpop.f32.mrb[0].mxu0
      %v2368 = vpop.f32.mrb[0].mxu0
      %v2369 = vadd.f32 0.0, %v2368
      %v2370 = vpop.f32.mrb[0].mxu0
      %2371 = vmatprep.mubr.bf16.mxu0 0
      %2372 = vmatmul.mubr.bf16.gmra.mrb[0].mxu0 %v2229
      %v2373 = vpop.f32.mrb[0].mxu0
      %v2374 = vadd.f32 0.0, %v2373
      %v2375 = vpop.f32.mrb[0].mxu0
      %v2376 = vpop.f32.mrb[0].mxu0
      %v2377 = vadd.f32 0.0, %v2376
      %v2378 = vpop.f32.mrb[0].mxu0
      %2379 = vmatprep.mubr.bf16.mxu0 0
      %2380 = vmatmul.mubr.bf16.gmra.mrb[0].mxu0 %v2232
      %v2381 = vpop.f32.mrb[0].mxu0
      %v2382 = vadd.f32 0.0, %v2381
      %v2383 = vpop.f32.mrb[0].mxu0
      %v2384 = vpop.f32.mrb[0].mxu0
      %v2385 = vadd.f32 0.0, %v2384
      %v2386 = vpop.f32.mrb[0].mxu0
      %2387 = vmatprep.mubr.bf16.mxu0 0
      %2388 = vmatmul.mubr.bf16.gmra.mrb[0].mxu0 %v2235
      %v2389 = vpop.f32.mrb[0].mxu0
      %v2390 = vadd.f32 0.0, %v2389
      %v2391 = vpop.f32.mrb[0].mxu0
      %v2392 = vpop.f32.mrb[0].mxu0
      %v2393 = vadd.f32 0.0, %v2392
      %v2394 = vpop.f32.mrb[0].mxu0
      %2395 = vmatprep.mubr.bf16.mxu0 0
      %2396 = vmatmul.mubr.bf16.gmra.mrb[0].mxu0 %v2238
      %v2397 = vpop.f32.mrb[0].mxu0
      %v2398 = vadd.f32 0.0, %v2397
      %v2399 = vpop.f32.mrb[0].mxu0
      %v2400 = vpop.f32.mrb[0].mxu0
      %v2401 = vadd.f32 0.0, %v2400
      %v2402 = vpop.f32.mrb[0].mxu0
      %2403 = vdwg.mxu0
      %v2404 = vadd.f32 %v2110, %v2278
      %v2405 = vadd.f32 %v2111, %v2281
      %v2406 = vadd.f32 %v2112, %v2286
      %v2407 = vadd.f32 %v2113, %v2289
      %v2408 = vadd.f32 %v2114, %v2294
      %v2409 = vadd.f32 %v2115, %v2297
      %v2410 = vadd.f32 %v2116, %v2302
      %v2411 = vadd.f32 %v2117, %v2305
      %v2412 = vadd.f32 %v2118, %v2310
      %v2413 = vadd.f32 %v2119, %v2313
      %v2414 = vadd.f32 %v2120, %v2318
      %v2415 = vadd.f32 %v2121, %v2321
      %v2416 = vadd.f32 %v2122, %v2326
      %v2417 = vadd.f32 %v2123, %v2329
      %v2418 = vadd.f32 %v2124, %v2334
      %v2419 = vadd.f32 %v2125, %v2337
      %v2420 = vadd.f32 %v2126, %v2342
      %v2421 = vadd.f32 %v2127, %v2345
      %v2422 = vadd.f32 %v2128, %v2350
      %v2423 = vadd.f32 %v2129, %v2353
      %v2424 = vadd.f32 %v2130, %v2358
      %v2425 = vadd.f32 %v2131, %v2361
      %v2426 = vadd.f32 %v2132, %v2366
      %v2427 = vadd.f32 %v2133, %v2369
      %v2428 = vadd.f32 %v2134, %v2374
      %v2429 = vadd.f32 %v2135, %v2377
      %v2430 = vadd.f32 %v2136, %v2382
      %v2431 = vadd.f32 %v2137, %v2385
      %v2432 = vadd.f32 %v2138, %v2390
      %v2433 = vadd.f32 %v2139, %v2393
      %v2434 = vadd.f32 %v2140, %v2398
      %v2435 = vadd.f32 %v2141, %v2401
      %s2436 = scalar_lea.vmem [#allocation2], 48
      %v2437 = vld [vmem:[%s2436] sm:$0xff]
      %v2438 = vld [vmem:[%s2436 + $0x8] sm:$0xff]
      %v2439 = vld [vmem:[%s2436 + $0x18] sm:$0xff]
      %v2440 = vld [vmem:[%s2436 + $0x20] sm:$0xff]
      %v2441 = vld [vmem:[%s2436 + $0x30] sm:$0xff]
      %v2442 = vld [vmem:[%s2436 + $0x38] sm:$0xff]
      %v2443 = vld [vmem:[%s2436 + $0x48] sm:$0xff]
      %v2444 = vld [vmem:[%s2436 + $0x50] sm:$0xff]
      %v2445 = vld [vmem:[%s2436 + $0x60] sm:$0xff]
      %v2446 = vld [vmem:[%s2436 + $0x68] sm:$0xff]
      %v2447 = vld [vmem:[%s2436 + $0x78] sm:$0xff]
      %v2448 = vld [vmem:[%s2436 + $0x80] sm:$0xff]
      %v2449 = vld [vmem:[%s2436 + $0x90] sm:$0xff]
      %v2450 = vld [vmem:[%s2436 + $0x98] sm:$0xff]
      %v2451 = vld [vmem:[%s2436 + $0xa8] sm:$0xff]
      %v2452 = vld [vmem:[%s2436 + $0xb0] sm:$0xff]
      %v2453 = vld [vmem:[%s2436 + $0xc0] sm:$0xff]
      %v2454 = vld [vmem:[%s2436 + $0xc8] sm:$0xff]
      %v2455 = vld [vmem:[%s2436 + $0xd8] sm:$0xff]
      %v2456 = vld [vmem:[%s2436 + $0xe0] sm:$0xff]
      %v2457 = vld [vmem:[%s2436 + $0xf0] sm:$0xff]
      %v2458 = vld [vmem:[%s2436 + $0xf8] sm:$0xff]
      %v2459 = vld [vmem:[%s2436 + $0x108] sm:$0xff]
      %v2460 = vld [vmem:[%s2436 + $0x110] sm:$0xff]
      %v2461 = vld [vmem:[%s2436 + $0x120] sm:$0xff]
      %v2462 = vld [vmem:[%s2436 + $0x128] sm:$0xff]
      %v2463 = vld [vmem:[%s2436 + $0x138] sm:$0xff]
      %v2464 = vld [vmem:[%s2436 + $0x140] sm:$0xff]
      %v2465 = vld [vmem:[%s2436 + $0x150] sm:$0xff]
      %v2466 = vld [vmem:[%s2436 + $0x158] sm:$0xff]
      %v2467 = vld [vmem:[%s2436 + $0x168] sm:$0xff]
      %v2468 = vld [vmem:[%s2436 + $0x170] sm:$0xff]
      %v2469 = vpack.c.bf16 %v2438, %v2437
      %v2470 = vpack.c.bf16 %v2440, %v2439
      %v2471 = vpack.c.bf16 %v2442, %v2441
      %v2472 = vpack.c.bf16 %v2444, %v2443
      %v2473 = vpack.c.bf16 %v2446, %v2445
      %v2474 = vpack.c.bf16 %v2448, %v2447
      %v2475 = vpack.c.bf16 %v2450, %v2449
      %v2476 = vpack.c.bf16 %v2452, %v2451
      %v2477 = vpack.c.bf16 %v2454, %v2453
      %v2478 = vpack.c.bf16 %v2456, %v2455
      %v2479 = vpack.c.bf16 %v2458, %v2457
      %v2480 = vpack.c.bf16 %v2460, %v2459
      %v2481 = vpack.c.bf16 %v2462, %v2461
      %v2482 = vpack.c.bf16 %v2464, %v2463
      %v2483 = vpack.c.bf16 %v2466, %v2465
      %v2484 = vpack.c.bf16 %v2468, %v2467
      %s2485 = scalar_lea.vmem %s5, 12
      %v2486 = vld [vmem:[%s2485] sm:$0x3]
      %v2488 = vsel %vm674, %v2469, 0
      %v2491 = vsel %vm674, %v2470, 0
      %v2494 = vsel %vm674, %v2471, 0
      %v2497 = vsel %vm674, %v2472, 0
      %v2500 = vsel %vm674, %v2473, 0
      %v2503 = vsel %vm674, %v2474, 0
      %v2506 = vsel %vm674, %v2475, 0
      %v2509 = vsel %vm674, %v2476, 0
      %v2512 = vsel %vm674, %v2477, 0
      %v2515 = vsel %vm674, %v2478, 0
      %v2518 = vsel %vm674, %v2479, 0
      %v2521 = vsel %vm674, %v2480, 0
      %v2524 = vsel %vm674, %v2481, 0
      %v2527 = vsel %vm674, %v2482, 0
      %v2530 = vsel %vm674, %v2483, 0
      %v2533 = vsel %vm674, %v2484, 0
      %v2536 = vsel %vm883, %v2486, 0
      %2538 = vmatprep.subr.bf16.mxu0 0
      %2539 = vmatpush1.bf16.msra.mxu0 %v2536
      %2540 = vmatprep.subr.bf16.mxu0 0
      %2541 = vmatpush1.bf16.msra.mxu0 0
      %2542 = vmatprep.subr.bf16.mxu0 0
      %2543 = vmatpush1.bf16.msra.mxu0 0
      %2544 = vmatprep.subr.bf16.mxu0 0
      %2545 = vmatpush1.bf16.msra.mxu0 0
      %2546 = vmatprep.subr.bf16.mxu0 0
      %2547 = vmatpush1.bf16.msra.mxu0 0
      %2548 = vmatprep.subr.bf16.mxu0 0
      %2549 = vmatpush1.bf16.msra.mxu0 0
      %2550 = vmatprep.subr.bf16.mxu0 0
      %2551 = vmatpush1.bf16.msra.mxu0 0
      %2552 = vmatprep.subr.bf16.mxu0 0
      %2553 = vmatpush1.bf16.msra.mxu0 0
      %2554 = vmatprep.subr.bf16.mxu0 0
      %2555 = vmatpush1.bf16.msra.mxu0 0
      %2556 = vmatprep.subr.bf16.mxu0 0
      %2557 = vmatpush1.bf16.msra.mxu0 0
      %2558 = vmatprep.subr.bf16.mxu0 0
      %2559 = vmatpush1.bf16.msra.mxu0 0
      %2560 = vmatprep.subr.bf16.mxu0 0
      %2561 = vmatpush1.bf16.msra.mxu0 0
      %2562 = vmatprep.subr.bf16.mxu0 0
      %2563 = vmatpush1.bf16.msra.mxu0 0
      %2564 = vmatprep.subr.bf16.mxu0 0
      %2565 = vmatpush1.bf16.msra.mxu0 0
      %2566 = vmatprep.subr.bf16.mxu0 0
      %2567 = vmatpush1.bf16.msra.mxu0 0
      %2568 = vmatprep.subr.bf16.mxu0 0
      %2569 = vmatpush1.bf16.msra.mxu0 0
      %2570 = vmatprep.mubr.bf16.mxu0 0
      %2571 = vmatmul.mubr.bf16.gmra.mrb[0].mxu0 %v2488
      %v2572 = vpop.f32.mrb[0].mxu0
      %v2573 = vadd.f32 0.0, %v2572
      %v2574 = vpop.f32.mrb[0].mxu0
      %v2575 = vpop.f32.mrb[0].mxu0
      %v2576 = vadd.f32 0.0, %v2575
      %v2577 = vpop.f32.mrb[0].mxu0
      %2578 = vmatprep.mubr.bf16.mxu0 0
      %2579 = vmatmul.mubr.bf16.gmra.mrb[0].mxu0 %v2491
      %v2580 = vpop.f32.mrb[0].mxu0
      %v2581 = vadd.f32 0.0, %v2580
      %v2582 = vpop.f32.mrb[0].mxu0
      %v2583 = vpop.f32.mrb[0].mxu0
      %v2584 = vadd.f32 0.0, %v2583
      %v2585 = vpop.f32.mrb[0].mxu0
      %2586 = vmatprep.mubr.bf16.mxu0 0
      %2587 = vmatmul.mubr.bf16.gmra.mrb[0].mxu0 %v2494
      %v2588 = vpop.f32.mrb[0].mxu0
      %v2589 = vadd.f32 0.0, %v2588
      %v2590 = vpop.f32.mrb[0].mxu0
      %v2591 = vpop.f32.mrb[0].mxu0
      %v2592 = vadd.f32 0.0, %v2591
      %v2593 = vpop.f32.mrb[0].mxu0
      %2594 = vmatprep.mubr.bf16.mxu0 0
      %2595 = vmatmul.mubr.bf16.gmra.mrb[0].mxu0 %v2497
      %v2596 = vpop.f32.mrb[0].mxu0
      %v2597 = vadd.f32 0.0, %v2596
      %v2598 = vpop.f32.mrb[0].mxu0
      %v2599 = vpop.f32.mrb[0].mxu0
      %v2600 = vadd.f32 0.0, %v2599
      %v2601 = vpop.f32.mrb[0].mxu0
      %2602 = vmatprep.mubr.bf16.mxu0 0
      %2603 = vmatmul.mubr.bf16.gmra.mrb[0].mxu0 %v2500
      %v2604 = vpop.f32.mrb[0].mxu0
      %v2605 = vadd.f32 0.0, %v2604
      %v2606 = vpop.f32.mrb[0].mxu0
      %v2607 = vpop.f32.mrb[0].mxu0
      %v2608 = vadd.f32 0.0, %v2607
      %v2609 = vpop.f32.mrb[0].mxu0
      %2610 = vmatprep.mubr.bf16.mxu0 0
      %2611 = vmatmul.mubr.bf16.gmra.mrb[0].mxu0 %v2503
      %v2612 = vpop.f32.mrb[0].mxu0
      %v2613 = vadd.f32 0.0, %v2612
      %v2614 = vpop.f32.mrb[0].mxu0
      %v2615 = vpop.f32.mrb[0].mxu0
      %v2616 = vadd.f32 0.0, %v2615
      %v2617 = vpop.f32.mrb[0].mxu0
      %2618 = vmatprep.mubr.bf16.mxu0 0
      %2619 = vmatmul.mubr.bf16.gmra.mrb[0].mxu0 %v2506
      %v2620 = vpop.f32.mrb[0].mxu0
      %v2621 = vadd.f32 0.0, %v2620
      %v2622 = vpop.f32.mrb[0].mxu0
      %v2623 = vpop.f32.mrb[0].mxu0
      %v2624 = vadd.f32 0.0, %v2623
      %v2625 = vpop.f32.mrb[0].mxu0
      %2626 = vmatprep.mubr.bf16.mxu0 0
      %2627 = vmatmul.mubr.bf16.gmra.mrb[0].mxu0 %v2509
      %v2628 = vpop.f32.mrb[0].mxu0
      %v2629 = vadd.f32 0.0, %v2628
      %v2630 = vpop.f32.mrb[0].mxu0
      %v2631 = vpop.f32.mrb[0].mxu0
      %v2632 = vadd.f32 0.0, %v2631
      %v2633 = vpop.f32.mrb[0].mxu0
      %2634 = vmatprep.mubr.bf16.mxu0 0
      %2635 = vmatmul.mubr.bf16.gmra.mrb[0].mxu0 %v2512
      %v2636 = vpop.f32.mrb[0].mxu0
      %v2637 = vadd.f32 0.0, %v2636
      %v2638 = vpop.f32.mrb[0].mxu0
      %v2639 = vpop.f32.mrb[0].mxu0
      %v2640 = vadd.f32 0.0, %v2639
      %v2641 = vpop.f32.mrb[0].mxu0
      %2642 = vmatprep.mubr.bf16.mxu0 0
      %2643 = vmatmul.mubr.bf16.gmra.mrb[0].mxu0 %v2515
      %v2644 = vpop.f32.mrb[0].mxu0
      %v2645 = vadd.f32 0.0, %v2644
      %v2646 = vpop.f32.mrb[0].mxu0
      %v2647 = vpop.f32.mrb[0].mxu0
      %v2648 = vadd.f32 0.0, %v2647
      %v2649 = vpop.f32.mrb[0].mxu0
      %2650 = vmatprep.mubr.bf16.mxu0 0
      %2651 = vmatmul.mubr.bf16.gmra.mrb[0].mxu0 %v2518
      %v2652 = vpop.f32.mrb[0].mxu0
      %v2653 = vadd.f32 0.0, %v2652
      %v2654 = vpop.f32.mrb[0].mxu0
      %v2655 = vpop.f32.mrb[0].mxu0
      %v2656 = vadd.f32 0.0, %v2655
      %v2657 = vpop.f32.mrb[0].mxu0
      %2658 = vmatprep.mubr.bf16.mxu0 0
      %2659 = vmatmul.mubr.bf16.gmra.mrb[0].mxu0 %v2521
      %v2660 = vpop.f32.mrb[0].mxu0
      %v2661 = vadd.f32 0.0, %v2660
      %v2662 = vpop.f32.mrb[0].mxu0
      %v2663 = vpop.f32.mrb[0].mxu0
      %v2664 = vadd.f32 0.0, %v2663
      %v2665 = vpop.f32.mrb[0].mxu0
      %2666 = vmatprep.mubr.bf16.mxu0 0
      %2667 = vmatmul.mubr.bf16.gmra.mrb[0].mxu0 %v2524
      %v2668 = vpop.f32.mrb[0].mxu0
      %v2669 = vadd.f32 0.0, %v2668
      %v2670 = vpop.f32.mrb[0].mxu0
      %v2671 = vpop.f32.mrb[0].mxu0
      %v2672 = vadd.f32 0.0, %v2671
      %v2673 = vpop.f32.mrb[0].mxu0
      %2674 = vmatprep.mubr.bf16.mxu0 0
      %2675 = vmatmul.mubr.bf16.gmra.mrb[0].mxu0 %v2527
      %v2676 = vpop.f32.mrb[0].mxu0
      %v2677 = vadd.f32 0.0, %v2676
      %v2678 = vpop.f32.mrb[0].mxu0
      %v2679 = vpop.f32.mrb[0].mxu0
      %v2680 = vadd.f32 0.0, %v2679
      %v2681 = vpop.f32.mrb[0].mxu0
      %2682 = vmatprep.mubr.bf16.mxu0 0
      %2683 = vmatmul.mubr.bf16.gmra.mrb[0].mxu0 %v2530
      %v2684 = vpop.f32.mrb[0].mxu0
      %v2685 = vadd.f32 0.0, %v2684
      %v2686 = vpop.f32.mrb[0].mxu0
      %v2687 = vpop.f32.mrb[0].mxu0
      %v2688 = vadd.f32 0.0, %v2687
      %v2689 = vpop.f32.mrb[0].mxu0
      %2690 = vmatprep.mubr.bf16.mxu0 0
      %2691 = vmatmul.mubr.bf16.gmra.mrb[0].mxu0 %v2533
      %v2692 = vpop.f32.mrb[0].mxu0
      %v2693 = vadd.f32 0.0, %v2692
      %v2694 = vpop.f32.mrb[0].mxu0
      %v2695 = vpop.f32.mrb[0].mxu0
      %v2696 = vadd.f32 0.0, %v2695
      %v2697 = vpop.f32.mrb[0].mxu0
      %2698 = vdwg.mxu0
      %v2699 = vadd.f32 %v2404, %v2573
      %v2700 = vadd.f32 %v2405, %v2576
      %v2701 = vadd.f32 %v2406, %v2581
      %v2702 = vadd.f32 %v2407, %v2584
      %v2703 = vadd.f32 %v2408, %v2589
      %v2704 = vadd.f32 %v2409, %v2592
      %v2705 = vadd.f32 %v2410, %v2597
      %v2706 = vadd.f32 %v2411, %v2600
      %v2707 = vadd.f32 %v2412, %v2605
      %v2708 = vadd.f32 %v2413, %v2608
      %v2709 = vadd.f32 %v2414, %v2613
      %v2710 = vadd.f32 %v2415, %v2616
      %v2711 = vadd.f32 %v2416, %v2621
      %v2712 = vadd.f32 %v2417, %v2624
      %v2713 = vadd.f32 %v2418, %v2629
      %v2714 = vadd.f32 %v2419, %v2632
      %v2715 = vadd.f32 %v2420, %v2637
      %v2716 = vadd.f32 %v2421, %v2640
      %v2717 = vadd.f32 %v2422, %v2645
      %v2718 = vadd.f32 %v2423, %v2648
      %v2719 = vadd.f32 %v2424, %v2653
      %v2720 = vadd.f32 %v2425, %v2656
      %v2721 = vadd.f32 %v2426, %v2661
      %v2722 = vadd.f32 %v2427, %v2664
      %v2723 = vadd.f32 %v2428, %v2669
      %v2724 = vadd.f32 %v2429, %v2672
      %v2725 = vadd.f32 %v2430, %v2677
      %v2726 = vadd.f32 %v2431, %v2680
      %v2727 = vadd.f32 %v2432, %v2685
      %v2728 = vadd.f32 %v2433, %v2688
      %v2729 = vadd.f32 %v2434, %v2693
      %v2730 = vadd.f32 %v2435, %v2696
      %v2731 = vld [vmem:[%s2436 + $0x1] sm:$0xff]
      %v2732 = vld [vmem:[%s2436 + $0x9] sm:$0xff]
      %v2733 = vld [vmem:[%s2436 + $0x19] sm:$0xff]
      %v2734 = vld [vmem:[%s2436 + $0x21] sm:$0xff]
      %v2735 = vld [vmem:[%s2436 + $0x31] sm:$0xff]
      %v2736 = vld [vmem:[%s2436 + $0x39] sm:$0xff]
      %v2737 = vld [vmem:[%s2436 + $0x49] sm:$0xff]
      %v2738 = vld [vmem:[%s2436 + $0x51] sm:$0xff]
      %v2739 = vld [vmem:[%s2436 + $0x61] sm:$0xff]
      %v2740 = vld [vmem:[%s2436 + $0x69] sm:$0xff]
      %v2741 = vld [vmem:[%s2436 + $0x79] sm:$0xff]
      %v2742 = vld [vmem:[%s2436 + $0x81] sm:$0xff]
      %v2743 = vld [vmem:[%s2436 + $0x91] sm:$0xff]
      %v2744 = vld [vmem:[%s2436 + $0x99] sm:$0xff]
      %v2745 = vld [vmem:[%s2436 + $0xa9] sm:$0xff]
      %v2746 = vld [vmem:[%s2436 + $0xb1] sm:$0xff]
      %v2747 = vld [vmem:[%s2436 + $0xc1] sm:$0xff]
      %v2748 = vld [vmem:[%s2436 + $0xc9] sm:$0xff]
      %v2749 = vld [vmem:[%s2436 + $0xd9] sm:$0xff]
      %v2750 = vld [vmem:[%s2436 + $0xe1] sm:$0xff]
      %v2751 = vld [vmem:[%s2436 + $0xf1] sm:$0xff]
      %v2752 = vld [vmem:[%s2436 + $0xf9] sm:$0xff]
      %v2753 = vld [vmem:[%s2436 + $0x109] sm:$0xff]
      %v2754 = vld [vmem:[%s2436 + $0x111] sm:$0xff]
      %v2755 = vld [vmem:[%s2436 + $0x121] sm:$0xff]
      %v2756 = vld [vmem:[%s2436 + $0x129] sm:$0xff]
      %v2757 = vld [vmem:[%s2436 + $0x139] sm:$0xff]
      %v2758 = vld [vmem:[%s2436 + $0x141] sm:$0xff]
      %v2759 = vld [vmem:[%s2436 + $0x151] sm:$0xff]
      %v2760 = vld [vmem:[%s2436 + $0x159] sm:$0xff]
      %v2761 = vld [vmem:[%s2436 + $0x169] sm:$0xff]
      %v2762 = vld [vmem:[%s2436 + $0x171] sm:$0xff]
      %v2763 = vpack.c.bf16 %v2732, %v2731
      %v2764 = vpack.c.bf16 %v2734, %v2733
      %v2765 = vpack.c.bf16 %v2736, %v2735
      %v2766 = vpack.c.bf16 %v2738, %v2737
      %v2767 = vpack.c.bf16 %v2740, %v2739
      %v2768 = vpack.c.bf16 %v2742, %v2741
      %v2769 = vpack.c.bf16 %v2744, %v2743
      %v2770 = vpack.c.bf16 %v2746, %v2745
      %v2771 = vpack.c.bf16 %v2748, %v2747
      %v2772 = vpack.c.bf16 %v2750, %v2749
      %v2773 = vpack.c.bf16 %v2752, %v2751
      %v2774 = vpack.c.bf16 %v2754, %v2753
      %v2775 = vpack.c.bf16 %v2756, %v2755
      %v2776 = vpack.c.bf16 %v2758, %v2757
      %v2777 = vpack.c.bf16 %v2760, %v2759
      %v2778 = vpack.c.bf16 %v2762, %v2761
      %s2779 = scalar_lea.vmem %s5, 14
      %v2780 = vld [vmem:[%s2779] sm:$0x3]
      %v2782 = vsel %vm674, %v2763, 0
      %v2785 = vsel %vm674, %v2764, 0
      %v2788 = vsel %vm674, %v2765, 0
      %v2791 = vsel %vm674, %v2766, 0
      %v2794 = vsel %vm674, %v2767, 0
      %v2797 = vsel %vm674, %v2768, 0
      %v2800 = vsel %vm674, %v2769, 0
      %v2803 = vsel %vm674, %v2770, 0
      %v2806 = vsel %vm674, %v2771, 0
      %v2809 = vsel %vm674, %v2772, 0
      %v2812 = vsel %vm674, %v2773, 0
      %v2815 = vsel %vm674, %v2774, 0
      %v2818 = vsel %vm674, %v2775, 0
      %v2821 = vsel %vm674, %v2776, 0
      %v2824 = vsel %vm674, %v2777, 0
      %v2827 = vsel %vm674, %v2778, 0
      %v2830 = vsel %vm883, %v2780, 0
      %2832 = vmatprep.subr.bf16.mxu0 0
      %2833 = vmatpush1.bf16.msra.mxu0 %v2830
      %2834 = vmatprep.subr.bf16.mxu0 0
      %2835 = vmatpush1.bf16.msra.mxu0 0
      %2836 = vmatprep.subr.bf16.mxu0 0
      %2837 = vmatpush1.bf16.msra.mxu0 0
      %2838 = vmatprep.subr.bf16.mxu0 0
      %2839 = vmatpush1.bf16.msra.mxu0 0
      %2840 = vmatprep.subr.bf16.mxu0 0
      %2841 = vmatpush1.bf16.msra.mxu0 0
      %2842 = vmatprep.subr.bf16.mxu0 0
      %2843 = vmatpush1.bf16.msra.mxu0 0
      %2844 = vmatprep.subr.bf16.mxu0 0
      %2845 = vmatpush1.bf16.msra.mxu0 0
      %2846 = vmatprep.subr.bf16.mxu0 0
      %2847 = vmatpush1.bf16.msra.mxu0 0
      %2848 = vmatprep.subr.bf16.mxu0 0
      %2849 = vmatpush1.bf16.msra.mxu0 0
      %2850 = vmatprep.subr.bf16.mxu0 0
      %2851 = vmatpush1.bf16.msra.mxu0 0
      %2852 = vmatprep.subr.bf16.mxu0 0
      %2853 = vmatpush1.bf16.msra.mxu0 0
      %2854 = vmatprep.subr.bf16.mxu0 0
      %2855 = vmatpush1.bf16.msra.mxu0 0
      %2856 = vmatprep.subr.bf16.mxu0 0
      %2857 = vmatpush1.bf16.msra.mxu0 0
      %2858 = vmatprep.subr.bf16.mxu0 0
      %2859 = vmatpush1.bf16.msra.mxu0 0
      %2860 = vmatprep.subr.bf16.mxu0 0
      %2861 = vmatpush1.bf16.msra.mxu0 0
      %2862 = vmatprep.subr.bf16.mxu0 0
      %2863 = vmatpush1.bf16.msra.mxu0 0
      %2864 = vmatprep.mubr.bf16.mxu0 0
      %2865 = vmatmul.mubr.bf16.gmra.mrb[0].mxu0 %v2782
      %v2866 = vpop.f32.mrb[0].mxu0
      %v2867 = vadd.f32 0.0, %v2866
      %v2868 = vpop.f32.mrb[0].mxu0
      %v2869 = vpop.f32.mrb[0].mxu0
      %v2870 = vadd.f32 0.0, %v2869
      %v2871 = vpop.f32.mrb[0].mxu0
      %2872 = vmatprep.mubr.bf16.mxu0 0
      %2873 = vmatmul.mubr.bf16.gmra.mrb[0].mxu0 %v2785
      %v2874 = vpop.f32.mrb[0].mxu0
      %v2875 = vadd.f32 0.0, %v2874
      %v2876 = vpop.f32.mrb[0].mxu0
      %v2877 = vpop.f32.mrb[0].mxu0
      %v2878 = vadd.f32 0.0, %v2877
      %v2879 = vpop.f32.mrb[0].mxu0
      %2880 = vmatprep.mubr.bf16.mxu0 0
      %2881 = vmatmul.mubr.bf16.gmra.mrb[0].mxu0 %v2788
      %v2882 = vpop.f32.mrb[0].mxu0
      %v2883 = vadd.f32 0.0, %v2882
      %v2884 = vpop.f32.mrb[0].mxu0
      %v2885 = vpop.f32.mrb[0].mxu0
      %v2886 = vadd.f32 0.0, %v2885
      %v2887 = vpop.f32.mrb[0].mxu0
      %2888 = vmatprep.mubr.bf16.mxu0 0
      %2889 = vmatmul.mubr.bf16.gmra.mrb[0].mxu0 %v2791
      %v2890 = vpop.f32.mrb[0].mxu0
      %v2891 = vadd.f32 0.0, %v2890
      %v2892 = vpop.f32.mrb[0].mxu0
      %v2893 = vpop.f32.mrb[0].mxu0
      %v2894 = vadd.f32 0.0, %v2893
      %v2895 = vpop.f32.mrb[0].mxu0
      %2896 = vmatprep.mubr.bf16.mxu0 0
      %2897 = vmatmul.mubr.bf16.gmra.mrb[0].mxu0 %v2794
      %v2898 = vpop.f32.mrb[0].mxu0
      %v2899 = vadd.f32 0.0, %v2898
      %v2900 = vpop.f32.mrb[0].mxu0
      %v2901 = vpop.f32.mrb[0].mxu0
      %v2902 = vadd.f32 0.0, %v2901
      %v2903 = vpop.f32.mrb[0].mxu0
      %2904 = vmatprep.mubr.bf16.mxu0 0
      %2905 = vmatmul.mubr.bf16.gmra.mrb[0].mxu0 %v2797
      %v2906 = vpop.f32.mrb[0].mxu0
      %v2907 = vadd.f32 0.0, %v2906
      %v2908 = vpop.f32.mrb[0].mxu0
      %v2909 = vpop.f32.mrb[0].mxu0
      %v2910 = vadd.f32 0.0, %v2909
      %v2911 = vpop.f32.mrb[0].mxu0
      %2912 = vmatprep.mubr.bf16.mxu0 0
      %2913 = vmatmul.mubr.bf16.gmra.mrb[0].mxu0 %v2800
      %v2914 = vpop.f32.mrb[0].mxu0
      %v2915 = vadd.f32 0.0, %v2914
      %v2916 = vpop.f32.mrb[0].mxu0
      %v2917 = vpop.f32.mrb[0].mxu0
      %v2918 = vadd.f32 0.0, %v2917
      %v2919 = vpop.f32.mrb[0].mxu0
      %2920 = vmatprep.mubr.bf16.mxu0 0
      %2921 = vmatmul.mubr.bf16.gmra.mrb[0].mxu0 %v2803
      %v2922 = vpop.f32.mrb[0].mxu0
      %v2923 = vadd.f32 0.0, %v2922
      %v2924 = vpop.f32.mrb[0].mxu0
      %v2925 = vpop.f32.mrb[0].mxu0
      %v2926 = vadd.f32 0.0, %v2925
      %v2927 = vpop.f32.mrb[0].mxu0
      %2928 = vmatprep.mubr.bf16.mxu0 0
      %2929 = vmatmul.mubr.bf16.gmra.mrb[0].mxu0 %v2806
      %v2930 = vpop.f32.mrb[0].mxu0
      %v2931 = vadd.f32 0.0, %v2930
      %v2932 = vpop.f32.mrb[0].mxu0
      %v2933 = vpop.f32.mrb[0].mxu0
      %v2934 = vadd.f32 0.0, %v2933
      %v2935 = vpop.f32.mrb[0].mxu0
      %2936 = vmatprep.mubr.bf16.mxu0 0
      %2937 = vmatmul.mubr.bf16.gmra.mrb[0].mxu0 %v2809
      %v2938 = vpop.f32.mrb[0].mxu0
      %v2939 = vadd.f32 0.0, %v2938
      %v2940 = vpop.f32.mrb[0].mxu0
      %v2941 = vpop.f32.mrb[0].mxu0
      %v2942 = vadd.f32 0.0, %v2941
      %v2943 = vpop.f32.mrb[0].mxu0
      %2944 = vmatprep.mubr.bf16.mxu0 0
      %2945 = vmatmul.mubr.bf16.gmra.mrb[0].mxu0 %v2812
      %v2946 = vpop.f32.mrb[0].mxu0
      %v2947 = vadd.f32 0.0, %v2946
      %v2948 = vpop.f32.mrb[0].mxu0
      %v2949 = vpop.f32.mrb[0].mxu0
      %v2950 = vadd.f32 0.0, %v2949
      %v2951 = vpop.f32.mrb[0].mxu0
      %2952 = vmatprep.mubr.bf16.mxu0 0
      %2953 = vmatmul.mubr.bf16.gmra.mrb[0].mxu0 %v2815
      %v2954 = vpop.f32.mrb[0].mxu0
      %v2955 = vadd.f32 0.0, %v2954
      %v2956 = vpop.f32.mrb[0].mxu0
      %v2957 = vpop.f32.mrb[0].mxu0
      %v2958 = vadd.f32 0.0, %v2957
      %v2959 = vpop.f32.mrb[0].mxu0
      %2960 = vmatprep.mubr.bf16.mxu0 0
      %2961 = vmatmul.mubr.bf16.gmra.mrb[0].mxu0 %v2818
      %v2962 = vpop.f32.mrb[0].mxu0
      %v2963 = vadd.f32 0.0, %v2962
      %v2964 = vpop.f32.mrb[0].mxu0
      %v2965 = vpop.f32.mrb[0].mxu0
      %v2966 = vadd.f32 0.0, %v2965
      %v2967 = vpop.f32.mrb[0].mxu0
      %2968 = vmatprep.mubr.bf16.mxu0 0
      %2969 = vmatmul.mubr.bf16.gmra.mrb[0].mxu0 %v2821
      %v2970 = vpop.f32.mrb[0].mxu0
      %v2971 = vadd.f32 0.0, %v2970
      %v2972 = vpop.f32.mrb[0].mxu0
      %v2973 = vpop.f32.mrb[0].mxu0
      %v2974 = vadd.f32 0.0, %v2973
      %v2975 = vpop.f32.mrb[0].mxu0
      %2976 = vmatprep.mubr.bf16.mxu0 0
      %2977 = vmatmul.mubr.bf16.gmra.mrb[0].mxu0 %v2824
      %v2978 = vpop.f32.mrb[0].mxu0
      %v2979 = vadd.f32 0.0, %v2978
      %v2980 = vpop.f32.mrb[0].mxu0
      %v2981 = vpop.f32.mrb[0].mxu0
      %v2982 = vadd.f32 0.0, %v2981
      %v2983 = vpop.f32.mrb[0].mxu0
      %2984 = vmatprep.mubr.bf16.mxu0 0
      %2985 = vmatmul.mubr.bf16.gmra.mrb[0].mxu0 %v2827
      %v2986 = vpop.f32.mrb[0].mxu0
      %v2987 = vadd.f32 0.0, %v2986
      %v2988 = vpop.f32.mrb[0].mxu0
      %v2989 = vpop.f32.mrb[0].mxu0
      %v2990 = vadd.f32 0.0, %v2989
      %v2991 = vpop.f32.mrb[0].mxu0
      %2992 = vdwg.mxu0
      %v2993 = vadd.f32 %v2699, %v2867
      %v2994 = vadd.f32 %v2700, %v2870
      %v2995 = vadd.f32 %v2701, %v2875
      %v2996 = vadd.f32 %v2702, %v2878
      %v2997 = vadd.f32 %v2703, %v2883
      %v2998 = vadd.f32 %v2704, %v2886
      %v2999 = vadd.f32 %v2705, %v2891
      %v3000 = vadd.f32 %v2706, %v2894
      %v3001 = vadd.f32 %v2707, %v2899
      %v3002 = vadd.f32 %v2708, %v2902
      %v3003 = vadd.f32 %v2709, %v2907
      %v3004 = vadd.f32 %v2710, %v2910
      %v3005 = vadd.f32 %v2711, %v2915
      %v3006 = vadd.f32 %v2712, %v2918
      %v3007 = vadd.f32 %v2713, %v2923
      %v3008 = vadd.f32 %v2714, %v2926
      %v3009 = vadd.f32 %v2715, %v2931
      %v3010 = vadd.f32 %v2716, %v2934
      %v3011 = vadd.f32 %v2717, %v2939
      %v3012 = vadd.f32 %v2718, %v2942
      %v3013 = vadd.f32 %v2719, %v2947
      %v3014 = vadd.f32 %v2720, %v2950
      %v3015 = vadd.f32 %v2721, %v2955
      %v3016 = vadd.f32 %v2722, %v2958
      %v3017 = vadd.f32 %v2723, %v2963
      %v3018 = vadd.f32 %v2724, %v2966
      %v3019 = vadd.f32 %v2725, %v2971
      %v3020 = vadd.f32 %v2726, %v2974
      %v3021 = vadd.f32 %v2727, %v2979
      %v3022 = vadd.f32 %v2728, %v2982
      %v3023 = vadd.f32 %v2729, %v2987
      %v3024 = vadd.f32 %v2730, %v2990
      %v3025 = vld [vmem:[%s2436 + $0x2] sm:$0xff]
      %v3026 = vld [vmem:[%s2436 + $0xa] sm:$0xff]
      %v3027 = vld [vmem:[%s2436 + $0x1a] sm:$0xff]
      %v3028 = vld [vmem:[%s2436 + $0x22] sm:$0xff]
      %v3029 = vld [vmem:[%s2436 + $0x32] sm:$0xff]
      %v3030 = vld [vmem:[%s2436 + $0x3a] sm:$0xff]
      %v3031 = vld [vmem:[%s2436 + $0x4a] sm:$0xff]
      %v3032 = vld [vmem:[%s2436 + $0x52] sm:$0xff]
      %v3033 = vld [vmem:[%s2436 + $0x62] sm:$0xff]
      %v3034 = vld [vmem:[%s2436 + $0x6a] sm:$0xff]
      %v3035 = vld [vmem:[%s2436 + $0x7a] sm:$0xff]
      %v3036 = vld [vmem:[%s2436 + $0x82] sm:$0xff]
      %v3037 = vld [vmem:[%s2436 + $0x92] sm:$0xff]
      %v3038 = vld [vmem:[%s2436 + $0x9a] sm:$0xff]
      %v3039 = vld [vmem:[%s2436 + $0xaa] sm:$0xff]
      %v3040 = vld [vmem:[%s2436 + $0xb2] sm:$0xff]
      %v3041 = vld [vmem:[%s2436 + $0xc2] sm:$0xff]
      %v3042 = vld [vmem:[%s2436 + $0xca] sm:$0xff]
      %v3043 = vld [vmem:[%s2436 + $0xda] sm:$0xff]
      %v3044 = vld [vmem:[%s2436 + $0xe2] sm:$0xff]
      %v3045 = vld [vmem:[%s2436 + $0xf2] sm:$0xff]
      %v3046 = vld [vmem:[%s2436 + $0xfa] sm:$0xff]
      %v3047 = vld [vmem:[%s2436 + $0x10a] sm:$0xff]
      %v3048 = vld [vmem:[%s2436 + $0x112] sm:$0xff]
      %v3049 = vld [vmem:[%s2436 + $0x122] sm:$0xff]
      %v3050 = vld [vmem:[%s2436 + $0x12a] sm:$0xff]
      %v3051 = vld [vmem:[%s2436 + $0x13a] sm:$0xff]
      %v3052 = vld [vmem:[%s2436 + $0x142] sm:$0xff]
      %v3053 = vld [vmem:[%s2436 + $0x152] sm:$0xff]
      %v3054 = vld [vmem:[%s2436 + $0x15a] sm:$0xff]
      %v3055 = vld [vmem:[%s2436 + $0x16a] sm:$0xff]
      %v3056 = vld [vmem:[%s2436 + $0x172] sm:$0xff]
      %v3057 = vpack.c.bf16 %v3026, %v3025
      %v3058 = vpack.c.bf16 %v3028, %v3027
      %v3059 = vpack.c.bf16 %v3030, %v3029
      %v3060 = vpack.c.bf16 %v3032, %v3031
      %v3061 = vpack.c.bf16 %v3034, %v3033
      %v3062 = vpack.c.bf16 %v3036, %v3035
      %v3063 = vpack.c.bf16 %v3038, %v3037
      %v3064 = vpack.c.bf16 %v3040, %v3039
      %v3065 = vpack.c.bf16 %v3042, %v3041
      %v3066 = vpack.c.bf16 %v3044, %v3043
      %v3067 = vpack.c.bf16 %v3046, %v3045
      %v3068 = vpack.c.bf16 %v3048, %v3047
      %v3069 = vpack.c.bf16 %v3050, %v3049
      %v3070 = vpack.c.bf16 %v3052, %v3051
      %v3071 = vpack.c.bf16 %v3054, %v3053
      %v3072 = vpack.c.bf16 %v3056, %v3055
      %s3073 = scalar_lea.vmem %s5, 16
      %v3074 = vld [vmem:[%s3073] sm:$0x3]
      %v3076 = vsel %vm674, %v3057, 0
      %v3079 = vsel %vm674, %v3058, 0
      %v3082 = vsel %vm674, %v3059, 0
      %v3085 = vsel %vm674, %v3060, 0
      %v3088 = vsel %vm674, %v3061, 0
      %v3091 = vsel %vm674, %v3062, 0
      %v3094 = vsel %vm674, %v3063, 0
      %v3097 = vsel %vm674, %v3064, 0
      %v3100 = vsel %vm674, %v3065, 0
      %v3103 = vsel %vm674, %v3066, 0
      %v3106 = vsel %vm674, %v3067, 0
      %v3109 = vsel %vm674, %v3068, 0
      %v3112 = vsel %vm674, %v3069, 0
      %v3115 = vsel %vm674, %v3070, 0
      %v3118 = vsel %vm674, %v3071, 0
      %v3121 = vsel %vm674, %v3072, 0
      %v3124 = vsel %vm883, %v3074, 0
      %3126 = vmatprep.subr.bf16.mxu0 0
      %3127 = vmatpush1.bf16.msra.mxu0 %v3124
      %3128 = vmatprep.subr.bf16.mxu0 0
      %3129 = vmatpush1.bf16.msra.mxu0 0
      %3130 = vmatprep.subr.bf16.mxu0 0
      %3131 = vmatpush1.bf16.msra.mxu0 0
      %3132 = vmatprep.subr.bf16.mxu0 0
      %3133 = vmatpush1.bf16.msra.mxu0 0
      %3134 = vmatprep.subr.bf16.mxu0 0
      %3135 = vmatpush1.bf16.msra.mxu0 0
      %3136 = vmatprep.subr.bf16.mxu0 0
      %3137 = vmatpush1.bf16.msra.mxu0 0
      %3138 = vmatprep.subr.bf16.mxu0 0
      %3139 = vmatpush1.bf16.msra.mxu0 0
      %3140 = vmatprep.subr.bf16.mxu0 0
      %3141 = vmatpush1.bf16.msra.mxu0 0
      %3142 = vmatprep.subr.bf16.mxu0 0
      %3143 = vmatpush1.bf16.msra.mxu0 0
      %3144 = vmatprep.subr.bf16.mxu0 0
      %3145 = vmatpush1.bf16.msra.mxu0 0
      %3146 = vmatprep.subr.bf16.mxu0 0
      %3147 = vmatpush1.bf16.msra.mxu0 0
      %3148 = vmatprep.subr.bf16.mxu0 0
      %3149 = vmatpush1.bf16.msra.mxu0 0
      %3150 = vmatprep.subr.bf16.mxu0 0
      %3151 = vmatpush1.bf16.msra.mxu0 0
      %3152 = vmatprep.subr.bf16.mxu0 0
      %3153 = vmatpush1.bf16.msra.mxu0 0
      %3154 = vmatprep.subr.bf16.mxu0 0
      %3155 = vmatpush1.bf16.msra.mxu0 0
      %3156 = vmatprep.subr.bf16.mxu0 0
      %3157 = vmatpush1.bf16.msra.mxu0 0
      %3158 = vmatprep.mubr.bf16.mxu0 0
      %3159 = vmatmul.mubr.bf16.gmra.mrb[0].mxu0 %v3076
      %v3160 = vpop.f32.mrb[0].mxu0
      %v3161 = vadd.f32 0.0, %v3160
      %v3162 = vpop.f32.mrb[0].mxu0
      %v3163 = vpop.f32.mrb[0].mxu0
      %v3164 = vadd.f32 0.0, %v3163
      %v3165 = vpop.f32.mrb[0].mxu0
      %3166 = vmatprep.mubr.bf16.mxu0 0
      %3167 = vmatmul.mubr.bf16.gmra.mrb[0].mxu0 %v3079
      %v3168 = vpop.f32.mrb[0].mxu0
      %v3169 = vadd.f32 0.0, %v3168
      %v3170 = vpop.f32.mrb[0].mxu0
      %v3171 = vpop.f32.mrb[0].mxu0
      %v3172 = vadd.f32 0.0, %v3171
      %v3173 = vpop.f32.mrb[0].mxu0
      %3174 = vmatprep.mubr.bf16.mxu0 0
      %3175 = vmatmul.mubr.bf16.gmra.mrb[0].mxu0 %v3082
      %v3176 = vpop.f32.mrb[0].mxu0
      %v3177 = vadd.f32 0.0, %v3176
      %v3178 = vpop.f32.mrb[0].mxu0
      %v3179 = vpop.f32.mrb[0].mxu0
      %v3180 = vadd.f32 0.0, %v3179
      %v3181 = vpop.f32.mrb[0].mxu0
      %3182 = vmatprep.mubr.bf16.mxu0 0
      %3183 = vmatmul.mubr.bf16.gmra.mrb[0].mxu0 %v3085
      %v3184 = vpop.f32.mrb[0].mxu0
      %v3185 = vadd.f32 0.0, %v3184
      %v3186 = vpop.f32.mrb[0].mxu0
      %v3187 = vpop.f32.mrb[0].mxu0
      %v3188 = vadd.f32 0.0, %v3187
      %v3189 = vpop.f32.mrb[0].mxu0
      %3190 = vmatprep.mubr.bf16.mxu0 0
      %3191 = vmatmul.mubr.bf16.gmra.mrb[0].mxu0 %v3088
      %v3192 = vpop.f32.mrb[0].mxu0
      %v3193 = vadd.f32 0.0, %v3192
      %v3194 = vpop.f32.mrb[0].mxu0
      %v3195 = vpop.f32.mrb[0].mxu0
      %v3196 = vadd.f32 0.0, %v3195
      %v3197 = vpop.f32.mrb[0].mxu0
      %3198 = vmatprep.mubr.bf16.mxu0 0
      %3199 = vmatmul.mubr.bf16.gmra.mrb[0].mxu0 %v3091
      %v3200 = vpop.f32.mrb[0].mxu0
      %v3201 = vadd.f32 0.0, %v3200
      %v3202 = vpop.f32.mrb[0].mxu0
      %v3203 = vpop.f32.mrb[0].mxu0
      %v3204 = vadd.f32 0.0, %v3203
      %v3205 = vpop.f32.mrb[0].mxu0
      %3206 = vmatprep.mubr.bf16.mxu0 0
      %3207 = vmatmul.mubr.bf16.gmra.mrb[0].mxu0 %v3094
      %v3208 = vpop.f32.mrb[0].mxu0
      %v3209 = vadd.f32 0.0, %v3208
      %v3210 = vpop.f32.mrb[0].mxu0
      %v3211 = vpop.f32.mrb[0].mxu0
      %v3212 = vadd.f32 0.0, %v3211
      %v3213 = vpop.f32.mrb[0].mxu0
      %3214 = vmatprep.mubr.bf16.mxu0 0
      %3215 = vmatmul.mubr.bf16.gmra.mrb[0].mxu0 %v3097
      %v3216 = vpop.f32.mrb[0].mxu0
      %v3217 = vadd.f32 0.0, %v3216
      %v3218 = vpop.f32.mrb[0].mxu0
      %v3219 = vpop.f32.mrb[0].mxu0
      %v3220 = vadd.f32 0.0, %v3219
      %v3221 = vpop.f32.mrb[0].mxu0
      %3222 = vmatprep.mubr.bf16.mxu0 0
      %3223 = vmatmul.mubr.bf16.gmra.mrb[0].mxu0 %v3100
      %v3224 = vpop.f32.mrb[0].mxu0
      %v3225 = vadd.f32 0.0, %v3224
      %v3226 = vpop.f32.mrb[0].mxu0
      %v3227 = vpop.f32.mrb[0].mxu0
      %v3228 = vadd.f32 0.0, %v3227
      %v3229 = vpop.f32.mrb[0].mxu0
      %3230 = vmatprep.mubr.bf16.mxu0 0
      %3231 = vmatmul.mubr.bf16.gmra.mrb[0].mxu0 %v3103
      %v3232 = vpop.f32.mrb[0].mxu0
      %v3233 = vadd.f32 0.0, %v3232
      %v3234 = vpop.f32.mrb[0].mxu0
      %v3235 = vpop.f32.mrb[0].mxu0
      %v3236 = vadd.f32 0.0, %v3235
      %v3237 = vpop.f32.mrb[0].mxu0
      %3238 = vmatprep.mubr.bf16.mxu0 0
      %3239 = vmatmul.mubr.bf16.gmra.mrb[0].mxu0 %v3106
      %v3240 = vpop.f32.mrb[0].mxu0
      %v3241 = vadd.f32 0.0, %v3240
      %v3242 = vpop.f32.mrb[0].mxu0
      %v3243 = vpop.f32.mrb[0].mxu0
      %v3244 = vadd.f32 0.0, %v3243
      %v3245 = vpop.f32.mrb[0].mxu0
      %3246 = vmatprep.mubr.bf16.mxu0 0
      %3247 = vmatmul.mubr.bf16.gmra.mrb[0].mxu0 %v3109
      %v3248 = vpop.f32.mrb[0].mxu0
      %v3249 = vadd.f32 0.0, %v3248
      %v3250 = vpop.f32.mrb[0].mxu0
      %v3251 = vpop.f32.mrb[0].mxu0
      %v3252 = vadd.f32 0.0, %v3251
      %v3253 = vpop.f32.mrb[0].mxu0
      %3254 = vmatprep.mubr.bf16.mxu0 0
      %3255 = vmatmul.mubr.bf16.gmra.mrb[0].mxu0 %v3112
      %v3256 = vpop.f32.mrb[0].mxu0
      %v3257 = vadd.f32 0.0, %v3256
      %v3258 = vpop.f32.mrb[0].mxu0
      %v3259 = vpop.f32.mrb[0].mxu0
      %v3260 = vadd.f32 0.0, %v3259
      %v3261 = vpop.f32.mrb[0].mxu0
      %3262 = vmatprep.mubr.bf16.mxu0 0
      %3263 = vmatmul.mubr.bf16.gmra.mrb[0].mxu0 %v3115
      %v3264 = vpop.f32.mrb[0].mxu0
      %v3265 = vadd.f32 0.0, %v3264
      %v3266 = vpop.f32.mrb[0].mxu0
      %v3267 = vpop.f32.mrb[0].mxu0
      %v3268 = vadd.f32 0.0, %v3267
      %v3269 = vpop.f32.mrb[0].mxu0
      %3270 = vmatprep.mubr.bf16.mxu0 0
      %3271 = vmatmul.mubr.bf16.gmra.mrb[0].mxu0 %v3118
      %v3272 = vpop.f32.mrb[0].mxu0
      %v3273 = vadd.f32 0.0, %v3272
      %v3274 = vpop.f32.mrb[0].mxu0
      %v3275 = vpop.f32.mrb[0].mxu0
      %v3276 = vadd.f32 0.0, %v3275
      %v3277 = vpop.f32.mrb[0].mxu0
      %3278 = vmatprep.mubr.bf16.mxu0 0
      %3279 = vmatmul.mubr.bf16.gmra.mrb[0].mxu0 %v3121
      %v3280 = vpop.f32.mrb[0].mxu0
      %v3281 = vadd.f32 0.0, %v3280
      %v3282 = vpop.f32.mrb[0].mxu0
      %v3283 = vpop.f32.mrb[0].mxu0
      %v3284 = vadd.f32 0.0, %v3283
      %v3285 = vpop.f32.mrb[0].mxu0
      %3286 = vdwg.mxu0
      %v3287 = vadd.f32 %v2993, %v3161
      %v3288 = vadd.f32 %v2994, %v3164
      %v3289 = vadd.f32 %v2995, %v3169
      %v3290 = vadd.f32 %v2996, %v3172
      %v3291 = vadd.f32 %v2997, %v3177
      %v3292 = vadd.f32 %v2998, %v3180
      %v3293 = vadd.f32 %v2999, %v3185
      %v3294 = vadd.f32 %v3000, %v3188
      %v3295 = vadd.f32 %v3001, %v3193
      %v3296 = vadd.f32 %v3002, %v3196
      %v3297 = vadd.f32 %v3003, %v3201
      %v3298 = vadd.f32 %v3004, %v3204
      %v3299 = vadd.f32 %v3005, %v3209
      %v3300 = vadd.f32 %v3006, %v3212
      %v3301 = vadd.f32 %v3007, %v3217
      %v3302 = vadd.f32 %v3008, %v3220
      %v3303 = vadd.f32 %v3009, %v3225
      %v3304 = vadd.f32 %v3010, %v3228
      %v3305 = vadd.f32 %v3011, %v3233
      %v3306 = vadd.f32 %v3012, %v3236
      %v3307 = vadd.f32 %v3013, %v3241
      %v3308 = vadd.f32 %v3014, %v3244
      %v3309 = vadd.f32 %v3015, %v3249
      %v3310 = vadd.f32 %v3016, %v3252
      %v3311 = vadd.f32 %v3017, %v3257
      %v3312 = vadd.f32 %v3018, %v3260
      %v3313 = vadd.f32 %v3019, %v3265
      %v3314 = vadd.f32 %v3020, %v3268
      %v3315 = vadd.f32 %v3021, %v3273
      %v3316 = vadd.f32 %v3022, %v3276
      %v3317 = vadd.f32 %v3023, %v3281
      %v3318 = vadd.f32 %v3024, %v3284
      %v3319 = vld [vmem:[%s6] sm:$0x1]
      %v3321 = vlaneseq
      %v3322 = vshrl.u32 %v3321, 7
      %v3323 = vsub.s32 0, %v3322
      %v3324 = vrot.slane %v3319, %v3323
      %v3326 = vadd.f32 %v3287, %v3324
      %v3327 = vadd.f32 %v3288, %v3324
      %v3328 = vadd.f32 %v3289, %v3324
      %v3329 = vadd.f32 %v3290, %v3324
      %v3330 = vadd.f32 %v3291, %v3324
      %v3331 = vadd.f32 %v3292, %v3324
      %v3332 = vadd.f32 %v3293, %v3324
      %v3333 = vadd.f32 %v3294, %v3324
      %v3334 = vadd.f32 %v3295, %v3324
      %v3335 = vadd.f32 %v3296, %v3324
      %v3336 = vadd.f32 %v3297, %v3324
      %v3337 = vadd.f32 %v3298, %v3324
      %v3338 = vadd.f32 %v3299, %v3324
      %v3339 = vadd.f32 %v3300, %v3324
      %v3340 = vadd.f32 %v3301, %v3324
      %v3341 = vadd.f32 %v3302, %v3324
      %v3342 = vadd.f32 %v3303, %v3324
      %v3343 = vadd.f32 %v3304, %v3324
      %v3344 = vadd.f32 %v3305, %v3324
      %v3345 = vadd.f32 %v3306, %v3324
      %v3346 = vadd.f32 %v3307, %v3324
      %v3347 = vadd.f32 %v3308, %v3324
      %v3348 = vadd.f32 %v3309, %v3324
      %v3349 = vadd.f32 %v3310, %v3324
      %v3350 = vadd.f32 %v3311, %v3324
      %v3351 = vadd.f32 %v3312, %v3324
      %v3352 = vadd.f32 %v3313, %v3324
      %v3353 = vadd.f32 %v3314, %v3324
      %v3354 = vadd.f32 %v3315, %v3324
      %v3355 = vadd.f32 %v3316, %v3324
      %v3356 = vadd.f32 %v3317, %v3324
      %v3357 = vadd.f32 %v3318, %v3324
      %v3358 = vpack.c.bf16 %v3327, %v3326
      %v3359 = vpack.c.bf16 %v3329, %v3328
      %v3360 = vpack.c.bf16 %v3331, %v3330
      %v3361 = vpack.c.bf16 %v3333, %v3332
      %v3362 = vpack.c.bf16 %v3335, %v3334
      %v3363 = vpack.c.bf16 %v3337, %v3336
      %v3364 = vpack.c.bf16 %v3339, %v3338
      %v3365 = vpack.c.bf16 %v3341, %v3340
      %v3366 = vpack.c.bf16 %v3343, %v3342
      %v3367 = vpack.c.bf16 %v3345, %v3344
      %v3368 = vpack.c.bf16 %v3347, %v3346
      %v3369 = vpack.c.bf16 %v3349, %v3348
      %v3370 = vpack.c.bf16 %v3351, %v3350
      %v3371 = vpack.c.bf16 %v3353, %v3352
      %v3372 = vpack.c.bf16 %v3355, %v3354
      %v3373 = vpack.c.bf16 %v3357, %v3356
      %v3390 = vunpack.c.l.b16 %v3358
      %v3391 = vunpack.c.h.b16 %v3358
      %v3392 = vunpack.c.l.b16 %v3359
      %v3393 = vunpack.c.h.b16 %v3359
      %v3394 = vunpack.c.l.b16 %v3360
      %v3395 = vunpack.c.h.b16 %v3360
      %v3396 = vunpack.c.l.b16 %v3361
      %v3397 = vunpack.c.h.b16 %v3361
      %v3398 = vunpack.c.l.b16 %v3362
      %v3399 = vunpack.c.h.b16 %v3362
      %v3400 = vunpack.c.l.b16 %v3363
      %v3401 = vunpack.c.h.b16 %v3363
      %v3402 = vunpack.c.l.b16 %v3364
      %v3403 = vunpack.c.h.b16 %v3364
      %v3404 = vunpack.c.l.b16 %v3365
      %v3405 = vunpack.c.h.b16 %v3365
      %v3406 = vunpack.c.l.b16 %v3366
      %v3407 = vunpack.c.h.b16 %v3366
      %v3408 = vunpack.c.l.b16 %v3367
      %v3409 = vunpack.c.h.b16 %v3367
      %v3410 = vunpack.c.l.b16 %v3368
      %v3411 = vunpack.c.h.b16 %v3368
      %v3412 = vunpack.c.l.b16 %v3369
      %v3413 = vunpack.c.h.b16 %v3369
      %v3414 = vunpack.c.l.b16 %v3370
      %v3415 = vunpack.c.h.b16 %v3370
      %v3416 = vunpack.c.l.b16 %v3371
      %v3417 = vunpack.c.h.b16 %v3371
      %v3418 = vunpack.c.l.b16 %v3372
      %v3419 = vunpack.c.h.b16 %v3372
      %v3420 = vunpack.c.l.b16 %v3373
      %v3421 = vunpack.c.h.b16 %v3373
      %v3422 = vpack.c.b16 %v3390, %v3390
      %v3423 = vpack.c.b16 %v3391, %v3391
      %v3424 = vpack.c.b16 %v3392, %v3392
      %v3425 = vpack.c.b16 %v3393, %v3393
      %v3426 = vpack.c.b16 %v3394, %v3394
      %v3427 = vpack.c.b16 %v3395, %v3395
      %v3428 = vpack.c.b16 %v3396, %v3396
      %v3429 = vpack.c.b16 %v3397, %v3397
      %v3430 = vpack.c.b16 %v3398, %v3398
      %v3431 = vpack.c.b16 %v3399, %v3399
      %v3432 = vpack.c.b16 %v3400, %v3400
      %v3433 = vpack.c.b16 %v3401, %v3401
      %v3434 = vpack.c.b16 %v3402, %v3402
      %v3435 = vpack.c.b16 %v3403, %v3403
      %v3436 = vpack.c.b16 %v3404, %v3404
      %v3437 = vpack.c.b16 %v3405, %v3405
      %v3438 = vpack.c.b16 %v3406, %v3406
      %v3439 = vpack.c.b16 %v3407, %v3407
      %v3440 = vpack.c.b16 %v3408, %v3408
      %v3441 = vpack.c.b16 %v3409, %v3409
      %v3442 = vpack.c.b16 %v3410, %v3410
      %v3443 = vpack.c.b16 %v3411, %v3411
      %v3444 = vpack.c.b16 %v3412, %v3412
      %v3445 = vpack.c.b16 %v3413, %v3413
      %v3446 = vpack.c.b16 %v3414, %v3414
      %v3447 = vpack.c.b16 %v3415, %v3415
      %v3448 = vpack.c.b16 %v3416, %v3416
      %v3449 = vpack.c.b16 %v3417, %v3417
      %v3450 = vpack.c.b16 %v3418, %v3418
      %v3451 = vpack.c.b16 %v3419, %v3419
      %v3452 = vpack.c.b16 %v3420, %v3420
      %v3453 = vpack.c.b16 %v3421, %v3421
      %vm3486 = vcmask 60416
      %3487 = vst.msk [vmem:[%s484] sm:$0xf] %vm3486, %v3422
      %3488 = vst.msk [vmem:[%s484 + $0x4] sm:$0xf] %vm3486, %v3423
      %3489 = vst.msk [vmem:[%s484 + $0x8] sm:$0xf] %vm3486, %v3424
      %3490 = vst.msk [vmem:[%s484 + $0xc] sm:$0xf] %vm3486, %v3425
      %3491 = vst.msk [vmem:[%s484 + $0x10] sm:$0xf] %vm3486, %v3426
      %3492 = vst.msk [vmem:[%s484 + $0x14] sm:$0xf] %vm3486, %v3427
      %3493 = vst.msk [vmem:[%s484 + $0x18] sm:$0xf] %vm3486, %v3428
      %3494 = vst.msk [vmem:[%s484 + $0x1c] sm:$0xf] %vm3486, %v3429
      %3495 = vst.msk [vmem:[%s484 + $0x20] sm:$0xf] %vm3486, %v3430
      %3496 = vst.msk [vmem:[%s484 + $0x24] sm:$0xf] %vm3486, %v3431
      %3497 = vst.msk [vmem:[%s484 + $0x28] sm:$0xf] %vm3486, %v3432
      %3498 = vst.msk [vmem:[%s484 + $0x2c] sm:$0xf] %vm3486, %v3433
      %3499 = vst.msk [vmem:[%s484 + $0x30] sm:$0xf] %vm3486, %v3434
      %3500 = vst.msk [vmem:[%s484 + $0x34] sm:$0xf] %vm3486, %v3435
      %3501 = vst.msk [vmem:[%s484 + $0x38] sm:$0xf] %vm3486, %v3436
      %3502 = vst.msk [vmem:[%s484 + $0x3c] sm:$0xf] %vm3486, %v3437
      %3503 = vst.msk [vmem:[%s484 + $0x40] sm:$0xf] %vm3486, %v3438
      %3504 = vst.msk [vmem:[%s484 + $0x44] sm:$0xf] %vm3486, %v3439
      %3505 = vst.msk [vmem:[%s484 + $0x48] sm:$0xf] %vm3486, %v3440
      %3506 = vst.msk [vmem:[%s484 + $0x4c] sm:$0xf] %vm3486, %v3441
      %3507 = vst.msk [vmem:[%s484 + $0x50] sm:$0xf] %vm3486, %v3442
      %3508 = vst.msk [vmem:[%s484 + $0x54] sm:$0xf] %vm3486, %v3443
      %3509 = vst.msk [vmem:[%s484 + $0x58] sm:$0xf] %vm3486, %v3444
      %3510 = vst.msk [vmem:[%s484 + $0x5c] sm:$0xf] %vm3486, %v3445
      %3511 = vst.msk [vmem:[%s484 + $0x60] sm:$0xf] %vm3486, %v3446
      %3512 = vst.msk [vmem:[%s484 + $0x64] sm:$0xf] %vm3486, %v3447
      %3513 = vst.msk [vmem:[%s484 + $0x68] sm:$0xf] %vm3486, %v3448
      %3514 = vst.msk [vmem:[%s484 + $0x6c] sm:$0xf] %vm3486, %v3449
      %3515 = vst.msk [vmem:[%s484 + $0x70] sm:$0xf] %vm3486, %v3450
      %3516 = vst.msk [vmem:[%s484 + $0x74] sm:$0xf] %vm3486, %v3451
      %3517 = vst.msk [vmem:[%s484 + $0x78] sm:$0xf] %vm3486, %v3452
      %3518 = vst.msk [vmem:[%s484 + $0x7c] sm:$0xf] %vm3486, %v3453
      %vm3519 = vcmask 64512
      %v3520 = vsel %vm3519, %v3326, 0.0
      %v3521 = vsel %vm3519, %v3327, 0.0
      %v3522 = vadd.f32 %v3520, %v3521
      %v3523 = vsel %vm3519, %v3328, 0.0
      %v3524 = vadd.f32 %v3522, %v3523
      %v3525 = vsel %vm3519, %v3329, 0.0
      %v3526 = vadd.f32 %v3524, %v3525
      %v3527 = vsel %vm3519, %v3330, 0.0
      %v3528 = vadd.f32 %v3526, %v3527
      %v3529 = vsel %vm3519, %v3331, 0.0
      %v3530 = vadd.f32 %v3528, %v3529
      %v3531 = vsel %vm3519, %v3332, 0.0
      %v3532 = vadd.f32 %v3530, %v3531
      %v3533 = vsel %vm3519, %v3333, 0.0
      %v3534 = vadd.f32 %v3532, %v3533
      %v3535 = vsel %vm3519, %v3334, 0.0
      %v3536 = vadd.f32 %v3534, %v3535
      %v3537 = vsel %vm3519, %v3335, 0.0
      %v3538 = vadd.f32 %v3536, %v3537
      %v3539 = vsel %vm3519, %v3336, 0.0
      %v3540 = vadd.f32 %v3538, %v3539
      %v3541 = vsel %vm3519, %v3337, 0.0
      %v3542 = vadd.f32 %v3540, %v3541
      %v3543 = vsel %vm3519, %v3338, 0.0
      %v3544 = vadd.f32 %v3542, %v3543
      %v3545 = vsel %vm3519, %v3339, 0.0
      %v3546 = vadd.f32 %v3544, %v3545
      %v3547 = vsel %vm3519, %v3340, 0.0
      %v3548 = vadd.f32 %v3546, %v3547
      %v3549 = vsel %vm3519, %v3341, 0.0
      %v3550 = vadd.f32 %v3548, %v3549
      %v3551 = vsel %vm3519, %v3342, 0.0
      %v3552 = vadd.f32 %v3550, %v3551
      %v3553 = vsel %vm3519, %v3343, 0.0
      %v3554 = vadd.f32 %v3552, %v3553
      %v3555 = vsel %vm3519, %v3344, 0.0
      %v3556 = vadd.f32 %v3554, %v3555
      %v3557 = vsel %vm3519, %v3345, 0.0
      %v3558 = vadd.f32 %v3556, %v3557
      %v3559 = vsel %vm3519, %v3346, 0.0
      %v3560 = vadd.f32 %v3558, %v3559
      %v3561 = vsel %vm3519, %v3347, 0.0
      %v3562 = vadd.f32 %v3560, %v3561
      %v3563 = vsel %vm3519, %v3348, 0.0
      %v3564 = vadd.f32 %v3562, %v3563
      %v3565 = vsel %vm3519, %v3349, 0.0
      %v3566 = vadd.f32 %v3564, %v3565
      %v3567 = vsel %vm3519, %v3350, 0.0
      %v3568 = vadd.f32 %v3566, %v3567
      %v3569 = vsel %vm3519, %v3351, 0.0
      %v3570 = vadd.f32 %v3568, %v3569
      %v3571 = vsel %vm3519, %v3352, 0.0
      %v3572 = vadd.f32 %v3570, %v3571
      %v3573 = vsel %vm3519, %v3353, 0.0
      %v3574 = vadd.f32 %v3572, %v3573
      %v3575 = vsel %vm3519, %v3354, 0.0
      %v3576 = vadd.f32 %v3574, %v3575
      %v3577 = vsel %vm3519, %v3355, 0.0
      %v3578 = vadd.f32 %v3576, %v3577
      %v3579 = vsel %vm3519, %v3356, 0.0
      %v3580 = vadd.f32 %v3578, %v3579
      %v3581 = vsel %vm3519, %v3357, 0.0
      %v3582 = vadd.f32 %v3580, %v3581
      %v3583 = vrot.slane %v3582, 4
      %v3584 = vadd.f32 %v3582, %v3583
      %v3585 = vrot.slane %v3584, 2
      %v3586 = vadd.f32 %v3584, %v3585
      %v3587 = vrot.slane %v3586, 1
      %v3588 = vadd.f32 %v3586, %v3587
      %vm3589 = vcmask 57344
      %3590 = vst.msk [vmem:[%s492] sm:$0x1] %vm3589, %v3588
      %v3591 = vmul.f32 %v3326, %v3326
      %v3592 = vmul.f32 %v3327, %v3327
      %v3593 = vmul.f32 %v3328, %v3328
      %v3594 = vmul.f32 %v3329, %v3329
      %v3595 = vmul.f32 %v3330, %v3330
      %v3596 = vmul.f32 %v3331, %v3331
      %v3597 = vmul.f32 %v3332, %v3332
      %v3598 = vmul.f32 %v3333, %v3333
      %v3599 = vmul.f32 %v3334, %v3334
      %v3600 = vmul.f32 %v3335, %v3335
      %v3601 = vmul.f32 %v3336, %v3336
      %v3602 = vmul.f32 %v3337, %v3337
      %v3603 = vmul.f32 %v3338, %v3338
      %v3604 = vmul.f32 %v3339, %v3339
      %v3605 = vmul.f32 %v3340, %v3340
      %v3606 = vmul.f32 %v3341, %v3341
      %v3607 = vmul.f32 %v3342, %v3342
      %v3608 = vmul.f32 %v3343, %v3343
      %v3609 = vmul.f32 %v3344, %v3344
      %v3610 = vmul.f32 %v3345, %v3345
      %v3611 = vmul.f32 %v3346, %v3346
      %v3612 = vmul.f32 %v3347, %v3347
      %v3613 = vmul.f32 %v3348, %v3348
      %v3614 = vmul.f32 %v3349, %v3349
      %v3615 = vmul.f32 %v3350, %v3350
      %v3616 = vmul.f32 %v3351, %v3351
      %v3617 = vmul.f32 %v3352, %v3352
      %v3618 = vmul.f32 %v3353, %v3353
      %v3619 = vmul.f32 %v3354, %v3354
      %v3620 = vmul.f32 %v3355, %v3355
      %v3621 = vmul.f32 %v3356, %v3356
      %v3622 = vmul.f32 %v3357, %v3357
      %v3623 = vsel %vm3519, %v3591, 0.0
      %v3624 = vsel %vm3519, %v3592, 0.0
      %v3625 = vadd.f32 %v3623, %v3624
      %v3626 = vsel %vm3519, %v3593, 0.0
      %v3627 = vadd.f32 %v3625, %v3626
      %v3628 = vsel %vm3519, %v3594, 0.0
      %v3629 = vadd.f32 %v3627, %v3628
      %v3630 = vsel %vm3519, %v3595, 0.0
      %v3631 = vadd.f32 %v3629, %v3630
      %v3632 = vsel %vm3519, %v3596, 0.0
      %v3633 = vadd.f32 %v3631, %v3632
      %v3634 = vsel %vm3519, %v3597, 0.0
      %v3635 = vadd.f32 %v3633, %v3634
      %v3636 = vsel %vm3519, %v3598, 0.0
      %v3637 = vadd.f32 %v3635, %v3636
      %v3638 = vsel %vm3519, %v3599, 0.0
      %v3639 = vadd.f32 %v3637, %v3638
      %v3640 = vsel %vm3519, %v3600, 0.0
      %v3641 = vadd.f32 %v3639, %v3640
      %v3642 = vsel %vm3519, %v3601, 0.0
      %v3643 = vadd.f32 %v3641, %v3642
      %v3644 = vsel %vm3519, %v3602, 0.0
      %v3645 = vadd.f32 %v3643, %v3644
      %v3646 = vsel %vm3519, %v3603, 0.0
      %v3647 = vadd.f32 %v3645, %v3646
      %v3648 = vsel %vm3519, %v3604, 0.0
      %v3649 = vadd.f32 %v3647, %v3648
      %v3650 = vsel %vm3519, %v3605, 0.0
      %v3651 = vadd.f32 %v3649, %v3650
      %v3652 = vsel %vm3519, %v3606, 0.0
      %v3653 = vadd.f32 %v3651, %v3652
      %v3654 = vsel %vm3519, %v3607, 0.0
      %v3655 = vadd.f32 %v3653, %v3654
      %v3656 = vsel %vm3519, %v3608, 0.0
      %v3657 = vadd.f32 %v3655, %v3656
      %v3658 = vsel %vm3519, %v3609, 0.0
      %v3659 = vadd.f32 %v3657, %v3658
      %v3660 = vsel %vm3519, %v3610, 0.0
      %v3661 = vadd.f32 %v3659, %v3660
      %v3662 = vsel %vm3519, %v3611, 0.0
      %v3663 = vadd.f32 %v3661, %v3662
      %v3664 = vsel %vm3519, %v3612, 0.0
      %v3665 = vadd.f32 %v3663, %v3664
      %v3666 = vsel %vm3519, %v3613, 0.0
      %v3667 = vadd.f32 %v3665, %v3666
      %v3668 = vsel %vm3519, %v3614, 0.0
      %v3669 = vadd.f32 %v3667, %v3668
      %v3670 = vsel %vm3519, %v3615, 0.0
      %v3671 = vadd.f32 %v3669, %v3670
      %v3672 = vsel %vm3519, %v3616, 0.0
      %v3673 = vadd.f32 %v3671, %v3672
      %v3674 = vsel %vm3519, %v3617, 0.0
      %v3675 = vadd.f32 %v3673, %v3674
      %v3676 = vsel %vm3519, %v3618, 0.0
      %v3677 = vadd.f32 %v3675, %v3676
      %v3678 = vsel %vm3519, %v3619, 0.0
      %v3679 = vadd.f32 %v3677, %v3678
      %v3680 = vsel %vm3519, %v3620, 0.0
      %v3681 = vadd.f32 %v3679, %v3680
      %v3682 = vsel %vm3519, %v3621, 0.0
      %v3683 = vadd.f32 %v3681, %v3682
      %v3684 = vsel %vm3519, %v3622, 0.0
      %v3685 = vadd.f32 %v3683, %v3684
      %v3686 = vrot.slane %v3685, 4
      %v3687 = vadd.f32 %v3685, %v3686
      %v3688 = vrot.slane %v3687, 2
      %v3689 = vadd.f32 %v3687, %v3688
      %v3690 = vrot.slane %v3689, 1
      %v3691 = vadd.f32 %v3689, %v3690
      %3692 = vst.msk [vmem:[%s492 + $0x1] sm:$0x1] %vm3589, %v3691
      %s3693 = smul.u32 16, %s25
      %p3694 = scmp.lt.s32.totalorder %s24, 1
      %s3695 = scalar_select %p3694, %s24, 1
      %p3696 = scmp.lt.s32.totalorder %s3693, 15
      %s3697 = scalar_select %p3696, %s3693, 15
      %s3698 = smul.addr %s3697, 2
      %s3699 = smul.addr %s3695, 32
      %s3700 = sadd.s32 %s3698, %s3699
      %s3701 = smul.addr %s3700, 4
      %s3702 = scalar_lea.vmem %s7, %s3701
      %p3703 = scmp.lt.s32.totalorder %s24, 1
      %s3704 = scalar_select %p3703, %s24, 1
      %p3705 = scmp.lt.s32.totalorder %s25, 0
      %s3706 = scalar_select %p3705, %s25, 0
      %s3707 = sadd.s32 %s3706, %s3704
      %s3708 = smul.addr %s3707, 2
      %s3709 = scalar_lea.vmem %s8, %s3708
      // Predicated region
      $region49: #{pre_activate_double_conv.2} parent=47 // pred_check
        %p3710 = pneg %p236
      $region50: #{pre_activate_double_conv.2} parent=47 // pred_check_branch
        %3712 = sbr.rel (%p3710) target = $region52
      $region51: #{pre_activate_double_conv.2} parent=47 // pred_region
        %s3713 = smul.u32 16, %s25
      $region52: #{pre_activate_double_conv.2} parent=47 // pred_fallthru
        _
      // Predicated region
      $region53: #{pre_activate_double_conv.2} parent=47 // pred_check
        %p3714 = pneg %p264
      $region54: #{pre_activate_double_conv.2} parent=47 // pred_check_branch
        %3716 = sbr.rel (%p3714) target = $region56
      $region55: #{pre_activate_double_conv.2} parent=47 // pred_region
        _
      $region56: #{pre_activate_double_conv.2} parent=47 // pred_fallthru
        _
    $region48: #{pre_activate_double_conv.2} parent=5 // pred_fallthru
      _
    %p3717 = scmp.le.s32.totalorder 2, %s15
    // Predicated region
    $region57: #{pre_activate_double_conv.2} parent=5 // pred_check
      %p3718 = pneg %p3717
    $region58: #{pre_activate_double_conv.2} parent=5 // pred_check_branch
      %3720 = sbr.rel (%p3718) target = $region60
    $region59: #{pre_activate_double_conv.2} parent=5 // pred_region
      %s3721 = ssub.s32 %s15, 2
      // Predicated region
      $region61: #{pre_activate_double_conv.2} parent=59 // pred_check
        %p3722 = pneg %p242
      $region62: #{pre_activate_double_conv.2} parent=59 // pred_check_branch
        %3724 = sbr.rel (%p3722) target = $region64
      $region63: #{pre_activate_double_conv.2} parent=59 // pred_region
        %s3725 = smul.u32 16, %s27
        %p3726 = scmp.lt.s32.totalorder %s26, 1
        %s3727 = scalar_select %p3726, %s26, 1
        %p3728 = scmp.lt.s32.totalorder %s3725, 15
        %s3729 = scalar_select %p3728, %s3725, 15
        %s3730 = smul.addr %s3729, 2
        %s3731 = smul.addr %s3727, 32
        %s3732 = sadd.s32 %s3730, %s3731
        %s3733 = smul.addr %s3732, 4
        %s3734 = scalar_lea.vmem %s7, %s3733
      $region64: #{pre_activate_double_conv.2} parent=59 // pred_fallthru
        _
      // Predicated region
      $region65: #{pre_activate_double_conv.2} parent=59 // pred_check
        %p3735 = pneg %p270
      $region66: #{pre_activate_double_conv.2} parent=59 // pred_check_branch
        %3737 = sbr.rel (%p3735) target = $region68
      $region67: #{pre_activate_double_conv.2} parent=59 // pred_region
        %p3738 = scmp.lt.s32.totalorder %s26, 1
        %s3739 = scalar_select %p3738, %s26, 1
        %p3740 = scmp.lt.s32.totalorder %s27, 0
        %s3741 = scalar_select %p3740, %s27, 0
        %s3742 = sadd.s32 %s3741, %s3739
        %s3743 = smul.addr %s3742, 2
        %s3744 = scalar_lea.vmem %s8, %s3743
      $region68: #{pre_activate_double_conv.2} parent=59 // pred_fallthru
        _
    $region60: #{pre_activate_double_conv.2} parent=5 // pred_fallthru
      _
  $region6: #{pre_activate_double_conv.2} parent=0 // loop_footer
    %s19 = sadd.s32 1, %s15
  $region7: #{pre_activate_double_conv.2} parent=0 // loop_footer_branch
    %14 = sbr.rel target = $region3
  $region8: #{pre_activate_double_conv.2} parent=0 // loop_exit
    _

</llo_original>
